<compile_context>
chip_gen: v5e
topology: v5e:2x2
jax: 0.10.0
libtpu: 0.0.40
codegen_flags: <defaults>
</compile_context>

<pallas_src>
import functools

import jax
import jax.numpy as jnp
from jax.experimental import pallas as pl
from jax.experimental.pallas import tpu as pltpu

SHRINK_EPS = 1e-12


# ----------------------------------------------------------------------------
# Shared helpers
# ----------------------------------------------------------------------------
def _bf16_dot(a, b):
    # bf16 operands, f32 accumulation (MXU native path on v6e/v7x).
    return jnp.dot(a.astype(jnp.bfloat16), b.astype(jnp.bfloat16),
                   preferred_element_type=jnp.float32)


# ----------------------------------------------------------------------------
# Pallas kernel
# ----------------------------------------------------------------------------
def memae_kernel(shrink_thres, bblk, x_ref, *refs):
    # refs: 10 LSTM weight refs, bias_pack, mem, w_fc, 2 outputs, 10 scratch.
    wih = [refs[2 * i] for i in range(5)]       # (Cin, 4H) each
    whh = [refs[2 * i + 1] for i in range(5)]   # (H, 4H) each
    bias_ref, mem_ref, wfc_ref = refs[10], refs[11], refs[12]
    fc_out_ref, att_out_ref = refs[13], refs[14]
    scratch = refs[15:]
    gate_refs = [scratch[2 * i] for i in range(5)]     # (L*Bblk, 4H)
    seq_refs = [scratch[2 * i + 1] for i in range(5)]  # (L*Bblk, H)

    x = x_ref[0]                                 # (L*Bblk, V), time-major
    seq_len = x.shape[0] // bblk                 # static python int

    # --- unpack the packed per-channel bias vector (static offsets) ---------
    widths = [whh[i].shape[1] for i in range(5)] + [wfc_ref.shape[1]]
    biases, off = [], 0
    for w in widths:
        biases.append(bias_ref[:, off:off + w])  # (1, w)
        off += w

    def sigmoid_fast(v):
        # exp on the EUP, reciprocal on the EUP (approx) -> no VALU divide.
        return pl.reciprocal(1.0 + jnp.exp(-v), approx=True)

    # --- one LSTM layer: fused gate projection + unrolled recurrence --------
    # Gate columns were pre-permuted in glue code to (i, f, o, g).
    def lstm(xseq, wih_ref, whh_ref, bias, gate_ref, out_ref):
        H = whh_ref.shape[0]
        # All time-steps' input projections in a single MXU matmul.
        gate_ref[...] = _bf16_dot(xseq, wih_ref[...]) + bias     # (L*Bblk, 4H)
        w_hh = whh_ref[...].astype(jnp.bfloat16)                 # hoisted

        def step(t, carry):
            h, c = carry
            row = pl.multiple_of(t * bblk, bblk)
            g = gate_ref[pl.ds(row, bblk), :] + jnp.dot(
                h.astype(jnp.bfloat16), w_hh,
                preferred_element_type=jnp.float32)              # (Bblk, 4H)
            z = sigmoid_fast(g[:, 0:3 * H])                      # one wide sigmoid
            gg = jnp.tanh(g[:, 3 * H:4 * H])                     # one tanh
            i = z[:, 0:H]
            f = z[:, H:2 * H]
            o = z[:, 2 * H:3 * H]
            c = f * c + i * gg
            h = o * jnp.tanh(c)
            out_ref[pl.ds(row, bblk), :] = h
            return (h, c)

        zero = jnp.zeros((bblk, H), jnp.float32)
        jax.lax.fori_loop(0, seq_len, step, (zero, zero), unroll=True)
        return out_ref[...]                                      # (L*Bblk, H)

    # --- encoder -------------------------------------------------------------
    h1 = jnp.maximum(lstm(x, wih[0], whh[0], biases[0], gate_refs[0], seq_refs[0]), 0.0)
    h2 = jnp.maximum(lstm(h1, wih[1], whh[1], biases[1], gate_refs[1], seq_refs[1]), 0.0)
    latent = lstm(h2, wih[2], whh[2], biases[2], gate_refs[2], seq_refs[2])  # (L*Bblk, C3)

    # --- memory module (MemAE MemoryUnit) ------------------------------------
    mem_bf = mem_ref[...].astype(jnp.bfloat16)                   # (M, C3)
    logits = jax.lax.dot_general(
        latent.astype(jnp.bfloat16), mem_bf,
        (((1,), (1,)), ((), ())), preferred_element_type=jnp.float32)  # (L*Bblk, M)
    lmax = jnp.max(logits, axis=-1, keepdims=True)
    e = jnp.exp(logits - lmax)
    att = e * pl.reciprocal(jnp.sum(e, axis=-1, keepdims=True), approx=True)
    # hard_shrink_relu: denominator can be ~1e-12 -> exact division.
    att = (jnp.maximum(att - shrink_thres, 0.0) * att
           / (jnp.abs(att - shrink_thres) + SHRINK_EPS))
    # L1 re-normalization (F.normalize p=1): exact division.
    att = att / jnp.maximum(jnp.sum(jnp.abs(att), axis=-1, keepdims=True), SHRINK_EPS)
    zmem = jnp.dot(att.astype(jnp.bfloat16), mem_bf,
                   preferred_element_type=jnp.float32)           # (L*Bblk, C3)

    # --- decoder + time-distributed Linear -----------------------------------
    d1 = jnp.maximum(lstm(zmem, wih[3], whh[3], biases[3], gate_refs[3], seq_refs[3]), 0.0)
    d2 = jnp.maximum(lstm(d1, wih[4], whh[4], biases[4], gate_refs[4], seq_refs[4]), 0.0)
    fc = _bf16_dot(d2, wfc_ref[...]) + biases[5]                 # (L*Bblk, V)

    # Outputs written in the kernel's natural time-major layout (no in-kernel
    # transposes); the wrapper does the final (B,L,V)/(B,M,L) permutes.
    fc_out_ref[...] = fc[None]
    att_out_ref[...] = att[None]


# ----------------------------------------------------------------------------
# Wrapper
# ----------------------------------------------------------------------------
def memae_forward(x, params, shrink_thres=0.0025, batch_block=None):
    B, L, V = x.shape
    if batch_block is None:
        batch_block = 1
        for cand in (8, 4, 2, 1):
            # keep >= 2 grid steps when possible (v7x has 2 TensorCores)
            if cand <= max(1, B // 2) and B % cand == 0:
                batch_block = cand
                break
    assert B % batch_block == 0, "batch must be divisible by batch_block"
    Bblk = batch_block
    nb = B // Bblk

    w_ih, w_hh = params["w_ih"], params["w_hh"]
    mem, w_fc, bias_pack = params["mem"], params["w_fc"], params["bias_pack"]
    M = mem.shape[0]

    # Layout plumbing in the wrapper: each batch-block becomes one flat
    # time-major (L*Bblk, V) slab so the kernel never transposes.
    x_tm = (x.reshape(nb, Bblk, L, V)
             .transpose(0, 2, 1, 3)
             .reshape(nb, L * Bblk, V))

    inputs = [x_tm]
    in_specs = [pl.BlockSpec((1, L * Bblk, V), lambda b: (b, 0, 0))]
    for wi, wh in zip(w_ih, w_hh):
        inputs += [wi, wh]
        in_specs += [pl.BlockSpec(wi.shape, lambda b: (0, 0)),
                     pl.BlockSpec(wh.shape, lambda b: (0, 0))]
    inputs += [bias_pack, mem, w_fc]
    in_specs += [pl.BlockSpec(bias_pack.shape, lambda b: (0, 0)),
                 pl.BlockSpec(mem.shape, lambda b: (0, 0)),
                 pl.BlockSpec(w_fc.shape, lambda b: (0, 0))]

    scratch_shapes = []
    for wh in w_hh:
        H = wh.shape[0]
        scratch_shapes += [pltpu.VMEM((L * Bblk, 4 * H), jnp.float32),  # gate proj
                           pltpu.VMEM((L * Bblk, H), jnp.float32)]      # hidden seq

    grid_spec = pltpu.PrefetchScalarGridSpec(
        num_scalar_prefetch=0,
        grid=(nb,),
        in_specs=in_specs,
        out_specs=(pl.BlockSpec((1, L * Bblk, V), lambda b: (b, 0, 0)),
                   pl.BlockSpec((1, L * Bblk, M), lambda b: (b, 0, 0))),
        scratch_shapes=scratch_shapes)

    fc_flat, att_flat = pl.pallas_call(
        functools.partial(memae_kernel, shrink_thres, Bblk),
        out_shape=(jax.ShapeDtypeStruct((nb, L * Bblk, V), jnp.float32),
                   jax.ShapeDtypeStruct((nb, L * Bblk, M), jnp.float32)),
        grid_spec=grid_spec,
        compiler_params=pltpu.CompilerParams(
            dimension_semantics=("parallel",),
            vmem_limit_bytes=32 * 1024 * 1024),
    )(*inputs)

    # Undo the time-major block layout (cheap XLA ops on tiny arrays).
    fc_out = (fc_flat.reshape(nb, L, Bblk, V)
              .transpose(0, 2, 1, 3)
              .reshape(B, L, V))
    atten_weight = (att_flat.reshape(nb, L, Bblk, M)
                    .transpose(0, 2, 3, 1)
                    .reshape(B, M, L))
    return fc_out, atten_weight


# ----------------------------------------------------------------------------
# Pure-JAX reference (same math / same (i,f,o,g) parameter layout, exact
# sigmoid and exact divisions).
# ----------------------------------------------------------------------------
def _sigmoid_exact(x):
    return 1.0 / (1.0 + jnp.exp(-x))


def _lstm_ref(x, w_ih, w_hh, b):
    B, L, Cin = x.shape
    H = w_hh.shape[0]
    xp = _bf16_dot(x.reshape(B * L, Cin), w_ih).reshape(B, L, 4 * H) + b

    def step(carry, gt):                      # gt: (B, 4H), gates in (i,f,o,g)
        h, c = carry
        g = gt + jnp.dot(h.astype(jnp.bfloat16), w_hh.astype(jnp.bfloat16),
                         preferred_element_type=jnp.float32)
        z = _sigmoid_exact(g[:, 0:3 * H])
        i, f, o = z[:, 0:H], z[:, H:2 * H], z[:, 2 * H:3 * H]
        gg = jnp.tanh(g[:, 3 * H:4 * H])
        c = f * c + i * gg
        h = o * jnp.tanh(c)
        return (h, c), h

    zero = jnp.zeros((B, H), jnp.float32)
    _, ys = jax.lax.scan(step, (zero, zero), jnp.swapaxes(xp, 0, 1))
    return jnp.swapaxes(ys, 0, 1)             # (B, L, H)


def memae_reference(x, params, shrink_thres=0.0025):
    w_ih, w_hh, biases = params["w_ih"], params["w_hh"], params["bias"]
    mem, w_fc, b_fc = params["mem"], params["w_fc"], params["b_fc"]
    B, L, _ = x.shape
    M, C3 = mem.shape

    h = jnp.maximum(_lstm_ref(x, w_ih[0], w_hh[0], biases[0]), 0.0)
    h = jnp.maximum(_lstm_ref(h, w_ih[1], w_hh[1], biases[1]), 0.0)
    latent = _lstm_ref(h, w_ih[2], w_hh[2], biases[2])           # (B, L, C3)

    hf = latent.reshape(B * L, C3)
    logits = jax.lax.dot_general(hf.astype(jnp.bfloat16), mem.astype(jnp.bfloat16),
                                 (((1,), (1,)), ((), ())),
                                 preferred_element_type=jnp.float32)
    att = jax.nn.softmax(logits, axis=-1)
    att = (jnp.maximum(att - shrink_thres, 0.0) * att
           / (jnp.abs(att - shrink_thres) + SHRINK_EPS))
    att = att / jnp.maximum(jnp.sum(jnp.abs(att), axis=-1, keepdims=True), SHRINK_EPS)
    z = _bf16_dot(att, mem).reshape(B, L, C3)

    d = jnp.maximum(_lstm_ref(z, w_ih[3], w_hh[3], biases[3]), 0.0)
    d = jnp.maximum(_lstm_ref(d, w_ih[4], w_hh[4], biases[4]), 0.0)
    Hd = d.shape[-1]
    fc = (_bf16_dot(d.reshape(B * L, Hd), w_fc) + b_fc).reshape(B, L, -1)
    return fc, jnp.transpose(att.reshape(B, L, M), (0, 2, 1))


# ----------------------------------------------------------------------------
# Deterministic synthetic parameters (PyTorch layouts converted in glue code;
# gate columns permuted once from torch (i,f,g,o) to (i,f,o,g)).
# ----------------------------------------------------------------------------
def init_params(key, vec_len, hidden, mem_dim):
    H1, H2, H3 = hidden, hidden // 2, hidden // 4
    layer_dims = [(vec_len, H1), (H1, H2), (H2, H3), (H3, H2), (H2, H1)]
    keys = jax.random.split(key, 4 * len(layer_dims) + 3)

    def w(k, shape, scale=0.1):
        return (scale * jax.random.normal(k, shape)).astype(jnp.float32)

    def reorder(a):  # last axis = 4h in torch (i,f,g,o) order -> (i,f,o,g)
        h = a.shape[-1] // 4
        return jnp.concatenate(
            [a[..., 0:2 * h], a[..., 3 * h:4 * h], a[..., 2 * h:3 * h]], axis=-1)

    p = {"w_ih": [], "w_hh": [], "bias": []}
    ki = 0
    for (cin, h) in layer_dims:
        w_ih = w(keys[ki], (4 * h, cin)); ki += 1     # torch weight_ih_l0
        w_hh = w(keys[ki], (4 * h, h)); ki += 1       # torch weight_hh_l0
        b_ih = w(keys[ki], (4 * h,)); ki += 1
        b_hh = w(keys[ki], (4 * h,)); ki += 1
        p["w_ih"].append(reorder(jnp.transpose(w_ih)))              # (cin, 4h)
        p["w_hh"].append(reorder(jnp.transpose(w_hh)))              # (h, 4h)
        p["bias"].append(reorder((b_ih + b_hh).reshape(1, -1)))     # fold b_ih + b_hh
    p["mem"] = w(keys[ki], (mem_dim, H3)); ki += 1    # MemoryUnit weight (M, fea_dim)
    w_fc = w(keys[ki], (vec_len, hidden)); ki += 1    # torch Linear (out, in)
    b_fc = w(keys[ki], (vec_len,)); ki += 1
    p["w_fc"] = jnp.transpose(w_fc)                   # (hidden, vec_len)
    p["b_fc"] = b_fc.reshape(1, -1)
    # pack all tiny per-channel vectors into a single lane-contiguous input
    p["bias_pack"] = jnp.concatenate(p["bias"] + [p["b_fc"]], axis=1)
    return p


if __name__ == "__main__":
    B, SEQ_LEN, VEC_LEN, HIDDEN, MEM_DIM = 8, 16, 4, 32, 32
    SHRINK = 0.0025

    key = jax.random.PRNGKey(0)
    kx, kp = jax.random.split(key)
    x = jax.random.normal(kx, (B, SEQ_LEN, VEC_LEN), dtype=jnp.float32)
    params = init_params(kp, VEC_LEN, HIDDEN, MEM_DIM)

    # Bblk=4 -> grid=(2,) "parallel": batch-blocked recurrence, both v7x TCs busy.
    fc_out, atten_weight = memae_forward(x, params, shrink_thres=SHRINK, batch_block=4)
    jax.block_until_ready((fc_out, atten_weight))

    assert fc_out.shape == (B, SEQ_LEN, VEC_LEN)
    assert atten_weight.shape == (B, MEM_DIM, SEQ_LEN)

    ref_fc, ref_att = memae_reference(x, params, shrink_thres=SHRINK)
    assert bool(jnp.all(jnp.isfinite(fc_out))) and bool(jnp.all(jnp.isfinite(atten_weight)))
    assert bool(jnp.allclose(fc_out, ref_fc, atol=1e-2, rtol=1e-2))
    assert bool(jnp.allclose(atten_weight, ref_att, atol=5e-3, rtol=5e-3))

    print("KERNEL_OK")
</pallas_src>

<mosaic_0001>
module attributes {stable_mosaic.version = 11 : i64} {
  func.func @memae_kernel(%arg0: i32, %arg1: memref<1x64x4xf32, #tpu.memory_space<vmem>>, %arg2: memref<4x128xf32, #tpu.memory_space<vmem>>, %arg3: memref<32x128xf32, #tpu.memory_space<vmem>>, %arg4: memref<32x64xf32, #tpu.memory_space<vmem>>, %arg5: memref<16x64xf32, #tpu.memory_space<vmem>>, %arg6: memref<16x32xf32, #tpu.memory_space<vmem>>, %arg7: memref<8x32xf32, #tpu.memory_space<vmem>>, %arg8: memref<8x64xf32, #tpu.memory_space<vmem>>, %arg9: memref<16x64xf32, #tpu.memory_space<vmem>>, %arg10: memref<16x128xf32, #tpu.memory_space<vmem>>, %arg11: memref<32x128xf32, #tpu.memory_space<vmem>>, %arg12: memref<1x420xf32, #tpu.memory_space<vmem>>, %arg13: memref<32x8xf32, #tpu.memory_space<vmem>>, %arg14: memref<32x4xf32, #tpu.memory_space<vmem>>, %arg15: memref<1x64x4xf32, #tpu.memory_space<vmem>>, %arg16: memref<1x64x32xf32, #tpu.memory_space<vmem>>, %arg17: memref<64x128xf32, #tpu.memory_space<vmem>>, %arg18: memref<64x32xf32, #tpu.memory_space<vmem>>, %arg19: memref<64x64xf32, #tpu.memory_space<vmem>>, %arg20: memref<64x16xf32, #tpu.memory_space<vmem>>, %arg21: memref<64x32xf32, #tpu.memory_space<vmem>>, %arg22: memref<64x8xf32, #tpu.memory_space<vmem>>, %arg23: memref<64x64xf32, #tpu.memory_space<vmem>>, %arg24: memref<64x16xf32, #tpu.memory_space<vmem>>, %arg25: memref<64x128xf32, #tpu.memory_space<vmem>>, %arg26: memref<64x32xf32, #tpu.memory_space<vmem>>) attributes {dimension_semantics = [#tpu.dimension_semantics<parallel>], iteration_bounds = array<i64: 2>, scalar_prefetch = 0 : i64, scratch_operands = 10 : i64, tpu.core_type = #tpu.core_type<tc>, window_params = [{transform_indices = @transform_0, window_bounds = array<i64: 1, 64, 4>}, {pipeline_mode = #tpu.pipeline_mode<synchronous>, transform_indices = @transform_1, window_bounds = array<i64: 4, 128>}, {pipeline_mode = #tpu.pipeline_mode<synchronous>, transform_indices = @transform_2, window_bounds = array<i64: 32, 128>}, {pipeline_mode = #tpu.pipeline_mode<synchronous>, transform_indices = @transform_3, window_bounds = array<i64: 32, 64>}, {pipeline_mode = #tpu.pipeline_mode<synchronous>, transform_indices = @transform_4, window_bounds = array<i64: 16, 64>}, {pipeline_mode = #tpu.pipeline_mode<synchronous>, transform_indices = @transform_5, window_bounds = array<i64: 16, 32>}, {pipeline_mode = #tpu.pipeline_mode<synchronous>, transform_indices = @transform_6, window_bounds = array<i64: 8, 32>}, {pipeline_mode = #tpu.pipeline_mode<synchronous>, transform_indices = @transform_7, window_bounds = array<i64: 8, 64>}, {pipeline_mode = #tpu.pipeline_mode<synchronous>, transform_indices = @transform_8, window_bounds = array<i64: 16, 64>}, {pipeline_mode = #tpu.pipeline_mode<synchronous>, transform_indices = @transform_9, window_bounds = array<i64: 16, 128>}, {pipeline_mode = #tpu.pipeline_mode<synchronous>, transform_indices = @transform_10, window_bounds = array<i64: 32, 128>}, {pipeline_mode = #tpu.pipeline_mode<synchronous>, transform_indices = @transform_11, window_bounds = array<i64: 1, 420>}, {pipeline_mode = #tpu.pipeline_mode<synchronous>, transform_indices = @transform_12, window_bounds = array<i64: 32, 8>}, {pipeline_mode = #tpu.pipeline_mode<synchronous>, transform_indices = @transform_13, window_bounds = array<i64: 32, 4>}, {transform_indices = @transform_14, window_bounds = array<i64: 1, 64, 4>}, {transform_indices = @transform_15, window_bounds = array<i64: 1, 64, 32>}]} {
    %c0 = arith.constant 0 : index
    %c0_0 = arith.constant 0 : index
    %c0_1 = arith.constant 0 : index
    %0 = vector.load %arg1[%c0, %c0_0, %c0_1] : memref<1x64x4xf32, #tpu.memory_space<vmem>>, vector<1x64x4xf32>
    %1 = vector.shape_cast %0 : vector<1x64x4xf32> to vector<64x4xf32>
    %c0_2 = arith.constant 0 : index
    %c0_3 = arith.constant 0 : index
    %2 = vector.load %arg12[%c0_2, %c0_3] : memref<1x420xf32, #tpu.memory_space<vmem>>, vector<1x128xf32>
    %c0_4 = arith.constant 0 : index
    %c128 = arith.constant 128 : index
    %3 = vector.load %arg12[%c0_4, %c128] : memref<1x420xf32, #tpu.memory_space<vmem>>, vector<1x64xf32>
    %c0_5 = arith.constant 0 : index
    %c192 = arith.constant 192 : index
    %4 = vector.load %arg12[%c0_5, %c192] : memref<1x420xf32, #tpu.memory_space<vmem>>, vector<1x32xf32>
    %c0_6 = arith.constant 0 : index
    %c224 = arith.constant 224 : index
    %5 = vector.load %arg12[%c0_6, %c224] : memref<1x420xf32, #tpu.memory_space<vmem>>, vector<1x64xf32>
    %c0_7 = arith.constant 0 : index
    %c288 = arith.constant 288 : index
    %6 = vector.load %arg12[%c0_7, %c288] : memref<1x420xf32, #tpu.memory_space<vmem>>, vector<1x128xf32>
    %c0_8 = arith.constant 0 : index
    %c416 = arith.constant 416 : index
    %7 = vector.load %arg12[%c0_8, %c416] : memref<1x420xf32, #tpu.memory_space<vmem>>, vector<1x4xf32>
    %c0_9 = arith.constant 0 : index
    %c0_10 = arith.constant 0 : index
    %8 = vector.load %arg2[%c0_9, %c0_10] : memref<4x128xf32, #tpu.memory_space<vmem>>, vector<4x128xf32>
    %9 = arith.truncf %1 : vector<64x4xf32> to vector<64x4xbf16>
    %10 = arith.truncf %8 : vector<4x128xf32> to vector<4x128xbf16>
    %cst = arith.constant dense<0.000000e+00> : vector<64x128xf32>
    %11 = tpu.matmul %9, %10, %cst {dimension_numbers = #tpu.dot_dimension_numbers<[1], [0], [0], [1], [0, 0, 1, 1], [], []>} : vector<64x4xbf16>, vector<4x128xbf16>, vector<64x128xf32> -> vector<64x128xf32>
    %12 = vector.broadcast %2 : vector<1x128xf32> to vector<64x128xf32>
    %13 = arith.addf %11, %12 : vector<64x128xf32>
    %c0_11 = arith.constant 0 : index
    %c0_12 = arith.constant 0 : index
    %14 = vector.load %arg17[%c0_11, %c0_12] : memref<64x128xf32, #tpu.memory_space<vmem>>, vector<64x128xf32>
    tpu.vector_store %arg17[%c0_11, %c0_12], %13 {strides = array<i32>} : memref<64x128xf32, #tpu.memory_space<vmem>>, vector<64x128xf32>,
    %c0_13 = arith.constant 0 : index
    %c0_14 = arith.constant 0 : index
    %15 = vector.load %arg3[%c0_13, %c0_14] : memref<32x128xf32, #tpu.memory_space<vmem>>, vector<32x128xf32>
    %16 = arith.truncf %15 : vector<32x128xf32> to vector<32x128xbf16>
    %cst_15 = arith.constant 0.000000e+00 : f32
    %17 = vector.broadcast %cst_15 : f32 to vector<4x32xf32>
    %c0_i32 = arith.constant 0 : i32
    %c4_i32 = arith.constant 4 : i32
    %18 = arith.muli %c0_i32, %c4_i32 : i32
    %19 = tpu.assume_multiple %18, 4 : i32
    %20 = arith.index_cast %19 : i32 to index
    %c0_16 = arith.constant 0 : index
    %21 = vector.load %arg17[%20, %c0_16] : memref<64x128xf32, #tpu.memory_space<vmem>>, vector<4x128xf32>
    %22 = arith.truncf %17 : vector<4x32xf32> to vector<4x32xbf16>
    %cst_17 = arith.constant dense<0.000000e+00> : vector<4x128xf32>
    %23 = tpu.matmul %22, %16, %cst_17 {dimension_numbers = #tpu.dot_dimension_numbers<[1], [0], [0], [1], [0, 0, 1, 1], [], []>} : vector<4x32xbf16>, vector<32x128xbf16>, vector<4x128xf32> -> vector<4x128xf32>
    %24 = arith.addf %21, %23 : vector<4x128xf32>
    %25 = vector.extract_strided_slice %24 {offsets = [0, 0], sizes = [4, 96], strides = [1, 1]} : vector<4x128xf32> to vector<4x96xf32>
    %cst_18 = arith.constant 0.000000e+00 : f32
    %26 = vector.broadcast %cst_18 : f32 to vector<4x96xf32>
    %27 = arith.subf %26, %25 : vector<4x96xf32>
    %28 = math.exp %27 : vector<4x96xf32>
    %cst_19 = arith.constant 1.000000e+00 : f32
    %29 = vector.broadcast %cst_19 : f32 to vector<4x96xf32>
    %30 = arith.addf %29, %28 : vector<4x96xf32>
    %31 = tpu.reciprocal %30 {approx = true} : vector<4x96xf32> -> vector<4x96xf32>
    %32 = vector.extract_strided_slice %24 {offsets = [0, 96], sizes = [4, 32], strides = [1, 1]} : vector<4x128xf32> to vector<4x32xf32>
    %33 = math.tanh %32 : vector<4x32xf32>
    %34 = vector.extract_strided_slice %31 {offsets = [0, 0], sizes = [4, 32], strides = [1, 1]} : vector<4x96xf32> to vector<4x32xf32>
    %35 = vector.extract_strided_slice %31 {offsets = [0, 32], sizes = [4, 32], strides = [1, 1]} : vector<4x96xf32> to vector<4x32xf32>
    %36 = vector.extract_strided_slice %31 {offsets = [0, 64], sizes = [4, 32], strides = [1, 1]} : vector<4x96xf32> to vector<4x32xf32>
    %37 = arith.mulf %35, %17 : vector<4x32xf32>
    %38 = arith.mulf %34, %33 : vector<4x32xf32>
    %39 = arith.addf %37, %38 : vector<4x32xf32>
    %40 = math.tanh %39 : vector<4x32xf32>
    %41 = arith.mulf %36, %40 : vector<4x32xf32>
    %42 = arith.index_cast %19 : i32 to index
    %c0_20 = arith.constant 0 : index
    %43 = vector.load %arg18[%42, %c0_20] : memref<64x32xf32, #tpu.memory_space<vmem>>, vector<4x32xf32>
    tpu.vector_store %arg18[%42, %c0_20], %41 {strides = array<i32>} : memref<64x32xf32, #tpu.memory_space<vmem>>, vector<4x32xf32>,
    %c1_i32 = arith.constant 1 : i32
    %c4_i32_21 = arith.constant 4 : i32
    %44 = arith.muli %c1_i32, %c4_i32_21 : i32
    %45 = tpu.assume_multiple %44, 4 : i32
    %46 = arith.index_cast %45 : i32 to index
    %c0_22 = arith.constant 0 : index
    %47 = vector.load %arg17[%46, %c0_22] : memref<64x128xf32, #tpu.memory_space<vmem>>, vector<4x128xf32>
    %48 = arith.truncf %41 : vector<4x32xf32> to vector<4x32xbf16>
    %cst_23 = arith.constant dense<0.000000e+00> : vector<4x128xf32>
    %49 = tpu.matmul %48, %16, %cst_23 {dimension_numbers = #tpu.dot_dimension_numbers<[1], [0], [0], [1], [0, 0, 1, 1], [], []>} : vector<4x32xbf16>, vector<32x128xbf16>, vector<4x128xf32> -> vector<4x128xf32>
    %50 = arith.addf %47, %49 : vector<4x128xf32>
    %51 = vector.extract_strided_slice %50 {offsets = [0, 0], sizes = [4, 96], strides = [1, 1]} : vector<4x128xf32> to vector<4x96xf32>
    %cst_24 = arith.constant 0.000000e+00 : f32
    %52 = vector.broadcast %cst_24 : f32 to vector<4x96xf32>
    %53 = arith.subf %52, %51 : vector<4x96xf32>
    %54 = math.exp %53 : vector<4x96xf32>
    %cst_25 = arith.constant 1.000000e+00 : f32
    %55 = vector.broadcast %cst_25 : f32 to vector<4x96xf32>
    %56 = arith.addf %55, %54 : vector<4x96xf32>
    %57 = tpu.reciprocal %56 {approx = true} : vector<4x96xf32> -> vector<4x96xf32>
    %58 = vector.extract_strided_slice %50 {offsets = [0, 96], sizes = [4, 32], strides = [1, 1]} : vector<4x128xf32> to vector<4x32xf32>
    %59 = math.tanh %58 : vector<4x32xf32>
    %60 = vector.extract_strided_slice %57 {offsets = [0, 0], sizes = [4, 32], strides = [1, 1]} : vector<4x96xf32> to vector<4x32xf32>
    %61 = vector.extract_strided_slice %57 {offsets = [0, 32], sizes = [4, 32], strides = [1, 1]} : vector<4x96xf32> to vector<4x32xf32>
    %62 = vector.extract_strided_slice %57 {offsets = [0, 64], sizes = [4, 32], strides = [1, 1]} : vector<4x96xf32> to vector<4x32xf32>
    %63 = arith.mulf %61, %39 : vector<4x32xf32>
    %64 = arith.mulf %60, %59 : vector<4x32xf32>
    %65 = arith.addf %63, %64 : vector<4x32xf32>
    %66 = math.tanh %65 : vector<4x32xf32>
    %67 = arith.mulf %62, %66 : vector<4x32xf32>
    %68 = arith.index_cast %45 : i32 to index
    %c0_26 = arith.constant 0 : index
    %69 = vector.load %arg18[%68, %c0_26] : memref<64x32xf32, #tpu.memory_space<vmem>>, vector<4x32xf32>
    tpu.vector_store %arg18[%68, %c0_26], %67 {strides = array<i32>} : memref<64x32xf32, #tpu.memory_space<vmem>>, vector<4x32xf32>,
    %c2_i32 = arith.constant 2 : i32
    %c4_i32_27 = arith.constant 4 : i32
    %70 = arith.muli %c2_i32, %c4_i32_27 : i32
    %71 = tpu.assume_multiple %70, 4 : i32
    %72 = arith.index_cast %71 : i32 to index
    %c0_28 = arith.constant 0 : index
    %73 = vector.load %arg17[%72, %c0_28] : memref<64x128xf32, #tpu.memory_space<vmem>>, vector<4x128xf32>
    %74 = arith.truncf %67 : vector<4x32xf32> to vector<4x32xbf16>
    %cst_29 = arith.constant dense<0.000000e+00> : vector<4x128xf32>
    %75 = tpu.matmul %74, %16, %cst_29 {dimension_numbers = #tpu.dot_dimension_numbers<[1], [0], [0], [1], [0, 0, 1, 1], [], []>} : vector<4x32xbf16>, vector<32x128xbf16>, vector<4x128xf32> -> vector<4x128xf32>
    %76 = arith.addf %73, %75 : vector<4x128xf32>
    %77 = vector.extract_strided_slice %76 {offsets = [0, 0], sizes = [4, 96], strides = [1, 1]} : vector<4x128xf32> to vector<4x96xf32>
    %cst_30 = arith.constant 0.000000e+00 : f32
    %78 = vector.broadcast %cst_30 : f32 to vector<4x96xf32>
    %79 = arith.subf %78, %77 : vector<4x96xf32>
    %80 = math.exp %79 : vector<4x96xf32>
    %cst_31 = arith.constant 1.000000e+00 : f32
    %81 = vector.broadcast %cst_31 : f32 to vector<4x96xf32>
    %82 = arith.addf %81, %80 : vector<4x96xf32>
    %83 = tpu.reciprocal %82 {approx = true} : vector<4x96xf32> -> vector<4x96xf32>
    %84 = vector.extract_strided_slice %76 {offsets = [0, 96], sizes = [4, 32], strides = [1, 1]} : vector<4x128xf32> to vector<4x32xf32>
    %85 = math.tanh %84 : vector<4x32xf32>
    %86 = vector.extract_strided_slice %83 {offsets = [0, 0], sizes = [4, 32], strides = [1, 1]} : vector<4x96xf32> to vector<4x32xf32>
    %87 = vector.extract_strided_slice %83 {offsets = [0, 32], sizes = [4, 32], strides = [1, 1]} : vector<4x96xf32> to vector<4x32xf32>
    %88 = vector.extract_strided_slice %83 {offsets = [0, 64], sizes = [4, 32], strides = [1, 1]} : vector<4x96xf32> to vector<4x32xf32>
    %89 = arith.mulf %87, %65 : vector<4x32xf32>
    %90 = arith.mulf %86, %85 : vector<4x32xf32>
    %91 = arith.addf %89, %90 : vector<4x32xf32>
    %92 = math.tanh %91 : vector<4x32xf32>
    %93 = arith.mulf %88, %92 : vector<4x32xf32>
    %94 = arith.index_cast %71 : i32 to index
    %c0_32 = arith.constant 0 : index
    %95 = vector.load %arg18[%94, %c0_32] : memref<64x32xf32, #tpu.memory_space<vmem>>, vector<4x32xf32>
    tpu.vector_store %arg18[%94, %c0_32], %93 {strides = array<i32>} : memref<64x32xf32, #tpu.memory_space<vmem>>, vector<4x32xf32>,
    %c3_i32 = arith.constant 3 : i32
    %c4_i32_33 = arith.constant 4 : i32
    %96 = arith.muli %c3_i32, %c4_i32_33 : i32
    %97 = tpu.assume_multiple %96, 4 : i32
    %98 = arith.index_cast %97 : i32 to index
    %c0_34 = arith.constant 0 : index
    %99 = vector.load %arg17[%98, %c0_34] : memref<64x128xf32, #tpu.memory_space<vmem>>, vector<4x128xf32>
    %100 = arith.truncf %93 : vector<4x32xf32> to vector<4x32xbf16>
    %cst_35 = arith.constant dense<0.000000e+00> : vector<4x128xf32>
    %101 = tpu.matmul %100, %16, %cst_35 {dimension_numbers = #tpu.dot_dimension_numbers<[1], [0], [0], [1], [0, 0, 1, 1], [], []>} : vector<4x32xbf16>, vector<32x128xbf16>, vector<4x128xf32> -> vector<4x128xf32>
    %102 = arith.addf %99, %101 : vector<4x128xf32>
    %103 = vector.extract_strided_slice %102 {offsets = [0, 0], sizes = [4, 96], strides = [1, 1]} : vector<4x128xf32> to vector<4x96xf32>
    %cst_36 = arith.constant 0.000000e+00 : f32
    %104 = vector.broadcast %cst_36 : f32 to vector<4x96xf32>
    %105 = arith.subf %104, %103 : vector<4x96xf32>
    %106 = math.exp %105 : vector<4x96xf32>
    %cst_37 = arith.constant 1.000000e+00 : f32
    %107 = vector.broadcast %cst_37 : f32 to vector<4x96xf32>
    %108 = arith.addf %107, %106 : vector<4x96xf32>
    %109 = tpu.reciprocal %108 {approx = true} : vector<4x96xf32> -> vector<4x96xf32>
    %110 = vector.extract_strided_slice %102 {offsets = [0, 96], sizes = [4, 32], strides = [1, 1]} : vector<4x128xf32> to vector<4x32xf32>
    %111 = math.tanh %110 : vector<4x32xf32>
    %112 = vector.extract_strided_slice %109 {offsets = [0, 0], sizes = [4, 32], strides = [1, 1]} : vector<4x96xf32> to vector<4x32xf32>
    %113 = vector.extract_strided_slice %109 {offsets = [0, 32], sizes = [4, 32], strides = [1, 1]} : vector<4x96xf32> to vector<4x32xf32>
    %114 = vector.extract_strided_slice %109 {offsets = [0, 64], sizes = [4, 32], strides = [1, 1]} : vector<4x96xf32> to vector<4x32xf32>
    %115 = arith.mulf %113, %91 : vector<4x32xf32>
    %116 = arith.mulf %112, %111 : vector<4x32xf32>
    %117 = arith.addf %115, %116 : vector<4x32xf32>
    %118 = math.tanh %117 : vector<4x32xf32>
    %119 = arith.mulf %114, %118 : vector<4x32xf32>
    %120 = arith.index_cast %97 : i32 to index
    %c0_38 = arith.constant 0 : index
    %121 = vector.load %arg18[%120, %c0_38] : memref<64x32xf32, #tpu.memory_space<vmem>>, vector<4x32xf32>
    tpu.vector_store %arg18[%120, %c0_38], %119 {strides = array<i32>} : memref<64x32xf32, #tpu.memory_space<vmem>>, vector<4x32xf32>,
    %c4_i32_39 = arith.constant 4 : i32
    %c4_i32_40 = arith.constant 4 : i32
    %122 = arith.muli %c4_i32_39, %c4_i32_40 : i32
    %123 = tpu.assume_multiple %122, 4 : i32
    %124 = arith.index_cast %123 : i32 to index
    %c0_41 = arith.constant 0 : index
    %125 = vector.load %arg17[%124, %c0_41] : memref<64x128xf32, #tpu.memory_space<vmem>>, vector<4x128xf32>
    %126 = arith.truncf %119 : vector<4x32xf32> to vector<4x32xbf16>
    %cst_42 = arith.constant dense<0.000000e+00> : vector<4x128xf32>
    %127 = tpu.matmul %126, %16, %cst_42 {dimension_numbers = #tpu.dot_dimension_numbers<[1], [0], [0], [1], [0, 0, 1, 1], [], []>} : vector<4x32xbf16>, vector<32x128xbf16>, vector<4x128xf32> -> vector<4x128xf32>
    %128 = arith.addf %125, %127 : vector<4x128xf32>
    %129 = vector.extract_strided_slice %128 {offsets = [0, 0], sizes = [4, 96], strides = [1, 1]} : vector<4x128xf32> to vector<4x96xf32>
    %cst_43 = arith.constant 0.000000e+00 : f32
    %130 = vector.broadcast %cst_43 : f32 to vector<4x96xf32>
    %131 = arith.subf %130, %129 : vector<4x96xf32>
    %132 = math.exp %131 : vector<4x96xf32>
    %cst_44 = arith.constant 1.000000e+00 : f32
    %133 = vector.broadcast %cst_44 : f32 to vector<4x96xf32>
    %134 = arith.addf %133, %132 : vector<4x96xf32>
    %135 = tpu.reciprocal %134 {approx = true} : vector<4x96xf32> -> vector<4x96xf32>
    %136 = vector.extract_strided_slice %128 {offsets = [0, 96], sizes = [4, 32], strides = [1, 1]} : vector<4x128xf32> to vector<4x32xf32>
    %137 = math.tanh %136 : vector<4x32xf32>
    %138 = vector.extract_strided_slice %135 {offsets = [0, 0], sizes = [4, 32], strides = [1, 1]} : vector<4x96xf32> to vector<4x32xf32>
    %139 = vector.extract_strided_slice %135 {offsets = [0, 32], sizes = [4, 32], strides = [1, 1]} : vector<4x96xf32> to vector<4x32xf32>
    %140 = vector.extract_strided_slice %135 {offsets = [0, 64], sizes = [4, 32], strides = [1, 1]} : vector<4x96xf32> to vector<4x32xf32>
    %141 = arith.mulf %139, %117 : vector<4x32xf32>
    %142 = arith.mulf %138, %137 : vector<4x32xf32>
    %143 = arith.addf %141, %142 : vector<4x32xf32>
    %144 = math.tanh %143 : vector<4x32xf32>
    %145 = arith.mulf %140, %144 : vector<4x32xf32>
    %146 = arith.index_cast %123 : i32 to index
    %c0_45 = arith.constant 0 : index
    %147 = vector.load %arg18[%146, %c0_45] : memref<64x32xf32, #tpu.memory_space<vmem>>, vector<4x32xf32>
    tpu.vector_store %arg18[%146, %c0_45], %145 {strides = array<i32>} : memref<64x32xf32, #tpu.memory_space<vmem>>, vector<4x32xf32>,
    %c5_i32 = arith.constant 5 : i32
    %c4_i32_46 = arith.constant 4 : i32
    %148 = arith.muli %c5_i32, %c4_i32_46 : i32
    %149 = tpu.assume_multiple %148, 4 : i32
    %150 = arith.index_cast %149 : i32 to index
    %c0_47 = arith.constant 0 : index
    %151 = vector.load %arg17[%150, %c0_47] : memref<64x128xf32, #tpu.memory_space<vmem>>, vector<4x128xf32>
    %152 = arith.truncf %145 : vector<4x32xf32> to vector<4x32xbf16>
    %cst_48 = arith.constant dense<0.000000e+00> : vector<4x128xf32>
    %153 = tpu.matmul %152, %16, %cst_48 {dimension_numbers = #tpu.dot_dimension_numbers<[1], [0], [0], [1], [0, 0, 1, 1], [], []>} : vector<4x32xbf16>, vector<32x128xbf16>, vector<4x128xf32> -> vector<4x128xf32>
    %154 = arith.addf %151, %153 : vector<4x128xf32>
    %155 = vector.extract_strided_slice %154 {offsets = [0, 0], sizes = [4, 96], strides = [1, 1]} : vector<4x128xf32> to vector<4x96xf32>
    %cst_49 = arith.constant 0.000000e+00 : f32
    %156 = vector.broadcast %cst_49 : f32 to vector<4x96xf32>
    %157 = arith.subf %156, %155 : vector<4x96xf32>
    %158 = math.exp %157 : vector<4x96xf32>
    %cst_50 = arith.constant 1.000000e+00 : f32
    %159 = vector.broadcast %cst_50 : f32 to vector<4x96xf32>
    %160 = arith.addf %159, %158 : vector<4x96xf32>
    %161 = tpu.reciprocal %160 {approx = true} : vector<4x96xf32> -> vector<4x96xf32>
    %162 = vector.extract_strided_slice %154 {offsets = [0, 96], sizes = [4, 32], strides = [1, 1]} : vector<4x128xf32> to vector<4x32xf32>
    %163 = math.tanh %162 : vector<4x32xf32>
    %164 = vector.extract_strided_slice %161 {offsets = [0, 0], sizes = [4, 32], strides = [1, 1]} : vector<4x96xf32> to vector<4x32xf32>
    %165 = vector.extract_strided_slice %161 {offsets = [0, 32], sizes = [4, 32], strides = [1, 1]} : vector<4x96xf32> to vector<4x32xf32>
    %166 = vector.extract_strided_slice %161 {offsets = [0, 64], sizes = [4, 32], strides = [1, 1]} : vector<4x96xf32> to vector<4x32xf32>
    %167 = arith.mulf %165, %143 : vector<4x32xf32>
    %168 = arith.mulf %164, %163 : vector<4x32xf32>
    %169 = arith.addf %167, %168 : vector<4x32xf32>
    %170 = math.tanh %169 : vector<4x32xf32>
    %171 = arith.mulf %166, %170 : vector<4x32xf32>
    %172 = arith.index_cast %149 : i32 to index
    %c0_51 = arith.constant 0 : index
    %173 = vector.load %arg18[%172, %c0_51] : memref<64x32xf32, #tpu.memory_space<vmem>>, vector<4x32xf32>
    tpu.vector_store %arg18[%172, %c0_51], %171 {strides = array<i32>} : memref<64x32xf32, #tpu.memory_space<vmem>>, vector<4x32xf32>,
    %c6_i32 = arith.constant 6 : i32
    %c4_i32_52 = arith.constant 4 : i32
    %174 = arith.muli %c6_i32, %c4_i32_52 : i32
    %175 = tpu.assume_multiple %174, 4 : i32
    %176 = arith.index_cast %175 : i32 to index
    %c0_53 = arith.constant 0 : index
    %177 = vector.load %arg17[%176, %c0_53] : memref<64x128xf32, #tpu.memory_space<vmem>>, vector<4x128xf32>
    %178 = arith.truncf %171 : vector<4x32xf32> to vector<4x32xbf16>
    %cst_54 = arith.constant dense<0.000000e+00> : vector<4x128xf32>
    %179 = tpu.matmul %178, %16, %cst_54 {dimension_numbers = #tpu.dot_dimension_numbers<[1], [0], [0], [1], [0, 0, 1, 1], [], []>} : vector<4x32xbf16>, vector<32x128xbf16>, vector<4x128xf32> -> vector<4x128xf32>
    %180 = arith.addf %177, %179 : vector<4x128xf32>
    %181 = vector.extract_strided_slice %180 {offsets = [0, 0], sizes = [4, 96], strides = [1, 1]} : vector<4x128xf32> to vector<4x96xf32>
    %cst_55 = arith.constant 0.000000e+00 : f32
    %182 = vector.broadcast %cst_55 : f32 to vector<4x96xf32>
    %183 = arith.subf %182, %181 : vector<4x96xf32>
    %184 = math.exp %183 : vector<4x96xf32>
    %cst_56 = arith.constant 1.000000e+00 : f32
    %185 = vector.broadcast %cst_56 : f32 to vector<4x96xf32>
    %186 = arith.addf %185, %184 : vector<4x96xf32>
    %187 = tpu.reciprocal %186 {approx = true} : vector<4x96xf32> -> vector<4x96xf32>
    %188 = vector.extract_strided_slice %180 {offsets = [0, 96], sizes = [4, 32], strides = [1, 1]} : vector<4x128xf32> to vector<4x32xf32>
    %189 = math.tanh %188 : vector<4x32xf32>
    %190 = vector.extract_strided_slice %187 {offsets = [0, 0], sizes = [4, 32], strides = [1, 1]} : vector<4x96xf32> to vector<4x32xf32>
    %191 = vector.extract_strided_slice %187 {offsets = [0, 32], sizes = [4, 32], strides = [1, 1]} : vector<4x96xf32> to vector<4x32xf32>
    %192 = vector.extract_strided_slice %187 {offsets = [0, 64], sizes = [4, 32], strides = [1, 1]} : vector<4x96xf32> to vector<4x32xf32>
    %193 = arith.mulf %191, %169 : vector<4x32xf32>
    %194 = arith.mulf %190, %189 : vector<4x32xf32>
    %195 = arith.addf %193, %194 : vector<4x32xf32>
    %196 = math.tanh %195 : vector<4x32xf32>
    %197 = arith.mulf %192, %196 : vector<4x32xf32>
    %198 = arith.index_cast %175 : i32 to index
    %c0_57 = arith.constant 0 : index
    %199 = vector.load %arg18[%198, %c0_57] : memref<64x32xf32, #tpu.memory_space<vmem>>, vector<4x32xf32>
    tpu.vector_store %arg18[%198, %c0_57], %197 {strides = array<i32>} : memref<64x32xf32, #tpu.memory_space<vmem>>, vector<4x32xf32>,
    %c7_i32 = arith.constant 7 : i32
    %c4_i32_58 = arith.constant 4 : i32
    %200 = arith.muli %c7_i32, %c4_i32_58 : i32
    %201 = tpu.assume_multiple %200, 4 : i32
    %202 = arith.index_cast %201 : i32 to index
    %c0_59 = arith.constant 0 : index
    %203 = vector.load %arg17[%202, %c0_59] : memref<64x128xf32, #tpu.memory_space<vmem>>, vector<4x128xf32>
    %204 = arith.truncf %197 : vector<4x32xf32> to vector<4x32xbf16>
    %cst_60 = arith.constant dense<0.000000e+00> : vector<4x128xf32>
    %205 = tpu.matmul %204, %16, %cst_60 {dimension_numbers = #tpu.dot_dimension_numbers<[1], [0], [0], [1], [0, 0, 1, 1], [], []>} : vector<4x32xbf16>, vector<32x128xbf16>, vector<4x128xf32> -> vector<4x128xf32>
    %206 = arith.addf %203, %205 : vector<4x128xf32>
    %207 = vector.extract_strided_slice %206 {offsets = [0, 0], sizes = [4, 96], strides = [1, 1]} : vector<4x128xf32> to vector<4x96xf32>
    %cst_61 = arith.constant 0.000000e+00 : f32
    %208 = vector.broadcast %cst_61 : f32 to vector<4x96xf32>
    %209 = arith.subf %208, %207 : vector<4x96xf32>
    %210 = math.exp %209 : vector<4x96xf32>
    %cst_62 = arith.constant 1.000000e+00 : f32
    %211 = vector.broadcast %cst_62 : f32 to vector<4x96xf32>
    %212 = arith.addf %211, %210 : vector<4x96xf32>
    %213 = tpu.reciprocal %212 {approx = true} : vector<4x96xf32> -> vector<4x96xf32>
    %214 = vector.extract_strided_slice %206 {offsets = [0, 96], sizes = [4, 32], strides = [1, 1]} : vector<4x128xf32> to vector<4x32xf32>
    %215 = math.tanh %214 : vector<4x32xf32>
    %216 = vector.extract_strided_slice %213 {offsets = [0, 0], sizes = [4, 32], strides = [1, 1]} : vector<4x96xf32> to vector<4x32xf32>
    %217 = vector.extract_strided_slice %213 {offsets = [0, 32], sizes = [4, 32], strides = [1, 1]} : vector<4x96xf32> to vector<4x32xf32>
    %218 = vector.extract_strided_slice %213 {offsets = [0, 64], sizes = [4, 32], strides = [1, 1]} : vector<4x96xf32> to vector<4x32xf32>
    %219 = arith.mulf %217, %195 : vector<4x32xf32>
    %220 = arith.mulf %216, %215 : vector<4x32xf32>
    %221 = arith.addf %219, %220 : vector<4x32xf32>
    %222 = math.tanh %221 : vector<4x32xf32>
    %223 = arith.mulf %218, %222 : vector<4x32xf32>
    %224 = arith.index_cast %201 : i32 to index
    %c0_63 = arith.constant 0 : index
    %225 = vector.load %arg18[%224, %c0_63] : memref<64x32xf32, #tpu.memory_space<vmem>>, vector<4x32xf32>
    tpu.vector_store %arg18[%224, %c0_63], %223 {strides = array<i32>} : memref<64x32xf32, #tpu.memory_space<vmem>>, vector<4x32xf32>,
    %c8_i32 = arith.constant 8 : i32
    %c4_i32_64 = arith.constant 4 : i32
    %226 = arith.muli %c8_i32, %c4_i32_64 : i32
    %227 = tpu.assume_multiple %226, 4 : i32
    %228 = arith.index_cast %227 : i32 to index
    %c0_65 = arith.constant 0 : index
    %229 = vector.load %arg17[%228, %c0_65] : memref<64x128xf32, #tpu.memory_space<vmem>>, vector<4x128xf32>
    %230 = arith.truncf %223 : vector<4x32xf32> to vector<4x32xbf16>
    %cst_66 = arith.constant dense<0.000000e+00> : vector<4x128xf32>
    %231 = tpu.matmul %230, %16, %cst_66 {dimension_numbers = #tpu.dot_dimension_numbers<[1], [0], [0], [1], [0, 0, 1, 1], [], []>} : vector<4x32xbf16>, vector<32x128xbf16>, vector<4x128xf32> -> vector<4x128xf32>
    %232 = arith.addf %229, %231 : vector<4x128xf32>
    %233 = vector.extract_strided_slice %232 {offsets = [0, 0], sizes = [4, 96], strides = [1, 1]} : vector<4x128xf32> to vector<4x96xf32>
    %cst_67 = arith.constant 0.000000e+00 : f32
    %234 = vector.broadcast %cst_67 : f32 to vector<4x96xf32>
    %235 = arith.subf %234, %233 : vector<4x96xf32>
    %236 = math.exp %235 : vector<4x96xf32>
    %cst_68 = arith.constant 1.000000e+00 : f32
    %237 = vector.broadcast %cst_68 : f32 to vector<4x96xf32>
    %238 = arith.addf %237, %236 : vector<4x96xf32>
    %239 = tpu.reciprocal %238 {approx = true} : vector<4x96xf32> -> vector<4x96xf32>
    %240 = vector.extract_strided_slice %232 {offsets = [0, 96], sizes = [4, 32], strides = [1, 1]} : vector<4x128xf32> to vector<4x32xf32>
    %241 = math.tanh %240 : vector<4x32xf32>
    %242 = vector.extract_strided_slice %239 {offsets = [0, 0], sizes = [4, 32], strides = [1, 1]} : vector<4x96xf32> to vector<4x32xf32>
    %243 = vector.extract_strided_slice %239 {offsets = [0, 32], sizes = [4, 32], strides = [1, 1]} : vector<4x96xf32> to vector<4x32xf32>
    %244 = vector.extract_strided_slice %239 {offsets = [0, 64], sizes = [4, 32], strides = [1, 1]} : vector<4x96xf32> to vector<4x32xf32>
    %245 = arith.mulf %243, %221 : vector<4x32xf32>
    %246 = arith.mulf %242, %241 : vector<4x32xf32>
    %247 = arith.addf %245, %246 : vector<4x32xf32>
    %248 = math.tanh %247 : vector<4x32xf32>
    %249 = arith.mulf %244, %248 : vector<4x32xf32>
    %250 = arith.index_cast %227 : i32 to index
    %c0_69 = arith.constant 0 : index
    %251 = vector.load %arg18[%250, %c0_69] : memref<64x32xf32, #tpu.memory_space<vmem>>, vector<4x32xf32>
    tpu.vector_store %arg18[%250, %c0_69], %249 {strides = array<i32>} : memref<64x32xf32, #tpu.memory_space<vmem>>, vector<4x32xf32>,
    %c9_i32 = arith.constant 9 : i32
    %c4_i32_70 = arith.constant 4 : i32
    %252 = arith.muli %c9_i32, %c4_i32_70 : i32
    %253 = tpu.assume_multiple %252, 4 : i32
    %254 = arith.index_cast %253 : i32 to index
    %c0_71 = arith.constant 0 : index
    %255 = vector.load %arg17[%254, %c0_71] : memref<64x128xf32, #tpu.memory_space<vmem>>, vector<4x128xf32>
    %256 = arith.truncf %249 : vector<4x32xf32> to vector<4x32xbf16>
    %cst_72 = arith.constant dense<0.000000e+00> : vector<4x128xf32>
    %257 = tpu.matmul %256, %16, %cst_72 {dimension_numbers = #tpu.dot_dimension_numbers<[1], [0], [0], [1], [0, 0, 1, 1], [], []>} : vector<4x32xbf16>, vector<32x128xbf16>, vector<4x128xf32> -> vector<4x128xf32>
    %258 = arith.addf %255, %257 : vector<4x128xf32>
    %259 = vector.extract_strided_slice %258 {offsets = [0, 0], sizes = [4, 96], strides = [1, 1]} : vector<4x128xf32> to vector<4x96xf32>
    %cst_73 = arith.constant 0.000000e+00 : f32
    %260 = vector.broadcast %cst_73 : f32 to vector<4x96xf32>
    %261 = arith.subf %260, %259 : vector<4x96xf32>
    %262 = math.exp %261 : vector<4x96xf32>
    %cst_74 = arith.constant 1.000000e+00 : f32
    %263 = vector.broadcast %cst_74 : f32 to vector<4x96xf32>
    %264 = arith.addf %263, %262 : vector<4x96xf32>
    %265 = tpu.reciprocal %264 {approx = true} : vector<4x96xf32> -> vector<4x96xf32>
    %266 = vector.extract_strided_slice %258 {offsets = [0, 96], sizes = [4, 32], strides = [1, 1]} : vector<4x128xf32> to vector<4x32xf32>
    %267 = math.tanh %266 : vector<4x32xf32>
    %268 = vector.extract_strided_slice %265 {offsets = [0, 0], sizes = [4, 32], strides = [1, 1]} : vector<4x96xf32> to vector<4x32xf32>
    %269 = vector.extract_strided_slice %265 {offsets = [0, 32], sizes = [4, 32], strides = [1, 1]} : vector<4x96xf32> to vector<4x32xf32>
    %270 = vector.extract_strided_slice %265 {offsets = [0, 64], sizes = [4, 32], strides = [1, 1]} : vector<4x96xf32> to vector<4x32xf32>
    %271 = arith.mulf %269, %247 : vector<4x32xf32>
    %272 = arith.mulf %268, %267 : vector<4x32xf32>
    %273 = arith.addf %271, %272 : vector<4x32xf32>
    %274 = math.tanh %273 : vector<4x32xf32>
    %275 = arith.mulf %270, %274 : vector<4x32xf32>
    %276 = arith.index_cast %253 : i32 to index
    %c0_75 = arith.constant 0 : index
    %277 = vector.load %arg18[%276, %c0_75] : memref<64x32xf32, #tpu.memory_space<vmem>>, vector<4x32xf32>
    tpu.vector_store %arg18[%276, %c0_75], %275 {strides = array<i32>} : memref<64x32xf32, #tpu.memory_space<vmem>>, vector<4x32xf32>,
    %c10_i32 = arith.constant 10 : i32
    %c4_i32_76 = arith.constant 4 : i32
    %278 = arith.muli %c10_i32, %c4_i32_76 : i32
    %279 = tpu.assume_multiple %278, 4 : i32
    %280 = arith.index_cast %279 : i32 to index
    %c0_77 = arith.constant 0 : index
    %281 = vector.load %arg17[%280, %c0_77] : memref<64x128xf32, #tpu.memory_space<vmem>>, vector<4x128xf32>
    %282 = arith.truncf %275 : vector<4x32xf32> to vector<4x32xbf16>
    %cst_78 = arith.constant dense<0.000000e+00> : vector<4x128xf32>
    %283 = tpu.matmul %282, %16, %cst_78 {dimension_numbers = #tpu.dot_dimension_numbers<[1], [0], [0], [1], [0, 0, 1, 1], [], []>} : vector<4x32xbf16>, vector<32x128xbf16>, vector<4x128xf32> -> vector<4x128xf32>
    %284 = arith.addf %281, %283 : vector<4x128xf32>
    %285 = vector.extract_strided_slice %284 {offsets = [0, 0], sizes = [4, 96], strides = [1, 1]} : vector<4x128xf32> to vector<4x96xf32>
    %cst_79 = arith.constant 0.000000e+00 : f32
    %286 = vector.broadcast %cst_79 : f32 to vector<4x96xf32>
    %287 = arith.subf %286, %285 : vector<4x96xf32>
    %288 = math.exp %287 : vector<4x96xf32>
    %cst_80 = arith.constant 1.000000e+00 : f32
    %289 = vector.broadcast %cst_80 : f32 to vector<4x96xf32>
    %290 = arith.addf %289, %288 : vector<4x96xf32>
    %291 = tpu.reciprocal %290 {approx = true} : vector<4x96xf32> -> vector<4x96xf32>
    %292 = vector.extract_strided_slice %284 {offsets = [0, 96], sizes = [4, 32], strides = [1, 1]} : vector<4x128xf32> to vector<4x32xf32>
    %293 = math.tanh %292 : vector<4x32xf32>
    %294 = vector.extract_strided_slice %291 {offsets = [0, 0], sizes = [4, 32], strides = [1, 1]} : vector<4x96xf32> to vector<4x32xf32>
    %295 = vector.extract_strided_slice %291 {offsets = [0, 32], sizes = [4, 32], strides = [1, 1]} : vector<4x96xf32> to vector<4x32xf32>
    %296 = vector.extract_strided_slice %291 {offsets = [0, 64], sizes = [4, 32], strides = [1, 1]} : vector<4x96xf32> to vector<4x32xf32>
    %297 = arith.mulf %295, %273 : vector<4x32xf32>
    %298 = arith.mulf %294, %293 : vector<4x32xf32>
    %299 = arith.addf %297, %298 : vector<4x32xf32>
    %300 = math.tanh %299 : vector<4x32xf32>
    %301 = arith.mulf %296, %300 : vector<4x32xf32>
    %302 = arith.index_cast %279 : i32 to index
    %c0_81 = arith.constant 0 : index
    %303 = vector.load %arg18[%302, %c0_81] : memref<64x32xf32, #tpu.memory_space<vmem>>, vector<4x32xf32>
    tpu.vector_store %arg18[%302, %c0_81], %301 {strides = array<i32>} : memref<64x32xf32, #tpu.memory_space<vmem>>, vector<4x32xf32>,
    %c11_i32 = arith.constant 11 : i32
    %c4_i32_82 = arith.constant 4 : i32
    %304 = arith.muli %c11_i32, %c4_i32_82 : i32
    %305 = tpu.assume_multiple %304, 4 : i32
    %306 = arith.index_cast %305 : i32 to index
    %c0_83 = arith.constant 0 : index
    %307 = vector.load %arg17[%306, %c0_83] : memref<64x128xf32, #tpu.memory_space<vmem>>, vector<4x128xf32>
    %308 = arith.truncf %301 : vector<4x32xf32> to vector<4x32xbf16>
    %cst_84 = arith.constant dense<0.000000e+00> : vector<4x128xf32>
    %309 = tpu.matmul %308, %16, %cst_84 {dimension_numbers = #tpu.dot_dimension_numbers<[1], [0], [0], [1], [0, 0, 1, 1], [], []>} : vector<4x32xbf16>, vector<32x128xbf16>, vector<4x128xf32> -> vector<4x128xf32>
    %310 = arith.addf %307, %309 : vector<4x128xf32>
    %311 = vector.extract_strided_slice %310 {offsets = [0, 0], sizes = [4, 96], strides = [1, 1]} : vector<4x128xf32> to vector<4x96xf32>
    %cst_85 = arith.constant 0.000000e+00 : f32
    %312 = vector.broadcast %cst_85 : f32 to vector<4x96xf32>
    %313 = arith.subf %312, %311 : vector<4x96xf32>
    %314 = math.exp %313 : vector<4x96xf32>
    %cst_86 = arith.constant 1.000000e+00 : f32
    %315 = vector.broadcast %cst_86 : f32 to vector<4x96xf32>
    %316 = arith.addf %315, %314 : vector<4x96xf32>
    %317 = tpu.reciprocal %316 {approx = true} : vector<4x96xf32> -> vector<4x96xf32>
    %318 = vector.extract_strided_slice %310 {offsets = [0, 96], sizes = [4, 32], strides = [1, 1]} : vector<4x128xf32> to vector<4x32xf32>
    %319 = math.tanh %318 : vector<4x32xf32>
    %320 = vector.extract_strided_slice %317 {offsets = [0, 0], sizes = [4, 32], strides = [1, 1]} : vector<4x96xf32> to vector<4x32xf32>
    %321 = vector.extract_strided_slice %317 {offsets = [0, 32], sizes = [4, 32], strides = [1, 1]} : vector<4x96xf32> to vector<4x32xf32>
    %322 = vector.extract_strided_slice %317 {offsets = [0, 64], sizes = [4, 32], strides = [1, 1]} : vector<4x96xf32> to vector<4x32xf32>
    %323 = arith.mulf %321, %299 : vector<4x32xf32>
    %324 = arith.mulf %320, %319 : vector<4x32xf32>
    %325 = arith.addf %323, %324 : vector<4x32xf32>
    %326 = math.tanh %325 : vector<4x32xf32>
    %327 = arith.mulf %322, %326 : vector<4x32xf32>
    %328 = arith.index_cast %305 : i32 to index
    %c0_87 = arith.constant 0 : index
    %329 = vector.load %arg18[%328, %c0_87] : memref<64x32xf32, #tpu.memory_space<vmem>>, vector<4x32xf32>
    tpu.vector_store %arg18[%328, %c0_87], %327 {strides = array<i32>} : memref<64x32xf32, #tpu.memory_space<vmem>>, vector<4x32xf32>,
    %c12_i32 = arith.constant 12 : i32
    %c4_i32_88 = arith.constant 4 : i32
    %330 = arith.muli %c12_i32, %c4_i32_88 : i32
    %331 = tpu.assume_multiple %330, 4 : i32
    %332 = arith.index_cast %331 : i32 to index
    %c0_89 = arith.constant 0 : index
    %333 = vector.load %arg17[%332, %c0_89] : memref<64x128xf32, #tpu.memory_space<vmem>>, vector<4x128xf32>
    %334 = arith.truncf %327 : vector<4x32xf32> to vector<4x32xbf16>
    %cst_90 = arith.constant dense<0.000000e+00> : vector<4x128xf32>
    %335 = tpu.matmul %334, %16, %cst_90 {dimension_numbers = #tpu.dot_dimension_numbers<[1], [0], [0], [1], [0, 0, 1, 1], [], []>} : vector<4x32xbf16>, vector<32x128xbf16>, vector<4x128xf32> -> vector<4x128xf32>
    %336 = arith.addf %333, %335 : vector<4x128xf32>
    %337 = vector.extract_strided_slice %336 {offsets = [0, 0], sizes = [4, 96], strides = [1, 1]} : vector<4x128xf32> to vector<4x96xf32>
    %cst_91 = arith.constant 0.000000e+00 : f32
    %338 = vector.broadcast %cst_91 : f32 to vector<4x96xf32>
    %339 = arith.subf %338, %337 : vector<4x96xf32>
    %340 = math.exp %339 : vector<4x96xf32>
    %cst_92 = arith.constant 1.000000e+00 : f32
    %341 = vector.broadcast %cst_92 : f32 to vector<4x96xf32>
    %342 = arith.addf %341, %340 : vector<4x96xf32>
    %343 = tpu.reciprocal %342 {approx = true} : vector<4x96xf32> -> vector<4x96xf32>
    %344 = vector.extract_strided_slice %336 {offsets = [0, 96], sizes = [4, 32], strides = [1, 1]} : vector<4x128xf32> to vector<4x32xf32>
    %345 = math.tanh %344 : vector<4x32xf32>
    %346 = vector.extract_strided_slice %343 {offsets = [0, 0], sizes = [4, 32], strides = [1, 1]} : vector<4x96xf32> to vector<4x32xf32>
    %347 = vector.extract_strided_slice %343 {offsets = [0, 32], sizes = [4, 32], strides = [1, 1]} : vector<4x96xf32> to vector<4x32xf32>
    %348 = vector.extract_strided_slice %343 {offsets = [0, 64], sizes = [4, 32], strides = [1, 1]} : vector<4x96xf32> to vector<4x32xf32>
    %349 = arith.mulf %347, %325 : vector<4x32xf32>
    %350 = arith.mulf %346, %345 : vector<4x32xf32>
    %351 = arith.addf %349, %350 : vector<4x32xf32>
    %352 = math.tanh %351 : vector<4x32xf32>
    %353 = arith.mulf %348, %352 : vector<4x32xf32>
    %354 = arith.index_cast %331 : i32 to index
    %c0_93 = arith.constant 0 : index
    %355 = vector.load %arg18[%354, %c0_93] : memref<64x32xf32, #tpu.memory_space<vmem>>, vector<4x32xf32>
    tpu.vector_store %arg18[%354, %c0_93], %353 {strides = array<i32>} : memref<64x32xf32, #tpu.memory_space<vmem>>, vector<4x32xf32>,
    %c13_i32 = arith.constant 13 : i32
    %c4_i32_94 = arith.constant 4 : i32
    %356 = arith.muli %c13_i32, %c4_i32_94 : i32
    %357 = tpu.assume_multiple %356, 4 : i32
    %358 = arith.index_cast %357 : i32 to index
    %c0_95 = arith.constant 0 : index
    %359 = vector.load %arg17[%358, %c0_95] : memref<64x128xf32, #tpu.memory_space<vmem>>, vector<4x128xf32>
    %360 = arith.truncf %353 : vector<4x32xf32> to vector<4x32xbf16>
    %cst_96 = arith.constant dense<0.000000e+00> : vector<4x128xf32>
    %361 = tpu.matmul %360, %16, %cst_96 {dimension_numbers = #tpu.dot_dimension_numbers<[1], [0], [0], [1], [0, 0, 1, 1], [], []>} : vector<4x32xbf16>, vector<32x128xbf16>, vector<4x128xf32> -> vector<4x128xf32>
    %362 = arith.addf %359, %361 : vector<4x128xf32>
    %363 = vector.extract_strided_slice %362 {offsets = [0, 0], sizes = [4, 96], strides = [1, 1]} : vector<4x128xf32> to vector<4x96xf32>
    %cst_97 = arith.constant 0.000000e+00 : f32
    %364 = vector.broadcast %cst_97 : f32 to vector<4x96xf32>
    %365 = arith.subf %364, %363 : vector<4x96xf32>
    %366 = math.exp %365 : vector<4x96xf32>
    %cst_98 = arith.constant 1.000000e+00 : f32
    %367 = vector.broadcast %cst_98 : f32 to vector<4x96xf32>
    %368 = arith.addf %367, %366 : vector<4x96xf32>
    %369 = tpu.reciprocal %368 {approx = true} : vector<4x96xf32> -> vector<4x96xf32>
    %370 = vector.extract_strided_slice %362 {offsets = [0, 96], sizes = [4, 32], strides = [1, 1]} : vector<4x128xf32> to vector<4x32xf32>
    %371 = math.tanh %370 : vector<4x32xf32>
    %372 = vector.extract_strided_slice %369 {offsets = [0, 0], sizes = [4, 32], strides = [1, 1]} : vector<4x96xf32> to vector<4x32xf32>
    %373 = vector.extract_strided_slice %369 {offsets = [0, 32], sizes = [4, 32], strides = [1, 1]} : vector<4x96xf32> to vector<4x32xf32>
    %374 = vector.extract_strided_slice %369 {offsets = [0, 64], sizes = [4, 32], strides = [1, 1]} : vector<4x96xf32> to vector<4x32xf32>
    %375 = arith.mulf %373, %351 : vector<4x32xf32>
    %376 = arith.mulf %372, %371 : vector<4x32xf32>
    %377 = arith.addf %375, %376 : vector<4x32xf32>
    %378 = math.tanh %377 : vector<4x32xf32>
    %379 = arith.mulf %374, %378 : vector<4x32xf32>
    %380 = arith.index_cast %357 : i32 to index
    %c0_99 = arith.constant 0 : index
    %381 = vector.load %arg18[%380, %c0_99] : memref<64x32xf32, #tpu.memory_space<vmem>>, vector<4x32xf32>
    tpu.vector_store %arg18[%380, %c0_99], %379 {strides = array<i32>} : memref<64x32xf32, #tpu.memory_space<vmem>>, vector<4x32xf32>,
    %c14_i32 = arith.constant 14 : i32
    %c4_i32_100 = arith.constant 4 : i32
    %382 = arith.muli %c14_i32, %c4_i32_100 : i32
    %383 = tpu.assume_multiple %382, 4 : i32
    %384 = arith.index_cast %383 : i32 to index
    %c0_101 = arith.constant 0 : index
    %385 = vector.load %arg17[%384, %c0_101] : memref<64x128xf32, #tpu.memory_space<vmem>>, vector<4x128xf32>
    %386 = arith.truncf %379 : vector<4x32xf32> to vector<4x32xbf16>
    %cst_102 = arith.constant dense<0.000000e+00> : vector<4x128xf32>
    %387 = tpu.matmul %386, %16, %cst_102 {dimension_numbers = #tpu.dot_dimension_numbers<[1], [0], [0], [1], [0, 0, 1, 1], [], []>} : vector<4x32xbf16>, vector<32x128xbf16>, vector<4x128xf32> -> vector<4x128xf32>
    %388 = arith.addf %385, %387 : vector<4x128xf32>
    %389 = vector.extract_strided_slice %388 {offsets = [0, 0], sizes = [4, 96], strides = [1, 1]} : vector<4x128xf32> to vector<4x96xf32>
    %cst_103 = arith.constant 0.000000e+00 : f32
    %390 = vector.broadcast %cst_103 : f32 to vector<4x96xf32>
    %391 = arith.subf %390, %389 : vector<4x96xf32>
    %392 = math.exp %391 : vector<4x96xf32>
    %cst_104 = arith.constant 1.000000e+00 : f32
    %393 = vector.broadcast %cst_104 : f32 to vector<4x96xf32>
    %394 = arith.addf %393, %392 : vector<4x96xf32>
    %395 = tpu.reciprocal %394 {approx = true} : vector<4x96xf32> -> vector<4x96xf32>
    %396 = vector.extract_strided_slice %388 {offsets = [0, 96], sizes = [4, 32], strides = [1, 1]} : vector<4x128xf32> to vector<4x32xf32>
    %397 = math.tanh %396 : vector<4x32xf32>
    %398 = vector.extract_strided_slice %395 {offsets = [0, 0], sizes = [4, 32], strides = [1, 1]} : vector<4x96xf32> to vector<4x32xf32>
    %399 = vector.extract_strided_slice %395 {offsets = [0, 32], sizes = [4, 32], strides = [1, 1]} : vector<4x96xf32> to vector<4x32xf32>
    %400 = vector.extract_strided_slice %395 {offsets = [0, 64], sizes = [4, 32], strides = [1, 1]} : vector<4x96xf32> to vector<4x32xf32>
    %401 = arith.mulf %399, %377 : vector<4x32xf32>
    %402 = arith.mulf %398, %397 : vector<4x32xf32>
    %403 = arith.addf %401, %402 : vector<4x32xf32>
    %404 = math.tanh %403 : vector<4x32xf32>
    %405 = arith.mulf %400, %404 : vector<4x32xf32>
    %406 = arith.index_cast %383 : i32 to index
    %c0_105 = arith.constant 0 : index
    %407 = vector.load %arg18[%406, %c0_105] : memref<64x32xf32, #tpu.memory_space<vmem>>, vector<4x32xf32>
    tpu.vector_store %arg18[%406, %c0_105], %405 {strides = array<i32>} : memref<64x32xf32, #tpu.memory_space<vmem>>, vector<4x32xf32>,
    %c15_i32 = arith.constant 15 : i32
    %c4_i32_106 = arith.constant 4 : i32
    %408 = arith.muli %c15_i32, %c4_i32_106 : i32
    %409 = tpu.assume_multiple %408, 4 : i32
    %410 = arith.index_cast %409 : i32 to index
    %c0_107 = arith.constant 0 : index
    %411 = vector.load %arg17[%410, %c0_107] : memref<64x128xf32, #tpu.memory_space<vmem>>, vector<4x128xf32>
    %412 = arith.truncf %405 : vector<4x32xf32> to vector<4x32xbf16>
    %cst_108 = arith.constant dense<0.000000e+00> : vector<4x128xf32>
    %413 = tpu.matmul %412, %16, %cst_108 {dimension_numbers = #tpu.dot_dimension_numbers<[1], [0], [0], [1], [0, 0, 1, 1], [], []>} : vector<4x32xbf16>, vector<32x128xbf16>, vector<4x128xf32> -> vector<4x128xf32>
    %414 = arith.addf %411, %413 : vector<4x128xf32>
    %415 = vector.extract_strided_slice %414 {offsets = [0, 0], sizes = [4, 96], strides = [1, 1]} : vector<4x128xf32> to vector<4x96xf32>
    %cst_109 = arith.constant 0.000000e+00 : f32
    %416 = vector.broadcast %cst_109 : f32 to vector<4x96xf32>
    %417 = arith.subf %416, %415 : vector<4x96xf32>
    %418 = math.exp %417 : vector<4x96xf32>
    %cst_110 = arith.constant 1.000000e+00 : f32
    %419 = vector.broadcast %cst_110 : f32 to vector<4x96xf32>
    %420 = arith.addf %419, %418 : vector<4x96xf32>
    %421 = tpu.reciprocal %420 {approx = true} : vector<4x96xf32> -> vector<4x96xf32>
    %422 = vector.extract_strided_slice %414 {offsets = [0, 96], sizes = [4, 32], strides = [1, 1]} : vector<4x128xf32> to vector<4x32xf32>
    %423 = math.tanh %422 : vector<4x32xf32>
    %424 = vector.extract_strided_slice %421 {offsets = [0, 0], sizes = [4, 32], strides = [1, 1]} : vector<4x96xf32> to vector<4x32xf32>
    %425 = vector.extract_strided_slice %421 {offsets = [0, 32], sizes = [4, 32], strides = [1, 1]} : vector<4x96xf32> to vector<4x32xf32>
    %426 = vector.extract_strided_slice %421 {offsets = [0, 64], sizes = [4, 32], strides = [1, 1]} : vector<4x96xf32> to vector<4x32xf32>
    %427 = arith.mulf %425, %403 : vector<4x32xf32>
    %428 = arith.mulf %424, %423 : vector<4x32xf32>
    %429 = arith.addf %427, %428 : vector<4x32xf32>
    %430 = math.tanh %429 : vector<4x32xf32>
    %431 = arith.mulf %426, %430 : vector<4x32xf32>
    %432 = arith.index_cast %409 : i32 to index
    %c0_111 = arith.constant 0 : index
    %433 = vector.load %arg18[%432, %c0_111] : memref<64x32xf32, #tpu.memory_space<vmem>>, vector<4x32xf32>
    tpu.vector_store %arg18[%432, %c0_111], %431 {strides = array<i32>} : memref<64x32xf32, #tpu.memory_space<vmem>>, vector<4x32xf32>,
    %c16_i32 = arith.constant 16 : i32
    %c0_112 = arith.constant 0 : index
    %c0_113 = arith.constant 0 : index
    %434 = vector.load %arg18[%c0_112, %c0_113] : memref<64x32xf32, #tpu.memory_space<vmem>>, vector<64x32xf32>
    %cst_114 = arith.constant 0.000000e+00 : f32
    %435 = vector.broadcast %cst_114 : f32 to vector<64x32xf32>
    %436 = arith.maximumf %434, %435 : vector<64x32xf32>
    %c0_115 = arith.constant 0 : index
    %c0_116 = arith.constant 0 : index
    %437 = vector.load %arg4[%c0_115, %c0_116] : memref<32x64xf32, #tpu.memory_space<vmem>>, vector<32x64xf32>
    %438 = arith.truncf %436 : vector<64x32xf32> to vector<64x32xbf16>
    %439 = arith.truncf %437 : vector<32x64xf32> to vector<32x64xbf16>
    %cst_117 = arith.constant dense<0.000000e+00> : vector<64x64xf32>
    %440 = tpu.matmul %438, %439, %cst_117 {dimension_numbers = #tpu.dot_dimension_numbers<[1], [0], [0], [1], [0, 0, 1, 1], [], []>} : vector<64x32xbf16>, vector<32x64xbf16>, vector<64x64xf32> -> vector<64x64xf32>
    %441 = vector.broadcast %3 : vector<1x64xf32> to vector<64x64xf32>
    %442 = arith.addf %440, %441 : vector<64x64xf32>
    %c0_118 = arith.constant 0 : index
    %c0_119 = arith.constant 0 : index
    %443 = vector.load %arg19[%c0_118, %c0_119] : memref<64x64xf32, #tpu.memory_space<vmem>>, vector<64x64xf32>
    tpu.vector_store %arg19[%c0_118, %c0_119], %442 {strides = array<i32>} : memref<64x64xf32, #tpu.memory_space<vmem>>, vector<64x64xf32>,
    %c0_120 = arith.constant 0 : index
    %c0_121 = arith.constant 0 : index
    %444 = vector.load %arg5[%c0_120, %c0_121] : memref<16x64xf32, #tpu.memory_space<vmem>>, vector<16x64xf32>
    %445 = arith.truncf %444 : vector<16x64xf32> to vector<16x64xbf16>
    %cst_122 = arith.constant 0.000000e+00 : f32
    %446 = vector.broadcast %cst_122 : f32 to vector<4x16xf32>
    %c0_i32_123 = arith.constant 0 : i32
    %c4_i32_124 = arith.constant 4 : i32
    %447 = arith.muli %c0_i32_123, %c4_i32_124 : i32
    %448 = tpu.assume_multiple %447, 4 : i32
    %449 = arith.index_cast %448 : i32 to index
    %c0_125 = arith.constant 0 : index
    %450 = vector.load %arg19[%449, %c0_125] : memref<64x64xf32, #tpu.memory_space<vmem>>, vector<4x64xf32>
    %451 = arith.truncf %446 : vector<4x16xf32> to vector<4x16xbf16>
    %cst_126 = arith.constant dense<0.000000e+00> : vector<4x64xf32>
    %452 = tpu.matmul %451, %445, %cst_126 {dimension_numbers = #tpu.dot_dimension_numbers<[1], [0], [0], [1], [0, 0, 1, 1], [], []>} : vector<4x16xbf16>, vector<16x64xbf16>, vector<4x64xf32> -> vector<4x64xf32>
    %453 = arith.addf %450, %452 : vector<4x64xf32>
    %454 = vector.extract_strided_slice %453 {offsets = [0, 0], sizes = [4, 48], strides = [1, 1]} : vector<4x64xf32> to vector<4x48xf32>
    %cst_127 = arith.constant 0.000000e+00 : f32
    %455 = vector.broadcast %cst_127 : f32 to vector<4x48xf32>
    %456 = arith.subf %455, %454 : vector<4x48xf32>
    %457 = math.exp %456 : vector<4x48xf32>
    %cst_128 = arith.constant 1.000000e+00 : f32
    %458 = vector.broadcast %cst_128 : f32 to vector<4x48xf32>
    %459 = arith.addf %458, %457 : vector<4x48xf32>
    %460 = tpu.reciprocal %459 {approx = true} : vector<4x48xf32> -> vector<4x48xf32>
    %461 = vector.extract_strided_slice %453 {offsets = [0, 48], sizes = [4, 16], strides = [1, 1]} : vector<4x64xf32> to vector<4x16xf32>
    %462 = math.tanh %461 : vector<4x16xf32>
    %463 = vector.extract_strided_slice %460 {offsets = [0, 0], sizes = [4, 16], strides = [1, 1]} : vector<4x48xf32> to vector<4x16xf32>
    %464 = vector.extract_strided_slice %460 {offsets = [0, 16], sizes = [4, 16], strides = [1, 1]} : vector<4x48xf32> to vector<4x16xf32>
    %465 = vector.extract_strided_slice %460 {offsets = [0, 32], sizes = [4, 16], strides = [1, 1]} : vector<4x48xf32> to vector<4x16xf32>
    %466 = arith.mulf %464, %446 : vector<4x16xf32>
    %467 = arith.mulf %463, %462 : vector<4x16xf32>
    %468 = arith.addf %466, %467 : vector<4x16xf32>
    %469 = math.tanh %468 : vector<4x16xf32>
    %470 = arith.mulf %465, %469 : vector<4x16xf32>
    %471 = arith.index_cast %448 : i32 to index
    %c0_129 = arith.constant 0 : index
    %472 = vector.load %arg20[%471, %c0_129] : memref<64x16xf32, #tpu.memory_space<vmem>>, vector<4x16xf32>
    tpu.vector_store %arg20[%471, %c0_129], %470 {strides = array<i32>} : memref<64x16xf32, #tpu.memory_space<vmem>>, vector<4x16xf32>,
    %c1_i32_130 = arith.constant 1 : i32
    %c4_i32_131 = arith.constant 4 : i32
    %473 = arith.muli %c1_i32_130, %c4_i32_131 : i32
    %474 = tpu.assume_multiple %473, 4 : i32
    %475 = arith.index_cast %474 : i32 to index
    %c0_132 = arith.constant 0 : index
    %476 = vector.load %arg19[%475, %c0_132] : memref<64x64xf32, #tpu.memory_space<vmem>>, vector<4x64xf32>
    %477 = arith.truncf %470 : vector<4x16xf32> to vector<4x16xbf16>
    %cst_133 = arith.constant dense<0.000000e+00> : vector<4x64xf32>
    %478 = tpu.matmul %477, %445, %cst_133 {dimension_numbers = #tpu.dot_dimension_numbers<[1], [0], [0], [1], [0, 0, 1, 1], [], []>} : vector<4x16xbf16>, vector<16x64xbf16>, vector<4x64xf32> -> vector<4x64xf32>
    %479 = arith.addf %476, %478 : vector<4x64xf32>
    %480 = vector.extract_strided_slice %479 {offsets = [0, 0], sizes = [4, 48], strides = [1, 1]} : vector<4x64xf32> to vector<4x48xf32>
    %cst_134 = arith.constant 0.000000e+00 : f32
    %481 = vector.broadcast %cst_134 : f32 to vector<4x48xf32>
    %482 = arith.subf %481, %480 : vector<4x48xf32>
    %483 = math.exp %482 : vector<4x48xf32>
    %cst_135 = arith.constant 1.000000e+00 : f32
    %484 = vector.broadcast %cst_135 : f32 to vector<4x48xf32>
    %485 = arith.addf %484, %483 : vector<4x48xf32>
    %486 = tpu.reciprocal %485 {approx = true} : vector<4x48xf32> -> vector<4x48xf32>
    %487 = vector.extract_strided_slice %479 {offsets = [0, 48], sizes = [4, 16], strides = [1, 1]} : vector<4x64xf32> to vector<4x16xf32>
    %488 = math.tanh %487 : vector<4x16xf32>
    %489 = vector.extract_strided_slice %486 {offsets = [0, 0], sizes = [4, 16], strides = [1, 1]} : vector<4x48xf32> to vector<4x16xf32>
    %490 = vector.extract_strided_slice %486 {offsets = [0, 16], sizes = [4, 16], strides = [1, 1]} : vector<4x48xf32> to vector<4x16xf32>
    %491 = vector.extract_strided_slice %486 {offsets = [0, 32], sizes = [4, 16], strides = [1, 1]} : vector<4x48xf32> to vector<4x16xf32>
    %492 = arith.mulf %490, %468 : vector<4x16xf32>
    %493 = arith.mulf %489, %488 : vector<4x16xf32>
    %494 = arith.addf %492, %493 : vector<4x16xf32>
    %495 = math.tanh %494 : vector<4x16xf32>
    %496 = arith.mulf %491, %495 : vector<4x16xf32>
    %497 = arith.index_cast %474 : i32 to index
    %c0_136 = arith.constant 0 : index
    %498 = vector.load %arg20[%497, %c0_136] : memref<64x16xf32, #tpu.memory_space<vmem>>, vector<4x16xf32>
    tpu.vector_store %arg20[%497, %c0_136], %496 {strides = array<i32>} : memref<64x16xf32, #tpu.memory_space<vmem>>, vector<4x16xf32>,
    %c2_i32_137 = arith.constant 2 : i32
    %c4_i32_138 = arith.constant 4 : i32
    %499 = arith.muli %c2_i32_137, %c4_i32_138 : i32
    %500 = tpu.assume_multiple %499, 4 : i32
    %501 = arith.index_cast %500 : i32 to index
    %c0_139 = arith.constant 0 : index
    %502 = vector.load %arg19[%501, %c0_139] : memref<64x64xf32, #tpu.memory_space<vmem>>, vector<4x64xf32>
    %503 = arith.truncf %496 : vector<4x16xf32> to vector<4x16xbf16>
    %cst_140 = arith.constant dense<0.000000e+00> : vector<4x64xf32>
    %504 = tpu.matmul %503, %445, %cst_140 {dimension_numbers = #tpu.dot_dimension_numbers<[1], [0], [0], [1], [0, 0, 1, 1], [], []>} : vector<4x16xbf16>, vector<16x64xbf16>, vector<4x64xf32> -> vector<4x64xf32>
    %505 = arith.addf %502, %504 : vector<4x64xf32>
    %506 = vector.extract_strided_slice %505 {offsets = [0, 0], sizes = [4, 48], strides = [1, 1]} : vector<4x64xf32> to vector<4x48xf32>
    %cst_141 = arith.constant 0.000000e+00 : f32
    %507 = vector.broadcast %cst_141 : f32 to vector<4x48xf32>
    %508 = arith.subf %507, %506 : vector<4x48xf32>
    %509 = math.exp %508 : vector<4x48xf32>
    %cst_142 = arith.constant 1.000000e+00 : f32
    %510 = vector.broadcast %cst_142 : f32 to vector<4x48xf32>
    %511 = arith.addf %510, %509 : vector<4x48xf32>
    %512 = tpu.reciprocal %511 {approx = true} : vector<4x48xf32> -> vector<4x48xf32>
    %513 = vector.extract_strided_slice %505 {offsets = [0, 48], sizes = [4, 16], strides = [1, 1]} : vector<4x64xf32> to vector<4x16xf32>
    %514 = math.tanh %513 : vector<4x16xf32>
    %515 = vector.extract_strided_slice %512 {offsets = [0, 0], sizes = [4, 16], strides = [1, 1]} : vector<4x48xf32> to vector<4x16xf32>
    %516 = vector.extract_strided_slice %512 {offsets = [0, 16], sizes = [4, 16], strides = [1, 1]} : vector<4x48xf32> to vector<4x16xf32>
    %517 = vector.extract_strided_slice %512 {offsets = [0, 32], sizes = [4, 16], strides = [1, 1]} : vector<4x48xf32> to vector<4x16xf32>
    %518 = arith.mulf %516, %494 : vector<4x16xf32>
    %519 = arith.mulf %515, %514 : vector<4x16xf32>
    %520 = arith.addf %518, %519 : vector<4x16xf32>
    %521 = math.tanh %520 : vector<4x16xf32>
    %522 = arith.mulf %517, %521 : vector<4x16xf32>
    %523 = arith.index_cast %500 : i32 to index
    %c0_143 = arith.constant 0 : index
    %524 = vector.load %arg20[%523, %c0_143] : memref<64x16xf32, #tpu.memory_space<vmem>>, vector<4x16xf32>
    tpu.vector_store %arg20[%523, %c0_143], %522 {strides = array<i32>} : memref<64x16xf32, #tpu.memory_space<vmem>>, vector<4x16xf32>,
    %c3_i32_144 = arith.constant 3 : i32
    %c4_i32_145 = arith.constant 4 : i32
    %525 = arith.muli %c3_i32_144, %c4_i32_145 : i32
    %526 = tpu.assume_multiple %525, 4 : i32
    %527 = arith.index_cast %526 : i32 to index
    %c0_146 = arith.constant 0 : index
    %528 = vector.load %arg19[%527, %c0_146] : memref<64x64xf32, #tpu.memory_space<vmem>>, vector<4x64xf32>
    %529 = arith.truncf %522 : vector<4x16xf32> to vector<4x16xbf16>
    %cst_147 = arith.constant dense<0.000000e+00> : vector<4x64xf32>
    %530 = tpu.matmul %529, %445, %cst_147 {dimension_numbers = #tpu.dot_dimension_numbers<[1], [0], [0], [1], [0, 0, 1, 1], [], []>} : vector<4x16xbf16>, vector<16x64xbf16>, vector<4x64xf32> -> vector<4x64xf32>
    %531 = arith.addf %528, %530 : vector<4x64xf32>
    %532 = vector.extract_strided_slice %531 {offsets = [0, 0], sizes = [4, 48], strides = [1, 1]} : vector<4x64xf32> to vector<4x48xf32>
    %cst_148 = arith.constant 0.000000e+00 : f32
    %533 = vector.broadcast %cst_148 : f32 to vector<4x48xf32>
    %534 = arith.subf %533, %532 : vector<4x48xf32>
    %535 = math.exp %534 : vector<4x48xf32>
    %cst_149 = arith.constant 1.000000e+00 : f32
    %536 = vector.broadcast %cst_149 : f32 to vector<4x48xf32>
    %537 = arith.addf %536, %535 : vector<4x48xf32>
    %538 = tpu.reciprocal %537 {approx = true} : vector<4x48xf32> -> vector<4x48xf32>
    %539 = vector.extract_strided_slice %531 {offsets = [0, 48], sizes = [4, 16], strides = [1, 1]} : vector<4x64xf32> to vector<4x16xf32>
    %540 = math.tanh %539 : vector<4x16xf32>
    %541 = vector.extract_strided_slice %538 {offsets = [0, 0], sizes = [4, 16], strides = [1, 1]} : vector<4x48xf32> to vector<4x16xf32>
    %542 = vector.extract_strided_slice %538 {offsets = [0, 16], sizes = [4, 16], strides = [1, 1]} : vector<4x48xf32> to vector<4x16xf32>
    %543 = vector.extract_strided_slice %538 {offsets = [0, 32], sizes = [4, 16], strides = [1, 1]} : vector<4x48xf32> to vector<4x16xf32>
    %544 = arith.mulf %542, %520 : vector<4x16xf32>
    %545 = arith.mulf %541, %540 : vector<4x16xf32>
    %546 = arith.addf %544, %545 : vector<4x16xf32>
    %547 = math.tanh %546 : vector<4x16xf32>
    %548 = arith.mulf %543, %547 : vector<4x16xf32>
    %549 = arith.index_cast %526 : i32 to index
    %c0_150 = arith.constant 0 : index
    %550 = vector.load %arg20[%549, %c0_150] : memref<64x16xf32, #tpu.memory_space<vmem>>, vector<4x16xf32>
    tpu.vector_store %arg20[%549, %c0_150], %548 {strides = array<i32>} : memref<64x16xf32, #tpu.memory_space<vmem>>, vector<4x16xf32>,
    %c4_i32_151 = arith.constant 4 : i32
    %c4_i32_152 = arith.constant 4 : i32
    %551 = arith.muli %c4_i32_151, %c4_i32_152 : i32
    %552 = tpu.assume_multiple %551, 4 : i32
    %553 = arith.index_cast %552 : i32 to index
    %c0_153 = arith.constant 0 : index
    %554 = vector.load %arg19[%553, %c0_153] : memref<64x64xf32, #tpu.memory_space<vmem>>, vector<4x64xf32>
    %555 = arith.truncf %548 : vector<4x16xf32> to vector<4x16xbf16>
    %cst_154 = arith.constant dense<0.000000e+00> : vector<4x64xf32>
    %556 = tpu.matmul %555, %445, %cst_154 {dimension_numbers = #tpu.dot_dimension_numbers<[1], [0], [0], [1], [0, 0, 1, 1], [], []>} : vector<4x16xbf16>, vector<16x64xbf16>, vector<4x64xf32> -> vector<4x64xf32>
    %557 = arith.addf %554, %556 : vector<4x64xf32>
    %558 = vector.extract_strided_slice %557 {offsets = [0, 0], sizes = [4, 48], strides = [1, 1]} : vector<4x64xf32> to vector<4x48xf32>
    %cst_155 = arith.constant 0.000000e+00 : f32
    %559 = vector.broadcast %cst_155 : f32 to vector<4x48xf32>
    %560 = arith.subf %559, %558 : vector<4x48xf32>
    %561 = math.exp %560 : vector<4x48xf32>
    %cst_156 = arith.constant 1.000000e+00 : f32
    %562 = vector.broadcast %cst_156 : f32 to vector<4x48xf32>
    %563 = arith.addf %562, %561 : vector<4x48xf32>
    %564 = tpu.reciprocal %563 {approx = true} : vector<4x48xf32> -> vector<4x48xf32>
    %565 = vector.extract_strided_slice %557 {offsets = [0, 48], sizes = [4, 16], strides = [1, 1]} : vector<4x64xf32> to vector<4x16xf32>
    %566 = math.tanh %565 : vector<4x16xf32>
    %567 = vector.extract_strided_slice %564 {offsets = [0, 0], sizes = [4, 16], strides = [1, 1]} : vector<4x48xf32> to vector<4x16xf32>
    %568 = vector.extract_strided_slice %564 {offsets = [0, 16], sizes = [4, 16], strides = [1, 1]} : vector<4x48xf32> to vector<4x16xf32>
    %569 = vector.extract_strided_slice %564 {offsets = [0, 32], sizes = [4, 16], strides = [1, 1]} : vector<4x48xf32> to vector<4x16xf32>
    %570 = arith.mulf %568, %546 : vector<4x16xf32>
    %571 = arith.mulf %567, %566 : vector<4x16xf32>
    %572 = arith.addf %570, %571 : vector<4x16xf32>
    %573 = math.tanh %572 : vector<4x16xf32>
    %574 = arith.mulf %569, %573 : vector<4x16xf32>
    %575 = arith.index_cast %552 : i32 to index
    %c0_157 = arith.constant 0 : index
    %576 = vector.load %arg20[%575, %c0_157] : memref<64x16xf32, #tpu.memory_space<vmem>>, vector<4x16xf32>
    tpu.vector_store %arg20[%575, %c0_157], %574 {strides = array<i32>} : memref<64x16xf32, #tpu.memory_space<vmem>>, vector<4x16xf32>,
    %c5_i32_158 = arith.constant 5 : i32
    %c4_i32_159 = arith.constant 4 : i32
    %577 = arith.muli %c5_i32_158, %c4_i32_159 : i32
    %578 = tpu.assume_multiple %577, 4 : i32
    %579 = arith.index_cast %578 : i32 to index
    %c0_160 = arith.constant 0 : index
    %580 = vector.load %arg19[%579, %c0_160] : memref<64x64xf32, #tpu.memory_space<vmem>>, vector<4x64xf32>
    %581 = arith.truncf %574 : vector<4x16xf32> to vector<4x16xbf16>
    %cst_161 = arith.constant dense<0.000000e+00> : vector<4x64xf32>
    %582 = tpu.matmul %581, %445, %cst_161 {dimension_numbers = #tpu.dot_dimension_numbers<[1], [0], [0], [1], [0, 0, 1, 1], [], []>} : vector<4x16xbf16>, vector<16x64xbf16>, vector<4x64xf32> -> vector<4x64xf32>
    %583 = arith.addf %580, %582 : vector<4x64xf32>
    %584 = vector.extract_strided_slice %583 {offsets = [0, 0], sizes = [4, 48], strides = [1, 1]} : vector<4x64xf32> to vector<4x48xf32>
    %cst_162 = arith.constant 0.000000e+00 : f32
    %585 = vector.broadcast %cst_162 : f32 to vector<4x48xf32>
    %586 = arith.subf %585, %584 : vector<4x48xf32>
    %587 = math.exp %586 : vector<4x48xf32>
    %cst_163 = arith.constant 1.000000e+00 : f32
    %588 = vector.broadcast %cst_163 : f32 to vector<4x48xf32>
    %589 = arith.addf %588, %587 : vector<4x48xf32>
    %590 = tpu.reciprocal %589 {approx = true} : vector<4x48xf32> -> vector<4x48xf32>
    %591 = vector.extract_strided_slice %583 {offsets = [0, 48], sizes = [4, 16], strides = [1, 1]} : vector<4x64xf32> to vector<4x16xf32>
    %592 = math.tanh %591 : vector<4x16xf32>
    %593 = vector.extract_strided_slice %590 {offsets = [0, 0], sizes = [4, 16], strides = [1, 1]} : vector<4x48xf32> to vector<4x16xf32>
    %594 = vector.extract_strided_slice %590 {offsets = [0, 16], sizes = [4, 16], strides = [1, 1]} : vector<4x48xf32> to vector<4x16xf32>
    %595 = vector.extract_strided_slice %590 {offsets = [0, 32], sizes = [4, 16], strides = [1, 1]} : vector<4x48xf32> to vector<4x16xf32>
    %596 = arith.mulf %594, %572 : vector<4x16xf32>
    %597 = arith.mulf %593, %592 : vector<4x16xf32>
    %598 = arith.addf %596, %597 : vector<4x16xf32>
    %599 = math.tanh %598 : vector<4x16xf32>
    %600 = arith.mulf %595, %599 : vector<4x16xf32>
    %601 = arith.index_cast %578 : i32 to index
    %c0_164 = arith.constant 0 : index
    %602 = vector.load %arg20[%601, %c0_164] : memref<64x16xf32, #tpu.memory_space<vmem>>, vector<4x16xf32>
    tpu.vector_store %arg20[%601, %c0_164], %600 {strides = array<i32>} : memref<64x16xf32, #tpu.memory_space<vmem>>, vector<4x16xf32>,
    %c6_i32_165 = arith.constant 6 : i32
    %c4_i32_166 = arith.constant 4 : i32
    %603 = arith.muli %c6_i32_165, %c4_i32_166 : i32
    %604 = tpu.assume_multiple %603, 4 : i32
    %605 = arith.index_cast %604 : i32 to index
    %c0_167 = arith.constant 0 : index
    %606 = vector.load %arg19[%605, %c0_167] : memref<64x64xf32, #tpu.memory_space<vmem>>, vector<4x64xf32>
    %607 = arith.truncf %600 : vector<4x16xf32> to vector<4x16xbf16>
    %cst_168 = arith.constant dense<0.000000e+00> : vector<4x64xf32>
    %608 = tpu.matmul %607, %445, %cst_168 {dimension_numbers = #tpu.dot_dimension_numbers<[1], [0], [0], [1], [0, 0, 1, 1], [], []>} : vector<4x16xbf16>, vector<16x64xbf16>, vector<4x64xf32> -> vector<4x64xf32>
    %609 = arith.addf %606, %608 : vector<4x64xf32>
    %610 = vector.extract_strided_slice %609 {offsets = [0, 0], sizes = [4, 48], strides = [1, 1]} : vector<4x64xf32> to vector<4x48xf32>
    %cst_169 = arith.constant 0.000000e+00 : f32
    %611 = vector.broadcast %cst_169 : f32 to vector<4x48xf32>
    %612 = arith.subf %611, %610 : vector<4x48xf32>
    %613 = math.exp %612 : vector<4x48xf32>
    %cst_170 = arith.constant 1.000000e+00 : f32
    %614 = vector.broadcast %cst_170 : f32 to vector<4x48xf32>
    %615 = arith.addf %614, %613 : vector<4x48xf32>
    %616 = tpu.reciprocal %615 {approx = true} : vector<4x48xf32> -> vector<4x48xf32>
    %617 = vector.extract_strided_slice %609 {offsets = [0, 48], sizes = [4, 16], strides = [1, 1]} : vector<4x64xf32> to vector<4x16xf32>
    %618 = math.tanh %617 : vector<4x16xf32>
    %619 = vector.extract_strided_slice %616 {offsets = [0, 0], sizes = [4, 16], strides = [1, 1]} : vector<4x48xf32> to vector<4x16xf32>
    %620 = vector.extract_strided_slice %616 {offsets = [0, 16], sizes = [4, 16], strides = [1, 1]} : vector<4x48xf32> to vector<4x16xf32>
    %621 = vector.extract_strided_slice %616 {offsets = [0, 32], sizes = [4, 16], strides = [1, 1]} : vector<4x48xf32> to vector<4x16xf32>
    %622 = arith.mulf %620, %598 : vector<4x16xf32>
    %623 = arith.mulf %619, %618 : vector<4x16xf32>
    %624 = arith.addf %622, %623 : vector<4x16xf32>
    %625 = math.tanh %624 : vector<4x16xf32>
    %626 = arith.mulf %621, %625 : vector<4x16xf32>
    %627 = arith.index_cast %604 : i32 to index
    %c0_171 = arith.constant 0 : index
    %628 = vector.load %arg20[%627, %c0_171] : memref<64x16xf32, #tpu.memory_space<vmem>>, vector<4x16xf32>
    tpu.vector_store %arg20[%627, %c0_171], %626 {strides = array<i32>} : memref<64x16xf32, #tpu.memory_space<vmem>>, vector<4x16xf32>,
    %c7_i32_172 = arith.constant 7 : i32
    %c4_i32_173 = arith.constant 4 : i32
    %629 = arith.muli %c7_i32_172, %c4_i32_173 : i32
    %630 = tpu.assume_multiple %629, 4 : i32
    %631 = arith.index_cast %630 : i32 to index
    %c0_174 = arith.constant 0 : index
    %632 = vector.load %arg19[%631, %c0_174] : memref<64x64xf32, #tpu.memory_space<vmem>>, vector<4x64xf32>
    %633 = arith.truncf %626 : vector<4x16xf32> to vector<4x16xbf16>
    %cst_175 = arith.constant dense<0.000000e+00> : vector<4x64xf32>
    %634 = tpu.matmul %633, %445, %cst_175 {dimension_numbers = #tpu.dot_dimension_numbers<[1], [0], [0], [1], [0, 0, 1, 1], [], []>} : vector<4x16xbf16>, vector<16x64xbf16>, vector<4x64xf32> -> vector<4x64xf32>
    %635 = arith.addf %632, %634 : vector<4x64xf32>
    %636 = vector.extract_strided_slice %635 {offsets = [0, 0], sizes = [4, 48], strides = [1, 1]} : vector<4x64xf32> to vector<4x48xf32>
    %cst_176 = arith.constant 0.000000e+00 : f32
    %637 = vector.broadcast %cst_176 : f32 to vector<4x48xf32>
    %638 = arith.subf %637, %636 : vector<4x48xf32>
    %639 = math.exp %638 : vector<4x48xf32>
    %cst_177 = arith.constant 1.000000e+00 : f32
    %640 = vector.broadcast %cst_177 : f32 to vector<4x48xf32>
    %641 = arith.addf %640, %639 : vector<4x48xf32>
    %642 = tpu.reciprocal %641 {approx = true} : vector<4x48xf32> -> vector<4x48xf32>
    %643 = vector.extract_strided_slice %635 {offsets = [0, 48], sizes = [4, 16], strides = [1, 1]} : vector<4x64xf32> to vector<4x16xf32>
    %644 = math.tanh %643 : vector<4x16xf32>
    %645 = vector.extract_strided_slice %642 {offsets = [0, 0], sizes = [4, 16], strides = [1, 1]} : vector<4x48xf32> to vector<4x16xf32>
    %646 = vector.extract_strided_slice %642 {offsets = [0, 16], sizes = [4, 16], strides = [1, 1]} : vector<4x48xf32> to vector<4x16xf32>
    %647 = vector.extract_strided_slice %642 {offsets = [0, 32], sizes = [4, 16], strides = [1, 1]} : vector<4x48xf32> to vector<4x16xf32>
    %648 = arith.mulf %646, %624 : vector<4x16xf32>
    %649 = arith.mulf %645, %644 : vector<4x16xf32>
    %650 = arith.addf %648, %649 : vector<4x16xf32>
    %651 = math.tanh %650 : vector<4x16xf32>
    %652 = arith.mulf %647, %651 : vector<4x16xf32>
    %653 = arith.index_cast %630 : i32 to index
    %c0_178 = arith.constant 0 : index
    %654 = vector.load %arg20[%653, %c0_178] : memref<64x16xf32, #tpu.memory_space<vmem>>, vector<4x16xf32>
    tpu.vector_store %arg20[%653, %c0_178], %652 {strides = array<i32>} : memref<64x16xf32, #tpu.memory_space<vmem>>, vector<4x16xf32>,
    %c8_i32_179 = arith.constant 8 : i32
    %c4_i32_180 = arith.constant 4 : i32
    %655 = arith.muli %c8_i32_179, %c4_i32_180 : i32
    %656 = tpu.assume_multiple %655, 4 : i32
    %657 = arith.index_cast %656 : i32 to index
    %c0_181 = arith.constant 0 : index
    %658 = vector.load %arg19[%657, %c0_181] : memref<64x64xf32, #tpu.memory_space<vmem>>, vector<4x64xf32>
    %659 = arith.truncf %652 : vector<4x16xf32> to vector<4x16xbf16>
    %cst_182 = arith.constant dense<0.000000e+00> : vector<4x64xf32>
    %660 = tpu.matmul %659, %445, %cst_182 {dimension_numbers = #tpu.dot_dimension_numbers<[1], [0], [0], [1], [0, 0, 1, 1], [], []>} : vector<4x16xbf16>, vector<16x64xbf16>, vector<4x64xf32> -> vector<4x64xf32>
    %661 = arith.addf %658, %660 : vector<4x64xf32>
    %662 = vector.extract_strided_slice %661 {offsets = [0, 0], sizes = [4, 48], strides = [1, 1]} : vector<4x64xf32> to vector<4x48xf32>
    %cst_183 = arith.constant 0.000000e+00 : f32
    %663 = vector.broadcast %cst_183 : f32 to vector<4x48xf32>
    %664 = arith.subf %663, %662 : vector<4x48xf32>
    %665 = math.exp %664 : vector<4x48xf32>
    %cst_184 = arith.constant 1.000000e+00 : f32
    %666 = vector.broadcast %cst_184 : f32 to vector<4x48xf32>
    %667 = arith.addf %666, %665 : vector<4x48xf32>
    %668 = tpu.reciprocal %667 {approx = true} : vector<4x48xf32> -> vector<4x48xf32>
    %669 = vector.extract_strided_slice %661 {offsets = [0, 48], sizes = [4, 16], strides = [1, 1]} : vector<4x64xf32> to vector<4x16xf32>
    %670 = math.tanh %669 : vector<4x16xf32>
    %671 = vector.extract_strided_slice %668 {offsets = [0, 0], sizes = [4, 16], strides = [1, 1]} : vector<4x48xf32> to vector<4x16xf32>
    %672 = vector.extract_strided_slice %668 {offsets = [0, 16], sizes = [4, 16], strides = [1, 1]} : vector<4x48xf32> to vector<4x16xf32>
    %673 = vector.extract_strided_slice %668 {offsets = [0, 32], sizes = [4, 16], strides = [1, 1]} : vector<4x48xf32> to vector<4x16xf32>
    %674 = arith.mulf %672, %650 : vector<4x16xf32>
    %675 = arith.mulf %671, %670 : vector<4x16xf32>
    %676 = arith.addf %674, %675 : vector<4x16xf32>
    %677 = math.tanh %676 : vector<4x16xf32>
    %678 = arith.mulf %673, %677 : vector<4x16xf32>
    %679 = arith.index_cast %656 : i32 to index
    %c0_185 = arith.constant 0 : index
    %680 = vector.load %arg20[%679, %c0_185] : memref<64x16xf32, #tpu.memory_space<vmem>>, vector<4x16xf32>
    tpu.vector_store %arg20[%679, %c0_185], %678 {strides = array<i32>} : memref<64x16xf32, #tpu.memory_space<vmem>>, vector<4x16xf32>,
    %c9_i32_186 = arith.constant 9 : i32
    %c4_i32_187 = arith.constant 4 : i32
    %681 = arith.muli %c9_i32_186, %c4_i32_187 : i32
    %682 = tpu.assume_multiple %681, 4 : i32
    %683 = arith.index_cast %682 : i32 to index
    %c0_188 = arith.constant 0 : index
    %684 = vector.load %arg19[%683, %c0_188] : memref<64x64xf32, #tpu.memory_space<vmem>>, vector<4x64xf32>
    %685 = arith.truncf %678 : vector<4x16xf32> to vector<4x16xbf16>
    %cst_189 = arith.constant dense<0.000000e+00> : vector<4x64xf32>
    %686 = tpu.matmul %685, %445, %cst_189 {dimension_numbers = #tpu.dot_dimension_numbers<[1], [0], [0], [1], [0, 0, 1, 1], [], []>} : vector<4x16xbf16>, vector<16x64xbf16>, vector<4x64xf32> -> vector<4x64xf32>
    %687 = arith.addf %684, %686 : vector<4x64xf32>
    %688 = vector.extract_strided_slice %687 {offsets = [0, 0], sizes = [4, 48], strides = [1, 1]} : vector<4x64xf32> to vector<4x48xf32>
    %cst_190 = arith.constant 0.000000e+00 : f32
    %689 = vector.broadcast %cst_190 : f32 to vector<4x48xf32>
    %690 = arith.subf %689, %688 : vector<4x48xf32>
    %691 = math.exp %690 : vector<4x48xf32>
    %cst_191 = arith.constant 1.000000e+00 : f32
    %692 = vector.broadcast %cst_191 : f32 to vector<4x48xf32>
    %693 = arith.addf %692, %691 : vector<4x48xf32>
    %694 = tpu.reciprocal %693 {approx = true} : vector<4x48xf32> -> vector<4x48xf32>
    %695 = vector.extract_strided_slice %687 {offsets = [0, 48], sizes = [4, 16], strides = [1, 1]} : vector<4x64xf32> to vector<4x16xf32>
    %696 = math.tanh %695 : vector<4x16xf32>
    %697 = vector.extract_strided_slice %694 {offsets = [0, 0], sizes = [4, 16], strides = [1, 1]} : vector<4x48xf32> to vector<4x16xf32>
    %698 = vector.extract_strided_slice %694 {offsets = [0, 16], sizes = [4, 16], strides = [1, 1]} : vector<4x48xf32> to vector<4x16xf32>
    %699 = vector.extract_strided_slice %694 {offsets = [0, 32], sizes = [4, 16], strides = [1, 1]} : vector<4x48xf32> to vector<4x16xf32>
    %700 = arith.mulf %698, %676 : vector<4x16xf32>
    %701 = arith.mulf %697, %696 : vector<4x16xf32>
    %702 = arith.addf %700, %701 : vector<4x16xf32>
    %703 = math.tanh %702 : vector<4x16xf32>
    %704 = arith.mulf %699, %703 : vector<4x16xf32>
    %705 = arith.index_cast %682 : i32 to index
    %c0_192 = arith.constant 0 : index
    %706 = vector.load %arg20[%705, %c0_192] : memref<64x16xf32, #tpu.memory_space<vmem>>, vector<4x16xf32>
    tpu.vector_store %arg20[%705, %c0_192], %704 {strides = array<i32>} : memref<64x16xf32, #tpu.memory_space<vmem>>, vector<4x16xf32>,
    %c10_i32_193 = arith.constant 10 : i32
    %c4_i32_194 = arith.constant 4 : i32
    %707 = arith.muli %c10_i32_193, %c4_i32_194 : i32
    %708 = tpu.assume_multiple %707, 4 : i32
    %709 = arith.index_cast %708 : i32 to index
    %c0_195 = arith.constant 0 : index
    %710 = vector.load %arg19[%709, %c0_195] : memref<64x64xf32, #tpu.memory_space<vmem>>, vector<4x64xf32>
    %711 = arith.truncf %704 : vector<4x16xf32> to vector<4x16xbf16>
    %cst_196 = arith.constant dense<0.000000e+00> : vector<4x64xf32>
    %712 = tpu.matmul %711, %445, %cst_196 {dimension_numbers = #tpu.dot_dimension_numbers<[1], [0], [0], [1], [0, 0, 1, 1], [], []>} : vector<4x16xbf16>, vector<16x64xbf16>, vector<4x64xf32> -> vector<4x64xf32>
    %713 = arith.addf %710, %712 : vector<4x64xf32>
    %714 = vector.extract_strided_slice %713 {offsets = [0, 0], sizes = [4, 48], strides = [1, 1]} : vector<4x64xf32> to vector<4x48xf32>
    %cst_197 = arith.constant 0.000000e+00 : f32
    %715 = vector.broadcast %cst_197 : f32 to vector<4x48xf32>
    %716 = arith.subf %715, %714 : vector<4x48xf32>
    %717 = math.exp %716 : vector<4x48xf32>
    %cst_198 = arith.constant 1.000000e+00 : f32
    %718 = vector.broadcast %cst_198 : f32 to vector<4x48xf32>
    %719 = arith.addf %718, %717 : vector<4x48xf32>
    %720 = tpu.reciprocal %719 {approx = true} : vector<4x48xf32> -> vector<4x48xf32>
    %721 = vector.extract_strided_slice %713 {offsets = [0, 48], sizes = [4, 16], strides = [1, 1]} : vector<4x64xf32> to vector<4x16xf32>
    %722 = math.tanh %721 : vector<4x16xf32>
    %723 = vector.extract_strided_slice %720 {offsets = [0, 0], sizes = [4, 16], strides = [1, 1]} : vector<4x48xf32> to vector<4x16xf32>
    %724 = vector.extract_strided_slice %720 {offsets = [0, 16], sizes = [4, 16], strides = [1, 1]} : vector<4x48xf32> to vector<4x16xf32>
    %725 = vector.extract_strided_slice %720 {offsets = [0, 32], sizes = [4, 16], strides = [1, 1]} : vector<4x48xf32> to vector<4x16xf32>
    %726 = arith.mulf %724, %702 : vector<4x16xf32>
    %727 = arith.mulf %723, %722 : vector<4x16xf32>
    %728 = arith.addf %726, %727 : vector<4x16xf32>
    %729 = math.tanh %728 : vector<4x16xf32>
    %730 = arith.mulf %725, %729 : vector<4x16xf32>
    %731 = arith.index_cast %708 : i32 to index
    %c0_199 = arith.constant 0 : index
    %732 = vector.load %arg20[%731, %c0_199] : memref<64x16xf32, #tpu.memory_space<vmem>>, vector<4x16xf32>
    tpu.vector_store %arg20[%731, %c0_199], %730 {strides = array<i32>} : memref<64x16xf32, #tpu.memory_space<vmem>>, vector<4x16xf32>,
    %c11_i32_200 = arith.constant 11 : i32
    %c4_i32_201 = arith.constant 4 : i32
    %733 = arith.muli %c11_i32_200, %c4_i32_201 : i32
    %734 = tpu.assume_multiple %733, 4 : i32
    %735 = arith.index_cast %734 : i32 to index
    %c0_202 = arith.constant 0 : index
    %736 = vector.load %arg19[%735, %c0_202] : memref<64x64xf32, #tpu.memory_space<vmem>>, vector<4x64xf32>
    %737 = arith.truncf %730 : vector<4x16xf32> to vector<4x16xbf16>
    %cst_203 = arith.constant dense<0.000000e+00> : vector<4x64xf32>
    %738 = tpu.matmul %737, %445, %cst_203 {dimension_numbers = #tpu.dot_dimension_numbers<[1], [0], [0], [1], [0, 0, 1, 1], [], []>} : vector<4x16xbf16>, vector<16x64xbf16>, vector<4x64xf32> -> vector<4x64xf32>
    %739 = arith.addf %736, %738 : vector<4x64xf32>
    %740 = vector.extract_strided_slice %739 {offsets = [0, 0], sizes = [4, 48], strides = [1, 1]} : vector<4x64xf32> to vector<4x48xf32>
    %cst_204 = arith.constant 0.000000e+00 : f32
    %741 = vector.broadcast %cst_204 : f32 to vector<4x48xf32>
    %742 = arith.subf %741, %740 : vector<4x48xf32>
    %743 = math.exp %742 : vector<4x48xf32>
    %cst_205 = arith.constant 1.000000e+00 : f32
    %744 = vector.broadcast %cst_205 : f32 to vector<4x48xf32>
    %745 = arith.addf %744, %743 : vector<4x48xf32>
    %746 = tpu.reciprocal %745 {approx = true} : vector<4x48xf32> -> vector<4x48xf32>
    %747 = vector.extract_strided_slice %739 {offsets = [0, 48], sizes = [4, 16], strides = [1, 1]} : vector<4x64xf32> to vector<4x16xf32>
    %748 = math.tanh %747 : vector<4x16xf32>
    %749 = vector.extract_strided_slice %746 {offsets = [0, 0], sizes = [4, 16], strides = [1, 1]} : vector<4x48xf32> to vector<4x16xf32>
    %750 = vector.extract_strided_slice %746 {offsets = [0, 16], sizes = [4, 16], strides = [1, 1]} : vector<4x48xf32> to vector<4x16xf32>
    %751 = vector.extract_strided_slice %746 {offsets = [0, 32], sizes = [4, 16], strides = [1, 1]} : vector<4x48xf32> to vector<4x16xf32>
    %752 = arith.mulf %750, %728 : vector<4x16xf32>
    %753 = arith.mulf %749, %748 : vector<4x16xf32>
    %754 = arith.addf %752, %753 : vector<4x16xf32>
    %755 = math.tanh %754 : vector<4x16xf32>
    %756 = arith.mulf %751, %755 : vector<4x16xf32>
    %757 = arith.index_cast %734 : i32 to index
    %c0_206 = arith.constant 0 : index
    %758 = vector.load %arg20[%757, %c0_206] : memref<64x16xf32, #tpu.memory_space<vmem>>, vector<4x16xf32>
    tpu.vector_store %arg20[%757, %c0_206], %756 {strides = array<i32>} : memref<64x16xf32, #tpu.memory_space<vmem>>, vector<4x16xf32>,
    %c12_i32_207 = arith.constant 12 : i32
    %c4_i32_208 = arith.constant 4 : i32
    %759 = arith.muli %c12_i32_207, %c4_i32_208 : i32
    %760 = tpu.assume_multiple %759, 4 : i32
    %761 = arith.index_cast %760 : i32 to index
    %c0_209 = arith.constant 0 : index
    %762 = vector.load %arg19[%761, %c0_209] : memref<64x64xf32, #tpu.memory_space<vmem>>, vector<4x64xf32>
    %763 = arith.truncf %756 : vector<4x16xf32> to vector<4x16xbf16>
    %cst_210 = arith.constant dense<0.000000e+00> : vector<4x64xf32>
    %764 = tpu.matmul %763, %445, %cst_210 {dimension_numbers = #tpu.dot_dimension_numbers<[1], [0], [0], [1], [0, 0, 1, 1], [], []>} : vector<4x16xbf16>, vector<16x64xbf16>, vector<4x64xf32> -> vector<4x64xf32>
    %765 = arith.addf %762, %764 : vector<4x64xf32>
    %766 = vector.extract_strided_slice %765 {offsets = [0, 0], sizes = [4, 48], strides = [1, 1]} : vector<4x64xf32> to vector<4x48xf32>
    %cst_211 = arith.constant 0.000000e+00 : f32
    %767 = vector.broadcast %cst_211 : f32 to vector<4x48xf32>
    %768 = arith.subf %767, %766 : vector<4x48xf32>
    %769 = math.exp %768 : vector<4x48xf32>
    %cst_212 = arith.constant 1.000000e+00 : f32
    %770 = vector.broadcast %cst_212 : f32 to vector<4x48xf32>
    %771 = arith.addf %770, %769 : vector<4x48xf32>
    %772 = tpu.reciprocal %771 {approx = true} : vector<4x48xf32> -> vector<4x48xf32>
    %773 = vector.extract_strided_slice %765 {offsets = [0, 48], sizes = [4, 16], strides = [1, 1]} : vector<4x64xf32> to vector<4x16xf32>
    %774 = math.tanh %773 : vector<4x16xf32>
    %775 = vector.extract_strided_slice %772 {offsets = [0, 0], sizes = [4, 16], strides = [1, 1]} : vector<4x48xf32> to vector<4x16xf32>
    %776 = vector.extract_strided_slice %772 {offsets = [0, 16], sizes = [4, 16], strides = [1, 1]} : vector<4x48xf32> to vector<4x16xf32>
    %777 = vector.extract_strided_slice %772 {offsets = [0, 32], sizes = [4, 16], strides = [1, 1]} : vector<4x48xf32> to vector<4x16xf32>
    %778 = arith.mulf %776, %754 : vector<4x16xf32>
    %779 = arith.mulf %775, %774 : vector<4x16xf32>
    %780 = arith.addf %778, %779 : vector<4x16xf32>
    %781 = math.tanh %780 : vector<4x16xf32>
    %782 = arith.mulf %777, %781 : vector<4x16xf32>
    %783 = arith.index_cast %760 : i32 to index
    %c0_213 = arith.constant 0 : index
    %784 = vector.load %arg20[%783, %c0_213] : memref<64x16xf32, #tpu.memory_space<vmem>>, vector<4x16xf32>
    tpu.vector_store %arg20[%783, %c0_213], %782 {strides = array<i32>} : memref<64x16xf32, #tpu.memory_space<vmem>>, vector<4x16xf32>,
    %c13_i32_214 = arith.constant 13 : i32
    %c4_i32_215 = arith.constant 4 : i32
    %785 = arith.muli %c13_i32_214, %c4_i32_215 : i32
    %786 = tpu.assume_multiple %785, 4 : i32
    %787 = arith.index_cast %786 : i32 to index
    %c0_216 = arith.constant 0 : index
    %788 = vector.load %arg19[%787, %c0_216] : memref<64x64xf32, #tpu.memory_space<vmem>>, vector<4x64xf32>
    %789 = arith.truncf %782 : vector<4x16xf32> to vector<4x16xbf16>
    %cst_217 = arith.constant dense<0.000000e+00> : vector<4x64xf32>
    %790 = tpu.matmul %789, %445, %cst_217 {dimension_numbers = #tpu.dot_dimension_numbers<[1], [0], [0], [1], [0, 0, 1, 1], [], []>} : vector<4x16xbf16>, vector<16x64xbf16>, vector<4x64xf32> -> vector<4x64xf32>
    %791 = arith.addf %788, %790 : vector<4x64xf32>
    %792 = vector.extract_strided_slice %791 {offsets = [0, 0], sizes = [4, 48], strides = [1, 1]} : vector<4x64xf32> to vector<4x48xf32>
    %cst_218 = arith.constant 0.000000e+00 : f32
    %793 = vector.broadcast %cst_218 : f32 to vector<4x48xf32>
    %794 = arith.subf %793, %792 : vector<4x48xf32>
    %795 = math.exp %794 : vector<4x48xf32>
    %cst_219 = arith.constant 1.000000e+00 : f32
    %796 = vector.broadcast %cst_219 : f32 to vector<4x48xf32>
    %797 = arith.addf %796, %795 : vector<4x48xf32>
    %798 = tpu.reciprocal %797 {approx = true} : vector<4x48xf32> -> vector<4x48xf32>
    %799 = vector.extract_strided_slice %791 {offsets = [0, 48], sizes = [4, 16], strides = [1, 1]} : vector<4x64xf32> to vector<4x16xf32>
    %800 = math.tanh %799 : vector<4x16xf32>
    %801 = vector.extract_strided_slice %798 {offsets = [0, 0], sizes = [4, 16], strides = [1, 1]} : vector<4x48xf32> to vector<4x16xf32>
    %802 = vector.extract_strided_slice %798 {offsets = [0, 16], sizes = [4, 16], strides = [1, 1]} : vector<4x48xf32> to vector<4x16xf32>
    %803 = vector.extract_strided_slice %798 {offsets = [0, 32], sizes = [4, 16], strides = [1, 1]} : vector<4x48xf32> to vector<4x16xf32>
    %804 = arith.mulf %802, %780 : vector<4x16xf32>
    %805 = arith.mulf %801, %800 : vector<4x16xf32>
    %806 = arith.addf %804, %805 : vector<4x16xf32>
    %807 = math.tanh %806 : vector<4x16xf32>
    %808 = arith.mulf %803, %807 : vector<4x16xf32>
    %809 = arith.index_cast %786 : i32 to index
    %c0_220 = arith.constant 0 : index
    %810 = vector.load %arg20[%809, %c0_220] : memref<64x16xf32, #tpu.memory_space<vmem>>, vector<4x16xf32>
    tpu.vector_store %arg20[%809, %c0_220], %808 {strides = array<i32>} : memref<64x16xf32, #tpu.memory_space<vmem>>, vector<4x16xf32>,
    %c14_i32_221 = arith.constant 14 : i32
    %c4_i32_222 = arith.constant 4 : i32
    %811 = arith.muli %c14_i32_221, %c4_i32_222 : i32
    %812 = tpu.assume_multiple %811, 4 : i32
    %813 = arith.index_cast %812 : i32 to index
    %c0_223 = arith.constant 0 : index
    %814 = vector.load %arg19[%813, %c0_223] : memref<64x64xf32, #tpu.memory_space<vmem>>, vector<4x64xf32>
    %815 = arith.truncf %808 : vector<4x16xf32> to vector<4x16xbf16>
    %cst_224 = arith.constant dense<0.000000e+00> : vector<4x64xf32>
    %816 = tpu.matmul %815, %445, %cst_224 {dimension_numbers = #tpu.dot_dimension_numbers<[1], [0], [0], [1], [0, 0, 1, 1], [], []>} : vector<4x16xbf16>, vector<16x64xbf16>, vector<4x64xf32> -> vector<4x64xf32>
    %817 = arith.addf %814, %816 : vector<4x64xf32>
    %818 = vector.extract_strided_slice %817 {offsets = [0, 0], sizes = [4, 48], strides = [1, 1]} : vector<4x64xf32> to vector<4x48xf32>
    %cst_225 = arith.constant 0.000000e+00 : f32
    %819 = vector.broadcast %cst_225 : f32 to vector<4x48xf32>
    %820 = arith.subf %819, %818 : vector<4x48xf32>
    %821 = math.exp %820 : vector<4x48xf32>
    %cst_226 = arith.constant 1.000000e+00 : f32
    %822 = vector.broadcast %cst_226 : f32 to vector<4x48xf32>
    %823 = arith.addf %822, %821 : vector<4x48xf32>
    %824 = tpu.reciprocal %823 {approx = true} : vector<4x48xf32> -> vector<4x48xf32>
    %825 = vector.extract_strided_slice %817 {offsets = [0, 48], sizes = [4, 16], strides = [1, 1]} : vector<4x64xf32> to vector<4x16xf32>
    %826 = math.tanh %825 : vector<4x16xf32>
    %827 = vector.extract_strided_slice %824 {offsets = [0, 0], sizes = [4, 16], strides = [1, 1]} : vector<4x48xf32> to vector<4x16xf32>
    %828 = vector.extract_strided_slice %824 {offsets = [0, 16], sizes = [4, 16], strides = [1, 1]} : vector<4x48xf32> to vector<4x16xf32>
    %829 = vector.extract_strided_slice %824 {offsets = [0, 32], sizes = [4, 16], strides = [1, 1]} : vector<4x48xf32> to vector<4x16xf32>
    %830 = arith.mulf %828, %806 : vector<4x16xf32>
    %831 = arith.mulf %827, %826 : vector<4x16xf32>
    %832 = arith.addf %830, %831 : vector<4x16xf32>
    %833 = math.tanh %832 : vector<4x16xf32>
    %834 = arith.mulf %829, %833 : vector<4x16xf32>
    %835 = arith.index_cast %812 : i32 to index
    %c0_227 = arith.constant 0 : index
    %836 = vector.load %arg20[%835, %c0_227] : memref<64x16xf32, #tpu.memory_space<vmem>>, vector<4x16xf32>
    tpu.vector_store %arg20[%835, %c0_227], %834 {strides = array<i32>} : memref<64x16xf32, #tpu.memory_space<vmem>>, vector<4x16xf32>,
    %c15_i32_228 = arith.constant 15 : i32
    %c4_i32_229 = arith.constant 4 : i32
    %837 = arith.muli %c15_i32_228, %c4_i32_229 : i32
    %838 = tpu.assume_multiple %837, 4 : i32
    %839 = arith.index_cast %838 : i32 to index
    %c0_230 = arith.constant 0 : index
    %840 = vector.load %arg19[%839, %c0_230] : memref<64x64xf32, #tpu.memory_space<vmem>>, vector<4x64xf32>
    %841 = arith.truncf %834 : vector<4x16xf32> to vector<4x16xbf16>
    %cst_231 = arith.constant dense<0.000000e+00> : vector<4x64xf32>
    %842 = tpu.matmul %841, %445, %cst_231 {dimension_numbers = #tpu.dot_dimension_numbers<[1], [0], [0], [1], [0, 0, 1, 1], [], []>} : vector<4x16xbf16>, vector<16x64xbf16>, vector<4x64xf32> -> vector<4x64xf32>
    %843 = arith.addf %840, %842 : vector<4x64xf32>
    %844 = vector.extract_strided_slice %843 {offsets = [0, 0], sizes = [4, 48], strides = [1, 1]} : vector<4x64xf32> to vector<4x48xf32>
    %cst_232 = arith.constant 0.000000e+00 : f32
    %845 = vector.broadcast %cst_232 : f32 to vector<4x48xf32>
    %846 = arith.subf %845, %844 : vector<4x48xf32>
    %847 = math.exp %846 : vector<4x48xf32>
    %cst_233 = arith.constant 1.000000e+00 : f32
    %848 = vector.broadcast %cst_233 : f32 to vector<4x48xf32>
    %849 = arith.addf %848, %847 : vector<4x48xf32>
    %850 = tpu.reciprocal %849 {approx = true} : vector<4x48xf32> -> vector<4x48xf32>
    %851 = vector.extract_strided_slice %843 {offsets = [0, 48], sizes = [4, 16], strides = [1, 1]} : vector<4x64xf32> to vector<4x16xf32>
    %852 = math.tanh %851 : vector<4x16xf32>
    %853 = vector.extract_strided_slice %850 {offsets = [0, 0], sizes = [4, 16], strides = [1, 1]} : vector<4x48xf32> to vector<4x16xf32>
    %854 = vector.extract_strided_slice %850 {offsets = [0, 16], sizes = [4, 16], strides = [1, 1]} : vector<4x48xf32> to vector<4x16xf32>
    %855 = vector.extract_strided_slice %850 {offsets = [0, 32], sizes = [4, 16], strides = [1, 1]} : vector<4x48xf32> to vector<4x16xf32>
    %856 = arith.mulf %854, %832 : vector<4x16xf32>
    %857 = arith.mulf %853, %852 : vector<4x16xf32>
    %858 = arith.addf %856, %857 : vector<4x16xf32>
    %859 = math.tanh %858 : vector<4x16xf32>
    %860 = arith.mulf %855, %859 : vector<4x16xf32>
    %861 = arith.index_cast %838 : i32 to index
    %c0_234 = arith.constant 0 : index
    %862 = vector.load %arg20[%861, %c0_234] : memref<64x16xf32, #tpu.memory_space<vmem>>, vector<4x16xf32>
    tpu.vector_store %arg20[%861, %c0_234], %860 {strides = array<i32>} : memref<64x16xf32, #tpu.memory_space<vmem>>, vector<4x16xf32>,
    %c16_i32_235 = arith.constant 16 : i32
    %c0_236 = arith.constant 0 : index
    %c0_237 = arith.constant 0 : index
    %863 = vector.load %arg20[%c0_236, %c0_237] : memref<64x16xf32, #tpu.memory_space<vmem>>, vector<64x16xf32>
    %cst_238 = arith.constant 0.000000e+00 : f32
    %864 = vector.broadcast %cst_238 : f32 to vector<64x16xf32>
    %865 = arith.maximumf %863, %864 : vector<64x16xf32>
    %c0_239 = arith.constant 0 : index
    %c0_240 = arith.constant 0 : index
    %866 = vector.load %arg6[%c0_239, %c0_240] : memref<16x32xf32, #tpu.memory_space<vmem>>, vector<16x32xf32>
    %867 = arith.truncf %865 : vector<64x16xf32> to vector<64x16xbf16>
    %868 = arith.truncf %866 : vector<16x32xf32> to vector<16x32xbf16>
    %cst_241 = arith.constant dense<0.000000e+00> : vector<64x32xf32>
    %869 = tpu.matmul %867, %868, %cst_241 {dimension_numbers = #tpu.dot_dimension_numbers<[1], [0], [0], [1], [0, 0, 1, 1], [], []>} : vector<64x16xbf16>, vector<16x32xbf16>, vector<64x32xf32> -> vector<64x32xf32>
    %870 = vector.broadcast %4 : vector<1x32xf32> to vector<64x32xf32>
    %871 = arith.addf %869, %870 : vector<64x32xf32>
    %c0_242 = arith.constant 0 : index
    %c0_243 = arith.constant 0 : index
    %872 = vector.load %arg21[%c0_242, %c0_243] : memref<64x32xf32, #tpu.memory_space<vmem>>, vector<64x32xf32>
    tpu.vector_store %arg21[%c0_242, %c0_243], %871 {strides = array<i32>} : memref<64x32xf32, #tpu.memory_space<vmem>>, vector<64x32xf32>,
    %c0_244 = arith.constant 0 : index
    %c0_245 = arith.constant 0 : index
    %873 = vector.load %arg7[%c0_244, %c0_245] : memref<8x32xf32, #tpu.memory_space<vmem>>, vector<8x32xf32>
    %874 = arith.truncf %873 : vector<8x32xf32> to vector<8x32xbf16>
    %cst_246 = arith.constant 0.000000e+00 : f32
    %875 = vector.broadcast %cst_246 : f32 to vector<4x8xf32>
    %c0_i32_247 = arith.constant 0 : i32
    %c4_i32_248 = arith.constant 4 : i32
    %876 = arith.muli %c0_i32_247, %c4_i32_248 : i32
    %877 = tpu.assume_multiple %876, 4 : i32
    %878 = arith.index_cast %877 : i32 to index
    %c0_249 = arith.constant 0 : index
    %879 = vector.load %arg21[%878, %c0_249] : memref<64x32xf32, #tpu.memory_space<vmem>>, vector<4x32xf32>
    %880 = arith.truncf %875 : vector<4x8xf32> to vector<4x8xbf16>
    %cst_250 = arith.constant dense<0.000000e+00> : vector<4x32xf32>
    %881 = tpu.matmul %880, %874, %cst_250 {dimension_numbers = #tpu.dot_dimension_numbers<[1], [0], [0], [1], [0, 0, 1, 1], [], []>} : vector<4x8xbf16>, vector<8x32xbf16>, vector<4x32xf32> -> vector<4x32xf32>
    %882 = arith.addf %879, %881 : vector<4x32xf32>
    %883 = vector.extract_strided_slice %882 {offsets = [0, 0], sizes = [4, 24], strides = [1, 1]} : vector<4x32xf32> to vector<4x24xf32>
    %cst_251 = arith.constant 0.000000e+00 : f32
    %884 = vector.broadcast %cst_251 : f32 to vector<4x24xf32>
    %885 = arith.subf %884, %883 : vector<4x24xf32>
    %886 = math.exp %885 : vector<4x24xf32>
    %cst_252 = arith.constant 1.000000e+00 : f32
    %887 = vector.broadcast %cst_252 : f32 to vector<4x24xf32>
    %888 = arith.addf %887, %886 : vector<4x24xf32>
    %889 = tpu.reciprocal %888 {approx = true} : vector<4x24xf32> -> vector<4x24xf32>
    %890 = vector.extract_strided_slice %882 {offsets = [0, 24], sizes = [4, 8], strides = [1, 1]} : vector<4x32xf32> to vector<4x8xf32>
    %891 = math.tanh %890 : vector<4x8xf32>
    %892 = vector.extract_strided_slice %889 {offsets = [0, 0], sizes = [4, 8], strides = [1, 1]} : vector<4x24xf32> to vector<4x8xf32>
    %893 = vector.extract_strided_slice %889 {offsets = [0, 8], sizes = [4, 8], strides = [1, 1]} : vector<4x24xf32> to vector<4x8xf32>
    %894 = vector.extract_strided_slice %889 {offsets = [0, 16], sizes = [4, 8], strides = [1, 1]} : vector<4x24xf32> to vector<4x8xf32>
    %895 = arith.mulf %893, %875 : vector<4x8xf32>
    %896 = arith.mulf %892, %891 : vector<4x8xf32>
    %897 = arith.addf %895, %896 : vector<4x8xf32>
    %898 = math.tanh %897 : vector<4x8xf32>
    %899 = arith.mulf %894, %898 : vector<4x8xf32>
    %900 = arith.index_cast %877 : i32 to index
    %c0_253 = arith.constant 0 : index
    %901 = vector.load %arg22[%900, %c0_253] : memref<64x8xf32, #tpu.memory_space<vmem>>, vector<4x8xf32>
    tpu.vector_store %arg22[%900, %c0_253], %899 {strides = array<i32>} : memref<64x8xf32, #tpu.memory_space<vmem>>, vector<4x8xf32>,
    %c1_i32_254 = arith.constant 1 : i32
    %c4_i32_255 = arith.constant 4 : i32
    %902 = arith.muli %c1_i32_254, %c4_i32_255 : i32
    %903 = tpu.assume_multiple %902, 4 : i32
    %904 = arith.index_cast %903 : i32 to index
    %c0_256 = arith.constant 0 : index
    %905 = vector.load %arg21[%904, %c0_256] : memref<64x32xf32, #tpu.memory_space<vmem>>, vector<4x32xf32>
    %906 = arith.truncf %899 : vector<4x8xf32> to vector<4x8xbf16>
    %cst_257 = arith.constant dense<0.000000e+00> : vector<4x32xf32>
    %907 = tpu.matmul %906, %874, %cst_257 {dimension_numbers = #tpu.dot_dimension_numbers<[1], [0], [0], [1], [0, 0, 1, 1], [], []>} : vector<4x8xbf16>, vector<8x32xbf16>, vector<4x32xf32> -> vector<4x32xf32>
    %908 = arith.addf %905, %907 : vector<4x32xf32>
    %909 = vector.extract_strided_slice %908 {offsets = [0, 0], sizes = [4, 24], strides = [1, 1]} : vector<4x32xf32> to vector<4x24xf32>
    %cst_258 = arith.constant 0.000000e+00 : f32
    %910 = vector.broadcast %cst_258 : f32 to vector<4x24xf32>
    %911 = arith.subf %910, %909 : vector<4x24xf32>
    %912 = math.exp %911 : vector<4x24xf32>
    %cst_259 = arith.constant 1.000000e+00 : f32
    %913 = vector.broadcast %cst_259 : f32 to vector<4x24xf32>
    %914 = arith.addf %913, %912 : vector<4x24xf32>
    %915 = tpu.reciprocal %914 {approx = true} : vector<4x24xf32> -> vector<4x24xf32>
    %916 = vector.extract_strided_slice %908 {offsets = [0, 24], sizes = [4, 8], strides = [1, 1]} : vector<4x32xf32> to vector<4x8xf32>
    %917 = math.tanh %916 : vector<4x8xf32>
    %918 = vector.extract_strided_slice %915 {offsets = [0, 0], sizes = [4, 8], strides = [1, 1]} : vector<4x24xf32> to vector<4x8xf32>
    %919 = vector.extract_strided_slice %915 {offsets = [0, 8], sizes = [4, 8], strides = [1, 1]} : vector<4x24xf32> to vector<4x8xf32>
    %920 = vector.extract_strided_slice %915 {offsets = [0, 16], sizes = [4, 8], strides = [1, 1]} : vector<4x24xf32> to vector<4x8xf32>
    %921 = arith.mulf %919, %897 : vector<4x8xf32>
    %922 = arith.mulf %918, %917 : vector<4x8xf32>
    %923 = arith.addf %921, %922 : vector<4x8xf32>
    %924 = math.tanh %923 : vector<4x8xf32>
    %925 = arith.mulf %920, %924 : vector<4x8xf32>
    %926 = arith.index_cast %903 : i32 to index
    %c0_260 = arith.constant 0 : index
    %927 = vector.load %arg22[%926, %c0_260] : memref<64x8xf32, #tpu.memory_space<vmem>>, vector<4x8xf32>
    tpu.vector_store %arg22[%926, %c0_260], %925 {strides = array<i32>} : memref<64x8xf32, #tpu.memory_space<vmem>>, vector<4x8xf32>,
    %c2_i32_261 = arith.constant 2 : i32
    %c4_i32_262 = arith.constant 4 : i32
    %928 = arith.muli %c2_i32_261, %c4_i32_262 : i32
    %929 = tpu.assume_multiple %928, 4 : i32
    %930 = arith.index_cast %929 : i32 to index
    %c0_263 = arith.constant 0 : index
    %931 = vector.load %arg21[%930, %c0_263] : memref<64x32xf32, #tpu.memory_space<vmem>>, vector<4x32xf32>
    %932 = arith.truncf %925 : vector<4x8xf32> to vector<4x8xbf16>
    %cst_264 = arith.constant dense<0.000000e+00> : vector<4x32xf32>
    %933 = tpu.matmul %932, %874, %cst_264 {dimension_numbers = #tpu.dot_dimension_numbers<[1], [0], [0], [1], [0, 0, 1, 1], [], []>} : vector<4x8xbf16>, vector<8x32xbf16>, vector<4x32xf32> -> vector<4x32xf32>
    %934 = arith.addf %931, %933 : vector<4x32xf32>
    %935 = vector.extract_strided_slice %934 {offsets = [0, 0], sizes = [4, 24], strides = [1, 1]} : vector<4x32xf32> to vector<4x24xf32>
    %cst_265 = arith.constant 0.000000e+00 : f32
    %936 = vector.broadcast %cst_265 : f32 to vector<4x24xf32>
    %937 = arith.subf %936, %935 : vector<4x24xf32>
    %938 = math.exp %937 : vector<4x24xf32>
    %cst_266 = arith.constant 1.000000e+00 : f32
    %939 = vector.broadcast %cst_266 : f32 to vector<4x24xf32>
    %940 = arith.addf %939, %938 : vector<4x24xf32>
    %941 = tpu.reciprocal %940 {approx = true} : vector<4x24xf32> -> vector<4x24xf32>
    %942 = vector.extract_strided_slice %934 {offsets = [0, 24], sizes = [4, 8], strides = [1, 1]} : vector<4x32xf32> to vector<4x8xf32>
    %943 = math.tanh %942 : vector<4x8xf32>
    %944 = vector.extract_strided_slice %941 {offsets = [0, 0], sizes = [4, 8], strides = [1, 1]} : vector<4x24xf32> to vector<4x8xf32>
    %945 = vector.extract_strided_slice %941 {offsets = [0, 8], sizes = [4, 8], strides = [1, 1]} : vector<4x24xf32> to vector<4x8xf32>
    %946 = vector.extract_strided_slice %941 {offsets = [0, 16], sizes = [4, 8], strides = [1, 1]} : vector<4x24xf32> to vector<4x8xf32>
    %947 = arith.mulf %945, %923 : vector<4x8xf32>
    %948 = arith.mulf %944, %943 : vector<4x8xf32>
    %949 = arith.addf %947, %948 : vector<4x8xf32>
    %950 = math.tanh %949 : vector<4x8xf32>
    %951 = arith.mulf %946, %950 : vector<4x8xf32>
    %952 = arith.index_cast %929 : i32 to index
    %c0_267 = arith.constant 0 : index
    %953 = vector.load %arg22[%952, %c0_267] : memref<64x8xf32, #tpu.memory_space<vmem>>, vector<4x8xf32>
    tpu.vector_store %arg22[%952, %c0_267], %951 {strides = array<i32>} : memref<64x8xf32, #tpu.memory_space<vmem>>, vector<4x8xf32>,
    %c3_i32_268 = arith.constant 3 : i32
    %c4_i32_269 = arith.constant 4 : i32
    %954 = arith.muli %c3_i32_268, %c4_i32_269 : i32
    %955 = tpu.assume_multiple %954, 4 : i32
    %956 = arith.index_cast %955 : i32 to index
    %c0_270 = arith.constant 0 : index
    %957 = vector.load %arg21[%956, %c0_270] : memref<64x32xf32, #tpu.memory_space<vmem>>, vector<4x32xf32>
    %958 = arith.truncf %951 : vector<4x8xf32> to vector<4x8xbf16>
    %cst_271 = arith.constant dense<0.000000e+00> : vector<4x32xf32>
    %959 = tpu.matmul %958, %874, %cst_271 {dimension_numbers = #tpu.dot_dimension_numbers<[1], [0], [0], [1], [0, 0, 1, 1], [], []>} : vector<4x8xbf16>, vector<8x32xbf16>, vector<4x32xf32> -> vector<4x32xf32>
    %960 = arith.addf %957, %959 : vector<4x32xf32>
    %961 = vector.extract_strided_slice %960 {offsets = [0, 0], sizes = [4, 24], strides = [1, 1]} : vector<4x32xf32> to vector<4x24xf32>
    %cst_272 = arith.constant 0.000000e+00 : f32
    %962 = vector.broadcast %cst_272 : f32 to vector<4x24xf32>
    %963 = arith.subf %962, %961 : vector<4x24xf32>
    %964 = math.exp %963 : vector<4x24xf32>
    %cst_273 = arith.constant 1.000000e+00 : f32
    %965 = vector.broadcast %cst_273 : f32 to vector<4x24xf32>
    %966 = arith.addf %965, %964 : vector<4x24xf32>
    %967 = tpu.reciprocal %966 {approx = true} : vector<4x24xf32> -> vector<4x24xf32>
    %968 = vector.extract_strided_slice %960 {offsets = [0, 24], sizes = [4, 8], strides = [1, 1]} : vector<4x32xf32> to vector<4x8xf32>
    %969 = math.tanh %968 : vector<4x8xf32>
    %970 = vector.extract_strided_slice %967 {offsets = [0, 0], sizes = [4, 8], strides = [1, 1]} : vector<4x24xf32> to vector<4x8xf32>
    %971 = vector.extract_strided_slice %967 {offsets = [0, 8], sizes = [4, 8], strides = [1, 1]} : vector<4x24xf32> to vector<4x8xf32>
    %972 = vector.extract_strided_slice %967 {offsets = [0, 16], sizes = [4, 8], strides = [1, 1]} : vector<4x24xf32> to vector<4x8xf32>
    %973 = arith.mulf %971, %949 : vector<4x8xf32>
    %974 = arith.mulf %970, %969 : vector<4x8xf32>
    %975 = arith.addf %973, %974 : vector<4x8xf32>
    %976 = math.tanh %975 : vector<4x8xf32>
    %977 = arith.mulf %972, %976 : vector<4x8xf32>
    %978 = arith.index_cast %955 : i32 to index
    %c0_274 = arith.constant 0 : index
    %979 = vector.load %arg22[%978, %c0_274] : memref<64x8xf32, #tpu.memory_space<vmem>>, vector<4x8xf32>
    tpu.vector_store %arg22[%978, %c0_274], %977 {strides = array<i32>} : memref<64x8xf32, #tpu.memory_space<vmem>>, vector<4x8xf32>,
    %c4_i32_275 = arith.constant 4 : i32
    %c4_i32_276 = arith.constant 4 : i32
    %980 = arith.muli %c4_i32_275, %c4_i32_276 : i32
    %981 = tpu.assume_multiple %980, 4 : i32
    %982 = arith.index_cast %981 : i32 to index
    %c0_277 = arith.constant 0 : index
    %983 = vector.load %arg21[%982, %c0_277] : memref<64x32xf32, #tpu.memory_space<vmem>>, vector<4x32xf32>
    %984 = arith.truncf %977 : vector<4x8xf32> to vector<4x8xbf16>
    %cst_278 = arith.constant dense<0.000000e+00> : vector<4x32xf32>
    %985 = tpu.matmul %984, %874, %cst_278 {dimension_numbers = #tpu.dot_dimension_numbers<[1], [0], [0], [1], [0, 0, 1, 1], [], []>} : vector<4x8xbf16>, vector<8x32xbf16>, vector<4x32xf32> -> vector<4x32xf32>
    %986 = arith.addf %983, %985 : vector<4x32xf32>
    %987 = vector.extract_strided_slice %986 {offsets = [0, 0], sizes = [4, 24], strides = [1, 1]} : vector<4x32xf32> to vector<4x24xf32>
    %cst_279 = arith.constant 0.000000e+00 : f32
    %988 = vector.broadcast %cst_279 : f32 to vector<4x24xf32>
    %989 = arith.subf %988, %987 : vector<4x24xf32>
    %990 = math.exp %989 : vector<4x24xf32>
    %cst_280 = arith.constant 1.000000e+00 : f32
    %991 = vector.broadcast %cst_280 : f32 to vector<4x24xf32>
    %992 = arith.addf %991, %990 : vector<4x24xf32>
    %993 = tpu.reciprocal %992 {approx = true} : vector<4x24xf32> -> vector<4x24xf32>
    %994 = vector.extract_strided_slice %986 {offsets = [0, 24], sizes = [4, 8], strides = [1, 1]} : vector<4x32xf32> to vector<4x8xf32>
    %995 = math.tanh %994 : vector<4x8xf32>
    %996 = vector.extract_strided_slice %993 {offsets = [0, 0], sizes = [4, 8], strides = [1, 1]} : vector<4x24xf32> to vector<4x8xf32>
    %997 = vector.extract_strided_slice %993 {offsets = [0, 8], sizes = [4, 8], strides = [1, 1]} : vector<4x24xf32> to vector<4x8xf32>
    %998 = vector.extract_strided_slice %993 {offsets = [0, 16], sizes = [4, 8], strides = [1, 1]} : vector<4x24xf32> to vector<4x8xf32>
    %999 = arith.mulf %997, %975 : vector<4x8xf32>
    %1000 = arith.mulf %996, %995 : vector<4x8xf32>
    %1001 = arith.addf %999, %1000 : vector<4x8xf32>
    %1002 = math.tanh %1001 : vector<4x8xf32>
    %1003 = arith.mulf %998, %1002 : vector<4x8xf32>
    %1004 = arith.index_cast %981 : i32 to index
    %c0_281 = arith.constant 0 : index
    %1005 = vector.load %arg22[%1004, %c0_281] : memref<64x8xf32, #tpu.memory_space<vmem>>, vector<4x8xf32>
    tpu.vector_store %arg22[%1004, %c0_281], %1003 {strides = array<i32>} : memref<64x8xf32, #tpu.memory_space<vmem>>, vector<4x8xf32>,
    %c5_i32_282 = arith.constant 5 : i32
    %c4_i32_283 = arith.constant 4 : i32
    %1006 = arith.muli %c5_i32_282, %c4_i32_283 : i32
    %1007 = tpu.assume_multiple %1006, 4 : i32
    %1008 = arith.index_cast %1007 : i32 to index
    %c0_284 = arith.constant 0 : index
    %1009 = vector.load %arg21[%1008, %c0_284] : memref<64x32xf32, #tpu.memory_space<vmem>>, vector<4x32xf32>
    %1010 = arith.truncf %1003 : vector<4x8xf32> to vector<4x8xbf16>
    %cst_285 = arith.constant dense<0.000000e+00> : vector<4x32xf32>
    %1011 = tpu.matmul %1010, %874, %cst_285 {dimension_numbers = #tpu.dot_dimension_numbers<[1], [0], [0], [1], [0, 0, 1, 1], [], []>} : vector<4x8xbf16>, vector<8x32xbf16>, vector<4x32xf32> -> vector<4x32xf32>
    %1012 = arith.addf %1009, %1011 : vector<4x32xf32>
    %1013 = vector.extract_strided_slice %1012 {offsets = [0, 0], sizes = [4, 24], strides = [1, 1]} : vector<4x32xf32> to vector<4x24xf32>
    %cst_286 = arith.constant 0.000000e+00 : f32
    %1014 = vector.broadcast %cst_286 : f32 to vector<4x24xf32>
    %1015 = arith.subf %1014, %1013 : vector<4x24xf32>
    %1016 = math.exp %1015 : vector<4x24xf32>
    %cst_287 = arith.constant 1.000000e+00 : f32
    %1017 = vector.broadcast %cst_287 : f32 to vector<4x24xf32>
    %1018 = arith.addf %1017, %1016 : vector<4x24xf32>
    %1019 = tpu.reciprocal %1018 {approx = true} : vector<4x24xf32> -> vector<4x24xf32>
    %1020 = vector.extract_strided_slice %1012 {offsets = [0, 24], sizes = [4, 8], strides = [1, 1]} : vector<4x32xf32> to vector<4x8xf32>
    %1021 = math.tanh %1020 : vector<4x8xf32>
    %1022 = vector.extract_strided_slice %1019 {offsets = [0, 0], sizes = [4, 8], strides = [1, 1]} : vector<4x24xf32> to vector<4x8xf32>
    %1023 = vector.extract_strided_slice %1019 {offsets = [0, 8], sizes = [4, 8], strides = [1, 1]} : vector<4x24xf32> to vector<4x8xf32>
    %1024 = vector.extract_strided_slice %1019 {offsets = [0, 16], sizes = [4, 8], strides = [1, 1]} : vector<4x24xf32> to vector<4x8xf32>
    %1025 = arith.mulf %1023, %1001 : vector<4x8xf32>
    %1026 = arith.mulf %1022, %1021 : vector<4x8xf32>
    %1027 = arith.addf %1025, %1026 : vector<4x8xf32>
    %1028 = math.tanh %1027 : vector<4x8xf32>
    %1029 = arith.mulf %1024, %1028 : vector<4x8xf32>
    %1030 = arith.index_cast %1007 : i32 to index
    %c0_288 = arith.constant 0 : index
    %1031 = vector.load %arg22[%1030, %c0_288] : memref<64x8xf32, #tpu.memory_space<vmem>>, vector<4x8xf32>
    tpu.vector_store %arg22[%1030, %c0_288], %1029 {strides = array<i32>} : memref<64x8xf32, #tpu.memory_space<vmem>>, vector<4x8xf32>,
    %c6_i32_289 = arith.constant 6 : i32
    %c4_i32_290 = arith.constant 4 : i32
    %1032 = arith.muli %c6_i32_289, %c4_i32_290 : i32
    %1033 = tpu.assume_multiple %1032, 4 : i32
    %1034 = arith.index_cast %1033 : i32 to index
    %c0_291 = arith.constant 0 : index
    %1035 = vector.load %arg21[%1034, %c0_291] : memref<64x32xf32, #tpu.memory_space<vmem>>, vector<4x32xf32>
    %1036 = arith.truncf %1029 : vector<4x8xf32> to vector<4x8xbf16>
    %cst_292 = arith.constant dense<0.000000e+00> : vector<4x32xf32>
    %1037 = tpu.matmul %1036, %874, %cst_292 {dimension_numbers = #tpu.dot_dimension_numbers<[1], [0], [0], [1], [0, 0, 1, 1], [], []>} : vector<4x8xbf16>, vector<8x32xbf16>, vector<4x32xf32> -> vector<4x32xf32>
    %1038 = arith.addf %1035, %1037 : vector<4x32xf32>
    %1039 = vector.extract_strided_slice %1038 {offsets = [0, 0], sizes = [4, 24], strides = [1, 1]} : vector<4x32xf32> to vector<4x24xf32>
    %cst_293 = arith.constant 0.000000e+00 : f32
    %1040 = vector.broadcast %cst_293 : f32 to vector<4x24xf32>
    %1041 = arith.subf %1040, %1039 : vector<4x24xf32>
    %1042 = math.exp %1041 : vector<4x24xf32>
    %cst_294 = arith.constant 1.000000e+00 : f32
    %1043 = vector.broadcast %cst_294 : f32 to vector<4x24xf32>
    %1044 = arith.addf %1043, %1042 : vector<4x24xf32>
    %1045 = tpu.reciprocal %1044 {approx = true} : vector<4x24xf32> -> vector<4x24xf32>
    %1046 = vector.extract_strided_slice %1038 {offsets = [0, 24], sizes = [4, 8], strides = [1, 1]} : vector<4x32xf32> to vector<4x8xf32>
    %1047 = math.tanh %1046 : vector<4x8xf32>
    %1048 = vector.extract_strided_slice %1045 {offsets = [0, 0], sizes = [4, 8], strides = [1, 1]} : vector<4x24xf32> to vector<4x8xf32>
    %1049 = vector.extract_strided_slice %1045 {offsets = [0, 8], sizes = [4, 8], strides = [1, 1]} : vector<4x24xf32> to vector<4x8xf32>
    %1050 = vector.extract_strided_slice %1045 {offsets = [0, 16], sizes = [4, 8], strides = [1, 1]} : vector<4x24xf32> to vector<4x8xf32>
    %1051 = arith.mulf %1049, %1027 : vector<4x8xf32>
    %1052 = arith.mulf %1048, %1047 : vector<4x8xf32>
    %1053 = arith.addf %1051, %1052 : vector<4x8xf32>
    %1054 = math.tanh %1053 : vector<4x8xf32>
    %1055 = arith.mulf %1050, %1054 : vector<4x8xf32>
    %1056 = arith.index_cast %1033 : i32 to index
    %c0_295 = arith.constant 0 : index
    %1057 = vector.load %arg22[%1056, %c0_295] : memref<64x8xf32, #tpu.memory_space<vmem>>, vector<4x8xf32>
    tpu.vector_store %arg22[%1056, %c0_295], %1055 {strides = array<i32>} : memref<64x8xf32, #tpu.memory_space<vmem>>, vector<4x8xf32>,
    %c7_i32_296 = arith.constant 7 : i32
    %c4_i32_297 = arith.constant 4 : i32
    %1058 = arith.muli %c7_i32_296, %c4_i32_297 : i32
    %1059 = tpu.assume_multiple %1058, 4 : i32
    %1060 = arith.index_cast %1059 : i32 to index
    %c0_298 = arith.constant 0 : index
    %1061 = vector.load %arg21[%1060, %c0_298] : memref<64x32xf32, #tpu.memory_space<vmem>>, vector<4x32xf32>
    %1062 = arith.truncf %1055 : vector<4x8xf32> to vector<4x8xbf16>
    %cst_299 = arith.constant dense<0.000000e+00> : vector<4x32xf32>
    %1063 = tpu.matmul %1062, %874, %cst_299 {dimension_numbers = #tpu.dot_dimension_numbers<[1], [0], [0], [1], [0, 0, 1, 1], [], []>} : vector<4x8xbf16>, vector<8x32xbf16>, vector<4x32xf32> -> vector<4x32xf32>
    %1064 = arith.addf %1061, %1063 : vector<4x32xf32>
    %1065 = vector.extract_strided_slice %1064 {offsets = [0, 0], sizes = [4, 24], strides = [1, 1]} : vector<4x32xf32> to vector<4x24xf32>
    %cst_300 = arith.constant 0.000000e+00 : f32
    %1066 = vector.broadcast %cst_300 : f32 to vector<4x24xf32>
    %1067 = arith.subf %1066, %1065 : vector<4x24xf32>
    %1068 = math.exp %1067 : vector<4x24xf32>
    %cst_301 = arith.constant 1.000000e+00 : f32
    %1069 = vector.broadcast %cst_301 : f32 to vector<4x24xf32>
    %1070 = arith.addf %1069, %1068 : vector<4x24xf32>
    %1071 = tpu.reciprocal %1070 {approx = true} : vector<4x24xf32> -> vector<4x24xf32>
    %1072 = vector.extract_strided_slice %1064 {offsets = [0, 24], sizes = [4, 8], strides = [1, 1]} : vector<4x32xf32> to vector<4x8xf32>
    %1073 = math.tanh %1072 : vector<4x8xf32>
    %1074 = vector.extract_strided_slice %1071 {offsets = [0, 0], sizes = [4, 8], strides = [1, 1]} : vector<4x24xf32> to vector<4x8xf32>
    %1075 = vector.extract_strided_slice %1071 {offsets = [0, 8], sizes = [4, 8], strides = [1, 1]} : vector<4x24xf32> to vector<4x8xf32>
    %1076 = vector.extract_strided_slice %1071 {offsets = [0, 16], sizes = [4, 8], strides = [1, 1]} : vector<4x24xf32> to vector<4x8xf32>
    %1077 = arith.mulf %1075, %1053 : vector<4x8xf32>
    %1078 = arith.mulf %1074, %1073 : vector<4x8xf32>
    %1079 = arith.addf %1077, %1078 : vector<4x8xf32>
    %1080 = math.tanh %1079 : vector<4x8xf32>
    %1081 = arith.mulf %1076, %1080 : vector<4x8xf32>
    %1082 = arith.index_cast %1059 : i32 to index
    %c0_302 = arith.constant 0 : index
    %1083 = vector.load %arg22[%1082, %c0_302] : memref<64x8xf32, #tpu.memory_space<vmem>>, vector<4x8xf32>
    tpu.vector_store %arg22[%1082, %c0_302], %1081 {strides = array<i32>} : memref<64x8xf32, #tpu.memory_space<vmem>>, vector<4x8xf32>,
    %c8_i32_303 = arith.constant 8 : i32
    %c4_i32_304 = arith.constant 4 : i32
    %1084 = arith.muli %c8_i32_303, %c4_i32_304 : i32
    %1085 = tpu.assume_multiple %1084, 4 : i32
    %1086 = arith.index_cast %1085 : i32 to index
    %c0_305 = arith.constant 0 : index
    %1087 = vector.load %arg21[%1086, %c0_305] : memref<64x32xf32, #tpu.memory_space<vmem>>, vector<4x32xf32>
    %1088 = arith.truncf %1081 : vector<4x8xf32> to vector<4x8xbf16>
    %cst_306 = arith.constant dense<0.000000e+00> : vector<4x32xf32>
    %1089 = tpu.matmul %1088, %874, %cst_306 {dimension_numbers = #tpu.dot_dimension_numbers<[1], [0], [0], [1], [0, 0, 1, 1], [], []>} : vector<4x8xbf16>, vector<8x32xbf16>, vector<4x32xf32> -> vector<4x32xf32>
    %1090 = arith.addf %1087, %1089 : vector<4x32xf32>
    %1091 = vector.extract_strided_slice %1090 {offsets = [0, 0], sizes = [4, 24], strides = [1, 1]} : vector<4x32xf32> to vector<4x24xf32>
    %cst_307 = arith.constant 0.000000e+00 : f32
    %1092 = vector.broadcast %cst_307 : f32 to vector<4x24xf32>
    %1093 = arith.subf %1092, %1091 : vector<4x24xf32>
    %1094 = math.exp %1093 : vector<4x24xf32>
    %cst_308 = arith.constant 1.000000e+00 : f32
    %1095 = vector.broadcast %cst_308 : f32 to vector<4x24xf32>
    %1096 = arith.addf %1095, %1094 : vector<4x24xf32>
    %1097 = tpu.reciprocal %1096 {approx = true} : vector<4x24xf32> -> vector<4x24xf32>
    %1098 = vector.extract_strided_slice %1090 {offsets = [0, 24], sizes = [4, 8], strides = [1, 1]} : vector<4x32xf32> to vector<4x8xf32>
    %1099 = math.tanh %1098 : vector<4x8xf32>
    %1100 = vector.extract_strided_slice %1097 {offsets = [0, 0], sizes = [4, 8], strides = [1, 1]} : vector<4x24xf32> to vector<4x8xf32>
    %1101 = vector.extract_strided_slice %1097 {offsets = [0, 8], sizes = [4, 8], strides = [1, 1]} : vector<4x24xf32> to vector<4x8xf32>
    %1102 = vector.extract_strided_slice %1097 {offsets = [0, 16], sizes = [4, 8], strides = [1, 1]} : vector<4x24xf32> to vector<4x8xf32>
    %1103 = arith.mulf %1101, %1079 : vector<4x8xf32>
    %1104 = arith.mulf %1100, %1099 : vector<4x8xf32>
    %1105 = arith.addf %1103, %1104 : vector<4x8xf32>
    %1106 = math.tanh %1105 : vector<4x8xf32>
    %1107 = arith.mulf %1102, %1106 : vector<4x8xf32>
    %1108 = arith.index_cast %1085 : i32 to index
    %c0_309 = arith.constant 0 : index
    %1109 = vector.load %arg22[%1108, %c0_309] : memref<64x8xf32, #tpu.memory_space<vmem>>, vector<4x8xf32>
    tpu.vector_store %arg22[%1108, %c0_309], %1107 {strides = array<i32>} : memref<64x8xf32, #tpu.memory_space<vmem>>, vector<4x8xf32>,
    %c9_i32_310 = arith.constant 9 : i32
    %c4_i32_311 = arith.constant 4 : i32
    %1110 = arith.muli %c9_i32_310, %c4_i32_311 : i32
    %1111 = tpu.assume_multiple %1110, 4 : i32
    %1112 = arith.index_cast %1111 : i32 to index
    %c0_312 = arith.constant 0 : index
    %1113 = vector.load %arg21[%1112, %c0_312] : memref<64x32xf32, #tpu.memory_space<vmem>>, vector<4x32xf32>
    %1114 = arith.truncf %1107 : vector<4x8xf32> to vector<4x8xbf16>
    %cst_313 = arith.constant dense<0.000000e+00> : vector<4x32xf32>
    %1115 = tpu.matmul %1114, %874, %cst_313 {dimension_numbers = #tpu.dot_dimension_numbers<[1], [0], [0], [1], [0, 0, 1, 1], [], []>} : vector<4x8xbf16>, vector<8x32xbf16>, vector<4x32xf32> -> vector<4x32xf32>
    %1116 = arith.addf %1113, %1115 : vector<4x32xf32>
    %1117 = vector.extract_strided_slice %1116 {offsets = [0, 0], sizes = [4, 24], strides = [1, 1]} : vector<4x32xf32> to vector<4x24xf32>
    %cst_314 = arith.constant 0.000000e+00 : f32
    %1118 = vector.broadcast %cst_314 : f32 to vector<4x24xf32>
    %1119 = arith.subf %1118, %1117 : vector<4x24xf32>
    %1120 = math.exp %1119 : vector<4x24xf32>
    %cst_315 = arith.constant 1.000000e+00 : f32
    %1121 = vector.broadcast %cst_315 : f32 to vector<4x24xf32>
    %1122 = arith.addf %1121, %1120 : vector<4x24xf32>
    %1123 = tpu.reciprocal %1122 {approx = true} : vector<4x24xf32> -> vector<4x24xf32>
    %1124 = vector.extract_strided_slice %1116 {offsets = [0, 24], sizes = [4, 8], strides = [1, 1]} : vector<4x32xf32> to vector<4x8xf32>
    %1125 = math.tanh %1124 : vector<4x8xf32>
    %1126 = vector.extract_strided_slice %1123 {offsets = [0, 0], sizes = [4, 8], strides = [1, 1]} : vector<4x24xf32> to vector<4x8xf32>
    %1127 = vector.extract_strided_slice %1123 {offsets = [0, 8], sizes = [4, 8], strides = [1, 1]} : vector<4x24xf32> to vector<4x8xf32>
    %1128 = vector.extract_strided_slice %1123 {offsets = [0, 16], sizes = [4, 8], strides = [1, 1]} : vector<4x24xf32> to vector<4x8xf32>
    %1129 = arith.mulf %1127, %1105 : vector<4x8xf32>
    %1130 = arith.mulf %1126, %1125 : vector<4x8xf32>
    %1131 = arith.addf %1129, %1130 : vector<4x8xf32>
    %1132 = math.tanh %1131 : vector<4x8xf32>
    %1133 = arith.mulf %1128, %1132 : vector<4x8xf32>
    %1134 = arith.index_cast %1111 : i32 to index
    %c0_316 = arith.constant 0 : index
    %1135 = vector.load %arg22[%1134, %c0_316] : memref<64x8xf32, #tpu.memory_space<vmem>>, vector<4x8xf32>
    tpu.vector_store %arg22[%1134, %c0_316], %1133 {strides = array<i32>} : memref<64x8xf32, #tpu.memory_space<vmem>>, vector<4x8xf32>,
    %c10_i32_317 = arith.constant 10 : i32
    %c4_i32_318 = arith.constant 4 : i32
    %1136 = arith.muli %c10_i32_317, %c4_i32_318 : i32
    %1137 = tpu.assume_multiple %1136, 4 : i32
    %1138 = arith.index_cast %1137 : i32 to index
    %c0_319 = arith.constant 0 : index
    %1139 = vector.load %arg21[%1138, %c0_319] : memref<64x32xf32, #tpu.memory_space<vmem>>, vector<4x32xf32>
    %1140 = arith.truncf %1133 : vector<4x8xf32> to vector<4x8xbf16>
    %cst_320 = arith.constant dense<0.000000e+00> : vector<4x32xf32>
    %1141 = tpu.matmul %1140, %874, %cst_320 {dimension_numbers = #tpu.dot_dimension_numbers<[1], [0], [0], [1], [0, 0, 1, 1], [], []>} : vector<4x8xbf16>, vector<8x32xbf16>, vector<4x32xf32> -> vector<4x32xf32>
    %1142 = arith.addf %1139, %1141 : vector<4x32xf32>
    %1143 = vector.extract_strided_slice %1142 {offsets = [0, 0], sizes = [4, 24], strides = [1, 1]} : vector<4x32xf32> to vector<4x24xf32>
    %cst_321 = arith.constant 0.000000e+00 : f32
    %1144 = vector.broadcast %cst_321 : f32 to vector<4x24xf32>
    %1145 = arith.subf %1144, %1143 : vector<4x24xf32>
    %1146 = math.exp %1145 : vector<4x24xf32>
    %cst_322 = arith.constant 1.000000e+00 : f32
    %1147 = vector.broadcast %cst_322 : f32 to vector<4x24xf32>
    %1148 = arith.addf %1147, %1146 : vector<4x24xf32>
    %1149 = tpu.reciprocal %1148 {approx = true} : vector<4x24xf32> -> vector<4x24xf32>
    %1150 = vector.extract_strided_slice %1142 {offsets = [0, 24], sizes = [4, 8], strides = [1, 1]} : vector<4x32xf32> to vector<4x8xf32>
    %1151 = math.tanh %1150 : vector<4x8xf32>
    %1152 = vector.extract_strided_slice %1149 {offsets = [0, 0], sizes = [4, 8], strides = [1, 1]} : vector<4x24xf32> to vector<4x8xf32>
    %1153 = vector.extract_strided_slice %1149 {offsets = [0, 8], sizes = [4, 8], strides = [1, 1]} : vector<4x24xf32> to vector<4x8xf32>
    %1154 = vector.extract_strided_slice %1149 {offsets = [0, 16], sizes = [4, 8], strides = [1, 1]} : vector<4x24xf32> to vector<4x8xf32>
    %1155 = arith.mulf %1153, %1131 : vector<4x8xf32>
    %1156 = arith.mulf %1152, %1151 : vector<4x8xf32>
    %1157 = arith.addf %1155, %1156 : vector<4x8xf32>
    %1158 = math.tanh %1157 : vector<4x8xf32>
    %1159 = arith.mulf %1154, %1158 : vector<4x8xf32>
    %1160 = arith.index_cast %1137 : i32 to index
    %c0_323 = arith.constant 0 : index
    %1161 = vector.load %arg22[%1160, %c0_323] : memref<64x8xf32, #tpu.memory_space<vmem>>, vector<4x8xf32>
    tpu.vector_store %arg22[%1160, %c0_323], %1159 {strides = array<i32>} : memref<64x8xf32, #tpu.memory_space<vmem>>, vector<4x8xf32>,
    %c11_i32_324 = arith.constant 11 : i32
    %c4_i32_325 = arith.constant 4 : i32
    %1162 = arith.muli %c11_i32_324, %c4_i32_325 : i32
    %1163 = tpu.assume_multiple %1162, 4 : i32
    %1164 = arith.index_cast %1163 : i32 to index
    %c0_326 = arith.constant 0 : index
    %1165 = vector.load %arg21[%1164, %c0_326] : memref<64x32xf32, #tpu.memory_space<vmem>>, vector<4x32xf32>
    %1166 = arith.truncf %1159 : vector<4x8xf32> to vector<4x8xbf16>
    %cst_327 = arith.constant dense<0.000000e+00> : vector<4x32xf32>
    %1167 = tpu.matmul %1166, %874, %cst_327 {dimension_numbers = #tpu.dot_dimension_numbers<[1], [0], [0], [1], [0, 0, 1, 1], [], []>} : vector<4x8xbf16>, vector<8x32xbf16>, vector<4x32xf32> -> vector<4x32xf32>
    %1168 = arith.addf %1165, %1167 : vector<4x32xf32>
    %1169 = vector.extract_strided_slice %1168 {offsets = [0, 0], sizes = [4, 24], strides = [1, 1]} : vector<4x32xf32> to vector<4x24xf32>
    %cst_328 = arith.constant 0.000000e+00 : f32
    %1170 = vector.broadcast %cst_328 : f32 to vector<4x24xf32>
    %1171 = arith.subf %1170, %1169 : vector<4x24xf32>
    %1172 = math.exp %1171 : vector<4x24xf32>
    %cst_329 = arith.constant 1.000000e+00 : f32
    %1173 = vector.broadcast %cst_329 : f32 to vector<4x24xf32>
    %1174 = arith.addf %1173, %1172 : vector<4x24xf32>
    %1175 = tpu.reciprocal %1174 {approx = true} : vector<4x24xf32> -> vector<4x24xf32>
    %1176 = vector.extract_strided_slice %1168 {offsets = [0, 24], sizes = [4, 8], strides = [1, 1]} : vector<4x32xf32> to vector<4x8xf32>
    %1177 = math.tanh %1176 : vector<4x8xf32>
    %1178 = vector.extract_strided_slice %1175 {offsets = [0, 0], sizes = [4, 8], strides = [1, 1]} : vector<4x24xf32> to vector<4x8xf32>
    %1179 = vector.extract_strided_slice %1175 {offsets = [0, 8], sizes = [4, 8], strides = [1, 1]} : vector<4x24xf32> to vector<4x8xf32>
    %1180 = vector.extract_strided_slice %1175 {offsets = [0, 16], sizes = [4, 8], strides = [1, 1]} : vector<4x24xf32> to vector<4x8xf32>
    %1181 = arith.mulf %1179, %1157 : vector<4x8xf32>
    %1182 = arith.mulf %1178, %1177 : vector<4x8xf32>
    %1183 = arith.addf %1181, %1182 : vector<4x8xf32>
    %1184 = math.tanh %1183 : vector<4x8xf32>
    %1185 = arith.mulf %1180, %1184 : vector<4x8xf32>
    %1186 = arith.index_cast %1163 : i32 to index
    %c0_330 = arith.constant 0 : index
    %1187 = vector.load %arg22[%1186, %c0_330] : memref<64x8xf32, #tpu.memory_space<vmem>>, vector<4x8xf32>
    tpu.vector_store %arg22[%1186, %c0_330], %1185 {strides = array<i32>} : memref<64x8xf32, #tpu.memory_space<vmem>>, vector<4x8xf32>,
    %c12_i32_331 = arith.constant 12 : i32
    %c4_i32_332 = arith.constant 4 : i32
    %1188 = arith.muli %c12_i32_331, %c4_i32_332 : i32
    %1189 = tpu.assume_multiple %1188, 4 : i32
    %1190 = arith.index_cast %1189 : i32 to index
    %c0_333 = arith.constant 0 : index
    %1191 = vector.load %arg21[%1190, %c0_333] : memref<64x32xf32, #tpu.memory_space<vmem>>, vector<4x32xf32>
    %1192 = arith.truncf %1185 : vector<4x8xf32> to vector<4x8xbf16>
    %cst_334 = arith.constant dense<0.000000e+00> : vector<4x32xf32>
    %1193 = tpu.matmul %1192, %874, %cst_334 {dimension_numbers = #tpu.dot_dimension_numbers<[1], [0], [0], [1], [0, 0, 1, 1], [], []>} : vector<4x8xbf16>, vector<8x32xbf16>, vector<4x32xf32> -> vector<4x32xf32>
    %1194 = arith.addf %1191, %1193 : vector<4x32xf32>
    %1195 = vector.extract_strided_slice %1194 {offsets = [0, 0], sizes = [4, 24], strides = [1, 1]} : vector<4x32xf32> to vector<4x24xf32>
    %cst_335 = arith.constant 0.000000e+00 : f32
    %1196 = vector.broadcast %cst_335 : f32 to vector<4x24xf32>
    %1197 = arith.subf %1196, %1195 : vector<4x24xf32>
    %1198 = math.exp %1197 : vector<4x24xf32>
    %cst_336 = arith.constant 1.000000e+00 : f32
    %1199 = vector.broadcast %cst_336 : f32 to vector<4x24xf32>
    %1200 = arith.addf %1199, %1198 : vector<4x24xf32>
    %1201 = tpu.reciprocal %1200 {approx = true} : vector<4x24xf32> -> vector<4x24xf32>
    %1202 = vector.extract_strided_slice %1194 {offsets = [0, 24], sizes = [4, 8], strides = [1, 1]} : vector<4x32xf32> to vector<4x8xf32>
    %1203 = math.tanh %1202 : vector<4x8xf32>
    %1204 = vector.extract_strided_slice %1201 {offsets = [0, 0], sizes = [4, 8], strides = [1, 1]} : vector<4x24xf32> to vector<4x8xf32>
    %1205 = vector.extract_strided_slice %1201 {offsets = [0, 8], sizes = [4, 8], strides = [1, 1]} : vector<4x24xf32> to vector<4x8xf32>
    %1206 = vector.extract_strided_slice %1201 {offsets = [0, 16], sizes = [4, 8], strides = [1, 1]} : vector<4x24xf32> to vector<4x8xf32>
    %1207 = arith.mulf %1205, %1183 : vector<4x8xf32>
    %1208 = arith.mulf %1204, %1203 : vector<4x8xf32>
    %1209 = arith.addf %1207, %1208 : vector<4x8xf32>
    %1210 = math.tanh %1209 : vector<4x8xf32>
    %1211 = arith.mulf %1206, %1210 : vector<4x8xf32>
    %1212 = arith.index_cast %1189 : i32 to index
    %c0_337 = arith.constant 0 : index
    %1213 = vector.load %arg22[%1212, %c0_337] : memref<64x8xf32, #tpu.memory_space<vmem>>, vector<4x8xf32>
    tpu.vector_store %arg22[%1212, %c0_337], %1211 {strides = array<i32>} : memref<64x8xf32, #tpu.memory_space<vmem>>, vector<4x8xf32>,
    %c13_i32_338 = arith.constant 13 : i32
    %c4_i32_339 = arith.constant 4 : i32
    %1214 = arith.muli %c13_i32_338, %c4_i32_339 : i32
    %1215 = tpu.assume_multiple %1214, 4 : i32
    %1216 = arith.index_cast %1215 : i32 to index
    %c0_340 = arith.constant 0 : index
    %1217 = vector.load %arg21[%1216, %c0_340] : memref<64x32xf32, #tpu.memory_space<vmem>>, vector<4x32xf32>
    %1218 = arith.truncf %1211 : vector<4x8xf32> to vector<4x8xbf16>
    %cst_341 = arith.constant dense<0.000000e+00> : vector<4x32xf32>
    %1219 = tpu.matmul %1218, %874, %cst_341 {dimension_numbers = #tpu.dot_dimension_numbers<[1], [0], [0], [1], [0, 0, 1, 1], [], []>} : vector<4x8xbf16>, vector<8x32xbf16>, vector<4x32xf32> -> vector<4x32xf32>
    %1220 = arith.addf %1217, %1219 : vector<4x32xf32>
    %1221 = vector.extract_strided_slice %1220 {offsets = [0, 0], sizes = [4, 24], strides = [1, 1]} : vector<4x32xf32> to vector<4x24xf32>
    %cst_342 = arith.constant 0.000000e+00 : f32
    %1222 = vector.broadcast %cst_342 : f32 to vector<4x24xf32>
    %1223 = arith.subf %1222, %1221 : vector<4x24xf32>
    %1224 = math.exp %1223 : vector<4x24xf32>
    %cst_343 = arith.constant 1.000000e+00 : f32
    %1225 = vector.broadcast %cst_343 : f32 to vector<4x24xf32>
    %1226 = arith.addf %1225, %1224 : vector<4x24xf32>
    %1227 = tpu.reciprocal %1226 {approx = true} : vector<4x24xf32> -> vector<4x24xf32>
    %1228 = vector.extract_strided_slice %1220 {offsets = [0, 24], sizes = [4, 8], strides = [1, 1]} : vector<4x32xf32> to vector<4x8xf32>
    %1229 = math.tanh %1228 : vector<4x8xf32>
    %1230 = vector.extract_strided_slice %1227 {offsets = [0, 0], sizes = [4, 8], strides = [1, 1]} : vector<4x24xf32> to vector<4x8xf32>
    %1231 = vector.extract_strided_slice %1227 {offsets = [0, 8], sizes = [4, 8], strides = [1, 1]} : vector<4x24xf32> to vector<4x8xf32>
    %1232 = vector.extract_strided_slice %1227 {offsets = [0, 16], sizes = [4, 8], strides = [1, 1]} : vector<4x24xf32> to vector<4x8xf32>
    %1233 = arith.mulf %1231, %1209 : vector<4x8xf32>
    %1234 = arith.mulf %1230, %1229 : vector<4x8xf32>
    %1235 = arith.addf %1233, %1234 : vector<4x8xf32>
    %1236 = math.tanh %1235 : vector<4x8xf32>
    %1237 = arith.mulf %1232, %1236 : vector<4x8xf32>
    %1238 = arith.index_cast %1215 : i32 to index
    %c0_344 = arith.constant 0 : index
    %1239 = vector.load %arg22[%1238, %c0_344] : memref<64x8xf32, #tpu.memory_space<vmem>>, vector<4x8xf32>
    tpu.vector_store %arg22[%1238, %c0_344], %1237 {strides = array<i32>} : memref<64x8xf32, #tpu.memory_space<vmem>>, vector<4x8xf32>,
    %c14_i32_345 = arith.constant 14 : i32
    %c4_i32_346 = arith.constant 4 : i32
    %1240 = arith.muli %c14_i32_345, %c4_i32_346 : i32
    %1241 = tpu.assume_multiple %1240, 4 : i32
    %1242 = arith.index_cast %1241 : i32 to index
    %c0_347 = arith.constant 0 : index
    %1243 = vector.load %arg21[%1242, %c0_347] : memref<64x32xf32, #tpu.memory_space<vmem>>, vector<4x32xf32>
    %1244 = arith.truncf %1237 : vector<4x8xf32> to vector<4x8xbf16>
    %cst_348 = arith.constant dense<0.000000e+00> : vector<4x32xf32>
    %1245 = tpu.matmul %1244, %874, %cst_348 {dimension_numbers = #tpu.dot_dimension_numbers<[1], [0], [0], [1], [0, 0, 1, 1], [], []>} : vector<4x8xbf16>, vector<8x32xbf16>, vector<4x32xf32> -> vector<4x32xf32>
    %1246 = arith.addf %1243, %1245 : vector<4x32xf32>
    %1247 = vector.extract_strided_slice %1246 {offsets = [0, 0], sizes = [4, 24], strides = [1, 1]} : vector<4x32xf32> to vector<4x24xf32>
    %cst_349 = arith.constant 0.000000e+00 : f32
    %1248 = vector.broadcast %cst_349 : f32 to vector<4x24xf32>
    %1249 = arith.subf %1248, %1247 : vector<4x24xf32>
    %1250 = math.exp %1249 : vector<4x24xf32>
    %cst_350 = arith.constant 1.000000e+00 : f32
    %1251 = vector.broadcast %cst_350 : f32 to vector<4x24xf32>
    %1252 = arith.addf %1251, %1250 : vector<4x24xf32>
    %1253 = tpu.reciprocal %1252 {approx = true} : vector<4x24xf32> -> vector<4x24xf32>
    %1254 = vector.extract_strided_slice %1246 {offsets = [0, 24], sizes = [4, 8], strides = [1, 1]} : vector<4x32xf32> to vector<4x8xf32>
    %1255 = math.tanh %1254 : vector<4x8xf32>
    %1256 = vector.extract_strided_slice %1253 {offsets = [0, 0], sizes = [4, 8], strides = [1, 1]} : vector<4x24xf32> to vector<4x8xf32>
    %1257 = vector.extract_strided_slice %1253 {offsets = [0, 8], sizes = [4, 8], strides = [1, 1]} : vector<4x24xf32> to vector<4x8xf32>
    %1258 = vector.extract_strided_slice %1253 {offsets = [0, 16], sizes = [4, 8], strides = [1, 1]} : vector<4x24xf32> to vector<4x8xf32>
    %1259 = arith.mulf %1257, %1235 : vector<4x8xf32>
    %1260 = arith.mulf %1256, %1255 : vector<4x8xf32>
    %1261 = arith.addf %1259, %1260 : vector<4x8xf32>
    %1262 = math.tanh %1261 : vector<4x8xf32>
    %1263 = arith.mulf %1258, %1262 : vector<4x8xf32>
    %1264 = arith.index_cast %1241 : i32 to index
    %c0_351 = arith.constant 0 : index
    %1265 = vector.load %arg22[%1264, %c0_351] : memref<64x8xf32, #tpu.memory_space<vmem>>, vector<4x8xf32>
    tpu.vector_store %arg22[%1264, %c0_351], %1263 {strides = array<i32>} : memref<64x8xf32, #tpu.memory_space<vmem>>, vector<4x8xf32>,
    %c15_i32_352 = arith.constant 15 : i32
    %c4_i32_353 = arith.constant 4 : i32
    %1266 = arith.muli %c15_i32_352, %c4_i32_353 : i32
    %1267 = tpu.assume_multiple %1266, 4 : i32
    %1268 = arith.index_cast %1267 : i32 to index
    %c0_354 = arith.constant 0 : index
    %1269 = vector.load %arg21[%1268, %c0_354] : memref<64x32xf32, #tpu.memory_space<vmem>>, vector<4x32xf32>
    %1270 = arith.truncf %1263 : vector<4x8xf32> to vector<4x8xbf16>
    %cst_355 = arith.constant dense<0.000000e+00> : vector<4x32xf32>
    %1271 = tpu.matmul %1270, %874, %cst_355 {dimension_numbers = #tpu.dot_dimension_numbers<[1], [0], [0], [1], [0, 0, 1, 1], [], []>} : vector<4x8xbf16>, vector<8x32xbf16>, vector<4x32xf32> -> vector<4x32xf32>
    %1272 = arith.addf %1269, %1271 : vector<4x32xf32>
    %1273 = vector.extract_strided_slice %1272 {offsets = [0, 0], sizes = [4, 24], strides = [1, 1]} : vector<4x32xf32> to vector<4x24xf32>
    %cst_356 = arith.constant 0.000000e+00 : f32
    %1274 = vector.broadcast %cst_356 : f32 to vector<4x24xf32>
    %1275 = arith.subf %1274, %1273 : vector<4x24xf32>
    %1276 = math.exp %1275 : vector<4x24xf32>
    %cst_357 = arith.constant 1.000000e+00 : f32
    %1277 = vector.broadcast %cst_357 : f32 to vector<4x24xf32>
    %1278 = arith.addf %1277, %1276 : vector<4x24xf32>
    %1279 = tpu.reciprocal %1278 {approx = true} : vector<4x24xf32> -> vector<4x24xf32>
    %1280 = vector.extract_strided_slice %1272 {offsets = [0, 24], sizes = [4, 8], strides = [1, 1]} : vector<4x32xf32> to vector<4x8xf32>
    %1281 = math.tanh %1280 : vector<4x8xf32>
    %1282 = vector.extract_strided_slice %1279 {offsets = [0, 0], sizes = [4, 8], strides = [1, 1]} : vector<4x24xf32> to vector<4x8xf32>
    %1283 = vector.extract_strided_slice %1279 {offsets = [0, 8], sizes = [4, 8], strides = [1, 1]} : vector<4x24xf32> to vector<4x8xf32>
    %1284 = vector.extract_strided_slice %1279 {offsets = [0, 16], sizes = [4, 8], strides = [1, 1]} : vector<4x24xf32> to vector<4x8xf32>
    %1285 = arith.mulf %1283, %1261 : vector<4x8xf32>
    %1286 = arith.mulf %1282, %1281 : vector<4x8xf32>
    %1287 = arith.addf %1285, %1286 : vector<4x8xf32>
    %1288 = math.tanh %1287 : vector<4x8xf32>
    %1289 = arith.mulf %1284, %1288 : vector<4x8xf32>
    %1290 = arith.index_cast %1267 : i32 to index
    %c0_358 = arith.constant 0 : index
    %1291 = vector.load %arg22[%1290, %c0_358] : memref<64x8xf32, #tpu.memory_space<vmem>>, vector<4x8xf32>
    tpu.vector_store %arg22[%1290, %c0_358], %1289 {strides = array<i32>} : memref<64x8xf32, #tpu.memory_space<vmem>>, vector<4x8xf32>,
    %c16_i32_359 = arith.constant 16 : i32
    %c0_360 = arith.constant 0 : index
    %c0_361 = arith.constant 0 : index
    %1292 = vector.load %arg22[%c0_360, %c0_361] : memref<64x8xf32, #tpu.memory_space<vmem>>, vector<64x8xf32>
    %c0_362 = arith.constant 0 : index
    %c0_363 = arith.constant 0 : index
    %1293 = vector.load %arg13[%c0_362, %c0_363] : memref<32x8xf32, #tpu.memory_space<vmem>>, vector<32x8xf32>
    %1294 = arith.truncf %1293 : vector<32x8xf32> to vector<32x8xbf16>
    %1295 = arith.truncf %1292 : vector<64x8xf32> to vector<64x8xbf16>
    %cst_364 = arith.constant dense<0.000000e+00> : vector<64x32xf32>
    %1296 = tpu.matmul %1295, %1294, %cst_364 {dimension_numbers = #tpu.dot_dimension_numbers<[1], [1], [0], [0], [0, 0, 1, 0], [], []>} : vector<64x8xbf16>, vector<32x8xbf16>, vector<64x32xf32> -> vector<64x32xf32>
    %cst_365 = arith.constant dense<0xFF800000> : vector<64xf32>
    %1297 = vector.multi_reduction <maximumf>, %1296, %cst_365 [1] : vector<64x32xf32> to vector<64xf32>
    %1298 = vector.shape_cast %1297 : vector<64xf32> to vector<64x1xf32>
    %1299 = vector.broadcast %1298 : vector<64x1xf32> to vector<64x32xf32>
    %1300 = arith.subf %1296, %1299 : vector<64x32xf32>
    %1301 = math.exp %1300 : vector<64x32xf32>
    %cst_366 = arith.constant dense<0.000000e+00> : vector<64xf32>
    %1302 = vector.multi_reduction <add>, %1301, %cst_366 [1] : vector<64x32xf32> to vector<64xf32>
    %1303 = vector.shape_cast %1302 : vector<64xf32> to vector<64x1xf32>
    %1304 = tpu.reciprocal %1303 {approx = true} : vector<64x1xf32> -> vector<64x1xf32>
    %1305 = vector.broadcast %1304 : vector<64x1xf32> to vector<64x32xf32>
    %1306 = arith.mulf %1301, %1305 : vector<64x32xf32>
    %cst_367 = arith.constant 2.500000e-03 : f32
    %1307 = vector.broadcast %cst_367 : f32 to vector<64x32xf32>
    %1308 = arith.subf %1306, %1307 : vector<64x32xf32>
    %cst_368 = arith.constant 0.000000e+00 : f32
    %1309 = vector.broadcast %cst_368 : f32 to vector<64x32xf32>
    %1310 = arith.maximumf %1308, %1309 : vector<64x32xf32>
    %1311 = arith.mulf %1310, %1306 : vector<64x32xf32>
    %cst_369 = arith.constant 2.500000e-03 : f32
    %1312 = vector.broadcast %cst_369 : f32 to vector<64x32xf32>
    %1313 = arith.subf %1306, %1312 : vector<64x32xf32>
    %1314 = math.absf %1313 : vector<64x32xf32>
    %cst_370 = arith.constant 9.99999996E-13 : f32
    %1315 = vector.broadcast %cst_370 : f32 to vector<64x32xf32>
    %1316 = arith.addf %1314, %1315 : vector<64x32xf32>
    %1317 = arith.divf %1311, %1316 : vector<64x32xf32>
    %1318 = math.absf %1317 : vector<64x32xf32>
    %cst_371 = arith.constant dense<0.000000e+00> : vector<64xf32>
    %1319 = vector.multi_reduction <add>, %1318, %cst_371 [1] : vector<64x32xf32> to vector<64xf32>
    %1320 = vector.shape_cast %1319 : vector<64xf32> to vector<64x1xf32>
    %cst_372 = arith.constant 9.99999996E-13 : f32
    %1321 = vector.broadcast %cst_372 : f32 to vector<64x1xf32>
    %1322 = arith.maximumf %1320, %1321 : vector<64x1xf32>
    %1323 = vector.broadcast %1322 : vector<64x1xf32> to vector<64x32xf32>
    %1324 = arith.divf %1317, %1323 : vector<64x32xf32>
    %1325 = arith.truncf %1324 : vector<64x32xf32> to vector<64x32xbf16>
    %cst_373 = arith.constant dense<0.000000e+00> : vector<64x8xf32>
    %1326 = tpu.matmul %1325, %1294, %cst_373 {dimension_numbers = #tpu.dot_dimension_numbers<[1], [0], [0], [1], [0, 0, 1, 1], [], []>} : vector<64x32xbf16>, vector<32x8xbf16>, vector<64x8xf32> -> vector<64x8xf32>
    %c0_374 = arith.constant 0 : index
    %c0_375 = arith.constant 0 : index
    %1327 = vector.load %arg8[%c0_374, %c0_375] : memref<8x64xf32, #tpu.memory_space<vmem>>, vector<8x64xf32>
    %1328 = arith.truncf %1326 : vector<64x8xf32> to vector<64x8xbf16>
    %1329 = arith.truncf %1327 : vector<8x64xf32> to vector<8x64xbf16>
    %cst_376 = arith.constant dense<0.000000e+00> : vector<64x64xf32>
    %1330 = tpu.matmul %1328, %1329, %cst_376 {dimension_numbers = #tpu.dot_dimension_numbers<[1], [0], [0], [1], [0, 0, 1, 1], [], []>} : vector<64x8xbf16>, vector<8x64xbf16>, vector<64x64xf32> -> vector<64x64xf32>
    %1331 = vector.broadcast %5 : vector<1x64xf32> to vector<64x64xf32>
    %1332 = arith.addf %1330, %1331 : vector<64x64xf32>
    %c0_377 = arith.constant 0 : index
    %c0_378 = arith.constant 0 : index
    %1333 = vector.load %arg23[%c0_377, %c0_378] : memref<64x64xf32, #tpu.memory_space<vmem>>, vector<64x64xf32>
    tpu.vector_store %arg23[%c0_377, %c0_378], %1332 {strides = array<i32>} : memref<64x64xf32, #tpu.memory_space<vmem>>, vector<64x64xf32>,
    %c0_379 = arith.constant 0 : index
    %c0_380 = arith.constant 0 : index
    %1334 = vector.load %arg9[%c0_379, %c0_380] : memref<16x64xf32, #tpu.memory_space<vmem>>, vector<16x64xf32>
    %1335 = arith.truncf %1334 : vector<16x64xf32> to vector<16x64xbf16>
    %cst_381 = arith.constant 0.000000e+00 : f32
    %1336 = vector.broadcast %cst_381 : f32 to vector<4x16xf32>
    %c0_i32_382 = arith.constant 0 : i32
    %c4_i32_383 = arith.constant 4 : i32
    %1337 = arith.muli %c0_i32_382, %c4_i32_383 : i32
    %1338 = tpu.assume_multiple %1337, 4 : i32
    %1339 = arith.index_cast %1338 : i32 to index
    %c0_384 = arith.constant 0 : index
    %1340 = vector.load %arg23[%1339, %c0_384] : memref<64x64xf32, #tpu.memory_space<vmem>>, vector<4x64xf32>
    %1341 = arith.truncf %1336 : vector<4x16xf32> to vector<4x16xbf16>
    %cst_385 = arith.constant dense<0.000000e+00> : vector<4x64xf32>
    %1342 = tpu.matmul %1341, %1335, %cst_385 {dimension_numbers = #tpu.dot_dimension_numbers<[1], [0], [0], [1], [0, 0, 1, 1], [], []>} : vector<4x16xbf16>, vector<16x64xbf16>, vector<4x64xf32> -> vector<4x64xf32>
    %1343 = arith.addf %1340, %1342 : vector<4x64xf32>
    %1344 = vector.extract_strided_slice %1343 {offsets = [0, 0], sizes = [4, 48], strides = [1, 1]} : vector<4x64xf32> to vector<4x48xf32>
    %cst_386 = arith.constant 0.000000e+00 : f32
    %1345 = vector.broadcast %cst_386 : f32 to vector<4x48xf32>
    %1346 = arith.subf %1345, %1344 : vector<4x48xf32>
    %1347 = math.exp %1346 : vector<4x48xf32>
    %cst_387 = arith.constant 1.000000e+00 : f32
    %1348 = vector.broadcast %cst_387 : f32 to vector<4x48xf32>
    %1349 = arith.addf %1348, %1347 : vector<4x48xf32>
    %1350 = tpu.reciprocal %1349 {approx = true} : vector<4x48xf32> -> vector<4x48xf32>
    %1351 = vector.extract_strided_slice %1343 {offsets = [0, 48], sizes = [4, 16], strides = [1, 1]} : vector<4x64xf32> to vector<4x16xf32>
    %1352 = math.tanh %1351 : vector<4x16xf32>
    %1353 = vector.extract_strided_slice %1350 {offsets = [0, 0], sizes = [4, 16], strides = [1, 1]} : vector<4x48xf32> to vector<4x16xf32>
    %1354 = vector.extract_strided_slice %1350 {offsets = [0, 16], sizes = [4, 16], strides = [1, 1]} : vector<4x48xf32> to vector<4x16xf32>
    %1355 = vector.extract_strided_slice %1350 {offsets = [0, 32], sizes = [4, 16], strides = [1, 1]} : vector<4x48xf32> to vector<4x16xf32>
    %1356 = arith.mulf %1354, %1336 : vector<4x16xf32>
    %1357 = arith.mulf %1353, %1352 : vector<4x16xf32>
    %1358 = arith.addf %1356, %1357 : vector<4x16xf32>
    %1359 = math.tanh %1358 : vector<4x16xf32>
    %1360 = arith.mulf %1355, %1359 : vector<4x16xf32>
    %1361 = arith.index_cast %1338 : i32 to index
    %c0_388 = arith.constant 0 : index
    %1362 = vector.load %arg24[%1361, %c0_388] : memref<64x16xf32, #tpu.memory_space<vmem>>, vector<4x16xf32>
    tpu.vector_store %arg24[%1361, %c0_388], %1360 {strides = array<i32>} : memref<64x16xf32, #tpu.memory_space<vmem>>, vector<4x16xf32>,
    %c1_i32_389 = arith.constant 1 : i32
    %c4_i32_390 = arith.constant 4 : i32
    %1363 = arith.muli %c1_i32_389, %c4_i32_390 : i32
    %1364 = tpu.assume_multiple %1363, 4 : i32
    %1365 = arith.index_cast %1364 : i32 to index
    %c0_391 = arith.constant 0 : index
    %1366 = vector.load %arg23[%1365, %c0_391] : memref<64x64xf32, #tpu.memory_space<vmem>>, vector<4x64xf32>
    %1367 = arith.truncf %1360 : vector<4x16xf32> to vector<4x16xbf16>
    %cst_392 = arith.constant dense<0.000000e+00> : vector<4x64xf32>
    %1368 = tpu.matmul %1367, %1335, %cst_392 {dimension_numbers = #tpu.dot_dimension_numbers<[1], [0], [0], [1], [0, 0, 1, 1], [], []>} : vector<4x16xbf16>, vector<16x64xbf16>, vector<4x64xf32> -> vector<4x64xf32>
    %1369 = arith.addf %1366, %1368 : vector<4x64xf32>
    %1370 = vector.extract_strided_slice %1369 {offsets = [0, 0], sizes = [4, 48], strides = [1, 1]} : vector<4x64xf32> to vector<4x48xf32>
    %cst_393 = arith.constant 0.000000e+00 : f32
    %1371 = vector.broadcast %cst_393 : f32 to vector<4x48xf32>
    %1372 = arith.subf %1371, %1370 : vector<4x48xf32>
    %1373 = math.exp %1372 : vector<4x48xf32>
    %cst_394 = arith.constant 1.000000e+00 : f32
    %1374 = vector.broadcast %cst_394 : f32 to vector<4x48xf32>
    %1375 = arith.addf %1374, %1373 : vector<4x48xf32>
    %1376 = tpu.reciprocal %1375 {approx = true} : vector<4x48xf32> -> vector<4x48xf32>
    %1377 = vector.extract_strided_slice %1369 {offsets = [0, 48], sizes = [4, 16], strides = [1, 1]} : vector<4x64xf32> to vector<4x16xf32>
    %1378 = math.tanh %1377 : vector<4x16xf32>
    %1379 = vector.extract_strided_slice %1376 {offsets = [0, 0], sizes = [4, 16], strides = [1, 1]} : vector<4x48xf32> to vector<4x16xf32>
    %1380 = vector.extract_strided_slice %1376 {offsets = [0, 16], sizes = [4, 16], strides = [1, 1]} : vector<4x48xf32> to vector<4x16xf32>
    %1381 = vector.extract_strided_slice %1376 {offsets = [0, 32], sizes = [4, 16], strides = [1, 1]} : vector<4x48xf32> to vector<4x16xf32>
    %1382 = arith.mulf %1380, %1358 : vector<4x16xf32>
    %1383 = arith.mulf %1379, %1378 : vector<4x16xf32>
    %1384 = arith.addf %1382, %1383 : vector<4x16xf32>
    %1385 = math.tanh %1384 : vector<4x16xf32>
    %1386 = arith.mulf %1381, %1385 : vector<4x16xf32>
    %1387 = arith.index_cast %1364 : i32 to index
    %c0_395 = arith.constant 0 : index
    %1388 = vector.load %arg24[%1387, %c0_395] : memref<64x16xf32, #tpu.memory_space<vmem>>, vector<4x16xf32>
    tpu.vector_store %arg24[%1387, %c0_395], %1386 {strides = array<i32>} : memref<64x16xf32, #tpu.memory_space<vmem>>, vector<4x16xf32>,
    %c2_i32_396 = arith.constant 2 : i32
    %c4_i32_397 = arith.constant 4 : i32
    %1389 = arith.muli %c2_i32_396, %c4_i32_397 : i32
    %1390 = tpu.assume_multiple %1389, 4 : i32
    %1391 = arith.index_cast %1390 : i32 to index
    %c0_398 = arith.constant 0 : index
    %1392 = vector.load %arg23[%1391, %c0_398] : memref<64x64xf32, #tpu.memory_space<vmem>>, vector<4x64xf32>
    %1393 = arith.truncf %1386 : vector<4x16xf32> to vector<4x16xbf16>
    %cst_399 = arith.constant dense<0.000000e+00> : vector<4x64xf32>
    %1394 = tpu.matmul %1393, %1335, %cst_399 {dimension_numbers = #tpu.dot_dimension_numbers<[1], [0], [0], [1], [0, 0, 1, 1], [], []>} : vector<4x16xbf16>, vector<16x64xbf16>, vector<4x64xf32> -> vector<4x64xf32>
    %1395 = arith.addf %1392, %1394 : vector<4x64xf32>
    %1396 = vector.extract_strided_slice %1395 {offsets = [0, 0], sizes = [4, 48], strides = [1, 1]} : vector<4x64xf32> to vector<4x48xf32>
    %cst_400 = arith.constant 0.000000e+00 : f32
    %1397 = vector.broadcast %cst_400 : f32 to vector<4x48xf32>
    %1398 = arith.subf %1397, %1396 : vector<4x48xf32>
    %1399 = math.exp %1398 : vector<4x48xf32>
    %cst_401 = arith.constant 1.000000e+00 : f32
    %1400 = vector.broadcast %cst_401 : f32 to vector<4x48xf32>
    %1401 = arith.addf %1400, %1399 : vector<4x48xf32>
    %1402 = tpu.reciprocal %1401 {approx = true} : vector<4x48xf32> -> vector<4x48xf32>
    %1403 = vector.extract_strided_slice %1395 {offsets = [0, 48], sizes = [4, 16], strides = [1, 1]} : vector<4x64xf32> to vector<4x16xf32>
    %1404 = math.tanh %1403 : vector<4x16xf32>
    %1405 = vector.extract_strided_slice %1402 {offsets = [0, 0], sizes = [4, 16], strides = [1, 1]} : vector<4x48xf32> to vector<4x16xf32>
    %1406 = vector.extract_strided_slice %1402 {offsets = [0, 16], sizes = [4, 16], strides = [1, 1]} : vector<4x48xf32> to vector<4x16xf32>
    %1407 = vector.extract_strided_slice %1402 {offsets = [0, 32], sizes = [4, 16], strides = [1, 1]} : vector<4x48xf32> to vector<4x16xf32>
    %1408 = arith.mulf %1406, %1384 : vector<4x16xf32>
    %1409 = arith.mulf %1405, %1404 : vector<4x16xf32>
    %1410 = arith.addf %1408, %1409 : vector<4x16xf32>
    %1411 = math.tanh %1410 : vector<4x16xf32>
    %1412 = arith.mulf %1407, %1411 : vector<4x16xf32>
    %1413 = arith.index_cast %1390 : i32 to index
    %c0_402 = arith.constant 0 : index
    %1414 = vector.load %arg24[%1413, %c0_402] : memref<64x16xf32, #tpu.memory_space<vmem>>, vector<4x16xf32>
    tpu.vector_store %arg24[%1413, %c0_402], %1412 {strides = array<i32>} : memref<64x16xf32, #tpu.memory_space<vmem>>, vector<4x16xf32>,
    %c3_i32_403 = arith.constant 3 : i32
    %c4_i32_404 = arith.constant 4 : i32
    %1415 = arith.muli %c3_i32_403, %c4_i32_404 : i32
    %1416 = tpu.assume_multiple %1415, 4 : i32
    %1417 = arith.index_cast %1416 : i32 to index
    %c0_405 = arith.constant 0 : index
    %1418 = vector.load %arg23[%1417, %c0_405] : memref<64x64xf32, #tpu.memory_space<vmem>>, vector<4x64xf32>
    %1419 = arith.truncf %1412 : vector<4x16xf32> to vector<4x16xbf16>
    %cst_406 = arith.constant dense<0.000000e+00> : vector<4x64xf32>
    %1420 = tpu.matmul %1419, %1335, %cst_406 {dimension_numbers = #tpu.dot_dimension_numbers<[1], [0], [0], [1], [0, 0, 1, 1], [], []>} : vector<4x16xbf16>, vector<16x64xbf16>, vector<4x64xf32> -> vector<4x64xf32>
    %1421 = arith.addf %1418, %1420 : vector<4x64xf32>
    %1422 = vector.extract_strided_slice %1421 {offsets = [0, 0], sizes = [4, 48], strides = [1, 1]} : vector<4x64xf32> to vector<4x48xf32>
    %cst_407 = arith.constant 0.000000e+00 : f32
    %1423 = vector.broadcast %cst_407 : f32 to vector<4x48xf32>
    %1424 = arith.subf %1423, %1422 : vector<4x48xf32>
    %1425 = math.exp %1424 : vector<4x48xf32>
    %cst_408 = arith.constant 1.000000e+00 : f32
    %1426 = vector.broadcast %cst_408 : f32 to vector<4x48xf32>
    %1427 = arith.addf %1426, %1425 : vector<4x48xf32>
    %1428 = tpu.reciprocal %1427 {approx = true} : vector<4x48xf32> -> vector<4x48xf32>
    %1429 = vector.extract_strided_slice %1421 {offsets = [0, 48], sizes = [4, 16], strides = [1, 1]} : vector<4x64xf32> to vector<4x16xf32>
    %1430 = math.tanh %1429 : vector<4x16xf32>
    %1431 = vector.extract_strided_slice %1428 {offsets = [0, 0], sizes = [4, 16], strides = [1, 1]} : vector<4x48xf32> to vector<4x16xf32>
    %1432 = vector.extract_strided_slice %1428 {offsets = [0, 16], sizes = [4, 16], strides = [1, 1]} : vector<4x48xf32> to vector<4x16xf32>
    %1433 = vector.extract_strided_slice %1428 {offsets = [0, 32], sizes = [4, 16], strides = [1, 1]} : vector<4x48xf32> to vector<4x16xf32>
    %1434 = arith.mulf %1432, %1410 : vector<4x16xf32>
    %1435 = arith.mulf %1431, %1430 : vector<4x16xf32>
    %1436 = arith.addf %1434, %1435 : vector<4x16xf32>
    %1437 = math.tanh %1436 : vector<4x16xf32>
    %1438 = arith.mulf %1433, %1437 : vector<4x16xf32>
    %1439 = arith.index_cast %1416 : i32 to index
    %c0_409 = arith.constant 0 : index
    %1440 = vector.load %arg24[%1439, %c0_409] : memref<64x16xf32, #tpu.memory_space<vmem>>, vector<4x16xf32>
    tpu.vector_store %arg24[%1439, %c0_409], %1438 {strides = array<i32>} : memref<64x16xf32, #tpu.memory_space<vmem>>, vector<4x16xf32>,
    %c4_i32_410 = arith.constant 4 : i32
    %c4_i32_411 = arith.constant 4 : i32
    %1441 = arith.muli %c4_i32_410, %c4_i32_411 : i32
    %1442 = tpu.assume_multiple %1441, 4 : i32
    %1443 = arith.index_cast %1442 : i32 to index
    %c0_412 = arith.constant 0 : index
    %1444 = vector.load %arg23[%1443, %c0_412] : memref<64x64xf32, #tpu.memory_space<vmem>>, vector<4x64xf32>
    %1445 = arith.truncf %1438 : vector<4x16xf32> to vector<4x16xbf16>
    %cst_413 = arith.constant dense<0.000000e+00> : vector<4x64xf32>
    %1446 = tpu.matmul %1445, %1335, %cst_413 {dimension_numbers = #tpu.dot_dimension_numbers<[1], [0], [0], [1], [0, 0, 1, 1], [], []>} : vector<4x16xbf16>, vector<16x64xbf16>, vector<4x64xf32> -> vector<4x64xf32>
    %1447 = arith.addf %1444, %1446 : vector<4x64xf32>
    %1448 = vector.extract_strided_slice %1447 {offsets = [0, 0], sizes = [4, 48], strides = [1, 1]} : vector<4x64xf32> to vector<4x48xf32>
    %cst_414 = arith.constant 0.000000e+00 : f32
    %1449 = vector.broadcast %cst_414 : f32 to vector<4x48xf32>
    %1450 = arith.subf %1449, %1448 : vector<4x48xf32>
    %1451 = math.exp %1450 : vector<4x48xf32>
    %cst_415 = arith.constant 1.000000e+00 : f32
    %1452 = vector.broadcast %cst_415 : f32 to vector<4x48xf32>
    %1453 = arith.addf %1452, %1451 : vector<4x48xf32>
    %1454 = tpu.reciprocal %1453 {approx = true} : vector<4x48xf32> -> vector<4x48xf32>
    %1455 = vector.extract_strided_slice %1447 {offsets = [0, 48], sizes = [4, 16], strides = [1, 1]} : vector<4x64xf32> to vector<4x16xf32>
    %1456 = math.tanh %1455 : vector<4x16xf32>
    %1457 = vector.extract_strided_slice %1454 {offsets = [0, 0], sizes = [4, 16], strides = [1, 1]} : vector<4x48xf32> to vector<4x16xf32>
    %1458 = vector.extract_strided_slice %1454 {offsets = [0, 16], sizes = [4, 16], strides = [1, 1]} : vector<4x48xf32> to vector<4x16xf32>
    %1459 = vector.extract_strided_slice %1454 {offsets = [0, 32], sizes = [4, 16], strides = [1, 1]} : vector<4x48xf32> to vector<4x16xf32>
    %1460 = arith.mulf %1458, %1436 : vector<4x16xf32>
    %1461 = arith.mulf %1457, %1456 : vector<4x16xf32>
    %1462 = arith.addf %1460, %1461 : vector<4x16xf32>
    %1463 = math.tanh %1462 : vector<4x16xf32>
    %1464 = arith.mulf %1459, %1463 : vector<4x16xf32>
    %1465 = arith.index_cast %1442 : i32 to index
    %c0_416 = arith.constant 0 : index
    %1466 = vector.load %arg24[%1465, %c0_416] : memref<64x16xf32, #tpu.memory_space<vmem>>, vector<4x16xf32>
    tpu.vector_store %arg24[%1465, %c0_416], %1464 {strides = array<i32>} : memref<64x16xf32, #tpu.memory_space<vmem>>, vector<4x16xf32>,
    %c5_i32_417 = arith.constant 5 : i32
    %c4_i32_418 = arith.constant 4 : i32
    %1467 = arith.muli %c5_i32_417, %c4_i32_418 : i32
    %1468 = tpu.assume_multiple %1467, 4 : i32
    %1469 = arith.index_cast %1468 : i32 to index
    %c0_419 = arith.constant 0 : index
    %1470 = vector.load %arg23[%1469, %c0_419] : memref<64x64xf32, #tpu.memory_space<vmem>>, vector<4x64xf32>
    %1471 = arith.truncf %1464 : vector<4x16xf32> to vector<4x16xbf16>
    %cst_420 = arith.constant dense<0.000000e+00> : vector<4x64xf32>
    %1472 = tpu.matmul %1471, %1335, %cst_420 {dimension_numbers = #tpu.dot_dimension_numbers<[1], [0], [0], [1], [0, 0, 1, 1], [], []>} : vector<4x16xbf16>, vector<16x64xbf16>, vector<4x64xf32> -> vector<4x64xf32>
    %1473 = arith.addf %1470, %1472 : vector<4x64xf32>
    %1474 = vector.extract_strided_slice %1473 {offsets = [0, 0], sizes = [4, 48], strides = [1, 1]} : vector<4x64xf32> to vector<4x48xf32>
    %cst_421 = arith.constant 0.000000e+00 : f32
    %1475 = vector.broadcast %cst_421 : f32 to vector<4x48xf32>
    %1476 = arith.subf %1475, %1474 : vector<4x48xf32>
    %1477 = math.exp %1476 : vector<4x48xf32>
    %cst_422 = arith.constant 1.000000e+00 : f32
    %1478 = vector.broadcast %cst_422 : f32 to vector<4x48xf32>
    %1479 = arith.addf %1478, %1477 : vector<4x48xf32>
    %1480 = tpu.reciprocal %1479 {approx = true} : vector<4x48xf32> -> vector<4x48xf32>
    %1481 = vector.extract_strided_slice %1473 {offsets = [0, 48], sizes = [4, 16], strides = [1, 1]} : vector<4x64xf32> to vector<4x16xf32>
    %1482 = math.tanh %1481 : vector<4x16xf32>
    %1483 = vector.extract_strided_slice %1480 {offsets = [0, 0], sizes = [4, 16], strides = [1, 1]} : vector<4x48xf32> to vector<4x16xf32>
    %1484 = vector.extract_strided_slice %1480 {offsets = [0, 16], sizes = [4, 16], strides = [1, 1]} : vector<4x48xf32> to vector<4x16xf32>
    %1485 = vector.extract_strided_slice %1480 {offsets = [0, 32], sizes = [4, 16], strides = [1, 1]} : vector<4x48xf32> to vector<4x16xf32>
    %1486 = arith.mulf %1484, %1462 : vector<4x16xf32>
    %1487 = arith.mulf %1483, %1482 : vector<4x16xf32>
    %1488 = arith.addf %1486, %1487 : vector<4x16xf32>
    %1489 = math.tanh %1488 : vector<4x16xf32>
    %1490 = arith.mulf %1485, %1489 : vector<4x16xf32>
    %1491 = arith.index_cast %1468 : i32 to index
    %c0_423 = arith.constant 0 : index
    %1492 = vector.load %arg24[%1491, %c0_423] : memref<64x16xf32, #tpu.memory_space<vmem>>, vector<4x16xf32>
    tpu.vector_store %arg24[%1491, %c0_423], %1490 {strides = array<i32>} : memref<64x16xf32, #tpu.memory_space<vmem>>, vector<4x16xf32>,
    %c6_i32_424 = arith.constant 6 : i32
    %c4_i32_425 = arith.constant 4 : i32
    %1493 = arith.muli %c6_i32_424, %c4_i32_425 : i32
    %1494 = tpu.assume_multiple %1493, 4 : i32
    %1495 = arith.index_cast %1494 : i32 to index
    %c0_426 = arith.constant 0 : index
    %1496 = vector.load %arg23[%1495, %c0_426] : memref<64x64xf32, #tpu.memory_space<vmem>>, vector<4x64xf32>
    %1497 = arith.truncf %1490 : vector<4x16xf32> to vector<4x16xbf16>
    %cst_427 = arith.constant dense<0.000000e+00> : vector<4x64xf32>
    %1498 = tpu.matmul %1497, %1335, %cst_427 {dimension_numbers = #tpu.dot_dimension_numbers<[1], [0], [0], [1], [0, 0, 1, 1], [], []>} : vector<4x16xbf16>, vector<16x64xbf16>, vector<4x64xf32> -> vector<4x64xf32>
    %1499 = arith.addf %1496, %1498 : vector<4x64xf32>
    %1500 = vector.extract_strided_slice %1499 {offsets = [0, 0], sizes = [4, 48], strides = [1, 1]} : vector<4x64xf32> to vector<4x48xf32>
    %cst_428 = arith.constant 0.000000e+00 : f32
    %1501 = vector.broadcast %cst_428 : f32 to vector<4x48xf32>
    %1502 = arith.subf %1501, %1500 : vector<4x48xf32>
    %1503 = math.exp %1502 : vector<4x48xf32>
    %cst_429 = arith.constant 1.000000e+00 : f32
    %1504 = vector.broadcast %cst_429 : f32 to vector<4x48xf32>
    %1505 = arith.addf %1504, %1503 : vector<4x48xf32>
    %1506 = tpu.reciprocal %1505 {approx = true} : vector<4x48xf32> -> vector<4x48xf32>
    %1507 = vector.extract_strided_slice %1499 {offsets = [0, 48], sizes = [4, 16], strides = [1, 1]} : vector<4x64xf32> to vector<4x16xf32>
    %1508 = math.tanh %1507 : vector<4x16xf32>
    %1509 = vector.extract_strided_slice %1506 {offsets = [0, 0], sizes = [4, 16], strides = [1, 1]} : vector<4x48xf32> to vector<4x16xf32>
    %1510 = vector.extract_strided_slice %1506 {offsets = [0, 16], sizes = [4, 16], strides = [1, 1]} : vector<4x48xf32> to vector<4x16xf32>
    %1511 = vector.extract_strided_slice %1506 {offsets = [0, 32], sizes = [4, 16], strides = [1, 1]} : vector<4x48xf32> to vector<4x16xf32>
    %1512 = arith.mulf %1510, %1488 : vector<4x16xf32>
    %1513 = arith.mulf %1509, %1508 : vector<4x16xf32>
    %1514 = arith.addf %1512, %1513 : vector<4x16xf32>
    %1515 = math.tanh %1514 : vector<4x16xf32>
    %1516 = arith.mulf %1511, %1515 : vector<4x16xf32>
    %1517 = arith.index_cast %1494 : i32 to index
    %c0_430 = arith.constant 0 : index
    %1518 = vector.load %arg24[%1517, %c0_430] : memref<64x16xf32, #tpu.memory_space<vmem>>, vector<4x16xf32>
    tpu.vector_store %arg24[%1517, %c0_430], %1516 {strides = array<i32>} : memref<64x16xf32, #tpu.memory_space<vmem>>, vector<4x16xf32>,
    %c7_i32_431 = arith.constant 7 : i32
    %c4_i32_432 = arith.constant 4 : i32
    %1519 = arith.muli %c7_i32_431, %c4_i32_432 : i32
    %1520 = tpu.assume_multiple %1519, 4 : i32
    %1521 = arith.index_cast %1520 : i32 to index
    %c0_433 = arith.constant 0 : index
    %1522 = vector.load %arg23[%1521, %c0_433] : memref<64x64xf32, #tpu.memory_space<vmem>>, vector<4x64xf32>
    %1523 = arith.truncf %1516 : vector<4x16xf32> to vector<4x16xbf16>
    %cst_434 = arith.constant dense<0.000000e+00> : vector<4x64xf32>
    %1524 = tpu.matmul %1523, %1335, %cst_434 {dimension_numbers = #tpu.dot_dimension_numbers<[1], [0], [0], [1], [0, 0, 1, 1], [], []>} : vector<4x16xbf16>, vector<16x64xbf16>, vector<4x64xf32> -> vector<4x64xf32>
    %1525 = arith.addf %1522, %1524 : vector<4x64xf32>
    %1526 = vector.extract_strided_slice %1525 {offsets = [0, 0], sizes = [4, 48], strides = [1, 1]} : vector<4x64xf32> to vector<4x48xf32>
    %cst_435 = arith.constant 0.000000e+00 : f32
    %1527 = vector.broadcast %cst_435 : f32 to vector<4x48xf32>
    %1528 = arith.subf %1527, %1526 : vector<4x48xf32>
    %1529 = math.exp %1528 : vector<4x48xf32>
    %cst_436 = arith.constant 1.000000e+00 : f32
    %1530 = vector.broadcast %cst_436 : f32 to vector<4x48xf32>
    %1531 = arith.addf %1530, %1529 : vector<4x48xf32>
    %1532 = tpu.reciprocal %1531 {approx = true} : vector<4x48xf32> -> vector<4x48xf32>
    %1533 = vector.extract_strided_slice %1525 {offsets = [0, 48], sizes = [4, 16], strides = [1, 1]} : vector<4x64xf32> to vector<4x16xf32>
    %1534 = math.tanh %1533 : vector<4x16xf32>
    %1535 = vector.extract_strided_slice %1532 {offsets = [0, 0], sizes = [4, 16], strides = [1, 1]} : vector<4x48xf32> to vector<4x16xf32>
    %1536 = vector.extract_strided_slice %1532 {offsets = [0, 16], sizes = [4, 16], strides = [1, 1]} : vector<4x48xf32> to vector<4x16xf32>
    %1537 = vector.extract_strided_slice %1532 {offsets = [0, 32], sizes = [4, 16], strides = [1, 1]} : vector<4x48xf32> to vector<4x16xf32>
    %1538 = arith.mulf %1536, %1514 : vector<4x16xf32>
    %1539 = arith.mulf %1535, %1534 : vector<4x16xf32>
    %1540 = arith.addf %1538, %1539 : vector<4x16xf32>
    %1541 = math.tanh %1540 : vector<4x16xf32>
    %1542 = arith.mulf %1537, %1541 : vector<4x16xf32>
    %1543 = arith.index_cast %1520 : i32 to index
    %c0_437 = arith.constant 0 : index
    %1544 = vector.load %arg24[%1543, %c0_437] : memref<64x16xf32, #tpu.memory_space<vmem>>, vector<4x16xf32>
    tpu.vector_store %arg24[%1543, %c0_437], %1542 {strides = array<i32>} : memref<64x16xf32, #tpu.memory_space<vmem>>, vector<4x16xf32>,
    %c8_i32_438 = arith.constant 8 : i32
    %c4_i32_439 = arith.constant 4 : i32
    %1545 = arith.muli %c8_i32_438, %c4_i32_439 : i32
    %1546 = tpu.assume_multiple %1545, 4 : i32
    %1547 = arith.index_cast %1546 : i32 to index
    %c0_440 = arith.constant 0 : index
    %1548 = vector.load %arg23[%1547, %c0_440] : memref<64x64xf32, #tpu.memory_space<vmem>>, vector<4x64xf32>
    %1549 = arith.truncf %1542 : vector<4x16xf32> to vector<4x16xbf16>
    %cst_441 = arith.constant dense<0.000000e+00> : vector<4x64xf32>
    %1550 = tpu.matmul %1549, %1335, %cst_441 {dimension_numbers = #tpu.dot_dimension_numbers<[1], [0], [0], [1], [0, 0, 1, 1], [], []>} : vector<4x16xbf16>, vector<16x64xbf16>, vector<4x64xf32> -> vector<4x64xf32>
    %1551 = arith.addf %1548, %1550 : vector<4x64xf32>
    %1552 = vector.extract_strided_slice %1551 {offsets = [0, 0], sizes = [4, 48], strides = [1, 1]} : vector<4x64xf32> to vector<4x48xf32>
    %cst_442 = arith.constant 0.000000e+00 : f32
    %1553 = vector.broadcast %cst_442 : f32 to vector<4x48xf32>
    %1554 = arith.subf %1553, %1552 : vector<4x48xf32>
    %1555 = math.exp %1554 : vector<4x48xf32>
    %cst_443 = arith.constant 1.000000e+00 : f32
    %1556 = vector.broadcast %cst_443 : f32 to vector<4x48xf32>
    %1557 = arith.addf %1556, %1555 : vector<4x48xf32>
    %1558 = tpu.reciprocal %1557 {approx = true} : vector<4x48xf32> -> vector<4x48xf32>
    %1559 = vector.extract_strided_slice %1551 {offsets = [0, 48], sizes = [4, 16], strides = [1, 1]} : vector<4x64xf32> to vector<4x16xf32>
    %1560 = math.tanh %1559 : vector<4x16xf32>
    %1561 = vector.extract_strided_slice %1558 {offsets = [0, 0], sizes = [4, 16], strides = [1, 1]} : vector<4x48xf32> to vector<4x16xf32>
    %1562 = vector.extract_strided_slice %1558 {offsets = [0, 16], sizes = [4, 16], strides = [1, 1]} : vector<4x48xf32> to vector<4x16xf32>
    %1563 = vector.extract_strided_slice %1558 {offsets = [0, 32], sizes = [4, 16], strides = [1, 1]} : vector<4x48xf32> to vector<4x16xf32>
    %1564 = arith.mulf %1562, %1540 : vector<4x16xf32>
    %1565 = arith.mulf %1561, %1560 : vector<4x16xf32>
    %1566 = arith.addf %1564, %1565 : vector<4x16xf32>
    %1567 = math.tanh %1566 : vector<4x16xf32>
    %1568 = arith.mulf %1563, %1567 : vector<4x16xf32>
    %1569 = arith.index_cast %1546 : i32 to index
    %c0_444 = arith.constant 0 : index
    %1570 = vector.load %arg24[%1569, %c0_444] : memref<64x16xf32, #tpu.memory_space<vmem>>, vector<4x16xf32>
    tpu.vector_store %arg24[%1569, %c0_444], %1568 {strides = array<i32>} : memref<64x16xf32, #tpu.memory_space<vmem>>, vector<4x16xf32>,
    %c9_i32_445 = arith.constant 9 : i32
    %c4_i32_446 = arith.constant 4 : i32
    %1571 = arith.muli %c9_i32_445, %c4_i32_446 : i32
    %1572 = tpu.assume_multiple %1571, 4 : i32
    %1573 = arith.index_cast %1572 : i32 to index
    %c0_447 = arith.constant 0 : index
    %1574 = vector.load %arg23[%1573, %c0_447] : memref<64x64xf32, #tpu.memory_space<vmem>>, vector<4x64xf32>
    %1575 = arith.truncf %1568 : vector<4x16xf32> to vector<4x16xbf16>
    %cst_448 = arith.constant dense<0.000000e+00> : vector<4x64xf32>
    %1576 = tpu.matmul %1575, %1335, %cst_448 {dimension_numbers = #tpu.dot_dimension_numbers<[1], [0], [0], [1], [0, 0, 1, 1], [], []>} : vector<4x16xbf16>, vector<16x64xbf16>, vector<4x64xf32> -> vector<4x64xf32>
    %1577 = arith.addf %1574, %1576 : vector<4x64xf32>
    %1578 = vector.extract_strided_slice %1577 {offsets = [0, 0], sizes = [4, 48], strides = [1, 1]} : vector<4x64xf32> to vector<4x48xf32>
    %cst_449 = arith.constant 0.000000e+00 : f32
    %1579 = vector.broadcast %cst_449 : f32 to vector<4x48xf32>
    %1580 = arith.subf %1579, %1578 : vector<4x48xf32>
    %1581 = math.exp %1580 : vector<4x48xf32>
    %cst_450 = arith.constant 1.000000e+00 : f32
    %1582 = vector.broadcast %cst_450 : f32 to vector<4x48xf32>
    %1583 = arith.addf %1582, %1581 : vector<4x48xf32>
    %1584 = tpu.reciprocal %1583 {approx = true} : vector<4x48xf32> -> vector<4x48xf32>
    %1585 = vector.extract_strided_slice %1577 {offsets = [0, 48], sizes = [4, 16], strides = [1, 1]} : vector<4x64xf32> to vector<4x16xf32>
    %1586 = math.tanh %1585 : vector<4x16xf32>
    %1587 = vector.extract_strided_slice %1584 {offsets = [0, 0], sizes = [4, 16], strides = [1, 1]} : vector<4x48xf32> to vector<4x16xf32>
    %1588 = vector.extract_strided_slice %1584 {offsets = [0, 16], sizes = [4, 16], strides = [1, 1]} : vector<4x48xf32> to vector<4x16xf32>
    %1589 = vector.extract_strided_slice %1584 {offsets = [0, 32], sizes = [4, 16], strides = [1, 1]} : vector<4x48xf32> to vector<4x16xf32>
    %1590 = arith.mulf %1588, %1566 : vector<4x16xf32>
    %1591 = arith.mulf %1587, %1586 : vector<4x16xf32>
    %1592 = arith.addf %1590, %1591 : vector<4x16xf32>
    %1593 = math.tanh %1592 : vector<4x16xf32>
    %1594 = arith.mulf %1589, %1593 : vector<4x16xf32>
    %1595 = arith.index_cast %1572 : i32 to index
    %c0_451 = arith.constant 0 : index
    %1596 = vector.load %arg24[%1595, %c0_451] : memref<64x16xf32, #tpu.memory_space<vmem>>, vector<4x16xf32>
    tpu.vector_store %arg24[%1595, %c0_451], %1594 {strides = array<i32>} : memref<64x16xf32, #tpu.memory_space<vmem>>, vector<4x16xf32>,
    %c10_i32_452 = arith.constant 10 : i32
    %c4_i32_453 = arith.constant 4 : i32
    %1597 = arith.muli %c10_i32_452, %c4_i32_453 : i32
    %1598 = tpu.assume_multiple %1597, 4 : i32
    %1599 = arith.index_cast %1598 : i32 to index
    %c0_454 = arith.constant 0 : index
    %1600 = vector.load %arg23[%1599, %c0_454] : memref<64x64xf32, #tpu.memory_space<vmem>>, vector<4x64xf32>
    %1601 = arith.truncf %1594 : vector<4x16xf32> to vector<4x16xbf16>
    %cst_455 = arith.constant dense<0.000000e+00> : vector<4x64xf32>
    %1602 = tpu.matmul %1601, %1335, %cst_455 {dimension_numbers = #tpu.dot_dimension_numbers<[1], [0], [0], [1], [0, 0, 1, 1], [], []>} : vector<4x16xbf16>, vector<16x64xbf16>, vector<4x64xf32> -> vector<4x64xf32>
    %1603 = arith.addf %1600, %1602 : vector<4x64xf32>
    %1604 = vector.extract_strided_slice %1603 {offsets = [0, 0], sizes = [4, 48], strides = [1, 1]} : vector<4x64xf32> to vector<4x48xf32>
    %cst_456 = arith.constant 0.000000e+00 : f32
    %1605 = vector.broadcast %cst_456 : f32 to vector<4x48xf32>
    %1606 = arith.subf %1605, %1604 : vector<4x48xf32>
    %1607 = math.exp %1606 : vector<4x48xf32>
    %cst_457 = arith.constant 1.000000e+00 : f32
    %1608 = vector.broadcast %cst_457 : f32 to vector<4x48xf32>
    %1609 = arith.addf %1608, %1607 : vector<4x48xf32>
    %1610 = tpu.reciprocal %1609 {approx = true} : vector<4x48xf32> -> vector<4x48xf32>
    %1611 = vector.extract_strided_slice %1603 {offsets = [0, 48], sizes = [4, 16], strides = [1, 1]} : vector<4x64xf32> to vector<4x16xf32>
    %1612 = math.tanh %1611 : vector<4x16xf32>
    %1613 = vector.extract_strided_slice %1610 {offsets = [0, 0], sizes = [4, 16], strides = [1, 1]} : vector<4x48xf32> to vector<4x16xf32>
    %1614 = vector.extract_strided_slice %1610 {offsets = [0, 16], sizes = [4, 16], strides = [1, 1]} : vector<4x48xf32> to vector<4x16xf32>
    %1615 = vector.extract_strided_slice %1610 {offsets = [0, 32], sizes = [4, 16], strides = [1, 1]} : vector<4x48xf32> to vector<4x16xf32>
    %1616 = arith.mulf %1614, %1592 : vector<4x16xf32>
    %1617 = arith.mulf %1613, %1612 : vector<4x16xf32>
    %1618 = arith.addf %1616, %1617 : vector<4x16xf32>
    %1619 = math.tanh %1618 : vector<4x16xf32>
    %1620 = arith.mulf %1615, %1619 : vector<4x16xf32>
    %1621 = arith.index_cast %1598 : i32 to index
    %c0_458 = arith.constant 0 : index
    %1622 = vector.load %arg24[%1621, %c0_458] : memref<64x16xf32, #tpu.memory_space<vmem>>, vector<4x16xf32>
    tpu.vector_store %arg24[%1621, %c0_458], %1620 {strides = array<i32>} : memref<64x16xf32, #tpu.memory_space<vmem>>, vector<4x16xf32>,
    %c11_i32_459 = arith.constant 11 : i32
    %c4_i32_460 = arith.constant 4 : i32
    %1623 = arith.muli %c11_i32_459, %c4_i32_460 : i32
    %1624 = tpu.assume_multiple %1623, 4 : i32
    %1625 = arith.index_cast %1624 : i32 to index
    %c0_461 = arith.constant 0 : index
    %1626 = vector.load %arg23[%1625, %c0_461] : memref<64x64xf32, #tpu.memory_space<vmem>>, vector<4x64xf32>
    %1627 = arith.truncf %1620 : vector<4x16xf32> to vector<4x16xbf16>
    %cst_462 = arith.constant dense<0.000000e+00> : vector<4x64xf32>
    %1628 = tpu.matmul %1627, %1335, %cst_462 {dimension_numbers = #tpu.dot_dimension_numbers<[1], [0], [0], [1], [0, 0, 1, 1], [], []>} : vector<4x16xbf16>, vector<16x64xbf16>, vector<4x64xf32> -> vector<4x64xf32>
    %1629 = arith.addf %1626, %1628 : vector<4x64xf32>
    %1630 = vector.extract_strided_slice %1629 {offsets = [0, 0], sizes = [4, 48], strides = [1, 1]} : vector<4x64xf32> to vector<4x48xf32>
    %cst_463 = arith.constant 0.000000e+00 : f32
    %1631 = vector.broadcast %cst_463 : f32 to vector<4x48xf32>
    %1632 = arith.subf %1631, %1630 : vector<4x48xf32>
    %1633 = math.exp %1632 : vector<4x48xf32>
    %cst_464 = arith.constant 1.000000e+00 : f32
    %1634 = vector.broadcast %cst_464 : f32 to vector<4x48xf32>
    %1635 = arith.addf %1634, %1633 : vector<4x48xf32>
    %1636 = tpu.reciprocal %1635 {approx = true} : vector<4x48xf32> -> vector<4x48xf32>
    %1637 = vector.extract_strided_slice %1629 {offsets = [0, 48], sizes = [4, 16], strides = [1, 1]} : vector<4x64xf32> to vector<4x16xf32>
    %1638 = math.tanh %1637 : vector<4x16xf32>
    %1639 = vector.extract_strided_slice %1636 {offsets = [0, 0], sizes = [4, 16], strides = [1, 1]} : vector<4x48xf32> to vector<4x16xf32>
    %1640 = vector.extract_strided_slice %1636 {offsets = [0, 16], sizes = [4, 16], strides = [1, 1]} : vector<4x48xf32> to vector<4x16xf32>
    %1641 = vector.extract_strided_slice %1636 {offsets = [0, 32], sizes = [4, 16], strides = [1, 1]} : vector<4x48xf32> to vector<4x16xf32>
    %1642 = arith.mulf %1640, %1618 : vector<4x16xf32>
    %1643 = arith.mulf %1639, %1638 : vector<4x16xf32>
    %1644 = arith.addf %1642, %1643 : vector<4x16xf32>
    %1645 = math.tanh %1644 : vector<4x16xf32>
    %1646 = arith.mulf %1641, %1645 : vector<4x16xf32>
    %1647 = arith.index_cast %1624 : i32 to index
    %c0_465 = arith.constant 0 : index
    %1648 = vector.load %arg24[%1647, %c0_465] : memref<64x16xf32, #tpu.memory_space<vmem>>, vector<4x16xf32>
    tpu.vector_store %arg24[%1647, %c0_465], %1646 {strides = array<i32>} : memref<64x16xf32, #tpu.memory_space<vmem>>, vector<4x16xf32>,
    %c12_i32_466 = arith.constant 12 : i32
    %c4_i32_467 = arith.constant 4 : i32
    %1649 = arith.muli %c12_i32_466, %c4_i32_467 : i32
    %1650 = tpu.assume_multiple %1649, 4 : i32
    %1651 = arith.index_cast %1650 : i32 to index
    %c0_468 = arith.constant 0 : index
    %1652 = vector.load %arg23[%1651, %c0_468] : memref<64x64xf32, #tpu.memory_space<vmem>>, vector<4x64xf32>
    %1653 = arith.truncf %1646 : vector<4x16xf32> to vector<4x16xbf16>
    %cst_469 = arith.constant dense<0.000000e+00> : vector<4x64xf32>
    %1654 = tpu.matmul %1653, %1335, %cst_469 {dimension_numbers = #tpu.dot_dimension_numbers<[1], [0], [0], [1], [0, 0, 1, 1], [], []>} : vector<4x16xbf16>, vector<16x64xbf16>, vector<4x64xf32> -> vector<4x64xf32>
    %1655 = arith.addf %1652, %1654 : vector<4x64xf32>
    %1656 = vector.extract_strided_slice %1655 {offsets = [0, 0], sizes = [4, 48], strides = [1, 1]} : vector<4x64xf32> to vector<4x48xf32>
    %cst_470 = arith.constant 0.000000e+00 : f32
    %1657 = vector.broadcast %cst_470 : f32 to vector<4x48xf32>
    %1658 = arith.subf %1657, %1656 : vector<4x48xf32>
    %1659 = math.exp %1658 : vector<4x48xf32>
    %cst_471 = arith.constant 1.000000e+00 : f32
    %1660 = vector.broadcast %cst_471 : f32 to vector<4x48xf32>
    %1661 = arith.addf %1660, %1659 : vector<4x48xf32>
    %1662 = tpu.reciprocal %1661 {approx = true} : vector<4x48xf32> -> vector<4x48xf32>
    %1663 = vector.extract_strided_slice %1655 {offsets = [0, 48], sizes = [4, 16], strides = [1, 1]} : vector<4x64xf32> to vector<4x16xf32>
    %1664 = math.tanh %1663 : vector<4x16xf32>
    %1665 = vector.extract_strided_slice %1662 {offsets = [0, 0], sizes = [4, 16], strides = [1, 1]} : vector<4x48xf32> to vector<4x16xf32>
    %1666 = vector.extract_strided_slice %1662 {offsets = [0, 16], sizes = [4, 16], strides = [1, 1]} : vector<4x48xf32> to vector<4x16xf32>
    %1667 = vector.extract_strided_slice %1662 {offsets = [0, 32], sizes = [4, 16], strides = [1, 1]} : vector<4x48xf32> to vector<4x16xf32>
    %1668 = arith.mulf %1666, %1644 : vector<4x16xf32>
    %1669 = arith.mulf %1665, %1664 : vector<4x16xf32>
    %1670 = arith.addf %1668, %1669 : vector<4x16xf32>
    %1671 = math.tanh %1670 : vector<4x16xf32>
    %1672 = arith.mulf %1667, %1671 : vector<4x16xf32>
    %1673 = arith.index_cast %1650 : i32 to index
    %c0_472 = arith.constant 0 : index
    %1674 = vector.load %arg24[%1673, %c0_472] : memref<64x16xf32, #tpu.memory_space<vmem>>, vector<4x16xf32>
    tpu.vector_store %arg24[%1673, %c0_472], %1672 {strides = array<i32>} : memref<64x16xf32, #tpu.memory_space<vmem>>, vector<4x16xf32>,
    %c13_i32_473 = arith.constant 13 : i32
    %c4_i32_474 = arith.constant 4 : i32
    %1675 = arith.muli %c13_i32_473, %c4_i32_474 : i32
    %1676 = tpu.assume_multiple %1675, 4 : i32
    %1677 = arith.index_cast %1676 : i32 to index
    %c0_475 = arith.constant 0 : index
    %1678 = vector.load %arg23[%1677, %c0_475] : memref<64x64xf32, #tpu.memory_space<vmem>>, vector<4x64xf32>
    %1679 = arith.truncf %1672 : vector<4x16xf32> to vector<4x16xbf16>
    %cst_476 = arith.constant dense<0.000000e+00> : vector<4x64xf32>
    %1680 = tpu.matmul %1679, %1335, %cst_476 {dimension_numbers = #tpu.dot_dimension_numbers<[1], [0], [0], [1], [0, 0, 1, 1], [], []>} : vector<4x16xbf16>, vector<16x64xbf16>, vector<4x64xf32> -> vector<4x64xf32>
    %1681 = arith.addf %1678, %1680 : vector<4x64xf32>
    %1682 = vector.extract_strided_slice %1681 {offsets = [0, 0], sizes = [4, 48], strides = [1, 1]} : vector<4x64xf32> to vector<4x48xf32>
    %cst_477 = arith.constant 0.000000e+00 : f32
    %1683 = vector.broadcast %cst_477 : f32 to vector<4x48xf32>
    %1684 = arith.subf %1683, %1682 : vector<4x48xf32>
    %1685 = math.exp %1684 : vector<4x48xf32>
    %cst_478 = arith.constant 1.000000e+00 : f32
    %1686 = vector.broadcast %cst_478 : f32 to vector<4x48xf32>
    %1687 = arith.addf %1686, %1685 : vector<4x48xf32>
    %1688 = tpu.reciprocal %1687 {approx = true} : vector<4x48xf32> -> vector<4x48xf32>
    %1689 = vector.extract_strided_slice %1681 {offsets = [0, 48], sizes = [4, 16], strides = [1, 1]} : vector<4x64xf32> to vector<4x16xf32>
    %1690 = math.tanh %1689 : vector<4x16xf32>
    %1691 = vector.extract_strided_slice %1688 {offsets = [0, 0], sizes = [4, 16], strides = [1, 1]} : vector<4x48xf32> to vector<4x16xf32>
    %1692 = vector.extract_strided_slice %1688 {offsets = [0, 16], sizes = [4, 16], strides = [1, 1]} : vector<4x48xf32> to vector<4x16xf32>
    %1693 = vector.extract_strided_slice %1688 {offsets = [0, 32], sizes = [4, 16], strides = [1, 1]} : vector<4x48xf32> to vector<4x16xf32>
    %1694 = arith.mulf %1692, %1670 : vector<4x16xf32>
    %1695 = arith.mulf %1691, %1690 : vector<4x16xf32>
    %1696 = arith.addf %1694, %1695 : vector<4x16xf32>
    %1697 = math.tanh %1696 : vector<4x16xf32>
    %1698 = arith.mulf %1693, %1697 : vector<4x16xf32>
    %1699 = arith.index_cast %1676 : i32 to index
    %c0_479 = arith.constant 0 : index
    %1700 = vector.load %arg24[%1699, %c0_479] : memref<64x16xf32, #tpu.memory_space<vmem>>, vector<4x16xf32>
    tpu.vector_store %arg24[%1699, %c0_479], %1698 {strides = array<i32>} : memref<64x16xf32, #tpu.memory_space<vmem>>, vector<4x16xf32>,
    %c14_i32_480 = arith.constant 14 : i32
    %c4_i32_481 = arith.constant 4 : i32
    %1701 = arith.muli %c14_i32_480, %c4_i32_481 : i32
    %1702 = tpu.assume_multiple %1701, 4 : i32
    %1703 = arith.index_cast %1702 : i32 to index
    %c0_482 = arith.constant 0 : index
    %1704 = vector.load %arg23[%1703, %c0_482] : memref<64x64xf32, #tpu.memory_space<vmem>>, vector<4x64xf32>
    %1705 = arith.truncf %1698 : vector<4x16xf32> to vector<4x16xbf16>
    %cst_483 = arith.constant dense<0.000000e+00> : vector<4x64xf32>
    %1706 = tpu.matmul %1705, %1335, %cst_483 {dimension_numbers = #tpu.dot_dimension_numbers<[1], [0], [0], [1], [0, 0, 1, 1], [], []>} : vector<4x16xbf16>, vector<16x64xbf16>, vector<4x64xf32> -> vector<4x64xf32>
    %1707 = arith.addf %1704, %1706 : vector<4x64xf32>
    %1708 = vector.extract_strided_slice %1707 {offsets = [0, 0], sizes = [4, 48], strides = [1, 1]} : vector<4x64xf32> to vector<4x48xf32>
    %cst_484 = arith.constant 0.000000e+00 : f32
    %1709 = vector.broadcast %cst_484 : f32 to vector<4x48xf32>
    %1710 = arith.subf %1709, %1708 : vector<4x48xf32>
    %1711 = math.exp %1710 : vector<4x48xf32>
    %cst_485 = arith.constant 1.000000e+00 : f32
    %1712 = vector.broadcast %cst_485 : f32 to vector<4x48xf32>
    %1713 = arith.addf %1712, %1711 : vector<4x48xf32>
    %1714 = tpu.reciprocal %1713 {approx = true} : vector<4x48xf32> -> vector<4x48xf32>
    %1715 = vector.extract_strided_slice %1707 {offsets = [0, 48], sizes = [4, 16], strides = [1, 1]} : vector<4x64xf32> to vector<4x16xf32>
    %1716 = math.tanh %1715 : vector<4x16xf32>
    %1717 = vector.extract_strided_slice %1714 {offsets = [0, 0], sizes = [4, 16], strides = [1, 1]} : vector<4x48xf32> to vector<4x16xf32>
    %1718 = vector.extract_strided_slice %1714 {offsets = [0, 16], sizes = [4, 16], strides = [1, 1]} : vector<4x48xf32> to vector<4x16xf32>
    %1719 = vector.extract_strided_slice %1714 {offsets = [0, 32], sizes = [4, 16], strides = [1, 1]} : vector<4x48xf32> to vector<4x16xf32>
    %1720 = arith.mulf %1718, %1696 : vector<4x16xf32>
    %1721 = arith.mulf %1717, %1716 : vector<4x16xf32>
    %1722 = arith.addf %1720, %1721 : vector<4x16xf32>
    %1723 = math.tanh %1722 : vector<4x16xf32>
    %1724 = arith.mulf %1719, %1723 : vector<4x16xf32>
    %1725 = arith.index_cast %1702 : i32 to index
    %c0_486 = arith.constant 0 : index
    %1726 = vector.load %arg24[%1725, %c0_486] : memref<64x16xf32, #tpu.memory_space<vmem>>, vector<4x16xf32>
    tpu.vector_store %arg24[%1725, %c0_486], %1724 {strides = array<i32>} : memref<64x16xf32, #tpu.memory_space<vmem>>, vector<4x16xf32>,
    %c15_i32_487 = arith.constant 15 : i32
    %c4_i32_488 = arith.constant 4 : i32
    %1727 = arith.muli %c15_i32_487, %c4_i32_488 : i32
    %1728 = tpu.assume_multiple %1727, 4 : i32
    %1729 = arith.index_cast %1728 : i32 to index
    %c0_489 = arith.constant 0 : index
    %1730 = vector.load %arg23[%1729, %c0_489] : memref<64x64xf32, #tpu.memory_space<vmem>>, vector<4x64xf32>
    %1731 = arith.truncf %1724 : vector<4x16xf32> to vector<4x16xbf16>
    %cst_490 = arith.constant dense<0.000000e+00> : vector<4x64xf32>
    %1732 = tpu.matmul %1731, %1335, %cst_490 {dimension_numbers = #tpu.dot_dimension_numbers<[1], [0], [0], [1], [0, 0, 1, 1], [], []>} : vector<4x16xbf16>, vector<16x64xbf16>, vector<4x64xf32> -> vector<4x64xf32>
    %1733 = arith.addf %1730, %1732 : vector<4x64xf32>
    %1734 = vector.extract_strided_slice %1733 {offsets = [0, 0], sizes = [4, 48], strides = [1, 1]} : vector<4x64xf32> to vector<4x48xf32>
    %cst_491 = arith.constant 0.000000e+00 : f32
    %1735 = vector.broadcast %cst_491 : f32 to vector<4x48xf32>
    %1736 = arith.subf %1735, %1734 : vector<4x48xf32>
    %1737 = math.exp %1736 : vector<4x48xf32>
    %cst_492 = arith.constant 1.000000e+00 : f32
    %1738 = vector.broadcast %cst_492 : f32 to vector<4x48xf32>
    %1739 = arith.addf %1738, %1737 : vector<4x48xf32>
    %1740 = tpu.reciprocal %1739 {approx = true} : vector<4x48xf32> -> vector<4x48xf32>
    %1741 = vector.extract_strided_slice %1733 {offsets = [0, 48], sizes = [4, 16], strides = [1, 1]} : vector<4x64xf32> to vector<4x16xf32>
    %1742 = math.tanh %1741 : vector<4x16xf32>
    %1743 = vector.extract_strided_slice %1740 {offsets = [0, 0], sizes = [4, 16], strides = [1, 1]} : vector<4x48xf32> to vector<4x16xf32>
    %1744 = vector.extract_strided_slice %1740 {offsets = [0, 16], sizes = [4, 16], strides = [1, 1]} : vector<4x48xf32> to vector<4x16xf32>
    %1745 = vector.extract_strided_slice %1740 {offsets = [0, 32], sizes = [4, 16], strides = [1, 1]} : vector<4x48xf32> to vector<4x16xf32>
    %1746 = arith.mulf %1744, %1722 : vector<4x16xf32>
    %1747 = arith.mulf %1743, %1742 : vector<4x16xf32>
    %1748 = arith.addf %1746, %1747 : vector<4x16xf32>
    %1749 = math.tanh %1748 : vector<4x16xf32>
    %1750 = arith.mulf %1745, %1749 : vector<4x16xf32>
    %1751 = arith.index_cast %1728 : i32 to index
    %c0_493 = arith.constant 0 : index
    %1752 = vector.load %arg24[%1751, %c0_493] : memref<64x16xf32, #tpu.memory_space<vmem>>, vector<4x16xf32>
    tpu.vector_store %arg24[%1751, %c0_493], %1750 {strides = array<i32>} : memref<64x16xf32, #tpu.memory_space<vmem>>, vector<4x16xf32>,
    %c16_i32_494 = arith.constant 16 : i32
    %c0_495 = arith.constant 0 : index
    %c0_496 = arith.constant 0 : index
    %1753 = vector.load %arg24[%c0_495, %c0_496] : memref<64x16xf32, #tpu.memory_space<vmem>>, vector<64x16xf32>
    %cst_497 = arith.constant 0.000000e+00 : f32
    %1754 = vector.broadcast %cst_497 : f32 to vector<64x16xf32>
    %1755 = arith.maximumf %1753, %1754 : vector<64x16xf32>
    %c0_498 = arith.constant 0 : index
    %c0_499 = arith.constant 0 : index
    %1756 = vector.load %arg10[%c0_498, %c0_499] : memref<16x128xf32, #tpu.memory_space<vmem>>, vector<16x128xf32>
    %1757 = arith.truncf %1755 : vector<64x16xf32> to vector<64x16xbf16>
    %1758 = arith.truncf %1756 : vector<16x128xf32> to vector<16x128xbf16>
    %cst_500 = arith.constant dense<0.000000e+00> : vector<64x128xf32>
    %1759 = tpu.matmul %1757, %1758, %cst_500 {dimension_numbers = #tpu.dot_dimension_numbers<[1], [0], [0], [1], [0, 0, 1, 1], [], []>} : vector<64x16xbf16>, vector<16x128xbf16>, vector<64x128xf32> -> vector<64x128xf32>
    %1760 = vector.broadcast %6 : vector<1x128xf32> to vector<64x128xf32>
    %1761 = arith.addf %1759, %1760 : vector<64x128xf32>
    %c0_501 = arith.constant 0 : index
    %c0_502 = arith.constant 0 : index
    %1762 = vector.load %arg25[%c0_501, %c0_502] : memref<64x128xf32, #tpu.memory_space<vmem>>, vector<64x128xf32>
    tpu.vector_store %arg25[%c0_501, %c0_502], %1761 {strides = array<i32>} : memref<64x128xf32, #tpu.memory_space<vmem>>, vector<64x128xf32>,
    %c0_503 = arith.constant 0 : index
    %c0_504 = arith.constant 0 : index
    %1763 = vector.load %arg11[%c0_503, %c0_504] : memref<32x128xf32, #tpu.memory_space<vmem>>, vector<32x128xf32>
    %1764 = arith.truncf %1763 : vector<32x128xf32> to vector<32x128xbf16>
    %cst_505 = arith.constant 0.000000e+00 : f32
    %1765 = vector.broadcast %cst_505 : f32 to vector<4x32xf32>
    %c0_i32_506 = arith.constant 0 : i32
    %c4_i32_507 = arith.constant 4 : i32
    %1766 = arith.muli %c0_i32_506, %c4_i32_507 : i32
    %1767 = tpu.assume_multiple %1766, 4 : i32
    %1768 = arith.index_cast %1767 : i32 to index
    %c0_508 = arith.constant 0 : index
    %1769 = vector.load %arg25[%1768, %c0_508] : memref<64x128xf32, #tpu.memory_space<vmem>>, vector<4x128xf32>
    %1770 = arith.truncf %1765 : vector<4x32xf32> to vector<4x32xbf16>
    %cst_509 = arith.constant dense<0.000000e+00> : vector<4x128xf32>
    %1771 = tpu.matmul %1770, %1764, %cst_509 {dimension_numbers = #tpu.dot_dimension_numbers<[1], [0], [0], [1], [0, 0, 1, 1], [], []>} : vector<4x32xbf16>, vector<32x128xbf16>, vector<4x128xf32> -> vector<4x128xf32>
    %1772 = arith.addf %1769, %1771 : vector<4x128xf32>
    %1773 = vector.extract_strided_slice %1772 {offsets = [0, 0], sizes = [4, 96], strides = [1, 1]} : vector<4x128xf32> to vector<4x96xf32>
    %cst_510 = arith.constant 0.000000e+00 : f32
    %1774 = vector.broadcast %cst_510 : f32 to vector<4x96xf32>
    %1775 = arith.subf %1774, %1773 : vector<4x96xf32>
    %1776 = math.exp %1775 : vector<4x96xf32>
    %cst_511 = arith.constant 1.000000e+00 : f32
    %1777 = vector.broadcast %cst_511 : f32 to vector<4x96xf32>
    %1778 = arith.addf %1777, %1776 : vector<4x96xf32>
    %1779 = tpu.reciprocal %1778 {approx = true} : vector<4x96xf32> -> vector<4x96xf32>
    %1780 = vector.extract_strided_slice %1772 {offsets = [0, 96], sizes = [4, 32], strides = [1, 1]} : vector<4x128xf32> to vector<4x32xf32>
    %1781 = math.tanh %1780 : vector<4x32xf32>
    %1782 = vector.extract_strided_slice %1779 {offsets = [0, 0], sizes = [4, 32], strides = [1, 1]} : vector<4x96xf32> to vector<4x32xf32>
    %1783 = vector.extract_strided_slice %1779 {offsets = [0, 32], sizes = [4, 32], strides = [1, 1]} : vector<4x96xf32> to vector<4x32xf32>
    %1784 = vector.extract_strided_slice %1779 {offsets = [0, 64], sizes = [4, 32], strides = [1, 1]} : vector<4x96xf32> to vector<4x32xf32>
    %1785 = arith.mulf %1783, %1765 : vector<4x32xf32>
    %1786 = arith.mulf %1782, %1781 : vector<4x32xf32>
    %1787 = arith.addf %1785, %1786 : vector<4x32xf32>
    %1788 = math.tanh %1787 : vector<4x32xf32>
    %1789 = arith.mulf %1784, %1788 : vector<4x32xf32>
    %1790 = arith.index_cast %1767 : i32 to index
    %c0_512 = arith.constant 0 : index
    %1791 = vector.load %arg26[%1790, %c0_512] : memref<64x32xf32, #tpu.memory_space<vmem>>, vector<4x32xf32>
    tpu.vector_store %arg26[%1790, %c0_512], %1789 {strides = array<i32>} : memref<64x32xf32, #tpu.memory_space<vmem>>, vector<4x32xf32>,
    %c1_i32_513 = arith.constant 1 : i32
    %c4_i32_514 = arith.constant 4 : i32
    %1792 = arith.muli %c1_i32_513, %c4_i32_514 : i32
    %1793 = tpu.assume_multiple %1792, 4 : i32
    %1794 = arith.index_cast %1793 : i32 to index
    %c0_515 = arith.constant 0 : index
    %1795 = vector.load %arg25[%1794, %c0_515] : memref<64x128xf32, #tpu.memory_space<vmem>>, vector<4x128xf32>
    %1796 = arith.truncf %1789 : vector<4x32xf32> to vector<4x32xbf16>
    %cst_516 = arith.constant dense<0.000000e+00> : vector<4x128xf32>
    %1797 = tpu.matmul %1796, %1764, %cst_516 {dimension_numbers = #tpu.dot_dimension_numbers<[1], [0], [0], [1], [0, 0, 1, 1], [], []>} : vector<4x32xbf16>, vector<32x128xbf16>, vector<4x128xf32> -> vector<4x128xf32>
    %1798 = arith.addf %1795, %1797 : vector<4x128xf32>
    %1799 = vector.extract_strided_slice %1798 {offsets = [0, 0], sizes = [4, 96], strides = [1, 1]} : vector<4x128xf32> to vector<4x96xf32>
    %cst_517 = arith.constant 0.000000e+00 : f32
    %1800 = vector.broadcast %cst_517 : f32 to vector<4x96xf32>
    %1801 = arith.subf %1800, %1799 : vector<4x96xf32>
    %1802 = math.exp %1801 : vector<4x96xf32>
    %cst_518 = arith.constant 1.000000e+00 : f32
    %1803 = vector.broadcast %cst_518 : f32 to vector<4x96xf32>
    %1804 = arith.addf %1803, %1802 : vector<4x96xf32>
    %1805 = tpu.reciprocal %1804 {approx = true} : vector<4x96xf32> -> vector<4x96xf32>
    %1806 = vector.extract_strided_slice %1798 {offsets = [0, 96], sizes = [4, 32], strides = [1, 1]} : vector<4x128xf32> to vector<4x32xf32>
    %1807 = math.tanh %1806 : vector<4x32xf32>
    %1808 = vector.extract_strided_slice %1805 {offsets = [0, 0], sizes = [4, 32], strides = [1, 1]} : vector<4x96xf32> to vector<4x32xf32>
    %1809 = vector.extract_strided_slice %1805 {offsets = [0, 32], sizes = [4, 32], strides = [1, 1]} : vector<4x96xf32> to vector<4x32xf32>
    %1810 = vector.extract_strided_slice %1805 {offsets = [0, 64], sizes = [4, 32], strides = [1, 1]} : vector<4x96xf32> to vector<4x32xf32>
    %1811 = arith.mulf %1809, %1787 : vector<4x32xf32>
    %1812 = arith.mulf %1808, %1807 : vector<4x32xf32>
    %1813 = arith.addf %1811, %1812 : vector<4x32xf32>
    %1814 = math.tanh %1813 : vector<4x32xf32>
    %1815 = arith.mulf %1810, %1814 : vector<4x32xf32>
    %1816 = arith.index_cast %1793 : i32 to index
    %c0_519 = arith.constant 0 : index
    %1817 = vector.load %arg26[%1816, %c0_519] : memref<64x32xf32, #tpu.memory_space<vmem>>, vector<4x32xf32>
    tpu.vector_store %arg26[%1816, %c0_519], %1815 {strides = array<i32>} : memref<64x32xf32, #tpu.memory_space<vmem>>, vector<4x32xf32>,
    %c2_i32_520 = arith.constant 2 : i32
    %c4_i32_521 = arith.constant 4 : i32
    %1818 = arith.muli %c2_i32_520, %c4_i32_521 : i32
    %1819 = tpu.assume_multiple %1818, 4 : i32
    %1820 = arith.index_cast %1819 : i32 to index
    %c0_522 = arith.constant 0 : index
    %1821 = vector.load %arg25[%1820, %c0_522] : memref<64x128xf32, #tpu.memory_space<vmem>>, vector<4x128xf32>
    %1822 = arith.truncf %1815 : vector<4x32xf32> to vector<4x32xbf16>
    %cst_523 = arith.constant dense<0.000000e+00> : vector<4x128xf32>
    %1823 = tpu.matmul %1822, %1764, %cst_523 {dimension_numbers = #tpu.dot_dimension_numbers<[1], [0], [0], [1], [0, 0, 1, 1], [], []>} : vector<4x32xbf16>, vector<32x128xbf16>, vector<4x128xf32> -> vector<4x128xf32>
    %1824 = arith.addf %1821, %1823 : vector<4x128xf32>
    %1825 = vector.extract_strided_slice %1824 {offsets = [0, 0], sizes = [4, 96], strides = [1, 1]} : vector<4x128xf32> to vector<4x96xf32>
    %cst_524 = arith.constant 0.000000e+00 : f32
    %1826 = vector.broadcast %cst_524 : f32 to vector<4x96xf32>
    %1827 = arith.subf %1826, %1825 : vector<4x96xf32>
    %1828 = math.exp %1827 : vector<4x96xf32>
    %cst_525 = arith.constant 1.000000e+00 : f32
    %1829 = vector.broadcast %cst_525 : f32 to vector<4x96xf32>
    %1830 = arith.addf %1829, %1828 : vector<4x96xf32>
    %1831 = tpu.reciprocal %1830 {approx = true} : vector<4x96xf32> -> vector<4x96xf32>
    %1832 = vector.extract_strided_slice %1824 {offsets = [0, 96], sizes = [4, 32], strides = [1, 1]} : vector<4x128xf32> to vector<4x32xf32>
    %1833 = math.tanh %1832 : vector<4x32xf32>
    %1834 = vector.extract_strided_slice %1831 {offsets = [0, 0], sizes = [4, 32], strides = [1, 1]} : vector<4x96xf32> to vector<4x32xf32>
    %1835 = vector.extract_strided_slice %1831 {offsets = [0, 32], sizes = [4, 32], strides = [1, 1]} : vector<4x96xf32> to vector<4x32xf32>
    %1836 = vector.extract_strided_slice %1831 {offsets = [0, 64], sizes = [4, 32], strides = [1, 1]} : vector<4x96xf32> to vector<4x32xf32>
    %1837 = arith.mulf %1835, %1813 : vector<4x32xf32>
    %1838 = arith.mulf %1834, %1833 : vector<4x32xf32>
    %1839 = arith.addf %1837, %1838 : vector<4x32xf32>
    %1840 = math.tanh %1839 : vector<4x32xf32>
    %1841 = arith.mulf %1836, %1840 : vector<4x32xf32>
    %1842 = arith.index_cast %1819 : i32 to index
    %c0_526 = arith.constant 0 : index
    %1843 = vector.load %arg26[%1842, %c0_526] : memref<64x32xf32, #tpu.memory_space<vmem>>, vector<4x32xf32>
    tpu.vector_store %arg26[%1842, %c0_526], %1841 {strides = array<i32>} : memref<64x32xf32, #tpu.memory_space<vmem>>, vector<4x32xf32>,
    %c3_i32_527 = arith.constant 3 : i32
    %c4_i32_528 = arith.constant 4 : i32
    %1844 = arith.muli %c3_i32_527, %c4_i32_528 : i32
    %1845 = tpu.assume_multiple %1844, 4 : i32
    %1846 = arith.index_cast %1845 : i32 to index
    %c0_529 = arith.constant 0 : index
    %1847 = vector.load %arg25[%1846, %c0_529] : memref<64x128xf32, #tpu.memory_space<vmem>>, vector<4x128xf32>
    %1848 = arith.truncf %1841 : vector<4x32xf32> to vector<4x32xbf16>
    %cst_530 = arith.constant dense<0.000000e+00> : vector<4x128xf32>
    %1849 = tpu.matmul %1848, %1764, %cst_530 {dimension_numbers = #tpu.dot_dimension_numbers<[1], [0], [0], [1], [0, 0, 1, 1], [], []>} : vector<4x32xbf16>, vector<32x128xbf16>, vector<4x128xf32> -> vector<4x128xf32>
    %1850 = arith.addf %1847, %1849 : vector<4x128xf32>
    %1851 = vector.extract_strided_slice %1850 {offsets = [0, 0], sizes = [4, 96], strides = [1, 1]} : vector<4x128xf32> to vector<4x96xf32>
    %cst_531 = arith.constant 0.000000e+00 : f32
    %1852 = vector.broadcast %cst_531 : f32 to vector<4x96xf32>
    %1853 = arith.subf %1852, %1851 : vector<4x96xf32>
    %1854 = math.exp %1853 : vector<4x96xf32>
    %cst_532 = arith.constant 1.000000e+00 : f32
    %1855 = vector.broadcast %cst_532 : f32 to vector<4x96xf32>
    %1856 = arith.addf %1855, %1854 : vector<4x96xf32>
    %1857 = tpu.reciprocal %1856 {approx = true} : vector<4x96xf32> -> vector<4x96xf32>
    %1858 = vector.extract_strided_slice %1850 {offsets = [0, 96], sizes = [4, 32], strides = [1, 1]} : vector<4x128xf32> to vector<4x32xf32>
    %1859 = math.tanh %1858 : vector<4x32xf32>
    %1860 = vector.extract_strided_slice %1857 {offsets = [0, 0], sizes = [4, 32], strides = [1, 1]} : vector<4x96xf32> to vector<4x32xf32>
    %1861 = vector.extract_strided_slice %1857 {offsets = [0, 32], sizes = [4, 32], strides = [1, 1]} : vector<4x96xf32> to vector<4x32xf32>
    %1862 = vector.extract_strided_slice %1857 {offsets = [0, 64], sizes = [4, 32], strides = [1, 1]} : vector<4x96xf32> to vector<4x32xf32>
    %1863 = arith.mulf %1861, %1839 : vector<4x32xf32>
    %1864 = arith.mulf %1860, %1859 : vector<4x32xf32>
    %1865 = arith.addf %1863, %1864 : vector<4x32xf32>
    %1866 = math.tanh %1865 : vector<4x32xf32>
    %1867 = arith.mulf %1862, %1866 : vector<4x32xf32>
    %1868 = arith.index_cast %1845 : i32 to index
    %c0_533 = arith.constant 0 : index
    %1869 = vector.load %arg26[%1868, %c0_533] : memref<64x32xf32, #tpu.memory_space<vmem>>, vector<4x32xf32>
    tpu.vector_store %arg26[%1868, %c0_533], %1867 {strides = array<i32>} : memref<64x32xf32, #tpu.memory_space<vmem>>, vector<4x32xf32>,
    %c4_i32_534 = arith.constant 4 : i32
    %c4_i32_535 = arith.constant 4 : i32
    %1870 = arith.muli %c4_i32_534, %c4_i32_535 : i32
    %1871 = tpu.assume_multiple %1870, 4 : i32
    %1872 = arith.index_cast %1871 : i32 to index
    %c0_536 = arith.constant 0 : index
    %1873 = vector.load %arg25[%1872, %c0_536] : memref<64x128xf32, #tpu.memory_space<vmem>>, vector<4x128xf32>
    %1874 = arith.truncf %1867 : vector<4x32xf32> to vector<4x32xbf16>
    %cst_537 = arith.constant dense<0.000000e+00> : vector<4x128xf32>
    %1875 = tpu.matmul %1874, %1764, %cst_537 {dimension_numbers = #tpu.dot_dimension_numbers<[1], [0], [0], [1], [0, 0, 1, 1], [], []>} : vector<4x32xbf16>, vector<32x128xbf16>, vector<4x128xf32> -> vector<4x128xf32>
    %1876 = arith.addf %1873, %1875 : vector<4x128xf32>
    %1877 = vector.extract_strided_slice %1876 {offsets = [0, 0], sizes = [4, 96], strides = [1, 1]} : vector<4x128xf32> to vector<4x96xf32>
    %cst_538 = arith.constant 0.000000e+00 : f32
    %1878 = vector.broadcast %cst_538 : f32 to vector<4x96xf32>
    %1879 = arith.subf %1878, %1877 : vector<4x96xf32>
    %1880 = math.exp %1879 : vector<4x96xf32>
    %cst_539 = arith.constant 1.000000e+00 : f32
    %1881 = vector.broadcast %cst_539 : f32 to vector<4x96xf32>
    %1882 = arith.addf %1881, %1880 : vector<4x96xf32>
    %1883 = tpu.reciprocal %1882 {approx = true} : vector<4x96xf32> -> vector<4x96xf32>
    %1884 = vector.extract_strided_slice %1876 {offsets = [0, 96], sizes = [4, 32], strides = [1, 1]} : vector<4x128xf32> to vector<4x32xf32>
    %1885 = math.tanh %1884 : vector<4x32xf32>
    %1886 = vector.extract_strided_slice %1883 {offsets = [0, 0], sizes = [4, 32], strides = [1, 1]} : vector<4x96xf32> to vector<4x32xf32>
    %1887 = vector.extract_strided_slice %1883 {offsets = [0, 32], sizes = [4, 32], strides = [1, 1]} : vector<4x96xf32> to vector<4x32xf32>
    %1888 = vector.extract_strided_slice %1883 {offsets = [0, 64], sizes = [4, 32], strides = [1, 1]} : vector<4x96xf32> to vector<4x32xf32>
    %1889 = arith.mulf %1887, %1865 : vector<4x32xf32>
    %1890 = arith.mulf %1886, %1885 : vector<4x32xf32>
    %1891 = arith.addf %1889, %1890 : vector<4x32xf32>
    %1892 = math.tanh %1891 : vector<4x32xf32>
    %1893 = arith.mulf %1888, %1892 : vector<4x32xf32>
    %1894 = arith.index_cast %1871 : i32 to index
    %c0_540 = arith.constant 0 : index
    %1895 = vector.load %arg26[%1894, %c0_540] : memref<64x32xf32, #tpu.memory_space<vmem>>, vector<4x32xf32>
    tpu.vector_store %arg26[%1894, %c0_540], %1893 {strides = array<i32>} : memref<64x32xf32, #tpu.memory_space<vmem>>, vector<4x32xf32>,
    %c5_i32_541 = arith.constant 5 : i32
    %c4_i32_542 = arith.constant 4 : i32
    %1896 = arith.muli %c5_i32_541, %c4_i32_542 : i32
    %1897 = tpu.assume_multiple %1896, 4 : i32
    %1898 = arith.index_cast %1897 : i32 to index
    %c0_543 = arith.constant 0 : index
    %1899 = vector.load %arg25[%1898, %c0_543] : memref<64x128xf32, #tpu.memory_space<vmem>>, vector<4x128xf32>
    %1900 = arith.truncf %1893 : vector<4x32xf32> to vector<4x32xbf16>
    %cst_544 = arith.constant dense<0.000000e+00> : vector<4x128xf32>
    %1901 = tpu.matmul %1900, %1764, %cst_544 {dimension_numbers = #tpu.dot_dimension_numbers<[1], [0], [0], [1], [0, 0, 1, 1], [], []>} : vector<4x32xbf16>, vector<32x128xbf16>, vector<4x128xf32> -> vector<4x128xf32>
    %1902 = arith.addf %1899, %1901 : vector<4x128xf32>
    %1903 = vector.extract_strided_slice %1902 {offsets = [0, 0], sizes = [4, 96], strides = [1, 1]} : vector<4x128xf32> to vector<4x96xf32>
    %cst_545 = arith.constant 0.000000e+00 : f32
    %1904 = vector.broadcast %cst_545 : f32 to vector<4x96xf32>
    %1905 = arith.subf %1904, %1903 : vector<4x96xf32>
    %1906 = math.exp %1905 : vector<4x96xf32>
    %cst_546 = arith.constant 1.000000e+00 : f32
    %1907 = vector.broadcast %cst_546 : f32 to vector<4x96xf32>
    %1908 = arith.addf %1907, %1906 : vector<4x96xf32>
    %1909 = tpu.reciprocal %1908 {approx = true} : vector<4x96xf32> -> vector<4x96xf32>
    %1910 = vector.extract_strided_slice %1902 {offsets = [0, 96], sizes = [4, 32], strides = [1, 1]} : vector<4x128xf32> to vector<4x32xf32>
    %1911 = math.tanh %1910 : vector<4x32xf32>
    %1912 = vector.extract_strided_slice %1909 {offsets = [0, 0], sizes = [4, 32], strides = [1, 1]} : vector<4x96xf32> to vector<4x32xf32>
    %1913 = vector.extract_strided_slice %1909 {offsets = [0, 32], sizes = [4, 32], strides = [1, 1]} : vector<4x96xf32> to vector<4x32xf32>
    %1914 = vector.extract_strided_slice %1909 {offsets = [0, 64], sizes = [4, 32], strides = [1, 1]} : vector<4x96xf32> to vector<4x32xf32>
    %1915 = arith.mulf %1913, %1891 : vector<4x32xf32>
    %1916 = arith.mulf %1912, %1911 : vector<4x32xf32>
    %1917 = arith.addf %1915, %1916 : vector<4x32xf32>
    %1918 = math.tanh %1917 : vector<4x32xf32>
    %1919 = arith.mulf %1914, %1918 : vector<4x32xf32>
    %1920 = arith.index_cast %1897 : i32 to index
    %c0_547 = arith.constant 0 : index
    %1921 = vector.load %arg26[%1920, %c0_547] : memref<64x32xf32, #tpu.memory_space<vmem>>, vector<4x32xf32>
    tpu.vector_store %arg26[%1920, %c0_547], %1919 {strides = array<i32>} : memref<64x32xf32, #tpu.memory_space<vmem>>, vector<4x32xf32>,
    %c6_i32_548 = arith.constant 6 : i32
    %c4_i32_549 = arith.constant 4 : i32
    %1922 = arith.muli %c6_i32_548, %c4_i32_549 : i32
    %1923 = tpu.assume_multiple %1922, 4 : i32
    %1924 = arith.index_cast %1923 : i32 to index
    %c0_550 = arith.constant 0 : index
    %1925 = vector.load %arg25[%1924, %c0_550] : memref<64x128xf32, #tpu.memory_space<vmem>>, vector<4x128xf32>
    %1926 = arith.truncf %1919 : vector<4x32xf32> to vector<4x32xbf16>
    %cst_551 = arith.constant dense<0.000000e+00> : vector<4x128xf32>
    %1927 = tpu.matmul %1926, %1764, %cst_551 {dimension_numbers = #tpu.dot_dimension_numbers<[1], [0], [0], [1], [0, 0, 1, 1], [], []>} : vector<4x32xbf16>, vector<32x128xbf16>, vector<4x128xf32> -> vector<4x128xf32>
    %1928 = arith.addf %1925, %1927 : vector<4x128xf32>
    %1929 = vector.extract_strided_slice %1928 {offsets = [0, 0], sizes = [4, 96], strides = [1, 1]} : vector<4x128xf32> to vector<4x96xf32>
    %cst_552 = arith.constant 0.000000e+00 : f32
    %1930 = vector.broadcast %cst_552 : f32 to vector<4x96xf32>
    %1931 = arith.subf %1930, %1929 : vector<4x96xf32>
    %1932 = math.exp %1931 : vector<4x96xf32>
    %cst_553 = arith.constant 1.000000e+00 : f32
    %1933 = vector.broadcast %cst_553 : f32 to vector<4x96xf32>
    %1934 = arith.addf %1933, %1932 : vector<4x96xf32>
    %1935 = tpu.reciprocal %1934 {approx = true} : vector<4x96xf32> -> vector<4x96xf32>
    %1936 = vector.extract_strided_slice %1928 {offsets = [0, 96], sizes = [4, 32], strides = [1, 1]} : vector<4x128xf32> to vector<4x32xf32>
    %1937 = math.tanh %1936 : vector<4x32xf32>
    %1938 = vector.extract_strided_slice %1935 {offsets = [0, 0], sizes = [4, 32], strides = [1, 1]} : vector<4x96xf32> to vector<4x32xf32>
    %1939 = vector.extract_strided_slice %1935 {offsets = [0, 32], sizes = [4, 32], strides = [1, 1]} : vector<4x96xf32> to vector<4x32xf32>
    %1940 = vector.extract_strided_slice %1935 {offsets = [0, 64], sizes = [4, 32], strides = [1, 1]} : vector<4x96xf32> to vector<4x32xf32>
    %1941 = arith.mulf %1939, %1917 : vector<4x32xf32>
    %1942 = arith.mulf %1938, %1937 : vector<4x32xf32>
    %1943 = arith.addf %1941, %1942 : vector<4x32xf32>
    %1944 = math.tanh %1943 : vector<4x32xf32>
    %1945 = arith.mulf %1940, %1944 : vector<4x32xf32>
    %1946 = arith.index_cast %1923 : i32 to index
    %c0_554 = arith.constant 0 : index
    %1947 = vector.load %arg26[%1946, %c0_554] : memref<64x32xf32, #tpu.memory_space<vmem>>, vector<4x32xf32>
    tpu.vector_store %arg26[%1946, %c0_554], %1945 {strides = array<i32>} : memref<64x32xf32, #tpu.memory_space<vmem>>, vector<4x32xf32>,
    %c7_i32_555 = arith.constant 7 : i32
    %c4_i32_556 = arith.constant 4 : i32
    %1948 = arith.muli %c7_i32_555, %c4_i32_556 : i32
    %1949 = tpu.assume_multiple %1948, 4 : i32
    %1950 = arith.index_cast %1949 : i32 to index
    %c0_557 = arith.constant 0 : index
    %1951 = vector.load %arg25[%1950, %c0_557] : memref<64x128xf32, #tpu.memory_space<vmem>>, vector<4x128xf32>
    %1952 = arith.truncf %1945 : vector<4x32xf32> to vector<4x32xbf16>
    %cst_558 = arith.constant dense<0.000000e+00> : vector<4x128xf32>
    %1953 = tpu.matmul %1952, %1764, %cst_558 {dimension_numbers = #tpu.dot_dimension_numbers<[1], [0], [0], [1], [0, 0, 1, 1], [], []>} : vector<4x32xbf16>, vector<32x128xbf16>, vector<4x128xf32> -> vector<4x128xf32>
    %1954 = arith.addf %1951, %1953 : vector<4x128xf32>
    %1955 = vector.extract_strided_slice %1954 {offsets = [0, 0], sizes = [4, 96], strides = [1, 1]} : vector<4x128xf32> to vector<4x96xf32>
    %cst_559 = arith.constant 0.000000e+00 : f32
    %1956 = vector.broadcast %cst_559 : f32 to vector<4x96xf32>
    %1957 = arith.subf %1956, %1955 : vector<4x96xf32>
    %1958 = math.exp %1957 : vector<4x96xf32>
    %cst_560 = arith.constant 1.000000e+00 : f32
    %1959 = vector.broadcast %cst_560 : f32 to vector<4x96xf32>
    %1960 = arith.addf %1959, %1958 : vector<4x96xf32>
    %1961 = tpu.reciprocal %1960 {approx = true} : vector<4x96xf32> -> vector<4x96xf32>
    %1962 = vector.extract_strided_slice %1954 {offsets = [0, 96], sizes = [4, 32], strides = [1, 1]} : vector<4x128xf32> to vector<4x32xf32>
    %1963 = math.tanh %1962 : vector<4x32xf32>
    %1964 = vector.extract_strided_slice %1961 {offsets = [0, 0], sizes = [4, 32], strides = [1, 1]} : vector<4x96xf32> to vector<4x32xf32>
    %1965 = vector.extract_strided_slice %1961 {offsets = [0, 32], sizes = [4, 32], strides = [1, 1]} : vector<4x96xf32> to vector<4x32xf32>
    %1966 = vector.extract_strided_slice %1961 {offsets = [0, 64], sizes = [4, 32], strides = [1, 1]} : vector<4x96xf32> to vector<4x32xf32>
    %1967 = arith.mulf %1965, %1943 : vector<4x32xf32>
    %1968 = arith.mulf %1964, %1963 : vector<4x32xf32>
    %1969 = arith.addf %1967, %1968 : vector<4x32xf32>
    %1970 = math.tanh %1969 : vector<4x32xf32>
    %1971 = arith.mulf %1966, %1970 : vector<4x32xf32>
    %1972 = arith.index_cast %1949 : i32 to index
    %c0_561 = arith.constant 0 : index
    %1973 = vector.load %arg26[%1972, %c0_561] : memref<64x32xf32, #tpu.memory_space<vmem>>, vector<4x32xf32>
    tpu.vector_store %arg26[%1972, %c0_561], %1971 {strides = array<i32>} : memref<64x32xf32, #tpu.memory_space<vmem>>, vector<4x32xf32>,
    %c8_i32_562 = arith.constant 8 : i32
    %c4_i32_563 = arith.constant 4 : i32
    %1974 = arith.muli %c8_i32_562, %c4_i32_563 : i32
    %1975 = tpu.assume_multiple %1974, 4 : i32
    %1976 = arith.index_cast %1975 : i32 to index
    %c0_564 = arith.constant 0 : index
    %1977 = vector.load %arg25[%1976, %c0_564] : memref<64x128xf32, #tpu.memory_space<vmem>>, vector<4x128xf32>
    %1978 = arith.truncf %1971 : vector<4x32xf32> to vector<4x32xbf16>
    %cst_565 = arith.constant dense<0.000000e+00> : vector<4x128xf32>
    %1979 = tpu.matmul %1978, %1764, %cst_565 {dimension_numbers = #tpu.dot_dimension_numbers<[1], [0], [0], [1], [0, 0, 1, 1], [], []>} : vector<4x32xbf16>, vector<32x128xbf16>, vector<4x128xf32> -> vector<4x128xf32>
    %1980 = arith.addf %1977, %1979 : vector<4x128xf32>
    %1981 = vector.extract_strided_slice %1980 {offsets = [0, 0], sizes = [4, 96], strides = [1, 1]} : vector<4x128xf32> to vector<4x96xf32>
    %cst_566 = arith.constant 0.000000e+00 : f32
    %1982 = vector.broadcast %cst_566 : f32 to vector<4x96xf32>
    %1983 = arith.subf %1982, %1981 : vector<4x96xf32>
    %1984 = math.exp %1983 : vector<4x96xf32>
    %cst_567 = arith.constant 1.000000e+00 : f32
    %1985 = vector.broadcast %cst_567 : f32 to vector<4x96xf32>
    %1986 = arith.addf %1985, %1984 : vector<4x96xf32>
    %1987 = tpu.reciprocal %1986 {approx = true} : vector<4x96xf32> -> vector<4x96xf32>
    %1988 = vector.extract_strided_slice %1980 {offsets = [0, 96], sizes = [4, 32], strides = [1, 1]} : vector<4x128xf32> to vector<4x32xf32>
    %1989 = math.tanh %1988 : vector<4x32xf32>
    %1990 = vector.extract_strided_slice %1987 {offsets = [0, 0], sizes = [4, 32], strides = [1, 1]} : vector<4x96xf32> to vector<4x32xf32>
    %1991 = vector.extract_strided_slice %1987 {offsets = [0, 32], sizes = [4, 32], strides = [1, 1]} : vector<4x96xf32> to vector<4x32xf32>
    %1992 = vector.extract_strided_slice %1987 {offsets = [0, 64], sizes = [4, 32], strides = [1, 1]} : vector<4x96xf32> to vector<4x32xf32>
    %1993 = arith.mulf %1991, %1969 : vector<4x32xf32>
    %1994 = arith.mulf %1990, %1989 : vector<4x32xf32>
    %1995 = arith.addf %1993, %1994 : vector<4x32xf32>
    %1996 = math.tanh %1995 : vector<4x32xf32>
    %1997 = arith.mulf %1992, %1996 : vector<4x32xf32>
    %1998 = arith.index_cast %1975 : i32 to index
    %c0_568 = arith.constant 0 : index
    %1999 = vector.load %arg26[%1998, %c0_568] : memref<64x32xf32, #tpu.memory_space<vmem>>, vector<4x32xf32>
    tpu.vector_store %arg26[%1998, %c0_568], %1997 {strides = array<i32>} : memref<64x32xf32, #tpu.memory_space<vmem>>, vector<4x32xf32>,
    %c9_i32_569 = arith.constant 9 : i32
    %c4_i32_570 = arith.constant 4 : i32
    %2000 = arith.muli %c9_i32_569, %c4_i32_570 : i32
    %2001 = tpu.assume_multiple %2000, 4 : i32
    %2002 = arith.index_cast %2001 : i32 to index
    %c0_571 = arith.constant 0 : index
    %2003 = vector.load %arg25[%2002, %c0_571] : memref<64x128xf32, #tpu.memory_space<vmem>>, vector<4x128xf32>
    %2004 = arith.truncf %1997 : vector<4x32xf32> to vector<4x32xbf16>
    %cst_572 = arith.constant dense<0.000000e+00> : vector<4x128xf32>
    %2005 = tpu.matmul %2004, %1764, %cst_572 {dimension_numbers = #tpu.dot_dimension_numbers<[1], [0], [0], [1], [0, 0, 1, 1], [], []>} : vector<4x32xbf16>, vector<32x128xbf16>, vector<4x128xf32> -> vector<4x128xf32>
    %2006 = arith.addf %2003, %2005 : vector<4x128xf32>
    %2007 = vector.extract_strided_slice %2006 {offsets = [0, 0], sizes = [4, 96], strides = [1, 1]} : vector<4x128xf32> to vector<4x96xf32>
    %cst_573 = arith.constant 0.000000e+00 : f32
    %2008 = vector.broadcast %cst_573 : f32 to vector<4x96xf32>
    %2009 = arith.subf %2008, %2007 : vector<4x96xf32>
    %2010 = math.exp %2009 : vector<4x96xf32>
    %cst_574 = arith.constant 1.000000e+00 : f32
    %2011 = vector.broadcast %cst_574 : f32 to vector<4x96xf32>
    %2012 = arith.addf %2011, %2010 : vector<4x96xf32>
    %2013 = tpu.reciprocal %2012 {approx = true} : vector<4x96xf32> -> vector<4x96xf32>
    %2014 = vector.extract_strided_slice %2006 {offsets = [0, 96], sizes = [4, 32], strides = [1, 1]} : vector<4x128xf32> to vector<4x32xf32>
    %2015 = math.tanh %2014 : vector<4x32xf32>
    %2016 = vector.extract_strided_slice %2013 {offsets = [0, 0], sizes = [4, 32], strides = [1, 1]} : vector<4x96xf32> to vector<4x32xf32>
    %2017 = vector.extract_strided_slice %2013 {offsets = [0, 32], sizes = [4, 32], strides = [1, 1]} : vector<4x96xf32> to vector<4x32xf32>
    %2018 = vector.extract_strided_slice %2013 {offsets = [0, 64], sizes = [4, 32], strides = [1, 1]} : vector<4x96xf32> to vector<4x32xf32>
    %2019 = arith.mulf %2017, %1995 : vector<4x32xf32>
    %2020 = arith.mulf %2016, %2015 : vector<4x32xf32>
    %2021 = arith.addf %2019, %2020 : vector<4x32xf32>
    %2022 = math.tanh %2021 : vector<4x32xf32>
    %2023 = arith.mulf %2018, %2022 : vector<4x32xf32>
    %2024 = arith.index_cast %2001 : i32 to index
    %c0_575 = arith.constant 0 : index
    %2025 = vector.load %arg26[%2024, %c0_575] : memref<64x32xf32, #tpu.memory_space<vmem>>, vector<4x32xf32>
    tpu.vector_store %arg26[%2024, %c0_575], %2023 {strides = array<i32>} : memref<64x32xf32, #tpu.memory_space<vmem>>, vector<4x32xf32>,
    %c10_i32_576 = arith.constant 10 : i32
    %c4_i32_577 = arith.constant 4 : i32
    %2026 = arith.muli %c10_i32_576, %c4_i32_577 : i32
    %2027 = tpu.assume_multiple %2026, 4 : i32
    %2028 = arith.index_cast %2027 : i32 to index
    %c0_578 = arith.constant 0 : index
    %2029 = vector.load %arg25[%2028, %c0_578] : memref<64x128xf32, #tpu.memory_space<vmem>>, vector<4x128xf32>
    %2030 = arith.truncf %2023 : vector<4x32xf32> to vector<4x32xbf16>
    %cst_579 = arith.constant dense<0.000000e+00> : vector<4x128xf32>
    %2031 = tpu.matmul %2030, %1764, %cst_579 {dimension_numbers = #tpu.dot_dimension_numbers<[1], [0], [0], [1], [0, 0, 1, 1], [], []>} : vector<4x32xbf16>, vector<32x128xbf16>, vector<4x128xf32> -> vector<4x128xf32>
    %2032 = arith.addf %2029, %2031 : vector<4x128xf32>
    %2033 = vector.extract_strided_slice %2032 {offsets = [0, 0], sizes = [4, 96], strides = [1, 1]} : vector<4x128xf32> to vector<4x96xf32>
    %cst_580 = arith.constant 0.000000e+00 : f32
    %2034 = vector.broadcast %cst_580 : f32 to vector<4x96xf32>
    %2035 = arith.subf %2034, %2033 : vector<4x96xf32>
    %2036 = math.exp %2035 : vector<4x96xf32>
    %cst_581 = arith.constant 1.000000e+00 : f32
    %2037 = vector.broadcast %cst_581 : f32 to vector<4x96xf32>
    %2038 = arith.addf %2037, %2036 : vector<4x96xf32>
    %2039 = tpu.reciprocal %2038 {approx = true} : vector<4x96xf32> -> vector<4x96xf32>
    %2040 = vector.extract_strided_slice %2032 {offsets = [0, 96], sizes = [4, 32], strides = [1, 1]} : vector<4x128xf32> to vector<4x32xf32>
    %2041 = math.tanh %2040 : vector<4x32xf32>
    %2042 = vector.extract_strided_slice %2039 {offsets = [0, 0], sizes = [4, 32], strides = [1, 1]} : vector<4x96xf32> to vector<4x32xf32>
    %2043 = vector.extract_strided_slice %2039 {offsets = [0, 32], sizes = [4, 32], strides = [1, 1]} : vector<4x96xf32> to vector<4x32xf32>
    %2044 = vector.extract_strided_slice %2039 {offsets = [0, 64], sizes = [4, 32], strides = [1, 1]} : vector<4x96xf32> to vector<4x32xf32>
    %2045 = arith.mulf %2043, %2021 : vector<4x32xf32>
    %2046 = arith.mulf %2042, %2041 : vector<4x32xf32>
    %2047 = arith.addf %2045, %2046 : vector<4x32xf32>
    %2048 = math.tanh %2047 : vector<4x32xf32>
    %2049 = arith.mulf %2044, %2048 : vector<4x32xf32>
    %2050 = arith.index_cast %2027 : i32 to index
    %c0_582 = arith.constant 0 : index
    %2051 = vector.load %arg26[%2050, %c0_582] : memref<64x32xf32, #tpu.memory_space<vmem>>, vector<4x32xf32>
    tpu.vector_store %arg26[%2050, %c0_582], %2049 {strides = array<i32>} : memref<64x32xf32, #tpu.memory_space<vmem>>, vector<4x32xf32>,
    %c11_i32_583 = arith.constant 11 : i32
    %c4_i32_584 = arith.constant 4 : i32
    %2052 = arith.muli %c11_i32_583, %c4_i32_584 : i32
    %2053 = tpu.assume_multiple %2052, 4 : i32
    %2054 = arith.index_cast %2053 : i32 to index
    %c0_585 = arith.constant 0 : index
    %2055 = vector.load %arg25[%2054, %c0_585] : memref<64x128xf32, #tpu.memory_space<vmem>>, vector<4x128xf32>
    %2056 = arith.truncf %2049 : vector<4x32xf32> to vector<4x32xbf16>
    %cst_586 = arith.constant dense<0.000000e+00> : vector<4x128xf32>
    %2057 = tpu.matmul %2056, %1764, %cst_586 {dimension_numbers = #tpu.dot_dimension_numbers<[1], [0], [0], [1], [0, 0, 1, 1], [], []>} : vector<4x32xbf16>, vector<32x128xbf16>, vector<4x128xf32> -> vector<4x128xf32>
    %2058 = arith.addf %2055, %2057 : vector<4x128xf32>
    %2059 = vector.extract_strided_slice %2058 {offsets = [0, 0], sizes = [4, 96], strides = [1, 1]} : vector<4x128xf32> to vector<4x96xf32>
    %cst_587 = arith.constant 0.000000e+00 : f32
    %2060 = vector.broadcast %cst_587 : f32 to vector<4x96xf32>
    %2061 = arith.subf %2060, %2059 : vector<4x96xf32>
    %2062 = math.exp %2061 : vector<4x96xf32>
    %cst_588 = arith.constant 1.000000e+00 : f32
    %2063 = vector.broadcast %cst_588 : f32 to vector<4x96xf32>
    %2064 = arith.addf %2063, %2062 : vector<4x96xf32>
    %2065 = tpu.reciprocal %2064 {approx = true} : vector<4x96xf32> -> vector<4x96xf32>
    %2066 = vector.extract_strided_slice %2058 {offsets = [0, 96], sizes = [4, 32], strides = [1, 1]} : vector<4x128xf32> to vector<4x32xf32>
    %2067 = math.tanh %2066 : vector<4x32xf32>
    %2068 = vector.extract_strided_slice %2065 {offsets = [0, 0], sizes = [4, 32], strides = [1, 1]} : vector<4x96xf32> to vector<4x32xf32>
    %2069 = vector.extract_strided_slice %2065 {offsets = [0, 32], sizes = [4, 32], strides = [1, 1]} : vector<4x96xf32> to vector<4x32xf32>
    %2070 = vector.extract_strided_slice %2065 {offsets = [0, 64], sizes = [4, 32], strides = [1, 1]} : vector<4x96xf32> to vector<4x32xf32>
    %2071 = arith.mulf %2069, %2047 : vector<4x32xf32>
    %2072 = arith.mulf %2068, %2067 : vector<4x32xf32>
    %2073 = arith.addf %2071, %2072 : vector<4x32xf32>
    %2074 = math.tanh %2073 : vector<4x32xf32>
    %2075 = arith.mulf %2070, %2074 : vector<4x32xf32>
    %2076 = arith.index_cast %2053 : i32 to index
    %c0_589 = arith.constant 0 : index
    %2077 = vector.load %arg26[%2076, %c0_589] : memref<64x32xf32, #tpu.memory_space<vmem>>, vector<4x32xf32>
    tpu.vector_store %arg26[%2076, %c0_589], %2075 {strides = array<i32>} : memref<64x32xf32, #tpu.memory_space<vmem>>, vector<4x32xf32>,
    %c12_i32_590 = arith.constant 12 : i32
    %c4_i32_591 = arith.constant 4 : i32
    %2078 = arith.muli %c12_i32_590, %c4_i32_591 : i32
    %2079 = tpu.assume_multiple %2078, 4 : i32
    %2080 = arith.index_cast %2079 : i32 to index
    %c0_592 = arith.constant 0 : index
    %2081 = vector.load %arg25[%2080, %c0_592] : memref<64x128xf32, #tpu.memory_space<vmem>>, vector<4x128xf32>
    %2082 = arith.truncf %2075 : vector<4x32xf32> to vector<4x32xbf16>
    %cst_593 = arith.constant dense<0.000000e+00> : vector<4x128xf32>
    %2083 = tpu.matmul %2082, %1764, %cst_593 {dimension_numbers = #tpu.dot_dimension_numbers<[1], [0], [0], [1], [0, 0, 1, 1], [], []>} : vector<4x32xbf16>, vector<32x128xbf16>, vector<4x128xf32> -> vector<4x128xf32>
    %2084 = arith.addf %2081, %2083 : vector<4x128xf32>
    %2085 = vector.extract_strided_slice %2084 {offsets = [0, 0], sizes = [4, 96], strides = [1, 1]} : vector<4x128xf32> to vector<4x96xf32>
    %cst_594 = arith.constant 0.000000e+00 : f32
    %2086 = vector.broadcast %cst_594 : f32 to vector<4x96xf32>
    %2087 = arith.subf %2086, %2085 : vector<4x96xf32>
    %2088 = math.exp %2087 : vector<4x96xf32>
    %cst_595 = arith.constant 1.000000e+00 : f32
    %2089 = vector.broadcast %cst_595 : f32 to vector<4x96xf32>
    %2090 = arith.addf %2089, %2088 : vector<4x96xf32>
    %2091 = tpu.reciprocal %2090 {approx = true} : vector<4x96xf32> -> vector<4x96xf32>
    %2092 = vector.extract_strided_slice %2084 {offsets = [0, 96], sizes = [4, 32], strides = [1, 1]} : vector<4x128xf32> to vector<4x32xf32>
    %2093 = math.tanh %2092 : vector<4x32xf32>
    %2094 = vector.extract_strided_slice %2091 {offsets = [0, 0], sizes = [4, 32], strides = [1, 1]} : vector<4x96xf32> to vector<4x32xf32>
    %2095 = vector.extract_strided_slice %2091 {offsets = [0, 32], sizes = [4, 32], strides = [1, 1]} : vector<4x96xf32> to vector<4x32xf32>
    %2096 = vector.extract_strided_slice %2091 {offsets = [0, 64], sizes = [4, 32], strides = [1, 1]} : vector<4x96xf32> to vector<4x32xf32>
    %2097 = arith.mulf %2095, %2073 : vector<4x32xf32>
    %2098 = arith.mulf %2094, %2093 : vector<4x32xf32>
    %2099 = arith.addf %2097, %2098 : vector<4x32xf32>
    %2100 = math.tanh %2099 : vector<4x32xf32>
    %2101 = arith.mulf %2096, %2100 : vector<4x32xf32>
    %2102 = arith.index_cast %2079 : i32 to index
    %c0_596 = arith.constant 0 : index
    %2103 = vector.load %arg26[%2102, %c0_596] : memref<64x32xf32, #tpu.memory_space<vmem>>, vector<4x32xf32>
    tpu.vector_store %arg26[%2102, %c0_596], %2101 {strides = array<i32>} : memref<64x32xf32, #tpu.memory_space<vmem>>, vector<4x32xf32>,
    %c13_i32_597 = arith.constant 13 : i32
    %c4_i32_598 = arith.constant 4 : i32
    %2104 = arith.muli %c13_i32_597, %c4_i32_598 : i32
    %2105 = tpu.assume_multiple %2104, 4 : i32
    %2106 = arith.index_cast %2105 : i32 to index
    %c0_599 = arith.constant 0 : index
    %2107 = vector.load %arg25[%2106, %c0_599] : memref<64x128xf32, #tpu.memory_space<vmem>>, vector<4x128xf32>
    %2108 = arith.truncf %2101 : vector<4x32xf32> to vector<4x32xbf16>
    %cst_600 = arith.constant dense<0.000000e+00> : vector<4x128xf32>
    %2109 = tpu.matmul %2108, %1764, %cst_600 {dimension_numbers = #tpu.dot_dimension_numbers<[1], [0], [0], [1], [0, 0, 1, 1], [], []>} : vector<4x32xbf16>, vector<32x128xbf16>, vector<4x128xf32> -> vector<4x128xf32>
    %2110 = arith.addf %2107, %2109 : vector<4x128xf32>
    %2111 = vector.extract_strided_slice %2110 {offsets = [0, 0], sizes = [4, 96], strides = [1, 1]} : vector<4x128xf32> to vector<4x96xf32>
    %cst_601 = arith.constant 0.000000e+00 : f32
    %2112 = vector.broadcast %cst_601 : f32 to vector<4x96xf32>
    %2113 = arith.subf %2112, %2111 : vector<4x96xf32>
    %2114 = math.exp %2113 : vector<4x96xf32>
    %cst_602 = arith.constant 1.000000e+00 : f32
    %2115 = vector.broadcast %cst_602 : f32 to vector<4x96xf32>
    %2116 = arith.addf %2115, %2114 : vector<4x96xf32>
    %2117 = tpu.reciprocal %2116 {approx = true} : vector<4x96xf32> -> vector<4x96xf32>
    %2118 = vector.extract_strided_slice %2110 {offsets = [0, 96], sizes = [4, 32], strides = [1, 1]} : vector<4x128xf32> to vector<4x32xf32>
    %2119 = math.tanh %2118 : vector<4x32xf32>
    %2120 = vector.extract_strided_slice %2117 {offsets = [0, 0], sizes = [4, 32], strides = [1, 1]} : vector<4x96xf32> to vector<4x32xf32>
    %2121 = vector.extract_strided_slice %2117 {offsets = [0, 32], sizes = [4, 32], strides = [1, 1]} : vector<4x96xf32> to vector<4x32xf32>
    %2122 = vector.extract_strided_slice %2117 {offsets = [0, 64], sizes = [4, 32], strides = [1, 1]} : vector<4x96xf32> to vector<4x32xf32>
    %2123 = arith.mulf %2121, %2099 : vector<4x32xf32>
    %2124 = arith.mulf %2120, %2119 : vector<4x32xf32>
    %2125 = arith.addf %2123, %2124 : vector<4x32xf32>
    %2126 = math.tanh %2125 : vector<4x32xf32>
    %2127 = arith.mulf %2122, %2126 : vector<4x32xf32>
    %2128 = arith.index_cast %2105 : i32 to index
    %c0_603 = arith.constant 0 : index
    %2129 = vector.load %arg26[%2128, %c0_603] : memref<64x32xf32, #tpu.memory_space<vmem>>, vector<4x32xf32>
    tpu.vector_store %arg26[%2128, %c0_603], %2127 {strides = array<i32>} : memref<64x32xf32, #tpu.memory_space<vmem>>, vector<4x32xf32>,
    %c14_i32_604 = arith.constant 14 : i32
    %c4_i32_605 = arith.constant 4 : i32
    %2130 = arith.muli %c14_i32_604, %c4_i32_605 : i32
    %2131 = tpu.assume_multiple %2130, 4 : i32
    %2132 = arith.index_cast %2131 : i32 to index
    %c0_606 = arith.constant 0 : index
    %2133 = vector.load %arg25[%2132, %c0_606] : memref<64x128xf32, #tpu.memory_space<vmem>>, vector<4x128xf32>
    %2134 = arith.truncf %2127 : vector<4x32xf32> to vector<4x32xbf16>
    %cst_607 = arith.constant dense<0.000000e+00> : vector<4x128xf32>
    %2135 = tpu.matmul %2134, %1764, %cst_607 {dimension_numbers = #tpu.dot_dimension_numbers<[1], [0], [0], [1], [0, 0, 1, 1], [], []>} : vector<4x32xbf16>, vector<32x128xbf16>, vector<4x128xf32> -> vector<4x128xf32>
    %2136 = arith.addf %2133, %2135 : vector<4x128xf32>
    %2137 = vector.extract_strided_slice %2136 {offsets = [0, 0], sizes = [4, 96], strides = [1, 1]} : vector<4x128xf32> to vector<4x96xf32>
    %cst_608 = arith.constant 0.000000e+00 : f32
    %2138 = vector.broadcast %cst_608 : f32 to vector<4x96xf32>
    %2139 = arith.subf %2138, %2137 : vector<4x96xf32>
    %2140 = math.exp %2139 : vector<4x96xf32>
    %cst_609 = arith.constant 1.000000e+00 : f32
    %2141 = vector.broadcast %cst_609 : f32 to vector<4x96xf32>
    %2142 = arith.addf %2141, %2140 : vector<4x96xf32>
    %2143 = tpu.reciprocal %2142 {approx = true} : vector<4x96xf32> -> vector<4x96xf32>
    %2144 = vector.extract_strided_slice %2136 {offsets = [0, 96], sizes = [4, 32], strides = [1, 1]} : vector<4x128xf32> to vector<4x32xf32>
    %2145 = math.tanh %2144 : vector<4x32xf32>
    %2146 = vector.extract_strided_slice %2143 {offsets = [0, 0], sizes = [4, 32], strides = [1, 1]} : vector<4x96xf32> to vector<4x32xf32>
    %2147 = vector.extract_strided_slice %2143 {offsets = [0, 32], sizes = [4, 32], strides = [1, 1]} : vector<4x96xf32> to vector<4x32xf32>
    %2148 = vector.extract_strided_slice %2143 {offsets = [0, 64], sizes = [4, 32], strides = [1, 1]} : vector<4x96xf32> to vector<4x32xf32>
    %2149 = arith.mulf %2147, %2125 : vector<4x32xf32>
    %2150 = arith.mulf %2146, %2145 : vector<4x32xf32>
    %2151 = arith.addf %2149, %2150 : vector<4x32xf32>
    %2152 = math.tanh %2151 : vector<4x32xf32>
    %2153 = arith.mulf %2148, %2152 : vector<4x32xf32>
    %2154 = arith.index_cast %2131 : i32 to index
    %c0_610 = arith.constant 0 : index
    %2155 = vector.load %arg26[%2154, %c0_610] : memref<64x32xf32, #tpu.memory_space<vmem>>, vector<4x32xf32>
    tpu.vector_store %arg26[%2154, %c0_610], %2153 {strides = array<i32>} : memref<64x32xf32, #tpu.memory_space<vmem>>, vector<4x32xf32>,
    %c15_i32_611 = arith.constant 15 : i32
    %c4_i32_612 = arith.constant 4 : i32
    %2156 = arith.muli %c15_i32_611, %c4_i32_612 : i32
    %2157 = tpu.assume_multiple %2156, 4 : i32
    %2158 = arith.index_cast %2157 : i32 to index
    %c0_613 = arith.constant 0 : index
    %2159 = vector.load %arg25[%2158, %c0_613] : memref<64x128xf32, #tpu.memory_space<vmem>>, vector<4x128xf32>
    %2160 = arith.truncf %2153 : vector<4x32xf32> to vector<4x32xbf16>
    %cst_614 = arith.constant dense<0.000000e+00> : vector<4x128xf32>
    %2161 = tpu.matmul %2160, %1764, %cst_614 {dimension_numbers = #tpu.dot_dimension_numbers<[1], [0], [0], [1], [0, 0, 1, 1], [], []>} : vector<4x32xbf16>, vector<32x128xbf16>, vector<4x128xf32> -> vector<4x128xf32>
    %2162 = arith.addf %2159, %2161 : vector<4x128xf32>
    %2163 = vector.extract_strided_slice %2162 {offsets = [0, 0], sizes = [4, 96], strides = [1, 1]} : vector<4x128xf32> to vector<4x96xf32>
    %cst_615 = arith.constant 0.000000e+00 : f32
    %2164 = vector.broadcast %cst_615 : f32 to vector<4x96xf32>
    %2165 = arith.subf %2164, %2163 : vector<4x96xf32>
    %2166 = math.exp %2165 : vector<4x96xf32>
    %cst_616 = arith.constant 1.000000e+00 : f32
    %2167 = vector.broadcast %cst_616 : f32 to vector<4x96xf32>
    %2168 = arith.addf %2167, %2166 : vector<4x96xf32>
    %2169 = tpu.reciprocal %2168 {approx = true} : vector<4x96xf32> -> vector<4x96xf32>
    %2170 = vector.extract_strided_slice %2162 {offsets = [0, 96], sizes = [4, 32], strides = [1, 1]} : vector<4x128xf32> to vector<4x32xf32>
    %2171 = math.tanh %2170 : vector<4x32xf32>
    %2172 = vector.extract_strided_slice %2169 {offsets = [0, 0], sizes = [4, 32], strides = [1, 1]} : vector<4x96xf32> to vector<4x32xf32>
    %2173 = vector.extract_strided_slice %2169 {offsets = [0, 32], sizes = [4, 32], strides = [1, 1]} : vector<4x96xf32> to vector<4x32xf32>
    %2174 = vector.extract_strided_slice %2169 {offsets = [0, 64], sizes = [4, 32], strides = [1, 1]} : vector<4x96xf32> to vector<4x32xf32>
    %2175 = arith.mulf %2173, %2151 : vector<4x32xf32>
    %2176 = arith.mulf %2172, %2171 : vector<4x32xf32>
    %2177 = arith.addf %2175, %2176 : vector<4x32xf32>
    %2178 = math.tanh %2177 : vector<4x32xf32>
    %2179 = arith.mulf %2174, %2178 : vector<4x32xf32>
    %2180 = arith.index_cast %2157 : i32 to index
    %c0_617 = arith.constant 0 : index
    %2181 = vector.load %arg26[%2180, %c0_617] : memref<64x32xf32, #tpu.memory_space<vmem>>, vector<4x32xf32>
    tpu.vector_store %arg26[%2180, %c0_617], %2179 {strides = array<i32>} : memref<64x32xf32, #tpu.memory_space<vmem>>, vector<4x32xf32>,
    %c16_i32_618 = arith.constant 16 : i32
    %c0_619 = arith.constant 0 : index
    %c0_620 = arith.constant 0 : index
    %2182 = vector.load %arg26[%c0_619, %c0_620] : memref<64x32xf32, #tpu.memory_space<vmem>>, vector<64x32xf32>
    %cst_621 = arith.constant 0.000000e+00 : f32
    %2183 = vector.broadcast %cst_621 : f32 to vector<64x32xf32>
    %2184 = arith.maximumf %2182, %2183 : vector<64x32xf32>
    %c0_622 = arith.constant 0 : index
    %c0_623 = arith.constant 0 : index
    %2185 = vector.load %arg14[%c0_622, %c0_623] : memref<32x4xf32, #tpu.memory_space<vmem>>, vector<32x4xf32>
    %2186 = arith.truncf %2184 : vector<64x32xf32> to vector<64x32xbf16>
    %2187 = arith.truncf %2185 : vector<32x4xf32> to vector<32x4xbf16>
    %cst_624 = arith.constant dense<0.000000e+00> : vector<64x4xf32>
    %2188 = tpu.matmul %2186, %2187, %cst_624 {dimension_numbers = #tpu.dot_dimension_numbers<[1], [0], [0], [1], [0, 0, 1, 1], [], []>} : vector<64x32xbf16>, vector<32x4xbf16>, vector<64x4xf32> -> vector<64x4xf32>
    %2189 = vector.broadcast %7 : vector<1x4xf32> to vector<64x4xf32>
    %2190 = arith.addf %2188, %2189 : vector<64x4xf32>
    %2191 = vector.shape_cast %2190 : vector<64x4xf32> to vector<1x64x4xf32>
    %c0_625 = arith.constant 0 : index
    %c0_626 = arith.constant 0 : index
    %c0_627 = arith.constant 0 : index
    %2192 = vector.load %arg15[%c0_625, %c0_626, %c0_627] : memref<1x64x4xf32, #tpu.memory_space<vmem>>, vector<1x64x4xf32>
    tpu.vector_store %arg15[%c0_625, %c0_626, %c0_627], %2191 {strides = array<i32>} : memref<1x64x4xf32, #tpu.memory_space<vmem>>, vector<1x64x4xf32>,
    %2193 = vector.shape_cast %1324 : vector<64x32xf32> to vector<1x64x32xf32>
    %c0_628 = arith.constant 0 : index
    %c0_629 = arith.constant 0 : index
    %c0_630 = arith.constant 0 : index
    %2194 = vector.load %arg16[%c0_628, %c0_629, %c0_630] : memref<1x64x32xf32, #tpu.memory_space<vmem>>, vector<1x64x32xf32>
    tpu.vector_store %arg16[%c0_628, %c0_629, %c0_630], %2193 {strides = array<i32>} : memref<1x64x32xf32, #tpu.memory_space<vmem>>, vector<1x64x32xf32>,
    return
  }
  func.func @transform_0(%arg0: i32) -> (i32, i32, i32) {
    %c0_i32 = arith.constant 0 : i32
    %c0_i32_0 = arith.constant 0 : i32
    %c0_i32_1 = arith.constant 0 : i32
    return %arg0, %c0_i32, %c0_i32_0 : i32, i32, i32
  }
  func.func @transform_1(%arg0: i32) -> (i32, i32) {
    %c0_i32 = arith.constant 0 : i32
    %c0_i32_0 = arith.constant 0 : i32
    %c0_i32_1 = arith.constant 0 : i32
    return %c0_i32, %c0_i32_0 : i32, i32
  }
  func.func @transform_2(%arg0: i32) -> (i32, i32) {
    %c0_i32 = arith.constant 0 : i32
    %c0_i32_0 = arith.constant 0 : i32
    %c0_i32_1 = arith.constant 0 : i32
    return %c0_i32, %c0_i32_0 : i32, i32
  }
  func.func @transform_3(%arg0: i32) -> (i32, i32) {
    %c0_i32 = arith.constant 0 : i32
    %c0_i32_0 = arith.constant 0 : i32
    %c0_i32_1 = arith.constant 0 : i32
    return %c0_i32, %c0_i32_0 : i32, i32
  }
  func.func @transform_4(%arg0: i32) -> (i32, i32) {
    %c0_i32 = arith.constant 0 : i32
    %c0_i32_0 = arith.constant 0 : i32
    %c0_i32_1 = arith.constant 0 : i32
    return %c0_i32, %c0_i32_0 : i32, i32
  }
  func.func @transform_5(%arg0: i32) -> (i32, i32) {
    %c0_i32 = arith.constant 0 : i32
    %c0_i32_0 = arith.constant 0 : i32
    %c0_i32_1 = arith.constant 0 : i32
    return %c0_i32, %c0_i32_0 : i32, i32
  }
  func.func @transform_6(%arg0: i32) -> (i32, i32) {
    %c0_i32 = arith.constant 0 : i32
    %c0_i32_0 = arith.constant 0 : i32
    %c0_i32_1 = arith.constant 0 : i32
    return %c0_i32, %c0_i32_0 : i32, i32
  }
  func.func @transform_7(%arg0: i32) -> (i32, i32) {
    %c0_i32 = arith.constant 0 : i32
    %c0_i32_0 = arith.constant 0 : i32
    %c0_i32_1 = arith.constant 0 : i32
    return %c0_i32, %c0_i32_0 : i32, i32
  }
  func.func @transform_8(%arg0: i32) -> (i32, i32) {
    %c0_i32 = arith.constant 0 : i32
    %c0_i32_0 = arith.constant 0 : i32
    %c0_i32_1 = arith.constant 0 : i32
    return %c0_i32, %c0_i32_0 : i32, i32
  }
  func.func @transform_9(%arg0: i32) -> (i32, i32) {
    %c0_i32 = arith.constant 0 : i32
    %c0_i32_0 = arith.constant 0 : i32
    %c0_i32_1 = arith.constant 0 : i32
    return %c0_i32, %c0_i32_0 : i32, i32
  }
  func.func @transform_10(%arg0: i32) -> (i32, i32) {
    %c0_i32 = arith.constant 0 : i32
    %c0_i32_0 = arith.constant 0 : i32
    %c0_i32_1 = arith.constant 0 : i32
    return %c0_i32, %c0_i32_0 : i32, i32
  }
  func.func @transform_11(%arg0: i32) -> (i32, i32) {
    %c0_i32 = arith.constant 0 : i32
    %c0_i32_0 = arith.constant 0 : i32
    %c0_i32_1 = arith.constant 0 : i32
    return %c0_i32, %c0_i32_0 : i32, i32
  }
  func.func @transform_12(%arg0: i32) -> (i32, i32) {
    %c0_i32 = arith.constant 0 : i32
    %c0_i32_0 = arith.constant 0 : i32
    %c0_i32_1 = arith.constant 0 : i32
    return %c0_i32, %c0_i32_0 : i32, i32
  }
  func.func @transform_13(%arg0: i32) -> (i32, i32) {
    %c0_i32 = arith.constant 0 : i32
    %c0_i32_0 = arith.constant 0 : i32
    %c0_i32_1 = arith.constant 0 : i32
    return %c0_i32, %c0_i32_0 : i32, i32
  }
  func.func @transform_14(%arg0: i32) -> (i32, i32, i32) {
    %c0_i32 = arith.constant 0 : i32
    %c0_i32_0 = arith.constant 0 : i32
    %c0_i32_1 = arith.constant 0 : i32
    return %arg0, %c0_i32, %c0_i32_0 : i32, i32, i32
  }
  func.func @transform_15(%arg0: i32) -> (i32, i32, i32) {
    %c0_i32 = arith.constant 0 : i32
    %c0_i32_0 = arith.constant 0 : i32
    %c0_i32_1 = arith.constant 0 : i32
    return %arg0, %c0_i32, %c0_i32_0 : i32, i32, i32
  }
}

</mosaic_0001>

<llo_original>
// kernel: tpu_custom_call.1
$region0: #{tpu_custom_call.1}
  #allocation0 [shape = 'u32[]', space=smem, size = 0x4, offset = 0x4, fixed_abs, tag = 'smem constant byte address 0x4 - core index']
  #allocation1 [shape = 'u32[72,128]{1,0:T(1,128)}', space=vmem, size = 0x9000, scoped, tag = 'internal scratch']
  #allocation2 [shape = 'f32[64,128]{1,0:T(8,128)}', space=vmem, size = 0x8000, scoped, tag = 'scratch operand']
  #allocation3 [shape = 'f32[64,32]{1,0:T(8,128)}', space=vmem, size = 0x8000, scoped, tag = 'scratch operand']
  #allocation4 [shape = 'f32[64,64]{1,0:T(8,128)}', space=vmem, size = 0x8000, scoped, tag = 'scratch operand']
  #allocation5 [shape = 'f32[64,16]{1,0:T(8,128)}', space=vmem, size = 0x8000, scoped, tag = 'scratch operand']
  #allocation6 [shape = 'f32[64,32]{1,0:T(8,128)}', space=vmem, size = 0x8000, scoped, tag = 'scratch operand']
  #allocation7 [shape = 'f32[64,8]{1,0:T(8,128)}', space=vmem, size = 0x8000, scoped, tag = 'scratch operand']
  #allocation8 [shape = 'f32[64,64]{1,0:T(8,128)}', space=vmem, size = 0x8000, scoped, tag = 'scratch operand']
  #allocation9 [shape = 'f32[64,16]{1,0:T(8,128)}', space=vmem, size = 0x8000, scoped, tag = 'scratch operand']
  #allocation10 [shape = 'f32[64,128]{1,0:T(8,128)}', space=vmem, size = 0x8000, scoped, tag = 'scratch operand']
  #allocation11 [shape = 'f32[64,32]{1,0:T(8,128)}', space=vmem, size = 0x8000, scoped, tag = 'scratch operand']
  %s0 = inlined_call_operand.vmem [shape: f32[2,64,4], index: 0, kind: input, shape index: {}]
  %s1 = inlined_call_operand.vmem [shape: f32[4,128], index: 1, kind: input, shape index: {}]
  %s2 = inlined_call_operand.vmem [shape: f32[32,128], index: 2, kind: input, shape index: {}]
  %s3 = inlined_call_operand.vmem [shape: f32[32,64], index: 3, kind: input, shape index: {}]
  %s4 = inlined_call_operand.vmem [shape: f32[16,64], index: 4, kind: input, shape index: {}]
  %s5 = inlined_call_operand.vmem [shape: f32[16,32], index: 5, kind: input, shape index: {}]
  %s6 = inlined_call_operand.vmem [shape: f32[8,32], index: 6, kind: input, shape index: {}]
  %s7 = inlined_call_operand.vmem [shape: f32[8,64], index: 7, kind: input, shape index: {}]
  %s8 = inlined_call_operand.vmem [shape: f32[16,64], index: 8, kind: input, shape index: {}]
  %s9 = inlined_call_operand.vmem [shape: f32[16,128], index: 9, kind: input, shape index: {}]
  %s10 = inlined_call_operand.vmem [shape: f32[32,128], index: 10, kind: input, shape index: {}]
  %s11 = inlined_call_operand.vmem [shape: f32[1,420], index: 11, kind: input, shape index: {}]
  %s12 = inlined_call_operand.vmem [shape: f32[32,8], index: 12, kind: input, shape index: {}]
  %s13 = inlined_call_operand.vmem [shape: f32[32,4], index: 13, kind: input, shape index: {}]
  %s14 = inlined_call_operand.vmem [shape: f32[2,64,4], index: 14, kind: output, shape index: {0}]
  %s15 = inlined_call_operand.vmem [shape: f32[2,64,32], index: 15, kind: output, shape index: {1}]
  %16 = xla_tuple %s14, %s15
  %s17 = sld [smem:[#allocation0]]
  $region97: #{tpu_custom_call.1} parent=0
    _
  %s19 = ssub.s32 1, %s17
  %s20 = scalar_select 0, %s19, %s17
  loop: start=0, step=1, limit=4
  $region2: #{tpu_custom_call.1} parent=0 // loop_pre_header
    _
  $region3: #{tpu_custom_call.1} parent=0 // loop_header
    %s22 = sphi 0, %s26
    %p23 = scmp.ge.s32.totalorder %s22, 4
    %s32 = sphi 0, %s34
    %s35 = sphi 0, %s32
    %s36 = sphi 0, %s35
    %s52 = sphi 0, %s36
    %s56 = sphi 0, %s56
    %s58 = sphi 0, %s56
    %s59 = sphi 0, %s58
    %s73 = sphi 0, %s59
    %s77 = sphi 0, %s77
    %s79 = sphi 0, %s77
    %s80 = sphi 0, %s79
    %s94 = sphi 0, %s80
    %s98 = sphi 0, %s98
    %s100 = sphi 0, %s98
    %s101 = sphi 0, %s100
    %s115 = sphi 0, %s101
    %s119 = sphi 0, %s119
    %s121 = sphi 0, %s119
    %s122 = sphi 0, %s121
    %s136 = sphi 0, %s122
    %s140 = sphi 0, %s140
    %s142 = sphi 0, %s140
    %s143 = sphi 0, %s142
    %s157 = sphi 0, %s143
    %s161 = sphi 0, %s161
    %s163 = sphi 0, %s161
    %s164 = sphi 0, %s163
    %s178 = sphi 0, %s164
    %s182 = sphi 0, %s182
    %s184 = sphi 0, %s182
    %s185 = sphi 0, %s184
    %s199 = sphi 0, %s185
    %s203 = sphi 0, %s203
    %s205 = sphi 0, %s203
    %s206 = sphi 0, %s205
    %s220 = sphi 0, %s206
    %s224 = sphi 0, %s224
    %s226 = sphi 0, %s224
    %s227 = sphi 0, %s226
    %s241 = sphi 0, %s227
    %s245 = sphi 0, %s245
    %s247 = sphi 0, %s245
    %s248 = sphi 0, %s247
    %s262 = sphi 0, %s248
    %s266 = sphi 0, %s266
    %s268 = sphi 0, %s266
    %s269 = sphi 0, %s268
    %s283 = sphi 0, %s269
    %s287 = sphi 0, %s287
    %s289 = sphi 0, %s287
    %s290 = sphi 0, %s289
    %s304 = sphi 0, %s290
    %s308 = sphi 0, %s308
    %s310 = sphi 0, %s308
    %s311 = sphi 0, %s310
    %s325 = sphi 0, %s311
    %s331 = sphi 0, %s333
    %s334 = sphi 0, %s331
    %s335 = sphi 0, %s334
    %s351 = sphi 0, %s335
    %s357 = sphi 0, %s359
    %s360 = sphi 0, %s357
    %s361 = sphi 0, %s360
    %s377 = sphi 0, %s361
  $region4: #{tpu_custom_call.1} parent=0 // loop_header_branch
    %25 = sbr.rel (%p23) target = $region8
  $region5: #{tpu_custom_call.1} parent=0 // loop_body
    %s27 = ssub.s32 %s22, 1
    %s28 = ssub.s32 %s22, 2
    %s29 = sadd.s32 %s22, 1
    %s30 = ssub.s32 %s22, %s29
    %p31 = scmp.eq.s32.totalorder %s30, 0
    %s33 = sadd.s32 %s32, 1
    %s34 = scalar_select %p31, %s32, %s33
    %p37 = pneg %p31
    %p38 = scmp.eq.s32.totalorder %s22, 1
    %p39 = por %p37, %p38
    %p40 = scmp.ne.s32.totalorder %s32, %s35
    %p41 = scmp.eq.s32.totalorder %s22, 0
    %p42 = por %p40, %p41
    %p43 = scmp.ne.s32.totalorder %s32, %s35
    %p44 = scmp.eq.s32.totalorder %s27, 1
    %p45 = por %p43, %p44
    %p46 = scmp.ne.s32.totalorder %s35, %s36
    %p47 = scmp.eq.s32.totalorder %s27, 0
    %p48 = por %p46, %p47
    %p49 = scmp.ne.s32.totalorder %s35, %s36
    %p50 = scmp.eq.s32.totalorder %s28, 1
    %p51 = por %p49, %p50
    %p53 = scmp.ne.s32.totalorder %s36, %s52
    %p54 = scmp.eq.s32.totalorder %s28, 0
    %p55 = por %p53, %p54
    %s57 = sadd.s32 %s56, 1
    %p60 = scmp.eq.s32.totalorder %s22, 1
    %p61 = scmp.ne.s32.totalorder %s56, %s58
    %p62 = scmp.eq.s32.totalorder %s22, 0
    %p63 = por %p61, %p62
    %p64 = scmp.ne.s32.totalorder %s56, %s58
    %p65 = scmp.eq.s32.totalorder %s27, 1
    %p66 = por %p64, %p65
    %p67 = scmp.ne.s32.totalorder %s58, %s59
    %p68 = scmp.eq.s32.totalorder %s27, 0
    %p69 = por %p67, %p68
    %p70 = scmp.ne.s32.totalorder %s58, %s59
    %p71 = scmp.eq.s32.totalorder %s28, 1
    %p72 = por %p70, %p71
    %p74 = scmp.ne.s32.totalorder %s59, %s73
    %p75 = scmp.eq.s32.totalorder %s28, 0
    %p76 = por %p74, %p75
    %s78 = sadd.s32 %s77, 1
    %p81 = scmp.eq.s32.totalorder %s22, 1
    %p82 = scmp.ne.s32.totalorder %s77, %s79
    %p83 = scmp.eq.s32.totalorder %s22, 0
    %p84 = por %p82, %p83
    %p85 = scmp.ne.s32.totalorder %s77, %s79
    %p86 = scmp.eq.s32.totalorder %s27, 1
    %p87 = por %p85, %p86
    %p88 = scmp.ne.s32.totalorder %s79, %s80
    %p89 = scmp.eq.s32.totalorder %s27, 0
    %p90 = por %p88, %p89
    %p91 = scmp.ne.s32.totalorder %s79, %s80
    %p92 = scmp.eq.s32.totalorder %s28, 1
    %p93 = por %p91, %p92
    %p95 = scmp.ne.s32.totalorder %s80, %s94
    %p96 = scmp.eq.s32.totalorder %s28, 0
    %p97 = por %p95, %p96
    %s99 = sadd.s32 %s98, 1
    %p102 = scmp.eq.s32.totalorder %s22, 1
    %p103 = scmp.ne.s32.totalorder %s98, %s100
    %p104 = scmp.eq.s32.totalorder %s22, 0
    %p105 = por %p103, %p104
    %p106 = scmp.ne.s32.totalorder %s98, %s100
    %p107 = scmp.eq.s32.totalorder %s27, 1
    %p108 = por %p106, %p107
    %p109 = scmp.ne.s32.totalorder %s100, %s101
    %p110 = scmp.eq.s32.totalorder %s27, 0
    %p111 = por %p109, %p110
    %p112 = scmp.ne.s32.totalorder %s100, %s101
    %p113 = scmp.eq.s32.totalorder %s28, 1
    %p114 = por %p112, %p113
    %p116 = scmp.ne.s32.totalorder %s101, %s115
    %p117 = scmp.eq.s32.totalorder %s28, 0
    %p118 = por %p116, %p117
    %s120 = sadd.s32 %s119, 1
    %p123 = scmp.eq.s32.totalorder %s22, 1
    %p124 = scmp.ne.s32.totalorder %s119, %s121
    %p125 = scmp.eq.s32.totalorder %s22, 0
    %p126 = por %p124, %p125
    %p127 = scmp.ne.s32.totalorder %s119, %s121
    %p128 = scmp.eq.s32.totalorder %s27, 1
    %p129 = por %p127, %p128
    %p130 = scmp.ne.s32.totalorder %s121, %s122
    %p131 = scmp.eq.s32.totalorder %s27, 0
    %p132 = por %p130, %p131
    %p133 = scmp.ne.s32.totalorder %s121, %s122
    %p134 = scmp.eq.s32.totalorder %s28, 1
    %p135 = por %p133, %p134
    %p137 = scmp.ne.s32.totalorder %s122, %s136
    %p138 = scmp.eq.s32.totalorder %s28, 0
    %p139 = por %p137, %p138
    %s141 = sadd.s32 %s140, 1
    %p144 = scmp.eq.s32.totalorder %s22, 1
    %p145 = scmp.ne.s32.totalorder %s140, %s142
    %p146 = scmp.eq.s32.totalorder %s22, 0
    %p147 = por %p145, %p146
    %p148 = scmp.ne.s32.totalorder %s140, %s142
    %p149 = scmp.eq.s32.totalorder %s27, 1
    %p150 = por %p148, %p149
    %p151 = scmp.ne.s32.totalorder %s142, %s143
    %p152 = scmp.eq.s32.totalorder %s27, 0
    %p153 = por %p151, %p152
    %p154 = scmp.ne.s32.totalorder %s142, %s143
    %p155 = scmp.eq.s32.totalorder %s28, 1
    %p156 = por %p154, %p155
    %p158 = scmp.ne.s32.totalorder %s143, %s157
    %p159 = scmp.eq.s32.totalorder %s28, 0
    %p160 = por %p158, %p159
    %s162 = sadd.s32 %s161, 1
    %p165 = scmp.eq.s32.totalorder %s22, 1
    %p166 = scmp.ne.s32.totalorder %s161, %s163
    %p167 = scmp.eq.s32.totalorder %s22, 0
    %p168 = por %p166, %p167
    %p169 = scmp.ne.s32.totalorder %s161, %s163
    %p170 = scmp.eq.s32.totalorder %s27, 1
    %p171 = por %p169, %p170
    %p172 = scmp.ne.s32.totalorder %s163, %s164
    %p173 = scmp.eq.s32.totalorder %s27, 0
    %p174 = por %p172, %p173
    %p175 = scmp.ne.s32.totalorder %s163, %s164
    %p176 = scmp.eq.s32.totalorder %s28, 1
    %p177 = por %p175, %p176
    %p179 = scmp.ne.s32.totalorder %s164, %s178
    %p180 = scmp.eq.s32.totalorder %s28, 0
    %p181 = por %p179, %p180
    %s183 = sadd.s32 %s182, 1
    %p186 = scmp.eq.s32.totalorder %s22, 1
    %p187 = scmp.ne.s32.totalorder %s182, %s184
    %p188 = scmp.eq.s32.totalorder %s22, 0
    %p189 = por %p187, %p188
    %p190 = scmp.ne.s32.totalorder %s182, %s184
    %p191 = scmp.eq.s32.totalorder %s27, 1
    %p192 = por %p190, %p191
    %p193 = scmp.ne.s32.totalorder %s184, %s185
    %p194 = scmp.eq.s32.totalorder %s27, 0
    %p195 = por %p193, %p194
    %p196 = scmp.ne.s32.totalorder %s184, %s185
    %p197 = scmp.eq.s32.totalorder %s28, 1
    %p198 = por %p196, %p197
    %p200 = scmp.ne.s32.totalorder %s185, %s199
    %p201 = scmp.eq.s32.totalorder %s28, 0
    %p202 = por %p200, %p201
    %s204 = sadd.s32 %s203, 1
    %p207 = scmp.eq.s32.totalorder %s22, 1
    %p208 = scmp.ne.s32.totalorder %s203, %s205
    %p209 = scmp.eq.s32.totalorder %s22, 0
    %p210 = por %p208, %p209
    %p211 = scmp.ne.s32.totalorder %s203, %s205
    %p212 = scmp.eq.s32.totalorder %s27, 1
    %p213 = por %p211, %p212
    %p214 = scmp.ne.s32.totalorder %s205, %s206
    %p215 = scmp.eq.s32.totalorder %s27, 0
    %p216 = por %p214, %p215
    %p217 = scmp.ne.s32.totalorder %s205, %s206
    %p218 = scmp.eq.s32.totalorder %s28, 1
    %p219 = por %p217, %p218
    %p221 = scmp.ne.s32.totalorder %s206, %s220
    %p222 = scmp.eq.s32.totalorder %s28, 0
    %p223 = por %p221, %p222
    %s225 = sadd.s32 %s224, 1
    %p228 = scmp.eq.s32.totalorder %s22, 1
    %p229 = scmp.ne.s32.totalorder %s224, %s226
    %p230 = scmp.eq.s32.totalorder %s22, 0
    %p231 = por %p229, %p230
    %p232 = scmp.ne.s32.totalorder %s224, %s226
    %p233 = scmp.eq.s32.totalorder %s27, 1
    %p234 = por %p232, %p233
    %p235 = scmp.ne.s32.totalorder %s226, %s227
    %p236 = scmp.eq.s32.totalorder %s27, 0
    %p237 = por %p235, %p236
    %p238 = scmp.ne.s32.totalorder %s226, %s227
    %p239 = scmp.eq.s32.totalorder %s28, 1
    %p240 = por %p238, %p239
    %p242 = scmp.ne.s32.totalorder %s227, %s241
    %p243 = scmp.eq.s32.totalorder %s28, 0
    %p244 = por %p242, %p243
    %s246 = sadd.s32 %s245, 1
    %p249 = scmp.eq.s32.totalorder %s22, 1
    %p250 = scmp.ne.s32.totalorder %s245, %s247
    %p251 = scmp.eq.s32.totalorder %s22, 0
    %p252 = por %p250, %p251
    %p253 = scmp.ne.s32.totalorder %s245, %s247
    %p254 = scmp.eq.s32.totalorder %s27, 1
    %p255 = por %p253, %p254
    %p256 = scmp.ne.s32.totalorder %s247, %s248
    %p257 = scmp.eq.s32.totalorder %s27, 0
    %p258 = por %p256, %p257
    %p259 = scmp.ne.s32.totalorder %s247, %s248
    %p260 = scmp.eq.s32.totalorder %s28, 1
    %p261 = por %p259, %p260
    %p263 = scmp.ne.s32.totalorder %s248, %s262
    %p264 = scmp.eq.s32.totalorder %s28, 0
    %p265 = por %p263, %p264
    %s267 = sadd.s32 %s266, 1
    %p270 = scmp.eq.s32.totalorder %s22, 1
    %p271 = scmp.ne.s32.totalorder %s266, %s268
    %p272 = scmp.eq.s32.totalorder %s22, 0
    %p273 = por %p271, %p272
    %p274 = scmp.ne.s32.totalorder %s266, %s268
    %p275 = scmp.eq.s32.totalorder %s27, 1
    %p276 = por %p274, %p275
    %p277 = scmp.ne.s32.totalorder %s268, %s269
    %p278 = scmp.eq.s32.totalorder %s27, 0
    %p279 = por %p277, %p278
    %p280 = scmp.ne.s32.totalorder %s268, %s269
    %p281 = scmp.eq.s32.totalorder %s28, 1
    %p282 = por %p280, %p281
    %p284 = scmp.ne.s32.totalorder %s269, %s283
    %p285 = scmp.eq.s32.totalorder %s28, 0
    %p286 = por %p284, %p285
    %s288 = sadd.s32 %s287, 1
    %p291 = scmp.eq.s32.totalorder %s22, 1
    %p292 = scmp.ne.s32.totalorder %s287, %s289
    %p293 = scmp.eq.s32.totalorder %s22, 0
    %p294 = por %p292, %p293
    %p295 = scmp.ne.s32.totalorder %s287, %s289
    %p296 = scmp.eq.s32.totalorder %s27, 1
    %p297 = por %p295, %p296
    %p298 = scmp.ne.s32.totalorder %s289, %s290
    %p299 = scmp.eq.s32.totalorder %s27, 0
    %p300 = por %p298, %p299
    %p301 = scmp.ne.s32.totalorder %s289, %s290
    %p302 = scmp.eq.s32.totalorder %s28, 1
    %p303 = por %p301, %p302
    %p305 = scmp.ne.s32.totalorder %s290, %s304
    %p306 = scmp.eq.s32.totalorder %s28, 0
    %p307 = por %p305, %p306
    %s309 = sadd.s32 %s308, 1
    %p312 = scmp.eq.s32.totalorder %s22, 1
    %p313 = scmp.ne.s32.totalorder %s308, %s310
    %p314 = scmp.eq.s32.totalorder %s22, 0
    %p315 = por %p313, %p314
    %p316 = scmp.ne.s32.totalorder %s308, %s310
    %p317 = scmp.eq.s32.totalorder %s27, 1
    %p318 = por %p316, %p317
    %p319 = scmp.ne.s32.totalorder %s310, %s311
    %p320 = scmp.eq.s32.totalorder %s27, 0
    %p321 = por %p319, %p320
    %p322 = scmp.ne.s32.totalorder %s310, %s311
    %p323 = scmp.eq.s32.totalorder %s28, 1
    %p324 = por %p322, %p323
    %p326 = scmp.ne.s32.totalorder %s311, %s325
    %p327 = scmp.eq.s32.totalorder %s28, 0
    %p328 = por %p326, %p327
    %s329 = ssub.s32 %s22, %s29
    %p330 = scmp.eq.s32.totalorder %s329, 0
    %s332 = sadd.s32 %s331, 1
    %s333 = scalar_select %p330, %s331, %s332
    %p336 = pneg %p330
    %p337 = scmp.eq.s32.totalorder %s22, 1
    %p338 = por %p336, %p337
    %p339 = scmp.ne.s32.totalorder %s331, %s334
    %p340 = scmp.eq.s32.totalorder %s22, 0
    %p341 = por %p339, %p340
    %p342 = scmp.ne.s32.totalorder %s331, %s334
    %p343 = scmp.eq.s32.totalorder %s27, 1
    %p344 = por %p342, %p343
    %p345 = scmp.ne.s32.totalorder %s334, %s335
    %p346 = scmp.eq.s32.totalorder %s27, 0
    %p347 = por %p345, %p346
    %p348 = scmp.ne.s32.totalorder %s334, %s335
    %p349 = scmp.eq.s32.totalorder %s28, 1
    %p350 = por %p348, %p349
    %p352 = scmp.ne.s32.totalorder %s335, %s351
    %p353 = scmp.eq.s32.totalorder %s28, 0
    %p354 = por %p352, %p353
    %s355 = ssub.s32 %s22, %s29
    %p356 = scmp.eq.s32.totalorder %s355, 0
    %s358 = sadd.s32 %s357, 1
    %s359 = scalar_select %p356, %s357, %s358
    %p362 = pneg %p356
    %p363 = scmp.eq.s32.totalorder %s22, 1
    %p364 = por %p362, %p363
    %p365 = scmp.ne.s32.totalorder %s357, %s360
    %p366 = scmp.eq.s32.totalorder %s22, 0
    %p367 = por %p365, %p366
    %p368 = scmp.ne.s32.totalorder %s357, %s360
    %p369 = scmp.eq.s32.totalorder %s27, 1
    %p370 = por %p368, %p369
    %p371 = scmp.ne.s32.totalorder %s360, %s361
    %p372 = scmp.eq.s32.totalorder %s27, 0
    %p373 = por %p371, %p372
    %p374 = scmp.ne.s32.totalorder %s360, %s361
    %p375 = scmp.eq.s32.totalorder %s28, 1
    %p376 = por %p374, %p375
    %p378 = scmp.ne.s32.totalorder %s361, %s377
    %p379 = scmp.eq.s32.totalorder %s28, 0
    %p380 = por %p378, %p379
    %p381 = scmp.le.s32.totalorder 1, %s22
    %p382 = scmp.lt.s32.totalorder %s22, 3
    %p383 = pnand %p381, %p382
    %p384 = pneg %p383
    // Predicated region
    $region9: #{tpu_custom_call.1} parent=5 // pred_check
      _
    $region10: #{tpu_custom_call.1} parent=5 // pred_check_branch
      %386 = sbr.rel (%p383) target = $region12
    $region11: #{tpu_custom_call.1} parent=5 // pred_region
      %s387 = ssub.s32 %s22, 1
      // Predicated region
      $region13: #{tpu_custom_call.1} parent=11 // pred_check
        %p388 = pneg %p69
      $region14: #{tpu_custom_call.1} parent=11 // pred_check_branch
        %390 = sbr.rel (%p388) target = $region16
      $region15: #{tpu_custom_call.1} parent=11 // pred_region
        _
      $region16: #{tpu_custom_call.1} parent=11 // pred_fallthru
        _
      // Predicated region
      $region17: #{tpu_custom_call.1} parent=11 // pred_check
        %p391 = pneg %p90
      $region18: #{tpu_custom_call.1} parent=11 // pred_check_branch
        %393 = sbr.rel (%p391) target = $region20
      $region19: #{tpu_custom_call.1} parent=11 // pred_region
        _
      $region20: #{tpu_custom_call.1} parent=11 // pred_fallthru
        _
      // Predicated region
      $region21: #{tpu_custom_call.1} parent=11 // pred_check
        %p394 = pneg %p111
      $region22: #{tpu_custom_call.1} parent=11 // pred_check_branch
        %396 = sbr.rel (%p394) target = $region24
      $region23: #{tpu_custom_call.1} parent=11 // pred_region
        _
      $region24: #{tpu_custom_call.1} parent=11 // pred_fallthru
        _
      // Predicated region
      $region25: #{tpu_custom_call.1} parent=11 // pred_check
        %p397 = pneg %p132
      $region26: #{tpu_custom_call.1} parent=11 // pred_check_branch
        %399 = sbr.rel (%p397) target = $region28
      $region27: #{tpu_custom_call.1} parent=11 // pred_region
        _
      $region28: #{tpu_custom_call.1} parent=11 // pred_fallthru
        _
      // Predicated region
      $region29: #{tpu_custom_call.1} parent=11 // pred_check
        %p400 = pneg %p153
      $region30: #{tpu_custom_call.1} parent=11 // pred_check_branch
        %402 = sbr.rel (%p400) target = $region32
      $region31: #{tpu_custom_call.1} parent=11 // pred_region
        _
      $region32: #{tpu_custom_call.1} parent=11 // pred_fallthru
        _
      // Predicated region
      $region33: #{tpu_custom_call.1} parent=11 // pred_check
        %p403 = pneg %p174
      $region34: #{tpu_custom_call.1} parent=11 // pred_check_branch
        %405 = sbr.rel (%p403) target = $region36
      $region35: #{tpu_custom_call.1} parent=11 // pred_region
        _
      $region36: #{tpu_custom_call.1} parent=11 // pred_fallthru
        _
      // Predicated region
      $region37: #{tpu_custom_call.1} parent=11 // pred_check
        %p406 = pneg %p195
      $region38: #{tpu_custom_call.1} parent=11 // pred_check_branch
        %408 = sbr.rel (%p406) target = $region40
      $region39: #{tpu_custom_call.1} parent=11 // pred_region
        _
      $region40: #{tpu_custom_call.1} parent=11 // pred_fallthru
        _
      // Predicated region
      $region41: #{tpu_custom_call.1} parent=11 // pred_check
        %p409 = pneg %p216
      $region42: #{tpu_custom_call.1} parent=11 // pred_check_branch
        %411 = sbr.rel (%p409) target = $region44
      $region43: #{tpu_custom_call.1} parent=11 // pred_region
        _
      $region44: #{tpu_custom_call.1} parent=11 // pred_fallthru
        _
      // Predicated region
      $region45: #{tpu_custom_call.1} parent=11 // pred_check
        %p412 = pneg %p237
      $region46: #{tpu_custom_call.1} parent=11 // pred_check_branch
        %414 = sbr.rel (%p412) target = $region48
      $region47: #{tpu_custom_call.1} parent=11 // pred_region
        _
      $region48: #{tpu_custom_call.1} parent=11 // pred_fallthru
        _
      // Predicated region
      $region49: #{tpu_custom_call.1} parent=11 // pred_check
        %p415 = pneg %p258
      $region50: #{tpu_custom_call.1} parent=11 // pred_check_branch
        %417 = sbr.rel (%p415) target = $region52
      $region51: #{tpu_custom_call.1} parent=11 // pred_region
        _
      $region52: #{tpu_custom_call.1} parent=11 // pred_fallthru
        _
      // Predicated region
      $region53: #{tpu_custom_call.1} parent=11 // pred_check
        %p418 = pneg %p279
      $region54: #{tpu_custom_call.1} parent=11 // pred_check_branch
        %420 = sbr.rel (%p418) target = $region56
      $region55: #{tpu_custom_call.1} parent=11 // pred_region
        _
      $region56: #{tpu_custom_call.1} parent=11 // pred_fallthru
        _
      // Predicated region
      $region57: #{tpu_custom_call.1} parent=11 // pred_check
        %p421 = pneg %p300
      $region58: #{tpu_custom_call.1} parent=11 // pred_check_branch
        %423 = sbr.rel (%p421) target = $region60
      $region59: #{tpu_custom_call.1} parent=11 // pred_region
        _
      $region60: #{tpu_custom_call.1} parent=11 // pred_fallthru
        _
      // Predicated region
      $region61: #{tpu_custom_call.1} parent=11 // pred_check
        %p424 = pneg %p321
      $region62: #{tpu_custom_call.1} parent=11 // pred_check_branch
        %426 = sbr.rel (%p424) target = $region64
      $region63: #{tpu_custom_call.1} parent=11 // pred_region
        _
      $region64: #{tpu_custom_call.1} parent=11 // pred_fallthru
        _
    $region12: #{tpu_custom_call.1} parent=5 // pred_fallthru
      _
    %p427 = scmp.lt.s32.totalorder %s22, 2
    // Predicated region
    $region65: #{tpu_custom_call.1} parent=5 // pred_check
      %p428 = pneg %p427
    $region66: #{tpu_custom_call.1} parent=5 // pred_check_branch
      %430 = sbr.rel (%p428) target = $region68
    $region67: #{tpu_custom_call.1} parent=5 // pred_region
      // Predicated region
      $region69: #{tpu_custom_call.1} parent=67 // pred_check
        %p431 = pneg %p42
      $region70: #{tpu_custom_call.1} parent=67 // pred_check_branch
        %433 = sbr.rel (%p431) target = $region72
      $region71: #{tpu_custom_call.1} parent=67 // pred_region
        %p434 = scmp.lt.s32.totalorder %s22, 1
        %s435 = scalar_select %p434, %s22, 1
        %s436 = smul.addr %s435, 8
        %s437 = smul.addr %s436, 8
        %s438 = scalar_lea.vmem %s0, %s437
      $region72: #{tpu_custom_call.1} parent=67 // pred_fallthru
        _
    $region68: #{tpu_custom_call.1} parent=5 // pred_fallthru
      _
    %p439 = scmp.le.s32.totalorder 1, %s22
    %p440 = scmp.lt.s32.totalorder %s22, 3
    %p441 = pnand %p439, %p440
    %p442 = pneg %p441
    // Predicated region
    $region73: #{tpu_custom_call.1} parent=5 // pred_check
      _
    $region74: #{tpu_custom_call.1} parent=5 // pred_check_branch
      %444 = sbr.rel (%p441) target = $region76
    $region75: #{tpu_custom_call.1} parent=5 // pred_region
      %s445 = ssub.s32 %s22, 1
      %p446 = scmp.lt.s32.totalorder %s27, 1
      %s447 = scalar_select %p446, %s27, 1
      %s448 = smul.addr %s447, 8
      %s449 = smul.addr %s448, 8
      %s450 = scalar_lea.vmem %s0, %s449
      %p451 = pneg %p48
      %p452 = pneg %p45
      %p453 = pneg %p69
      %p454 = pneg %p66
      %p455 = pneg %p90
      %p456 = pneg %p87
      %p457 = pneg %p111
      %p458 = pneg %p108
      %p459 = pneg %p132
      %p460 = pneg %p129
      %p461 = pneg %p153
      %p462 = pneg %p150
      %p463 = pneg %p174
      %p464 = pneg %p171
      %p465 = pneg %p195
      %p466 = pneg %p192
      %p467 = pneg %p216
      %p468 = pneg %p213
      %p469 = pneg %p237
      %p470 = pneg %p234
      %p471 = pneg %p258
      %p472 = pneg %p255
      %p473 = pneg %p279
      %p474 = pneg %p276
      %p475 = pneg %p300
      %p476 = pneg %p297
      %p477 = pneg %p321
      %p478 = pneg %p318
      %p479 = pneg %p347
      %p480 = pneg %p344
      %p481 = scmp.lt.s32.totalorder %s27, 1
      %s482 = scalar_select %p481, %s27, 1
      %s483 = smul.addr %s482, 8
      %s484 = smul.addr %s483, 8
      %s485 = scalar_lea.vmem %s14, %s484
      %p486 = pneg %p373
      %p487 = pneg %p370
      %p488 = scmp.lt.s32.totalorder %s27, 1
      %s489 = scalar_select %p488, %s27, 1
      %s490 = smul.addr %s489, 8
      %s491 = smul.addr %s490, 8
      %s492 = scalar_lea.vmem %s15, %s491
      %p493 = scmp.lt.s32.totalorder %s27, 1
      %s494 = scalar_select %p493, %s27, 1
      %s495 = smul.addr %s494, 8
      %s496 = smul.addr %s495, 8
      %s497 = scalar_lea.vmem %s0, %s496
      %p498 = scmp.lt.s32.totalorder %s27, 1
      %s499 = scalar_select %p498, %s27, 1
      %s500 = smul.addr %s499, 8
      %s501 = smul.addr %s500, 8
      %s502 = scalar_lea.vmem %s14, %s501
      %p503 = scmp.lt.s32.totalorder %s27, 1
      %s504 = scalar_select %p503, %s27, 1
      %s505 = smul.addr %s504, 8
      %s506 = smul.addr %s505, 8
      %s507 = scalar_lea.vmem %s15, %s506
      %v509 = vld [vmem:[%s497] sm:$0xff]
      %v510 = vld [vmem:[%s497 + $0x8] sm:$0xff]
      %v511 = vld [vmem:[%s497 + $0x10] sm:$0xff]
      %v512 = vld [vmem:[%s497 + $0x18] sm:$0xff]
      %v513 = vld [vmem:[%s497 + $0x20] sm:$0xff]
      %v514 = vld [vmem:[%s497 + $0x28] sm:$0xff]
      %v515 = vld [vmem:[%s497 + $0x30] sm:$0xff]
      %v516 = vld [vmem:[%s497 + $0x38] sm:$0xff]
      %v517 = vld [vmem:[%s11] sm:$0x1]
      %v518 = vld [vmem:[%s11 + $0x1] sm:$0x1]
      %v519 = vld [vmem:[%s11 + $0x1] sm:$0x3]
      %v520 = vld [vmem:[%s11 + $0x2] sm:$0x3]
      %v521 = vld [vmem:[%s11 + $0x3] sm:$0x1]
      %v522 = vld [vmem:[%s1] sm:$0xf]
      %v523 = vpack.c.bf16 %v510, %v509
      %v524 = vpack.c.bf16 %v512, %v511
      %v525 = vpack.c.bf16 %v514, %v513
      %v526 = vpack.c.bf16 %v516, %v515
      %v527 = vpack.c.bf16 %v522, %v522
      %v529 = vperm.slane %v517, 0
      %vm531 = vcmask 31744
      %v533 = vsel %vm531, %v523, 0
      %v536 = vsel %vm531, %v524, 0
      %v539 = vsel %vm531, %v525, 0
      %v542 = vsel %vm531, %v526, 0
      %vm544 = vcmask 1041408
      %v546 = vsel %vm544, %v527, 0
      %548 = vmatpush.bf16.msra.mxu0 0
      %549 = vmatpush.bf16.msra.mxu0 0
      %550 = vmatpush.bf16.msra.mxu0 0
      %551 = vmatpush.bf16.msra.mxu0 0
      %552 = vmatpush.bf16.msra.mxu0 0
      %553 = vmatpush.bf16.msra.mxu0 0
      %554 = vmatpush.bf16.msra.mxu0 0
      %555 = vmatpush.bf16.msra.mxu0 %v546
      %556 = vmatmul.bf16.gmra.mxu0 %v533
      %v557 = vpop.f32.mrf.mxu0
      %v558 = vadd.f32 %v529, %v557
      %v559 = vpop.f32.mrf.mxu0
      %v560 = vadd.f32 %v529, %v559
      %561 = vmatmul.bf16.gmra.mxu0 %v536
      %v562 = vpop.f32.mrf.mxu0
      %v563 = vadd.f32 %v529, %v562
      %v564 = vpop.f32.mrf.mxu0
      %v565 = vadd.f32 %v529, %v564
      %566 = vmatmul.bf16.gmra.mxu0 %v539
      %v567 = vpop.f32.mrf.mxu0
      %v568 = vadd.f32 %v529, %v567
      %v569 = vpop.f32.mrf.mxu0
      %v570 = vadd.f32 %v529, %v569
      %571 = vmatmul.bf16.gmra.mxu0 %v542
      %v572 = vpop.f32.mrf.mxu0
      %v573 = vadd.f32 %v529, %v572
      %v574 = vpop.f32.mrf.mxu0
      %v575 = vadd.f32 %v529, %v574
      %576 = vdwg.mxu0
      %577 = vst [vmem:[#allocation2] sm:$0xff] %v558
      %578 = vst [vmem:[#allocation2 + $0x8] sm:$0xff] %v560
      %579 = vst [vmem:[#allocation2 + $0x10] sm:$0xff] %v563
      %580 = vst [vmem:[#allocation2 + $0x18] sm:$0xff] %v565
      %581 = vst [vmem:[#allocation2 + $0x20] sm:$0xff] %v568
      %582 = vst [vmem:[#allocation2 + $0x28] sm:$0xff] %v570
      %583 = vst [vmem:[#allocation2 + $0x30] sm:$0xff] %v573
      %584 = vst [vmem:[#allocation2 + $0x38] sm:$0xff] %v575
      %v585 = vld [vmem:[%s2] sm:$0xff]
      %v586 = vld [vmem:[%s2 + $0x8] sm:$0xff]
      %v587 = vld [vmem:[%s2 + $0x10] sm:$0xff]
      %v588 = vld [vmem:[%s2 + $0x18] sm:$0xff]
      %v589 = vpack.c.bf16 %v586, %v585
      %v590 = vpack.c.bf16 %v588, %v587
      %v591 = vld [vmem:[#allocation2] sm:$0xf]
      %vm592 = vcmask 261120
      %v594 = vsel %vm592, 0, 0
      %596 = vmatpush.bf16.msra.mxu0 0
      %597 = vmatpush.bf16.msra.mxu0 0
      %598 = vmatpush.bf16.msra.mxu0 0
      %599 = vmatpush.bf16.msra.mxu0 0
      %600 = vmatpush.bf16.msra.mxu0 0
      %601 = vmatpush.bf16.msra.mxu0 0
      %602 = vmatpush.bf16.msra.mxu0 %v590
      %603 = vmatpush.bf16.msra.mxu0 %v589
      %604 = vmatmul.bf16.gmra.mxu0 %v594
      %v605 = vpop.f32.mrf.mxu0
      %v606 = vadd.f32 0.0, %v605
      %v607 = vpop.f32.mrf.mxu0
      %608 = vdwg.mxu0
      %v609 = vadd.f32 %v591, %v606
      %v610 = vsub.f32 0.0, %v609
      %v611 = vmul.f32 %v610, 1.442695
      %v612 = vpow.pop %v611
      %v613 = vadd.f32 %v612, 1.0
      %v614 = vrcp.pop %v613
      %v615 = vtanh.pop %v609
      %v616 = vmul.f32 %v614, 0.0
      %618 = vrot.lane.b32.xlu0 %v615, 32
      %v619 = vpop.permute.xlu0 %618
      %v621 = vmul.f32 %v614, %v619
      %623 = vrot.lane.b32.xlu0 %v621, 32
      %v624 = vpop.permute.xlu0 %623
      %v626 = vadd.f32 %v616, %v624
      %v627 = vtanh.pop %v626
      %629 = vrot.lane.b32.xlu0 %v627, 32
      %v630 = vpop.permute.xlu0 %629
      %v632 = vmul.f32 %v614, %v630
      %634 = vrot.lane.b32.xlu0 %v632, 64
      %v635 = vpop.permute.xlu0 %634
      %vm637 = vcmask 257024
      %638 = vst.msk [vmem:[#allocation3] sm:$0xf] %vm637, %v635
      %s639 = scalar_lea.vmem [#allocation2], 4
      %v640 = vld [vmem:[%s639] sm:$0xf]
      %v641 = vpack.c.bf16 %v632, %v632
      %643 = vrot.lane.b32.xlu0 %v641, 64
      %v644 = vpop.permute.xlu0 %643
      %v646 = vsel %vm592, %v644, 0
      %648 = vmatpush.bf16.msra.mxu0 0
      %649 = vmatpush.bf16.msra.mxu0 0
      %650 = vmatpush.bf16.msra.mxu0 0
      %651 = vmatpush.bf16.msra.mxu0 0
      %652 = vmatpush.bf16.msra.mxu0 0
      %653 = vmatpush.bf16.msra.mxu0 0
      %654 = vmatpush.bf16.msra.mxu0 %v590
      %655 = vmatpush.bf16.msra.mxu0 %v589
      %656 = vmatmul.bf16.gmra.mxu0 %v646
      %v657 = vpop.f32.mrf.mxu0
      %v658 = vadd.f32 0.0, %v657
      %v659 = vpop.f32.mrf.mxu0
      %660 = vdwg.mxu0
      %v661 = vadd.f32 %v640, %v658
      %v662 = vsub.f32 0.0, %v661
      %v663 = vmul.f32 %v662, 1.442695
      %v664 = vpow.pop %v663
      %v665 = vadd.f32 %v664, 1.0
      %v666 = vrcp.pop %v665
      %v667 = vtanh.pop %v661
      %v668 = vmul.f32 %v666, %v626
      %670 = vrot.lane.b32.xlu0 %v667, 32
      %v671 = vpop.permute.xlu0 %670
      %v673 = vmul.f32 %v666, %v671
      %675 = vrot.lane.b32.xlu0 %v673, 32
      %v676 = vpop.permute.xlu0 %675
      %v678 = vadd.f32 %v668, %v676
      %v679 = vtanh.pop %v678
      %681 = vrot.lane.b32.xlu0 %v679, 32
      %v682 = vpop.permute.xlu0 %681
      %v684 = vmul.f32 %v666, %v682
      %686 = vrot.lane.b32.xlu0 %v684, 64
      %v687 = vpop.permute.xlu0 %686
      %s689 = scalar_lea.vmem [#allocation3], 4
      %690 = vst.msk [vmem:[%s689] sm:$0xf] %vm637, %v687
      %s691 = scalar_lea.vmem [#allocation2], 8
      %v692 = vld [vmem:[%s691] sm:$0xf]
      %v693 = vpack.c.bf16 %v684, %v684
      %695 = vrot.lane.b32.xlu0 %v693, 64
      %v696 = vpop.permute.xlu0 %695
      %v698 = vsel %vm592, %v696, 0
      %700 = vmatpush.bf16.msra.mxu0 0
      %701 = vmatpush.bf16.msra.mxu0 0
      %702 = vmatpush.bf16.msra.mxu0 0
      %703 = vmatpush.bf16.msra.mxu0 0
      %704 = vmatpush.bf16.msra.mxu0 0
      %705 = vmatpush.bf16.msra.mxu0 0
      %706 = vmatpush.bf16.msra.mxu0 %v590
      %707 = vmatpush.bf16.msra.mxu0 %v589
      %708 = vmatmul.bf16.gmra.mxu0 %v698
      %v709 = vpop.f32.mrf.mxu0
      %v710 = vadd.f32 0.0, %v709
      %v711 = vpop.f32.mrf.mxu0
      %712 = vdwg.mxu0
      %v713 = vadd.f32 %v692, %v710
      %v714 = vsub.f32 0.0, %v713
      %v715 = vmul.f32 %v714, 1.442695
      %v716 = vpow.pop %v715
      %v717 = vadd.f32 %v716, 1.0
      %v718 = vrcp.pop %v717
      %v719 = vtanh.pop %v713
      %v720 = vmul.f32 %v718, %v678
      %722 = vrot.lane.b32.xlu0 %v719, 32
      %v723 = vpop.permute.xlu0 %722
      %v725 = vmul.f32 %v718, %v723
      %727 = vrot.lane.b32.xlu0 %v725, 32
      %v728 = vpop.permute.xlu0 %727
      %v730 = vadd.f32 %v720, %v728
      %v731 = vtanh.pop %v730
      %733 = vrot.lane.b32.xlu0 %v731, 32
      %v734 = vpop.permute.xlu0 %733
      %v736 = vmul.f32 %v718, %v734
      %738 = vrot.lane.b32.xlu0 %v736, 64
      %v739 = vpop.permute.xlu0 %738
      %s741 = scalar_lea.vmem [#allocation3], 8
      %742 = vst.msk [vmem:[%s741] sm:$0xf] %vm637, %v739
      %s743 = scalar_lea.vmem [#allocation2], 12
      %v744 = vld [vmem:[%s743] sm:$0xf]
      %v745 = vpack.c.bf16 %v736, %v736
      %747 = vrot.lane.b32.xlu0 %v745, 64
      %v748 = vpop.permute.xlu0 %747
      %v750 = vsel %vm592, %v748, 0
      %752 = vmatpush.bf16.msra.mxu0 0
      %753 = vmatpush.bf16.msra.mxu0 0
      %754 = vmatpush.bf16.msra.mxu0 0
      %755 = vmatpush.bf16.msra.mxu0 0
      %756 = vmatpush.bf16.msra.mxu0 0
      %757 = vmatpush.bf16.msra.mxu0 0
      %758 = vmatpush.bf16.msra.mxu0 %v590
      %759 = vmatpush.bf16.msra.mxu0 %v589
      %760 = vmatmul.bf16.gmra.mxu0 %v750
      %v761 = vpop.f32.mrf.mxu0
      %v762 = vadd.f32 0.0, %v761
      %v763 = vpop.f32.mrf.mxu0
      %764 = vdwg.mxu0
      %v765 = vadd.f32 %v744, %v762
      %v766 = vsub.f32 0.0, %v765
      %v767 = vmul.f32 %v766, 1.442695
      %v768 = vpow.pop %v767
      %v769 = vadd.f32 %v768, 1.0
      %v770 = vrcp.pop %v769
      %v771 = vtanh.pop %v765
      %v772 = vmul.f32 %v770, %v730
      %774 = vrot.lane.b32.xlu0 %v771, 32
      %v775 = vpop.permute.xlu0 %774
      %v777 = vmul.f32 %v770, %v775
      %779 = vrot.lane.b32.xlu0 %v777, 32
      %v780 = vpop.permute.xlu0 %779
      %v782 = vadd.f32 %v772, %v780
      %v783 = vtanh.pop %v782
      %785 = vrot.lane.b32.xlu0 %v783, 32
      %v786 = vpop.permute.xlu0 %785
      %v788 = vmul.f32 %v770, %v786
      %790 = vrot.lane.b32.xlu0 %v788, 64
      %v791 = vpop.permute.xlu0 %790
      %s793 = scalar_lea.vmem [#allocation3], 12
      %794 = vst.msk [vmem:[%s793] sm:$0xf] %vm637, %v791
      %s795 = scalar_lea.vmem [#allocation2], 16
      %v796 = vld [vmem:[%s795] sm:$0xf]
      %v797 = vpack.c.bf16 %v788, %v788
      %799 = vrot.lane.b32.xlu0 %v797, 64
      %v800 = vpop.permute.xlu0 %799
      %v802 = vsel %vm592, %v800, 0
      %804 = vmatpush.bf16.msra.mxu0 0
      %805 = vmatpush.bf16.msra.mxu0 0
      %806 = vmatpush.bf16.msra.mxu0 0
      %807 = vmatpush.bf16.msra.mxu0 0
      %808 = vmatpush.bf16.msra.mxu0 0
      %809 = vmatpush.bf16.msra.mxu0 0
      %810 = vmatpush.bf16.msra.mxu0 %v590
      %811 = vmatpush.bf16.msra.mxu0 %v589
      %812 = vmatmul.bf16.gmra.mxu0 %v802
      %v813 = vpop.f32.mrf.mxu0
      %v814 = vadd.f32 0.0, %v813
      %v815 = vpop.f32.mrf.mxu0
      %816 = vdwg.mxu0
      %v817 = vadd.f32 %v796, %v814
      %v818 = vsub.f32 0.0, %v817
      %v819 = vmul.f32 %v818, 1.442695
      %v820 = vpow.pop %v819
      %v821 = vadd.f32 %v820, 1.0
      %v822 = vrcp.pop %v821
      %v823 = vtanh.pop %v817
      %v824 = vmul.f32 %v822, %v782
      %826 = vrot.lane.b32.xlu0 %v823, 32
      %v827 = vpop.permute.xlu0 %826
      %v829 = vmul.f32 %v822, %v827
      %831 = vrot.lane.b32.xlu0 %v829, 32
      %v832 = vpop.permute.xlu0 %831
      %v834 = vadd.f32 %v824, %v832
      %v835 = vtanh.pop %v834
      %837 = vrot.lane.b32.xlu0 %v835, 32
      %v838 = vpop.permute.xlu0 %837
      %v840 = vmul.f32 %v822, %v838
      %842 = vrot.lane.b32.xlu0 %v840, 64
      %v843 = vpop.permute.xlu0 %842
      %s845 = scalar_lea.vmem [#allocation3], 16
      %846 = vst.msk [vmem:[%s845] sm:$0xf] %vm637, %v843
      %s847 = scalar_lea.vmem [#allocation2], 20
      %v848 = vld [vmem:[%s847] sm:$0xf]
      %v849 = vpack.c.bf16 %v840, %v840
      %851 = vrot.lane.b32.xlu0 %v849, 64
      %v852 = vpop.permute.xlu0 %851
      %v854 = vsel %vm592, %v852, 0
      %856 = vmatpush.bf16.msra.mxu0 0
      %857 = vmatpush.bf16.msra.mxu0 0
      %858 = vmatpush.bf16.msra.mxu0 0
      %859 = vmatpush.bf16.msra.mxu0 0
      %860 = vmatpush.bf16.msra.mxu0 0
      %861 = vmatpush.bf16.msra.mxu0 0
      %862 = vmatpush.bf16.msra.mxu0 %v590
      %863 = vmatpush.bf16.msra.mxu0 %v589
      %864 = vmatmul.bf16.gmra.mxu0 %v854
      %v865 = vpop.f32.mrf.mxu0
      %v866 = vadd.f32 0.0, %v865
      %v867 = vpop.f32.mrf.mxu0
      %868 = vdwg.mxu0
      %v869 = vadd.f32 %v848, %v866
      %v870 = vsub.f32 0.0, %v869
      %v871 = vmul.f32 %v870, 1.442695
      %v872 = vpow.pop %v871
      %v873 = vadd.f32 %v872, 1.0
      %v874 = vrcp.pop %v873
      %v875 = vtanh.pop %v869
      %v876 = vmul.f32 %v874, %v834
      %878 = vrot.lane.b32.xlu0 %v875, 32
      %v879 = vpop.permute.xlu0 %878
      %v881 = vmul.f32 %v874, %v879
      %883 = vrot.lane.b32.xlu0 %v881, 32
      %v884 = vpop.permute.xlu0 %883
      %v886 = vadd.f32 %v876, %v884
      %v887 = vtanh.pop %v886
      %889 = vrot.lane.b32.xlu0 %v887, 32
      %v890 = vpop.permute.xlu0 %889
      %v892 = vmul.f32 %v874, %v890
      %894 = vrot.lane.b32.xlu0 %v892, 64
      %v895 = vpop.permute.xlu0 %894
      %s897 = scalar_lea.vmem [#allocation3], 20
      %898 = vst.msk [vmem:[%s897] sm:$0xf] %vm637, %v895
      %s899 = scalar_lea.vmem [#allocation2], 24
      %v900 = vld [vmem:[%s899] sm:$0xf]
      %v901 = vpack.c.bf16 %v892, %v892
      %903 = vrot.lane.b32.xlu0 %v901, 64
      %v904 = vpop.permute.xlu0 %903
      %v906 = vsel %vm592, %v904, 0
      %908 = vmatpush.bf16.msra.mxu0 0
      %909 = vmatpush.bf16.msra.mxu0 0
      %910 = vmatpush.bf16.msra.mxu0 0
      %911 = vmatpush.bf16.msra.mxu0 0
      %912 = vmatpush.bf16.msra.mxu0 0
      %913 = vmatpush.bf16.msra.mxu0 0
      %914 = vmatpush.bf16.msra.mxu0 %v590
      %915 = vmatpush.bf16.msra.mxu0 %v589
      %916 = vmatmul.bf16.gmra.mxu0 %v906
      %v917 = vpop.f32.mrf.mxu0
      %v918 = vadd.f32 0.0, %v917
      %v919 = vpop.f32.mrf.mxu0
      %920 = vdwg.mxu0
      %v921 = vadd.f32 %v900, %v918
      %v922 = vsub.f32 0.0, %v921
      %v923 = vmul.f32 %v922, 1.442695
      %v924 = vpow.pop %v923
      %v925 = vadd.f32 %v924, 1.0
      %v926 = vrcp.pop %v925
      %v927 = vtanh.pop %v921
      %v928 = vmul.f32 %v926, %v886
      %930 = vrot.lane.b32.xlu0 %v927, 32
      %v931 = vpop.permute.xlu0 %930
      %v933 = vmul.f32 %v926, %v931
      %935 = vrot.lane.b32.xlu0 %v933, 32
      %v936 = vpop.permute.xlu0 %935
      %v938 = vadd.f32 %v928, %v936
      %v939 = vtanh.pop %v938
      %941 = vrot.lane.b32.xlu0 %v939, 32
      %v942 = vpop.permute.xlu0 %941
      %v944 = vmul.f32 %v926, %v942
      %946 = vrot.lane.b32.xlu0 %v944, 64
      %v947 = vpop.permute.xlu0 %946
      %s949 = scalar_lea.vmem [#allocation3], 24
      %950 = vst.msk [vmem:[%s949] sm:$0xf] %vm637, %v947
      %s951 = scalar_lea.vmem [#allocation2], 28
      %v952 = vld [vmem:[%s951] sm:$0xf]
      %v953 = vpack.c.bf16 %v944, %v944
      %955 = vrot.lane.b32.xlu0 %v953, 64
      %v956 = vpop.permute.xlu0 %955
      %v958 = vsel %vm592, %v956, 0
      %960 = vmatpush.bf16.msra.mxu0 0
      %961 = vmatpush.bf16.msra.mxu0 0
      %962 = vmatpush.bf16.msra.mxu0 0
      %963 = vmatpush.bf16.msra.mxu0 0
      %964 = vmatpush.bf16.msra.mxu0 0
      %965 = vmatpush.bf16.msra.mxu0 0
      %966 = vmatpush.bf16.msra.mxu0 %v590
      %967 = vmatpush.bf16.msra.mxu0 %v589
      %968 = vmatmul.bf16.gmra.mxu0 %v958
      %v969 = vpop.f32.mrf.mxu0
      %v970 = vadd.f32 0.0, %v969
      %v971 = vpop.f32.mrf.mxu0
      %972 = vdwg.mxu0
      %v973 = vadd.f32 %v952, %v970
      %v974 = vsub.f32 0.0, %v973
      %v975 = vmul.f32 %v974, 1.442695
      %v976 = vpow.pop %v975
      %v977 = vadd.f32 %v976, 1.0
      %v978 = vrcp.pop %v977
      %v979 = vtanh.pop %v973
      %v980 = vmul.f32 %v978, %v938
      %982 = vrot.lane.b32.xlu0 %v979, 32
      %v983 = vpop.permute.xlu0 %982
      %v985 = vmul.f32 %v978, %v983
      %987 = vrot.lane.b32.xlu0 %v985, 32
      %v988 = vpop.permute.xlu0 %987
      %v990 = vadd.f32 %v980, %v988
      %v991 = vtanh.pop %v990
      %993 = vrot.lane.b32.xlu0 %v991, 32
      %v994 = vpop.permute.xlu0 %993
      %v996 = vmul.f32 %v978, %v994
      %998 = vrot.lane.b32.xlu0 %v996, 64
      %v999 = vpop.permute.xlu0 %998
      %s1001 = scalar_lea.vmem [#allocation3], 28
      %1002 = vst.msk [vmem:[%s1001] sm:$0xf] %vm637, %v999
      %s1003 = scalar_lea.vmem [#allocation2], 32
      %v1004 = vld [vmem:[%s1003] sm:$0xf]
      %v1005 = vpack.c.bf16 %v996, %v996
      %1007 = vrot.lane.b32.xlu0 %v1005, 64
      %v1008 = vpop.permute.xlu0 %1007
      %v1010 = vsel %vm592, %v1008, 0
      %1012 = vmatpush.bf16.msra.mxu0 0
      %1013 = vmatpush.bf16.msra.mxu0 0
      %1014 = vmatpush.bf16.msra.mxu0 0
      %1015 = vmatpush.bf16.msra.mxu0 0
      %1016 = vmatpush.bf16.msra.mxu0 0
      %1017 = vmatpush.bf16.msra.mxu0 0
      %1018 = vmatpush.bf16.msra.mxu0 %v590
      %1019 = vmatpush.bf16.msra.mxu0 %v589
      %1020 = vmatmul.bf16.gmra.mxu0 %v1010
      %v1021 = vpop.f32.mrf.mxu0
      %v1022 = vadd.f32 0.0, %v1021
      %v1023 = vpop.f32.mrf.mxu0
      %1024 = vdwg.mxu0
      %v1025 = vadd.f32 %v1004, %v1022
      %v1026 = vsub.f32 0.0, %v1025
      %v1027 = vmul.f32 %v1026, 1.442695
      %v1028 = vpow.pop %v1027
      %v1029 = vadd.f32 %v1028, 1.0
      %v1030 = vrcp.pop %v1029
      %v1031 = vtanh.pop %v1025
      %v1032 = vmul.f32 %v1030, %v990
      %1034 = vrot.lane.b32.xlu0 %v1031, 32
      %v1035 = vpop.permute.xlu0 %1034
      %v1037 = vmul.f32 %v1030, %v1035
      %1039 = vrot.lane.b32.xlu0 %v1037, 32
      %v1040 = vpop.permute.xlu0 %1039
      %v1042 = vadd.f32 %v1032, %v1040
      %v1043 = vtanh.pop %v1042
      %1045 = vrot.lane.b32.xlu0 %v1043, 32
      %v1046 = vpop.permute.xlu0 %1045
      %v1048 = vmul.f32 %v1030, %v1046
      %1050 = vrot.lane.b32.xlu0 %v1048, 64
      %v1051 = vpop.permute.xlu0 %1050
      %s1053 = scalar_lea.vmem [#allocation3], 32
      %1054 = vst.msk [vmem:[%s1053] sm:$0xf] %vm637, %v1051
      %s1055 = scalar_lea.vmem [#allocation2], 36
      %v1056 = vld [vmem:[%s1055] sm:$0xf]
      %v1057 = vpack.c.bf16 %v1048, %v1048
      %1059 = vrot.lane.b32.xlu0 %v1057, 64
      %v1060 = vpop.permute.xlu0 %1059
      %v1062 = vsel %vm592, %v1060, 0
      %1064 = vmatpush.bf16.msra.mxu0 0
      %1065 = vmatpush.bf16.msra.mxu0 0
      %1066 = vmatpush.bf16.msra.mxu0 0
      %1067 = vmatpush.bf16.msra.mxu0 0
      %1068 = vmatpush.bf16.msra.mxu0 0
      %1069 = vmatpush.bf16.msra.mxu0 0
      %1070 = vmatpush.bf16.msra.mxu0 %v590
      %1071 = vmatpush.bf16.msra.mxu0 %v589
      %1072 = vmatmul.bf16.gmra.mxu0 %v1062
      %v1073 = vpop.f32.mrf.mxu0
      %v1074 = vadd.f32 0.0, %v1073
      %v1075 = vpop.f32.mrf.mxu0
      %1076 = vdwg.mxu0
      %v1077 = vadd.f32 %v1056, %v1074
      %v1078 = vsub.f32 0.0, %v1077
      %v1079 = vmul.f32 %v1078, 1.442695
      %v1080 = vpow.pop %v1079
      %v1081 = vadd.f32 %v1080, 1.0
      %v1082 = vrcp.pop %v1081
      %v1083 = vtanh.pop %v1077
      %v1084 = vmul.f32 %v1082, %v1042
      %1086 = vrot.lane.b32.xlu0 %v1083, 32
      %v1087 = vpop.permute.xlu0 %1086
      %v1089 = vmul.f32 %v1082, %v1087
      %1091 = vrot.lane.b32.xlu0 %v1089, 32
      %v1092 = vpop.permute.xlu0 %1091
      %v1094 = vadd.f32 %v1084, %v1092
      %v1095 = vtanh.pop %v1094
      %1097 = vrot.lane.b32.xlu0 %v1095, 32
      %v1098 = vpop.permute.xlu0 %1097
      %v1100 = vmul.f32 %v1082, %v1098
      %1102 = vrot.lane.b32.xlu0 %v1100, 64
      %v1103 = vpop.permute.xlu0 %1102
      %s1105 = scalar_lea.vmem [#allocation3], 36
      %1106 = vst.msk [vmem:[%s1105] sm:$0xf] %vm637, %v1103
      %s1107 = scalar_lea.vmem [#allocation2], 40
      %v1108 = vld [vmem:[%s1107] sm:$0xf]
      %v1109 = vpack.c.bf16 %v1100, %v1100
      %1111 = vrot.lane.b32.xlu0 %v1109, 64
      %v1112 = vpop.permute.xlu0 %1111
      %v1114 = vsel %vm592, %v1112, 0
      %1116 = vmatpush.bf16.msra.mxu0 0
      %1117 = vmatpush.bf16.msra.mxu0 0
      %1118 = vmatpush.bf16.msra.mxu0 0
      %1119 = vmatpush.bf16.msra.mxu0 0
      %1120 = vmatpush.bf16.msra.mxu0 0
      %1121 = vmatpush.bf16.msra.mxu0 0
      %1122 = vmatpush.bf16.msra.mxu0 %v590
      %1123 = vmatpush.bf16.msra.mxu0 %v589
      %1124 = vmatmul.bf16.gmra.mxu0 %v1114
      %v1125 = vpop.f32.mrf.mxu0
      %v1126 = vadd.f32 0.0, %v1125
      %v1127 = vpop.f32.mrf.mxu0
      %1128 = vdwg.mxu0
      %v1129 = vadd.f32 %v1108, %v1126
      %v1130 = vsub.f32 0.0, %v1129
      %v1131 = vmul.f32 %v1130, 1.442695
      %v1132 = vpow.pop %v1131
      %v1133 = vadd.f32 %v1132, 1.0
      %v1134 = vrcp.pop %v1133
      %v1135 = vtanh.pop %v1129
      %v1136 = vmul.f32 %v1134, %v1094
      %1138 = vrot.lane.b32.xlu0 %v1135, 32
      %v1139 = vpop.permute.xlu0 %1138
      %v1141 = vmul.f32 %v1134, %v1139
      %1143 = vrot.lane.b32.xlu0 %v1141, 32
      %v1144 = vpop.permute.xlu0 %1143
      %v1146 = vadd.f32 %v1136, %v1144
      %v1147 = vtanh.pop %v1146
      %1149 = vrot.lane.b32.xlu0 %v1147, 32
      %v1150 = vpop.permute.xlu0 %1149
      %v1152 = vmul.f32 %v1134, %v1150
      %1154 = vrot.lane.b32.xlu0 %v1152, 64
      %v1155 = vpop.permute.xlu0 %1154
      %s1157 = scalar_lea.vmem [#allocation3], 40
      %1158 = vst.msk [vmem:[%s1157] sm:$0xf] %vm637, %v1155
      %s1159 = scalar_lea.vmem [#allocation2], 44
      %v1160 = vld [vmem:[%s1159] sm:$0xf]
      %v1161 = vpack.c.bf16 %v1152, %v1152
      %1163 = vrot.lane.b32.xlu0 %v1161, 64
      %v1164 = vpop.permute.xlu0 %1163
      %v1166 = vsel %vm592, %v1164, 0
      %1168 = vmatpush.bf16.msra.mxu0 0
      %1169 = vmatpush.bf16.msra.mxu0 0
      %1170 = vmatpush.bf16.msra.mxu0 0
      %1171 = vmatpush.bf16.msra.mxu0 0
      %1172 = vmatpush.bf16.msra.mxu0 0
      %1173 = vmatpush.bf16.msra.mxu0 0
      %1174 = vmatpush.bf16.msra.mxu0 %v590
      %1175 = vmatpush.bf16.msra.mxu0 %v589
      %1176 = vmatmul.bf16.gmra.mxu0 %v1166
      %v1177 = vpop.f32.mrf.mxu0
      %v1178 = vadd.f32 0.0, %v1177
      %v1179 = vpop.f32.mrf.mxu0
      %1180 = vdwg.mxu0
      %v1181 = vadd.f32 %v1160, %v1178
      %v1182 = vsub.f32 0.0, %v1181
      %v1183 = vmul.f32 %v1182, 1.442695
      %v1184 = vpow.pop %v1183
      %v1185 = vadd.f32 %v1184, 1.0
      %v1186 = vrcp.pop %v1185
      %v1187 = vtanh.pop %v1181
      %v1188 = vmul.f32 %v1186, %v1146
      %1190 = vrot.lane.b32.xlu0 %v1187, 32
      %v1191 = vpop.permute.xlu0 %1190
      %v1193 = vmul.f32 %v1186, %v1191
      %1195 = vrot.lane.b32.xlu0 %v1193, 32
      %v1196 = vpop.permute.xlu0 %1195
      %v1198 = vadd.f32 %v1188, %v1196
      %v1199 = vtanh.pop %v1198
      %1201 = vrot.lane.b32.xlu0 %v1199, 32
      %v1202 = vpop.permute.xlu0 %1201
      %v1204 = vmul.f32 %v1186, %v1202
      %1206 = vrot.lane.b32.xlu0 %v1204, 64
      %v1207 = vpop.permute.xlu0 %1206
      %s1209 = scalar_lea.vmem [#allocation3], 44
      %1210 = vst.msk [vmem:[%s1209] sm:$0xf] %vm637, %v1207
      %s1211 = scalar_lea.vmem [#allocation2], 48
      %v1212 = vld [vmem:[%s1211] sm:$0xf]
      %v1213 = vpack.c.bf16 %v1204, %v1204
      %1215 = vrot.lane.b32.xlu0 %v1213, 64
      %v1216 = vpop.permute.xlu0 %1215
      %v1218 = vsel %vm592, %v1216, 0
      %1220 = vmatpush.bf16.msra.mxu0 0
      %1221 = vmatpush.bf16.msra.mxu0 0
      %1222 = vmatpush.bf16.msra.mxu0 0
      %1223 = vmatpush.bf16.msra.mxu0 0
      %1224 = vmatpush.bf16.msra.mxu0 0
      %1225 = vmatpush.bf16.msra.mxu0 0
      %1226 = vmatpush.bf16.msra.mxu0 %v590
      %1227 = vmatpush.bf16.msra.mxu0 %v589
      %1228 = vmatmul.bf16.gmra.mxu0 %v1218
      %v1229 = vpop.f32.mrf.mxu0
      %v1230 = vadd.f32 0.0, %v1229
      %v1231 = vpop.f32.mrf.mxu0
      %1232 = vdwg.mxu0
      %v1233 = vadd.f32 %v1212, %v1230
      %v1234 = vsub.f32 0.0, %v1233
      %v1235 = vmul.f32 %v1234, 1.442695
      %v1236 = vpow.pop %v1235
      %v1237 = vadd.f32 %v1236, 1.0
      %v1238 = vrcp.pop %v1237
      %v1239 = vtanh.pop %v1233
      %v1240 = vmul.f32 %v1238, %v1198
      %1242 = vrot.lane.b32.xlu0 %v1239, 32
      %v1243 = vpop.permute.xlu0 %1242
      %v1245 = vmul.f32 %v1238, %v1243
      %1247 = vrot.lane.b32.xlu0 %v1245, 32
      %v1248 = vpop.permute.xlu0 %1247
      %v1250 = vadd.f32 %v1240, %v1248
      %v1251 = vtanh.pop %v1250
      %1253 = vrot.lane.b32.xlu0 %v1251, 32
      %v1254 = vpop.permute.xlu0 %1253
      %v1256 = vmul.f32 %v1238, %v1254
      %1258 = vrot.lane.b32.xlu0 %v1256, 64
      %v1259 = vpop.permute.xlu0 %1258
      %s1261 = scalar_lea.vmem [#allocation3], 48
      %1262 = vst.msk [vmem:[%s1261] sm:$0xf] %vm637, %v1259
      %s1263 = scalar_lea.vmem [#allocation2], 52
      %v1264 = vld [vmem:[%s1263] sm:$0xf]
      %v1265 = vpack.c.bf16 %v1256, %v1256
      %1267 = vrot.lane.b32.xlu0 %v1265, 64
      %v1268 = vpop.permute.xlu0 %1267
      %v1270 = vsel %vm592, %v1268, 0
      %1272 = vmatpush.bf16.msra.mxu0 0
      %1273 = vmatpush.bf16.msra.mxu0 0
      %1274 = vmatpush.bf16.msra.mxu0 0
      %1275 = vmatpush.bf16.msra.mxu0 0
      %1276 = vmatpush.bf16.msra.mxu0 0
      %1277 = vmatpush.bf16.msra.mxu0 0
      %1278 = vmatpush.bf16.msra.mxu0 %v590
      %1279 = vmatpush.bf16.msra.mxu0 %v589
      %1280 = vmatmul.bf16.gmra.mxu0 %v1270
      %v1281 = vpop.f32.mrf.mxu0
      %v1282 = vadd.f32 0.0, %v1281
      %v1283 = vpop.f32.mrf.mxu0
      %1284 = vdwg.mxu0
      %v1285 = vadd.f32 %v1264, %v1282
      %v1286 = vsub.f32 0.0, %v1285
      %v1287 = vmul.f32 %v1286, 1.442695
      %v1288 = vpow.pop %v1287
      %v1289 = vadd.f32 %v1288, 1.0
      %v1290 = vrcp.pop %v1289
      %v1291 = vtanh.pop %v1285
      %v1292 = vmul.f32 %v1290, %v1250
      %1294 = vrot.lane.b32.xlu0 %v1291, 32
      %v1295 = vpop.permute.xlu0 %1294
      %v1297 = vmul.f32 %v1290, %v1295
      %1299 = vrot.lane.b32.xlu0 %v1297, 32
      %v1300 = vpop.permute.xlu0 %1299
      %v1302 = vadd.f32 %v1292, %v1300
      %v1303 = vtanh.pop %v1302
      %1305 = vrot.lane.b32.xlu0 %v1303, 32
      %v1306 = vpop.permute.xlu0 %1305
      %v1308 = vmul.f32 %v1290, %v1306
      %1310 = vrot.lane.b32.xlu0 %v1308, 64
      %v1311 = vpop.permute.xlu0 %1310
      %s1313 = scalar_lea.vmem [#allocation3], 52
      %1314 = vst.msk [vmem:[%s1313] sm:$0xf] %vm637, %v1311
      %s1315 = scalar_lea.vmem [#allocation2], 56
      %v1316 = vld [vmem:[%s1315] sm:$0xf]
      %v1317 = vpack.c.bf16 %v1308, %v1308
      %1319 = vrot.lane.b32.xlu0 %v1317, 64
      %v1320 = vpop.permute.xlu0 %1319
      %v1322 = vsel %vm592, %v1320, 0
      %1324 = vmatpush.bf16.msra.mxu0 0
      %1325 = vmatpush.bf16.msra.mxu0 0
      %1326 = vmatpush.bf16.msra.mxu0 0
      %1327 = vmatpush.bf16.msra.mxu0 0
      %1328 = vmatpush.bf16.msra.mxu0 0
      %1329 = vmatpush.bf16.msra.mxu0 0
      %1330 = vmatpush.bf16.msra.mxu0 %v590
      %1331 = vmatpush.bf16.msra.mxu0 %v589
      %1332 = vmatmul.bf16.gmra.mxu0 %v1322
      %v1333 = vpop.f32.mrf.mxu0
      %v1334 = vadd.f32 0.0, %v1333
      %v1335 = vpop.f32.mrf.mxu0
      %1336 = vdwg.mxu0
      %v1337 = vadd.f32 %v1316, %v1334
      %v1338 = vsub.f32 0.0, %v1337
      %v1339 = vmul.f32 %v1338, 1.442695
      %v1340 = vpow.pop %v1339
      %v1341 = vadd.f32 %v1340, 1.0
      %v1342 = vrcp.pop %v1341
      %v1343 = vtanh.pop %v1337
      %v1344 = vmul.f32 %v1342, %v1302
      %1346 = vrot.lane.b32.xlu0 %v1343, 32
      %v1347 = vpop.permute.xlu0 %1346
      %v1349 = vmul.f32 %v1342, %v1347
      %1351 = vrot.lane.b32.xlu0 %v1349, 32
      %v1352 = vpop.permute.xlu0 %1351
      %v1354 = vadd.f32 %v1344, %v1352
      %v1355 = vtanh.pop %v1354
      %1357 = vrot.lane.b32.xlu0 %v1355, 32
      %v1358 = vpop.permute.xlu0 %1357
      %v1360 = vmul.f32 %v1342, %v1358
      %1362 = vrot.lane.b32.xlu0 %v1360, 64
      %v1363 = vpop.permute.xlu0 %1362
      %s1365 = scalar_lea.vmem [#allocation3], 56
      %1366 = vst.msk [vmem:[%s1365] sm:$0xf] %vm637, %v1363
      %s1367 = scalar_lea.vmem [#allocation2], 60
      %v1368 = vld [vmem:[%s1367] sm:$0xf]
      %v1369 = vpack.c.bf16 %v1360, %v1360
      %1371 = vrot.lane.b32.xlu0 %v1369, 64
      %v1372 = vpop.permute.xlu0 %1371
      %v1374 = vsel %vm592, %v1372, 0
      %1376 = vmatpush.bf16.msra.mxu0 0
      %1377 = vmatpush.bf16.msra.mxu0 0
      %1378 = vmatpush.bf16.msra.mxu0 0
      %1379 = vmatpush.bf16.msra.mxu0 0
      %1380 = vmatpush.bf16.msra.mxu0 0
      %1381 = vmatpush.bf16.msra.mxu0 0
      %1382 = vmatpush.bf16.msra.mxu0 %v590
      %1383 = vmatpush.bf16.msra.mxu0 %v589
      %1384 = vmatmul.bf16.gmra.mxu0 %v1374
      %v1385 = vpop.f32.mrf.mxu0
      %v1386 = vadd.f32 0.0, %v1385
      %v1387 = vpop.f32.mrf.mxu0
      %1388 = vdwg.mxu0
      %v1389 = vadd.f32 %v1368, %v1386
      %v1390 = vsub.f32 0.0, %v1389
      %v1391 = vmul.f32 %v1390, 1.442695
      %v1392 = vpow.pop %v1391
      %v1393 = vadd.f32 %v1392, 1.0
      %v1394 = vrcp.pop %v1393
      %v1395 = vtanh.pop %v1389
      %v1396 = vmul.f32 %v1394, %v1354
      %1398 = vrot.lane.b32.xlu0 %v1395, 32
      %v1399 = vpop.permute.xlu0 %1398
      %v1401 = vmul.f32 %v1394, %v1399
      %1403 = vrot.lane.b32.xlu0 %v1401, 32
      %v1404 = vpop.permute.xlu0 %1403
      %v1406 = vadd.f32 %v1396, %v1404
      %v1407 = vtanh.pop %v1406
      %1409 = vrot.lane.b32.xlu0 %v1407, 32
      %v1410 = vpop.permute.xlu0 %1409
      %v1412 = vmul.f32 %v1394, %v1410
      %1414 = vrot.lane.b32.xlu0 %v1412, 64
      %v1415 = vpop.permute.xlu0 %1414
      %s1417 = scalar_lea.vmem [#allocation3], 60
      %1418 = vst.msk [vmem:[%s1417] sm:$0xf] %vm637, %v1415
      %v1419 = vld [vmem:[#allocation3] sm:$0xff]
      %v1420 = vld [vmem:[#allocation3 + $0x8] sm:$0xff]
      %v1421 = vld [vmem:[#allocation3 + $0x10] sm:$0xff]
      %v1422 = vld [vmem:[#allocation3 + $0x18] sm:$0xff]
      %v1423 = vld [vmem:[#allocation3 + $0x20] sm:$0xff]
      %v1424 = vld [vmem:[#allocation3 + $0x28] sm:$0xff]
      %v1425 = vld [vmem:[#allocation3 + $0x30] sm:$0xff]
      %v1426 = vld [vmem:[#allocation3 + $0x38] sm:$0xff]
      %v1427 = vmax.f32 %v1419, 0.0
      %v1428 = vmax.f32 %v1420, 0.0
      %v1429 = vmax.f32 %v1421, 0.0
      %v1430 = vmax.f32 %v1422, 0.0
      %v1431 = vmax.f32 %v1423, 0.0
      %v1432 = vmax.f32 %v1424, 0.0
      %v1433 = vmax.f32 %v1425, 0.0
      %v1434 = vmax.f32 %v1426, 0.0
      %v1435 = vld [vmem:[%s3] sm:$0xff]
      %v1436 = vld [vmem:[%s3 + $0x8] sm:$0xff]
      %v1437 = vld [vmem:[%s3 + $0x10] sm:$0xff]
      %v1438 = vld [vmem:[%s3 + $0x18] sm:$0xff]
      %v1439 = vpack.c.bf16 %v1428, %v1427
      %v1440 = vpack.c.bf16 %v1430, %v1429
      %v1441 = vpack.c.bf16 %v1432, %v1431
      %v1442 = vpack.c.bf16 %v1434, %v1433
      %v1443 = vpack.c.bf16 %v1436, %v1435
      %v1444 = vpack.c.bf16 %v1438, %v1437
      %v1446 = vperm.slane %v518, 0
      %v1449 = vsel %vm592, %v1439, 0
      %v1452 = vsel %vm592, %v1440, 0
      %v1455 = vsel %vm592, %v1441, 0
      %v1458 = vsel %vm592, %v1442, 0
      %1460 = vmatpush.bf16.msra.mxu0 0
      %1461 = vmatpush.bf16.msra.mxu0 0
      %1462 = vmatpush.bf16.msra.mxu0 0
      %1463 = vmatpush.bf16.msra.mxu0 0
      %1464 = vmatpush.bf16.msra.mxu0 0
      %1465 = vmatpush.bf16.msra.mxu0 0
      %1466 = vmatpush.bf16.msra.mxu0 %v1444
      %1467 = vmatpush.bf16.msra.mxu0 %v1443
      %1468 = vmatmul.bf16.gmra.mxu0 %v1449
      %v1469 = vpop.f32.mrf.mxu0
      %v1470 = vadd.f32 %v1446, %v1469
      %v1471 = vpop.f32.mrf.mxu0
      %v1472 = vadd.f32 %v1446, %v1471
      %1473 = vmatmul.bf16.gmra.mxu0 %v1452
      %v1474 = vpop.f32.mrf.mxu0
      %v1475 = vadd.f32 %v1446, %v1474
      %v1476 = vpop.f32.mrf.mxu0
      %v1477 = vadd.f32 %v1446, %v1476
      %1478 = vmatmul.bf16.gmra.mxu0 %v1455
      %v1479 = vpop.f32.mrf.mxu0
      %v1480 = vadd.f32 %v1446, %v1479
      %v1481 = vpop.f32.mrf.mxu0
      %v1482 = vadd.f32 %v1446, %v1481
      %1483 = vmatmul.bf16.gmra.mxu0 %v1458
      %v1484 = vpop.f32.mrf.mxu0
      %v1485 = vadd.f32 %v1446, %v1484
      %v1486 = vpop.f32.mrf.mxu0
      %v1487 = vadd.f32 %v1446, %v1486
      %1488 = vdwg.mxu0
      %vm1489 = vcmask 523264
      %1490 = vst.msk [vmem:[#allocation4] sm:$0xff] %vm1489, %v1470
      %1491 = vst.msk [vmem:[#allocation4 + $0x8] sm:$0xff] %vm1489, %v1472
      %1492 = vst.msk [vmem:[#allocation4 + $0x10] sm:$0xff] %vm1489, %v1475
      %1493 = vst.msk [vmem:[#allocation4 + $0x18] sm:$0xff] %vm1489, %v1477
      %1494 = vst.msk [vmem:[#allocation4 + $0x20] sm:$0xff] %vm1489, %v1480
      %1495 = vst.msk [vmem:[#allocation4 + $0x28] sm:$0xff] %vm1489, %v1482
      %1496 = vst.msk [vmem:[#allocation4 + $0x30] sm:$0xff] %vm1489, %v1485
      %1497 = vst.msk [vmem:[#allocation4 + $0x38] sm:$0xff] %vm1489, %v1487
      %v1498 = vld [vmem:[%s4] sm:$0xff]
      %v1499 = vld [vmem:[%s4 + $0x8] sm:$0xff]
      %v1500 = vpack.c.bf16 %v1499, %v1498
      %v1501 = vld [vmem:[#allocation4] sm:$0xf]
      %vm1502 = vcmask 130048
      %v1503 = vsel %vm1502, 0, 0
      %1505 = vmatpush.bf16.msra.mxu0 0
      %1506 = vmatpush.bf16.msra.mxu0 0
      %1507 = vmatpush.bf16.msra.mxu0 0
      %1508 = vmatpush.bf16.msra.mxu0 0
      %1509 = vmatpush.bf16.msra.mxu0 0
      %1510 = vmatpush.bf16.msra.mxu0 0
      %1511 = vmatpush.bf16.msra.mxu0 0
      %1512 = vmatpush.bf16.msra.mxu0 %v1500
      %1513 = vmatmul.bf16.gmra.mxu0 %v1503
      %v1514 = vpop.f32.mrf.mxu0
      %v1515 = vadd.f32 0.0, %v1514
      %v1516 = vpop.f32.mrf.mxu0
      %1517 = vdwg.mxu0
      %v1518 = vadd.f32 %v1501, %v1515
      %v1519 = vsub.f32 0.0, %v1518
      %v1520 = vmul.f32 %v1519, 1.442695
      %v1521 = vpow.pop %v1520
      %v1522 = vadd.f32 %v1521, 1.0
      %v1523 = vrcp.pop %v1522
      %v1524 = vtanh.pop %v1518
      %v1525 = vmul.f32 %v1523, 0.0
      %1527 = vrot.lane.b32.xlu0 %v1524, 80
      %v1528 = vpop.permute.xlu0 %1527
      %v1530 = vmul.f32 %v1523, %v1528
      %1532 = vrot.lane.b32.xlu0 %v1530, 16
      %v1533 = vpop.permute.xlu0 %1532
      %v1535 = vadd.f32 %v1525, %v1533
      %v1536 = vtanh.pop %v1535
      %1538 = vrot.lane.b32.xlu0 %v1536, 16
      %v1539 = vpop.permute.xlu0 %1538
      %v1541 = vmul.f32 %v1523, %v1539
      %1543 = vrot.lane.b32.xlu0 %v1541, 96
      %v1544 = vpop.permute.xlu0 %1543
      %vm1546 = vcmask 125952
      %1547 = vst.msk [vmem:[#allocation5] sm:$0xf] %vm1546, %v1544
      %s1548 = scalar_lea.vmem [#allocation4], 4
      %v1549 = vld [vmem:[%s1548] sm:$0xf]
      %v1550 = vpack.c.bf16 %v1541, %v1541
      %1552 = vrot.lane.b32.xlu0 %v1550, 96
      %v1553 = vpop.permute.xlu0 %1552
      %v1555 = vsel %vm1502, %v1553, 0
      %1557 = vmatpush.bf16.msra.mxu0 0
      %1558 = vmatpush.bf16.msra.mxu0 0
      %1559 = vmatpush.bf16.msra.mxu0 0
      %1560 = vmatpush.bf16.msra.mxu0 0
      %1561 = vmatpush.bf16.msra.mxu0 0
      %1562 = vmatpush.bf16.msra.mxu0 0
      %1563 = vmatpush.bf16.msra.mxu0 0
      %1564 = vmatpush.bf16.msra.mxu0 %v1500
      %1565 = vmatmul.bf16.gmra.mxu0 %v1555
      %v1566 = vpop.f32.mrf.mxu0
      %v1567 = vadd.f32 0.0, %v1566
      %v1568 = vpop.f32.mrf.mxu0
      %1569 = vdwg.mxu0
      %v1570 = vadd.f32 %v1549, %v1567
      %v1571 = vsub.f32 0.0, %v1570
      %v1572 = vmul.f32 %v1571, 1.442695
      %v1573 = vpow.pop %v1572
      %v1574 = vadd.f32 %v1573, 1.0
      %v1575 = vrcp.pop %v1574
      %v1576 = vtanh.pop %v1570
      %v1577 = vmul.f32 %v1575, %v1535
      %1579 = vrot.lane.b32.xlu0 %v1576, 80
      %v1580 = vpop.permute.xlu0 %1579
      %v1582 = vmul.f32 %v1575, %v1580
      %1584 = vrot.lane.b32.xlu0 %v1582, 16
      %v1585 = vpop.permute.xlu0 %1584
      %v1587 = vadd.f32 %v1577, %v1585
      %v1588 = vtanh.pop %v1587
      %1590 = vrot.lane.b32.xlu0 %v1588, 16
      %v1591 = vpop.permute.xlu0 %1590
      %v1593 = vmul.f32 %v1575, %v1591
      %1595 = vrot.lane.b32.xlu0 %v1593, 96
      %v1596 = vpop.permute.xlu0 %1595
      %s1598 = scalar_lea.vmem [#allocation5], 4
      %1599 = vst.msk [vmem:[%s1598] sm:$0xf] %vm1546, %v1596
      %s1600 = scalar_lea.vmem [#allocation4], 8
      %v1601 = vld [vmem:[%s1600] sm:$0xf]
      %v1602 = vpack.c.bf16 %v1593, %v1593
      %1604 = vrot.lane.b32.xlu0 %v1602, 96
      %v1605 = vpop.permute.xlu0 %1604
      %v1607 = vsel %vm1502, %v1605, 0
      %1609 = vmatpush.bf16.msra.mxu0 0
      %1610 = vmatpush.bf16.msra.mxu0 0
      %1611 = vmatpush.bf16.msra.mxu0 0
      %1612 = vmatpush.bf16.msra.mxu0 0
      %1613 = vmatpush.bf16.msra.mxu0 0
      %1614 = vmatpush.bf16.msra.mxu0 0
      %1615 = vmatpush.bf16.msra.mxu0 0
      %1616 = vmatpush.bf16.msra.mxu0 %v1500
      %1617 = vmatmul.bf16.gmra.mxu0 %v1607
      %v1618 = vpop.f32.mrf.mxu0
      %v1619 = vadd.f32 0.0, %v1618
      %v1620 = vpop.f32.mrf.mxu0
      %1621 = vdwg.mxu0
      %v1622 = vadd.f32 %v1601, %v1619
      %v1623 = vsub.f32 0.0, %v1622
      %v1624 = vmul.f32 %v1623, 1.442695
      %v1625 = vpow.pop %v1624
      %v1626 = vadd.f32 %v1625, 1.0
      %v1627 = vrcp.pop %v1626
      %v1628 = vtanh.pop %v1622
      %v1629 = vmul.f32 %v1627, %v1587
      %1631 = vrot.lane.b32.xlu0 %v1628, 80
      %v1632 = vpop.permute.xlu0 %1631
      %v1634 = vmul.f32 %v1627, %v1632
      %1636 = vrot.lane.b32.xlu0 %v1634, 16
      %v1637 = vpop.permute.xlu0 %1636
      %v1639 = vadd.f32 %v1629, %v1637
      %v1640 = vtanh.pop %v1639
      %1642 = vrot.lane.b32.xlu0 %v1640, 16
      %v1643 = vpop.permute.xlu0 %1642
      %v1645 = vmul.f32 %v1627, %v1643
      %1647 = vrot.lane.b32.xlu0 %v1645, 96
      %v1648 = vpop.permute.xlu0 %1647
      %s1650 = scalar_lea.vmem [#allocation5], 8
      %1651 = vst.msk [vmem:[%s1650] sm:$0xf] %vm1546, %v1648
      %s1652 = scalar_lea.vmem [#allocation4], 12
      %v1653 = vld [vmem:[%s1652] sm:$0xf]
      %v1654 = vpack.c.bf16 %v1645, %v1645
      %1656 = vrot.lane.b32.xlu0 %v1654, 96
      %v1657 = vpop.permute.xlu0 %1656
      %v1659 = vsel %vm1502, %v1657, 0
      %1661 = vmatpush.bf16.msra.mxu0 0
      %1662 = vmatpush.bf16.msra.mxu0 0
      %1663 = vmatpush.bf16.msra.mxu0 0
      %1664 = vmatpush.bf16.msra.mxu0 0
      %1665 = vmatpush.bf16.msra.mxu0 0
      %1666 = vmatpush.bf16.msra.mxu0 0
      %1667 = vmatpush.bf16.msra.mxu0 0
      %1668 = vmatpush.bf16.msra.mxu0 %v1500
      %1669 = vmatmul.bf16.gmra.mxu0 %v1659
      %v1670 = vpop.f32.mrf.mxu0
      %v1671 = vadd.f32 0.0, %v1670
      %v1672 = vpop.f32.mrf.mxu0
      %1673 = vdwg.mxu0
      %v1674 = vadd.f32 %v1653, %v1671
      %v1675 = vsub.f32 0.0, %v1674
      %v1676 = vmul.f32 %v1675, 1.442695
      %v1677 = vpow.pop %v1676
      %v1678 = vadd.f32 %v1677, 1.0
      %v1679 = vrcp.pop %v1678
      %v1680 = vtanh.pop %v1674
      %v1681 = vmul.f32 %v1679, %v1639
      %1683 = vrot.lane.b32.xlu0 %v1680, 80
      %v1684 = vpop.permute.xlu0 %1683
      %v1686 = vmul.f32 %v1679, %v1684
      %1688 = vrot.lane.b32.xlu0 %v1686, 16
      %v1689 = vpop.permute.xlu0 %1688
      %v1691 = vadd.f32 %v1681, %v1689
      %v1692 = vtanh.pop %v1691
      %1694 = vrot.lane.b32.xlu0 %v1692, 16
      %v1695 = vpop.permute.xlu0 %1694
      %v1697 = vmul.f32 %v1679, %v1695
      %1699 = vrot.lane.b32.xlu0 %v1697, 96
      %v1700 = vpop.permute.xlu0 %1699
      %s1702 = scalar_lea.vmem [#allocation5], 12
      %1703 = vst.msk [vmem:[%s1702] sm:$0xf] %vm1546, %v1700
      %s1704 = scalar_lea.vmem [#allocation4], 16
      %v1705 = vld [vmem:[%s1704] sm:$0xf]
      %v1706 = vpack.c.bf16 %v1697, %v1697
      %1708 = vrot.lane.b32.xlu0 %v1706, 96
      %v1709 = vpop.permute.xlu0 %1708
      %v1711 = vsel %vm1502, %v1709, 0
      %1713 = vmatpush.bf16.msra.mxu0 0
      %1714 = vmatpush.bf16.msra.mxu0 0
      %1715 = vmatpush.bf16.msra.mxu0 0
      %1716 = vmatpush.bf16.msra.mxu0 0
      %1717 = vmatpush.bf16.msra.mxu0 0
      %1718 = vmatpush.bf16.msra.mxu0 0
      %1719 = vmatpush.bf16.msra.mxu0 0
      %1720 = vmatpush.bf16.msra.mxu0 %v1500
      %1721 = vmatmul.bf16.gmra.mxu0 %v1711
      %v1722 = vpop.f32.mrf.mxu0
      %v1723 = vadd.f32 0.0, %v1722
      %v1724 = vpop.f32.mrf.mxu0
      %1725 = vdwg.mxu0
      %v1726 = vadd.f32 %v1705, %v1723
      %v1727 = vsub.f32 0.0, %v1726
      %v1728 = vmul.f32 %v1727, 1.442695
      %v1729 = vpow.pop %v1728
      %v1730 = vadd.f32 %v1729, 1.0
      %v1731 = vrcp.pop %v1730
      %v1732 = vtanh.pop %v1726
      %v1733 = vmul.f32 %v1731, %v1691
      %1735 = vrot.lane.b32.xlu0 %v1732, 80
      %v1736 = vpop.permute.xlu0 %1735
      %v1738 = vmul.f32 %v1731, %v1736
      %1740 = vrot.lane.b32.xlu0 %v1738, 16
      %v1741 = vpop.permute.xlu0 %1740
      %v1743 = vadd.f32 %v1733, %v1741
      %v1744 = vtanh.pop %v1743
      %1746 = vrot.lane.b32.xlu0 %v1744, 16
      %v1747 = vpop.permute.xlu0 %1746
      %v1749 = vmul.f32 %v1731, %v1747
      %1751 = vrot.lane.b32.xlu0 %v1749, 96
      %v1752 = vpop.permute.xlu0 %1751
      %s1754 = scalar_lea.vmem [#allocation5], 16
      %1755 = vst.msk [vmem:[%s1754] sm:$0xf] %vm1546, %v1752
      %s1756 = scalar_lea.vmem [#allocation4], 20
      %v1757 = vld [vmem:[%s1756] sm:$0xf]
      %v1758 = vpack.c.bf16 %v1749, %v1749
      %1760 = vrot.lane.b32.xlu0 %v1758, 96
      %v1761 = vpop.permute.xlu0 %1760
      %v1763 = vsel %vm1502, %v1761, 0
      %1765 = vmatpush.bf16.msra.mxu0 0
      %1766 = vmatpush.bf16.msra.mxu0 0
      %1767 = vmatpush.bf16.msra.mxu0 0
      %1768 = vmatpush.bf16.msra.mxu0 0
      %1769 = vmatpush.bf16.msra.mxu0 0
      %1770 = vmatpush.bf16.msra.mxu0 0
      %1771 = vmatpush.bf16.msra.mxu0 0
      %1772 = vmatpush.bf16.msra.mxu0 %v1500
      %1773 = vmatmul.bf16.gmra.mxu0 %v1763
      %v1774 = vpop.f32.mrf.mxu0
      %v1775 = vadd.f32 0.0, %v1774
      %v1776 = vpop.f32.mrf.mxu0
      %1777 = vdwg.mxu0
      %v1778 = vadd.f32 %v1757, %v1775
      %v1779 = vsub.f32 0.0, %v1778
      %v1780 = vmul.f32 %v1779, 1.442695
      %v1781 = vpow.pop %v1780
      %v1782 = vadd.f32 %v1781, 1.0
      %v1783 = vrcp.pop %v1782
      %v1784 = vtanh.pop %v1778
      %v1785 = vmul.f32 %v1783, %v1743
      %1787 = vrot.lane.b32.xlu0 %v1784, 80
      %v1788 = vpop.permute.xlu0 %1787
      %v1790 = vmul.f32 %v1783, %v1788
      %1792 = vrot.lane.b32.xlu0 %v1790, 16
      %v1793 = vpop.permute.xlu0 %1792
      %v1795 = vadd.f32 %v1785, %v1793
      %v1796 = vtanh.pop %v1795
      %1798 = vrot.lane.b32.xlu0 %v1796, 16
      %v1799 = vpop.permute.xlu0 %1798
      %v1801 = vmul.f32 %v1783, %v1799
      %1803 = vrot.lane.b32.xlu0 %v1801, 96
      %v1804 = vpop.permute.xlu0 %1803
      %s1806 = scalar_lea.vmem [#allocation5], 20
      %1807 = vst.msk [vmem:[%s1806] sm:$0xf] %vm1546, %v1804
      %s1808 = scalar_lea.vmem [#allocation4], 24
      %v1809 = vld [vmem:[%s1808] sm:$0xf]
      %v1810 = vpack.c.bf16 %v1801, %v1801
      %1812 = vrot.lane.b32.xlu0 %v1810, 96
      %v1813 = vpop.permute.xlu0 %1812
      %v1815 = vsel %vm1502, %v1813, 0
      %1817 = vmatpush.bf16.msra.mxu0 0
      %1818 = vmatpush.bf16.msra.mxu0 0
      %1819 = vmatpush.bf16.msra.mxu0 0
      %1820 = vmatpush.bf16.msra.mxu0 0
      %1821 = vmatpush.bf16.msra.mxu0 0
      %1822 = vmatpush.bf16.msra.mxu0 0
      %1823 = vmatpush.bf16.msra.mxu0 0
      %1824 = vmatpush.bf16.msra.mxu0 %v1500
      %1825 = vmatmul.bf16.gmra.mxu0 %v1815
      %v1826 = vpop.f32.mrf.mxu0
      %v1827 = vadd.f32 0.0, %v1826
      %v1828 = vpop.f32.mrf.mxu0
      %1829 = vdwg.mxu0
      %v1830 = vadd.f32 %v1809, %v1827
      %v1831 = vsub.f32 0.0, %v1830
      %v1832 = vmul.f32 %v1831, 1.442695
      %v1833 = vpow.pop %v1832
      %v1834 = vadd.f32 %v1833, 1.0
      %v1835 = vrcp.pop %v1834
      %v1836 = vtanh.pop %v1830
      %v1837 = vmul.f32 %v1835, %v1795
      %1839 = vrot.lane.b32.xlu0 %v1836, 80
      %v1840 = vpop.permute.xlu0 %1839
      %v1842 = vmul.f32 %v1835, %v1840
      %1844 = vrot.lane.b32.xlu0 %v1842, 16
      %v1845 = vpop.permute.xlu0 %1844
      %v1847 = vadd.f32 %v1837, %v1845
      %v1848 = vtanh.pop %v1847
      %1850 = vrot.lane.b32.xlu0 %v1848, 16
      %v1851 = vpop.permute.xlu0 %1850
      %v1853 = vmul.f32 %v1835, %v1851
      %1855 = vrot.lane.b32.xlu0 %v1853, 96
      %v1856 = vpop.permute.xlu0 %1855
      %s1858 = scalar_lea.vmem [#allocation5], 24
      %1859 = vst.msk [vmem:[%s1858] sm:$0xf] %vm1546, %v1856
      %s1860 = scalar_lea.vmem [#allocation4], 28
      %v1861 = vld [vmem:[%s1860] sm:$0xf]
      %v1862 = vpack.c.bf16 %v1853, %v1853
      %1864 = vrot.lane.b32.xlu0 %v1862, 96
      %v1865 = vpop.permute.xlu0 %1864
      %v1867 = vsel %vm1502, %v1865, 0
      %1869 = vmatpush.bf16.msra.mxu0 0
      %1870 = vmatpush.bf16.msra.mxu0 0
      %1871 = vmatpush.bf16.msra.mxu0 0
      %1872 = vmatpush.bf16.msra.mxu0 0
      %1873 = vmatpush.bf16.msra.mxu0 0
      %1874 = vmatpush.bf16.msra.mxu0 0
      %1875 = vmatpush.bf16.msra.mxu0 0
      %1876 = vmatpush.bf16.msra.mxu0 %v1500
      %1877 = vmatmul.bf16.gmra.mxu0 %v1867
      %v1878 = vpop.f32.mrf.mxu0
      %v1879 = vadd.f32 0.0, %v1878
      %v1880 = vpop.f32.mrf.mxu0
      %1881 = vdwg.mxu0
      %v1882 = vadd.f32 %v1861, %v1879
      %v1883 = vsub.f32 0.0, %v1882
      %v1884 = vmul.f32 %v1883, 1.442695
      %v1885 = vpow.pop %v1884
      %v1886 = vadd.f32 %v1885, 1.0
      %v1887 = vrcp.pop %v1886
      %v1888 = vtanh.pop %v1882
      %v1889 = vmul.f32 %v1887, %v1847
      %1891 = vrot.lane.b32.xlu0 %v1888, 80
      %v1892 = vpop.permute.xlu0 %1891
      %v1894 = vmul.f32 %v1887, %v1892
      %1896 = vrot.lane.b32.xlu0 %v1894, 16
      %v1897 = vpop.permute.xlu0 %1896
      %v1899 = vadd.f32 %v1889, %v1897
      %v1900 = vtanh.pop %v1899
      %1902 = vrot.lane.b32.xlu0 %v1900, 16
      %v1903 = vpop.permute.xlu0 %1902
      %v1905 = vmul.f32 %v1887, %v1903
      %1907 = vrot.lane.b32.xlu0 %v1905, 96
      %v1908 = vpop.permute.xlu0 %1907
      %s1910 = scalar_lea.vmem [#allocation5], 28
      %1911 = vst.msk [vmem:[%s1910] sm:$0xf] %vm1546, %v1908
      %s1912 = scalar_lea.vmem [#allocation4], 32
      %v1913 = vld [vmem:[%s1912] sm:$0xf]
      %v1914 = vpack.c.bf16 %v1905, %v1905
      %1916 = vrot.lane.b32.xlu0 %v1914, 96
      %v1917 = vpop.permute.xlu0 %1916
      %v1919 = vsel %vm1502, %v1917, 0
      %1921 = vmatpush.bf16.msra.mxu0 0
      %1922 = vmatpush.bf16.msra.mxu0 0
      %1923 = vmatpush.bf16.msra.mxu0 0
      %1924 = vmatpush.bf16.msra.mxu0 0
      %1925 = vmatpush.bf16.msra.mxu0 0
      %1926 = vmatpush.bf16.msra.mxu0 0
      %1927 = vmatpush.bf16.msra.mxu0 0
      %1928 = vmatpush.bf16.msra.mxu0 %v1500
      %1929 = vmatmul.bf16.gmra.mxu0 %v1919
      %v1930 = vpop.f32.mrf.mxu0
      %v1931 = vadd.f32 0.0, %v1930
      %v1932 = vpop.f32.mrf.mxu0
      %1933 = vdwg.mxu0
      %v1934 = vadd.f32 %v1913, %v1931
      %v1935 = vsub.f32 0.0, %v1934
      %v1936 = vmul.f32 %v1935, 1.442695
      %v1937 = vpow.pop %v1936
      %v1938 = vadd.f32 %v1937, 1.0
      %v1939 = vrcp.pop %v1938
      %v1940 = vtanh.pop %v1934
      %v1941 = vmul.f32 %v1939, %v1899
      %1943 = vrot.lane.b32.xlu0 %v1940, 80
      %v1944 = vpop.permute.xlu0 %1943
      %v1946 = vmul.f32 %v1939, %v1944
      %1948 = vrot.lane.b32.xlu0 %v1946, 16
      %v1949 = vpop.permute.xlu0 %1948
      %v1951 = vadd.f32 %v1941, %v1949
      %v1952 = vtanh.pop %v1951
      %1954 = vrot.lane.b32.xlu0 %v1952, 16
      %v1955 = vpop.permute.xlu0 %1954
      %v1957 = vmul.f32 %v1939, %v1955
      %1959 = vrot.lane.b32.xlu0 %v1957, 96
      %v1960 = vpop.permute.xlu0 %1959
      %s1962 = scalar_lea.vmem [#allocation5], 32
      %1963 = vst.msk [vmem:[%s1962] sm:$0xf] %vm1546, %v1960
      %s1964 = scalar_lea.vmem [#allocation4], 36
      %v1965 = vld [vmem:[%s1964] sm:$0xf]
      %v1966 = vpack.c.bf16 %v1957, %v1957
      %1968 = vrot.lane.b32.xlu0 %v1966, 96
      %v1969 = vpop.permute.xlu0 %1968
      %v1971 = vsel %vm1502, %v1969, 0
      %1973 = vmatpush.bf16.msra.mxu0 0
      %1974 = vmatpush.bf16.msra.mxu0 0
      %1975 = vmatpush.bf16.msra.mxu0 0
      %1976 = vmatpush.bf16.msra.mxu0 0
      %1977 = vmatpush.bf16.msra.mxu0 0
      %1978 = vmatpush.bf16.msra.mxu0 0
      %1979 = vmatpush.bf16.msra.mxu0 0
      %1980 = vmatpush.bf16.msra.mxu0 %v1500
      %1981 = vmatmul.bf16.gmra.mxu0 %v1971
      %v1982 = vpop.f32.mrf.mxu0
      %v1983 = vadd.f32 0.0, %v1982
      %v1984 = vpop.f32.mrf.mxu0
      %1985 = vdwg.mxu0
      %v1986 = vadd.f32 %v1965, %v1983
      %v1987 = vsub.f32 0.0, %v1986
      %v1988 = vmul.f32 %v1987, 1.442695
      %v1989 = vpow.pop %v1988
      %v1990 = vadd.f32 %v1989, 1.0
      %v1991 = vrcp.pop %v1990
      %v1992 = vtanh.pop %v1986
      %v1993 = vmul.f32 %v1991, %v1951
      %1995 = vrot.lane.b32.xlu0 %v1992, 80
      %v1996 = vpop.permute.xlu0 %1995
      %v1998 = vmul.f32 %v1991, %v1996
      %2000 = vrot.lane.b32.xlu0 %v1998, 16
      %v2001 = vpop.permute.xlu0 %2000
      %v2003 = vadd.f32 %v1993, %v2001
      %v2004 = vtanh.pop %v2003
      %2006 = vrot.lane.b32.xlu0 %v2004, 16
      %v2007 = vpop.permute.xlu0 %2006
      %v2009 = vmul.f32 %v1991, %v2007
      %2011 = vrot.lane.b32.xlu0 %v2009, 96
      %v2012 = vpop.permute.xlu0 %2011
      %s2014 = scalar_lea.vmem [#allocation5], 36
      %2015 = vst.msk [vmem:[%s2014] sm:$0xf] %vm1546, %v2012
      %s2016 = scalar_lea.vmem [#allocation4], 40
      %v2017 = vld [vmem:[%s2016] sm:$0xf]
      %v2018 = vpack.c.bf16 %v2009, %v2009
      %2020 = vrot.lane.b32.xlu0 %v2018, 96
      %v2021 = vpop.permute.xlu0 %2020
      %v2023 = vsel %vm1502, %v2021, 0
      %2025 = vmatpush.bf16.msra.mxu0 0
      %2026 = vmatpush.bf16.msra.mxu0 0
      %2027 = vmatpush.bf16.msra.mxu0 0
      %2028 = vmatpush.bf16.msra.mxu0 0
      %2029 = vmatpush.bf16.msra.mxu0 0
      %2030 = vmatpush.bf16.msra.mxu0 0
      %2031 = vmatpush.bf16.msra.mxu0 0
      %2032 = vmatpush.bf16.msra.mxu0 %v1500
      %2033 = vmatmul.bf16.gmra.mxu0 %v2023
      %v2034 = vpop.f32.mrf.mxu0
      %v2035 = vadd.f32 0.0, %v2034
      %v2036 = vpop.f32.mrf.mxu0
      %2037 = vdwg.mxu0
      %v2038 = vadd.f32 %v2017, %v2035
      %v2039 = vsub.f32 0.0, %v2038
      %v2040 = vmul.f32 %v2039, 1.442695
      %v2041 = vpow.pop %v2040
      %v2042 = vadd.f32 %v2041, 1.0
      %v2043 = vrcp.pop %v2042
      %v2044 = vtanh.pop %v2038
      %v2045 = vmul.f32 %v2043, %v2003
      %2047 = vrot.lane.b32.xlu0 %v2044, 80
      %v2048 = vpop.permute.xlu0 %2047
      %v2050 = vmul.f32 %v2043, %v2048
      %2052 = vrot.lane.b32.xlu0 %v2050, 16
      %v2053 = vpop.permute.xlu0 %2052
      %v2055 = vadd.f32 %v2045, %v2053
      %v2056 = vtanh.pop %v2055
      %2058 = vrot.lane.b32.xlu0 %v2056, 16
      %v2059 = vpop.permute.xlu0 %2058
      %v2061 = vmul.f32 %v2043, %v2059
      %2063 = vrot.lane.b32.xlu0 %v2061, 96
      %v2064 = vpop.permute.xlu0 %2063
      %s2066 = scalar_lea.vmem [#allocation5], 40
      %2067 = vst.msk [vmem:[%s2066] sm:$0xf] %vm1546, %v2064
      %s2068 = scalar_lea.vmem [#allocation4], 44
      %v2069 = vld [vmem:[%s2068] sm:$0xf]
      %v2070 = vpack.c.bf16 %v2061, %v2061
      %2072 = vrot.lane.b32.xlu0 %v2070, 96
      %v2073 = vpop.permute.xlu0 %2072
      %v2075 = vsel %vm1502, %v2073, 0
      %2077 = vmatpush.bf16.msra.mxu0 0
      %2078 = vmatpush.bf16.msra.mxu0 0
      %2079 = vmatpush.bf16.msra.mxu0 0
      %2080 = vmatpush.bf16.msra.mxu0 0
      %2081 = vmatpush.bf16.msra.mxu0 0
      %2082 = vmatpush.bf16.msra.mxu0 0
      %2083 = vmatpush.bf16.msra.mxu0 0
      %2084 = vmatpush.bf16.msra.mxu0 %v1500
      %2085 = vmatmul.bf16.gmra.mxu0 %v2075
      %v2086 = vpop.f32.mrf.mxu0
      %v2087 = vadd.f32 0.0, %v2086
      %v2088 = vpop.f32.mrf.mxu0
      %2089 = vdwg.mxu0
      %v2090 = vadd.f32 %v2069, %v2087
      %v2091 = vsub.f32 0.0, %v2090
      %v2092 = vmul.f32 %v2091, 1.442695
      %v2093 = vpow.pop %v2092
      %v2094 = vadd.f32 %v2093, 1.0
      %v2095 = vrcp.pop %v2094
      %v2096 = vtanh.pop %v2090
      %v2097 = vmul.f32 %v2095, %v2055
      %2099 = vrot.lane.b32.xlu0 %v2096, 80
      %v2100 = vpop.permute.xlu0 %2099
      %v2102 = vmul.f32 %v2095, %v2100
      %2104 = vrot.lane.b32.xlu0 %v2102, 16
      %v2105 = vpop.permute.xlu0 %2104
      %v2107 = vadd.f32 %v2097, %v2105
      %v2108 = vtanh.pop %v2107
      %2110 = vrot.lane.b32.xlu0 %v2108, 16
      %v2111 = vpop.permute.xlu0 %2110
      %v2113 = vmul.f32 %v2095, %v2111
      %2115 = vrot.lane.b32.xlu0 %v2113, 96
      %v2116 = vpop.permute.xlu0 %2115
      %s2118 = scalar_lea.vmem [#allocation5], 44
      %2119 = vst.msk [vmem:[%s2118] sm:$0xf] %vm1546, %v2116
      %s2120 = scalar_lea.vmem [#allocation4], 48
      %v2121 = vld [vmem:[%s2120] sm:$0xf]
      %v2122 = vpack.c.bf16 %v2113, %v2113
      %2124 = vrot.lane.b32.xlu0 %v2122, 96
      %v2125 = vpop.permute.xlu0 %2124
      %v2127 = vsel %vm1502, %v2125, 0
      %2129 = vmatpush.bf16.msra.mxu0 0
      %2130 = vmatpush.bf16.msra.mxu0 0
      %2131 = vmatpush.bf16.msra.mxu0 0
      %2132 = vmatpush.bf16.msra.mxu0 0
      %2133 = vmatpush.bf16.msra.mxu0 0
      %2134 = vmatpush.bf16.msra.mxu0 0
      %2135 = vmatpush.bf16.msra.mxu0 0
      %2136 = vmatpush.bf16.msra.mxu0 %v1500
      %2137 = vmatmul.bf16.gmra.mxu0 %v2127
      %v2138 = vpop.f32.mrf.mxu0
      %v2139 = vadd.f32 0.0, %v2138
      %v2140 = vpop.f32.mrf.mxu0
      %2141 = vdwg.mxu0
      %v2142 = vadd.f32 %v2121, %v2139
      %v2143 = vsub.f32 0.0, %v2142
      %v2144 = vmul.f32 %v2143, 1.442695
      %v2145 = vpow.pop %v2144
      %v2146 = vadd.f32 %v2145, 1.0
      %v2147 = vrcp.pop %v2146
      %v2148 = vtanh.pop %v2142
      %v2149 = vmul.f32 %v2147, %v2107
      %2151 = vrot.lane.b32.xlu0 %v2148, 80
      %v2152 = vpop.permute.xlu0 %2151
      %v2154 = vmul.f32 %v2147, %v2152
      %2156 = vrot.lane.b32.xlu0 %v2154, 16
      %v2157 = vpop.permute.xlu0 %2156
      %v2159 = vadd.f32 %v2149, %v2157
      %v2160 = vtanh.pop %v2159
      %2162 = vrot.lane.b32.xlu0 %v2160, 16
      %v2163 = vpop.permute.xlu0 %2162
      %v2165 = vmul.f32 %v2147, %v2163
      %2167 = vrot.lane.b32.xlu0 %v2165, 96
      %v2168 = vpop.permute.xlu0 %2167
      %s2170 = scalar_lea.vmem [#allocation5], 48
      %2171 = vst.msk [vmem:[%s2170] sm:$0xf] %vm1546, %v2168
      %s2172 = scalar_lea.vmem [#allocation4], 52
      %v2173 = vld [vmem:[%s2172] sm:$0xf]
      %v2174 = vpack.c.bf16 %v2165, %v2165
      %2176 = vrot.lane.b32.xlu0 %v2174, 96
      %v2177 = vpop.permute.xlu0 %2176
      %v2179 = vsel %vm1502, %v2177, 0
      %2181 = vmatpush.bf16.msra.mxu0 0
      %2182 = vmatpush.bf16.msra.mxu0 0
      %2183 = vmatpush.bf16.msra.mxu0 0
      %2184 = vmatpush.bf16.msra.mxu0 0
      %2185 = vmatpush.bf16.msra.mxu0 0
      %2186 = vmatpush.bf16.msra.mxu0 0
      %2187 = vmatpush.bf16.msra.mxu0 0
      %2188 = vmatpush.bf16.msra.mxu0 %v1500
      %2189 = vmatmul.bf16.gmra.mxu0 %v2179
      %v2190 = vpop.f32.mrf.mxu0
      %v2191 = vadd.f32 0.0, %v2190
      %v2192 = vpop.f32.mrf.mxu0
      %2193 = vdwg.mxu0
      %v2194 = vadd.f32 %v2173, %v2191
      %v2195 = vsub.f32 0.0, %v2194
      %v2196 = vmul.f32 %v2195, 1.442695
      %v2197 = vpow.pop %v2196
      %v2198 = vadd.f32 %v2197, 1.0
      %v2199 = vrcp.pop %v2198
      %v2200 = vtanh.pop %v2194
      %v2201 = vmul.f32 %v2199, %v2159
      %2203 = vrot.lane.b32.xlu0 %v2200, 80
      %v2204 = vpop.permute.xlu0 %2203
      %v2206 = vmul.f32 %v2199, %v2204
      %2208 = vrot.lane.b32.xlu0 %v2206, 16
      %v2209 = vpop.permute.xlu0 %2208
      %v2211 = vadd.f32 %v2201, %v2209
      %v2212 = vtanh.pop %v2211
      %2214 = vrot.lane.b32.xlu0 %v2212, 16
      %v2215 = vpop.permute.xlu0 %2214
      %v2217 = vmul.f32 %v2199, %v2215
      %2219 = vrot.lane.b32.xlu0 %v2217, 96
      %v2220 = vpop.permute.xlu0 %2219
      %s2222 = scalar_lea.vmem [#allocation5], 52
      %2223 = vst.msk [vmem:[%s2222] sm:$0xf] %vm1546, %v2220
      %s2224 = scalar_lea.vmem [#allocation4], 56
      %v2225 = vld [vmem:[%s2224] sm:$0xf]
      %v2226 = vpack.c.bf16 %v2217, %v2217
      %2228 = vrot.lane.b32.xlu0 %v2226, 96
      %v2229 = vpop.permute.xlu0 %2228
      %v2231 = vsel %vm1502, %v2229, 0
      %2233 = vmatpush.bf16.msra.mxu0 0
      %2234 = vmatpush.bf16.msra.mxu0 0
      %2235 = vmatpush.bf16.msra.mxu0 0
      %2236 = vmatpush.bf16.msra.mxu0 0
      %2237 = vmatpush.bf16.msra.mxu0 0
      %2238 = vmatpush.bf16.msra.mxu0 0
      %2239 = vmatpush.bf16.msra.mxu0 0
      %2240 = vmatpush.bf16.msra.mxu0 %v1500
      %2241 = vmatmul.bf16.gmra.mxu0 %v2231
      %v2242 = vpop.f32.mrf.mxu0
      %v2243 = vadd.f32 0.0, %v2242
      %v2244 = vpop.f32.mrf.mxu0
      %2245 = vdwg.mxu0
      %v2246 = vadd.f32 %v2225, %v2243
      %v2247 = vsub.f32 0.0, %v2246
      %v2248 = vmul.f32 %v2247, 1.442695
      %v2249 = vpow.pop %v2248
      %v2250 = vadd.f32 %v2249, 1.0
      %v2251 = vrcp.pop %v2250
      %v2252 = vtanh.pop %v2246
      %v2253 = vmul.f32 %v2251, %v2211
      %2255 = vrot.lane.b32.xlu0 %v2252, 80
      %v2256 = vpop.permute.xlu0 %2255
      %v2258 = vmul.f32 %v2251, %v2256
      %2260 = vrot.lane.b32.xlu0 %v2258, 16
      %v2261 = vpop.permute.xlu0 %2260
      %v2263 = vadd.f32 %v2253, %v2261
      %v2264 = vtanh.pop %v2263
      %2266 = vrot.lane.b32.xlu0 %v2264, 16
      %v2267 = vpop.permute.xlu0 %2266
      %v2269 = vmul.f32 %v2251, %v2267
      %2271 = vrot.lane.b32.xlu0 %v2269, 96
      %v2272 = vpop.permute.xlu0 %2271
      %s2274 = scalar_lea.vmem [#allocation5], 56
      %2275 = vst.msk [vmem:[%s2274] sm:$0xf] %vm1546, %v2272
      %s2276 = scalar_lea.vmem [#allocation4], 60
      %v2277 = vld [vmem:[%s2276] sm:$0xf]
      %v2278 = vpack.c.bf16 %v2269, %v2269
      %2280 = vrot.lane.b32.xlu0 %v2278, 96
      %v2281 = vpop.permute.xlu0 %2280
      %v2283 = vsel %vm1502, %v2281, 0
      %2285 = vmatpush.bf16.msra.mxu0 0
      %2286 = vmatpush.bf16.msra.mxu0 0
      %2287 = vmatpush.bf16.msra.mxu0 0
      %2288 = vmatpush.bf16.msra.mxu0 0
      %2289 = vmatpush.bf16.msra.mxu0 0
      %2290 = vmatpush.bf16.msra.mxu0 0
      %2291 = vmatpush.bf16.msra.mxu0 0
      %2292 = vmatpush.bf16.msra.mxu0 %v1500
      %2293 = vmatmul.bf16.gmra.mxu0 %v2283
      %v2294 = vpop.f32.mrf.mxu0
      %v2295 = vadd.f32 0.0, %v2294
      %v2296 = vpop.f32.mrf.mxu0
      %2297 = vdwg.mxu0
      %v2298 = vadd.f32 %v2277, %v2295
      %v2299 = vsub.f32 0.0, %v2298
      %v2300 = vmul.f32 %v2299, 1.442695
      %v2301 = vpow.pop %v2300
      %v2302 = vadd.f32 %v2301, 1.0
      %v2303 = vrcp.pop %v2302
      %v2304 = vtanh.pop %v2298
      %v2305 = vmul.f32 %v2303, %v2263
      %2307 = vrot.lane.b32.xlu0 %v2304, 80
      %v2308 = vpop.permute.xlu0 %2307
      %v2310 = vmul.f32 %v2303, %v2308
      %2312 = vrot.lane.b32.xlu0 %v2310, 16
      %v2313 = vpop.permute.xlu0 %2312
      %v2315 = vadd.f32 %v2305, %v2313
      %v2316 = vtanh.pop %v2315
      %2318 = vrot.lane.b32.xlu0 %v2316, 16
      %v2319 = vpop.permute.xlu0 %2318
      %v2321 = vmul.f32 %v2303, %v2319
      %2323 = vrot.lane.b32.xlu0 %v2321, 96
      %v2324 = vpop.permute.xlu0 %2323
      %s2326 = scalar_lea.vmem [#allocation5], 60
      %2327 = vst.msk [vmem:[%s2326] sm:$0xf] %vm1546, %v2324
      %v2328 = vld [vmem:[#allocation5] sm:$0xff]
      %v2329 = vld [vmem:[#allocation5 + $0x8] sm:$0xff]
      %v2330 = vld [vmem:[#allocation5 + $0x10] sm:$0xff]
      %v2331 = vld [vmem:[#allocation5 + $0x18] sm:$0xff]
      %v2332 = vld [vmem:[#allocation5 + $0x20] sm:$0xff]
      %v2333 = vld [vmem:[#allocation5 + $0x28] sm:$0xff]
      %v2334 = vld [vmem:[#allocation5 + $0x30] sm:$0xff]
      %v2335 = vld [vmem:[#allocation5 + $0x38] sm:$0xff]
      %v2336 = vmax.f32 %v2328, 0.0
      %v2337 = vmax.f32 %v2329, 0.0
      %v2338 = vmax.f32 %v2330, 0.0
      %v2339 = vmax.f32 %v2331, 0.0
      %v2340 = vmax.f32 %v2332, 0.0
      %v2341 = vmax.f32 %v2333, 0.0
      %v2342 = vmax.f32 %v2334, 0.0
      %v2343 = vmax.f32 %v2335, 0.0
      %v2344 = vld [vmem:[%s5] sm:$0xff]
      %v2345 = vld [vmem:[%s5 + $0x8] sm:$0xff]
      %v2346 = vpack.c.bf16 %v2337, %v2336
      %v2347 = vpack.c.bf16 %v2339, %v2338
      %v2348 = vpack.c.bf16 %v2341, %v2340
      %v2349 = vpack.c.bf16 %v2343, %v2342
      %v2350 = vpack.c.bf16 %v2345, %v2344
      %2351 = vrot.lane.b32.xlu0 %v1446, 64
      %v2352 = vpop.permute.xlu0 %2351
      %v2355 = vsel %vm1502, %v2346, 0
      %v2358 = vsel %vm1502, %v2347, 0
      %v2361 = vsel %vm1502, %v2348, 0
      %v2364 = vsel %vm1502, %v2349, 0
      %2366 = vmatpush.bf16.msra.mxu0 0
      %2367 = vmatpush.bf16.msra.mxu0 0
      %2368 = vmatpush.bf16.msra.mxu0 0
      %2369 = vmatpush.bf16.msra.mxu0 0
      %2370 = vmatpush.bf16.msra.mxu0 0
      %2371 = vmatpush.bf16.msra.mxu0 0
      %2372 = vmatpush.bf16.msra.mxu0 0
      %2373 = vmatpush.bf16.msra.mxu0 %v2350
      %2374 = vmatmul.bf16.gmra.mxu0 %v2355
      %v2375 = vpop.f32.mrf.mxu0
      %v2376 = vadd.f32 %v2352, %v2375
      %v2377 = vpop.f32.mrf.mxu0
      %v2378 = vadd.f32 %v2352, %v2377
      %2379 = vmatmul.bf16.gmra.mxu0 %v2358
      %v2380 = vpop.f32.mrf.mxu0
      %v2381 = vadd.f32 %v2352, %v2380
      %v2382 = vpop.f32.mrf.mxu0
      %v2383 = vadd.f32 %v2352, %v2382
      %2384 = vmatmul.bf16.gmra.mxu0 %v2361
      %v2385 = vpop.f32.mrf.mxu0
      %v2386 = vadd.f32 %v2352, %v2385
      %v2387 = vpop.f32.mrf.mxu0
      %v2388 = vadd.f32 %v2352, %v2387
      %2389 = vmatmul.bf16.gmra.mxu0 %v2364
      %v2390 = vpop.f32.mrf.mxu0
      %v2391 = vadd.f32 %v2352, %v2390
      %v2392 = vpop.f32.mrf.mxu0
      %v2393 = vadd.f32 %v2352, %v2392
      %2394 = vdwg.mxu0
      %2395 = vst.msk [vmem:[#allocation6] sm:$0xff] %vm592, %v2376
      %2396 = vst.msk [vmem:[#allocation6 + $0x8] sm:$0xff] %vm592, %v2378
      %2397 = vst.msk [vmem:[#allocation6 + $0x10] sm:$0xff] %vm592, %v2381
      %2398 = vst.msk [vmem:[#allocation6 + $0x18] sm:$0xff] %vm592, %v2383
      %2399 = vst.msk [vmem:[#allocation6 + $0x20] sm:$0xff] %vm592, %v2386
      %2400 = vst.msk [vmem:[#allocation6 + $0x28] sm:$0xff] %vm592, %v2388
      %2401 = vst.msk [vmem:[#allocation6 + $0x30] sm:$0xff] %vm592, %v2391
      %2402 = vst.msk [vmem:[#allocation6 + $0x38] sm:$0xff] %vm592, %v2393
      %v2403 = vld [vmem:[%s6] sm:$0xff]
      %v2404 = vpack.c.bf16 %v2403, %v2403
      %v2405 = vld [vmem:[#allocation6] sm:$0xf]
      %vm2406 = vcmask 64512
      %v2407 = vsel %vm2406, 0, 0
      %vm2409 = vcmask 1043456
      %v2411 = vsel %vm2409, %v2404, 0
      %2413 = vmatpush.bf16.msra.mxu0 0
      %2414 = vmatpush.bf16.msra.mxu0 0
      %2415 = vmatpush.bf16.msra.mxu0 0
      %2416 = vmatpush.bf16.msra.mxu0 0
      %2417 = vmatpush.bf16.msra.mxu0 0
      %2418 = vmatpush.bf16.msra.mxu0 0
      %2419 = vmatpush.bf16.msra.mxu0 0
      %2420 = vmatpush.bf16.msra.mxu0 %v2411
      %2421 = vmatmul.bf16.gmra.mxu0 %v2407
      %v2422 = vpop.f32.mrf.mxu0
      %v2423 = vadd.f32 0.0, %v2422
      %v2424 = vpop.f32.mrf.mxu0
      %2425 = vdwg.mxu0
      %v2426 = vadd.f32 %v2405, %v2423
      %v2427 = vsub.f32 0.0, %v2426
      %v2428 = vmul.f32 %v2427, 1.442695
      %v2429 = vpow.pop %v2428
      %v2430 = vadd.f32 %v2429, 1.0
      %v2431 = vrcp.pop %v2430
      %v2432 = vtanh.pop %v2426
      %v2433 = vmul.f32 %v2431, 0.0
      %2435 = vrot.lane.b32.xlu0 %v2432, 104
      %v2436 = vpop.permute.xlu0 %2435
      %v2438 = vmul.f32 %v2431, %v2436
      %2440 = vrot.lane.b32.xlu0 %v2438, 8
      %v2441 = vpop.permute.xlu0 %2440
      %v2443 = vadd.f32 %v2433, %v2441
      %v2444 = vtanh.pop %v2443
      %2446 = vrot.lane.b32.xlu0 %v2444, 8
      %v2447 = vpop.permute.xlu0 %2446
      %v2449 = vmul.f32 %v2431, %v2447
      %2451 = vrot.lane.b32.xlu0 %v2449, 112
      %v2452 = vpop.permute.xlu0 %2451
      %vm2454 = vcmask 60416
      %2455 = vst.msk [vmem:[#allocation7] sm:$0xf] %vm2454, %v2452
      %s2456 = scalar_lea.vmem [#allocation6], 4
      %v2457 = vld [vmem:[%s2456] sm:$0xf]
      %v2458 = vpack.c.bf16 %v2449, %v2449
      %2460 = vrot.lane.b32.xlu0 %v2458, 112
      %v2461 = vpop.permute.xlu0 %2460
      %v2463 = vsel %vm2406, %v2461, 0
      %2465 = vmatpush.bf16.msra.mxu0 0
      %2466 = vmatpush.bf16.msra.mxu0 0
      %2467 = vmatpush.bf16.msra.mxu0 0
      %2468 = vmatpush.bf16.msra.mxu0 0
      %2469 = vmatpush.bf16.msra.mxu0 0
      %2470 = vmatpush.bf16.msra.mxu0 0
      %2471 = vmatpush.bf16.msra.mxu0 0
      %2472 = vmatpush.bf16.msra.mxu0 %v2411
      %2473 = vmatmul.bf16.gmra.mxu0 %v2463
      %v2474 = vpop.f32.mrf.mxu0
      %v2475 = vadd.f32 0.0, %v2474
      %v2476 = vpop.f32.mrf.mxu0
      %2477 = vdwg.mxu0
      %v2478 = vadd.f32 %v2457, %v2475
      %v2479 = vsub.f32 0.0, %v2478
      %v2480 = vmul.f32 %v2479, 1.442695
      %v2481 = vpow.pop %v2480
      %v2482 = vadd.f32 %v2481, 1.0
      %v2483 = vrcp.pop %v2482
      %v2484 = vtanh.pop %v2478
      %v2485 = vmul.f32 %v2483, %v2443
      %2487 = vrot.lane.b32.xlu0 %v2484, 104
      %v2488 = vpop.permute.xlu0 %2487
      %v2490 = vmul.f32 %v2483, %v2488
      %2492 = vrot.lane.b32.xlu0 %v2490, 8
      %v2493 = vpop.permute.xlu0 %2492
      %v2495 = vadd.f32 %v2485, %v2493
      %v2496 = vtanh.pop %v2495
      %2498 = vrot.lane.b32.xlu0 %v2496, 8
      %v2499 = vpop.permute.xlu0 %2498
      %v2501 = vmul.f32 %v2483, %v2499
      %2503 = vrot.lane.b32.xlu0 %v2501, 112
      %v2504 = vpop.permute.xlu0 %2503
      %s2506 = scalar_lea.vmem [#allocation7], 4
      %2507 = vst.msk [vmem:[%s2506] sm:$0xf] %vm2454, %v2504
      %s2508 = scalar_lea.vmem [#allocation6], 8
      %v2509 = vld [vmem:[%s2508] sm:$0xf]
      %v2510 = vpack.c.bf16 %v2501, %v2501
      %2512 = vrot.lane.b32.xlu0 %v2510, 112
      %v2513 = vpop.permute.xlu0 %2512
      %v2515 = vsel %vm2406, %v2513, 0
      %2517 = vmatpush.bf16.msra.mxu0 0
      %2518 = vmatpush.bf16.msra.mxu0 0
      %2519 = vmatpush.bf16.msra.mxu0 0
      %2520 = vmatpush.bf16.msra.mxu0 0
      %2521 = vmatpush.bf16.msra.mxu0 0
      %2522 = vmatpush.bf16.msra.mxu0 0
      %2523 = vmatpush.bf16.msra.mxu0 0
      %2524 = vmatpush.bf16.msra.mxu0 %v2411
      %2525 = vmatmul.bf16.gmra.mxu0 %v2515
      %v2526 = vpop.f32.mrf.mxu0
      %v2527 = vadd.f32 0.0, %v2526
      %v2528 = vpop.f32.mrf.mxu0
      %2529 = vdwg.mxu0
      %v2530 = vadd.f32 %v2509, %v2527
      %v2531 = vsub.f32 0.0, %v2530
      %v2532 = vmul.f32 %v2531, 1.442695
      %v2533 = vpow.pop %v2532
      %v2534 = vadd.f32 %v2533, 1.0
      %v2535 = vrcp.pop %v2534
      %v2536 = vtanh.pop %v2530
      %v2537 = vmul.f32 %v2535, %v2495
      %2539 = vrot.lane.b32.xlu0 %v2536, 104
      %v2540 = vpop.permute.xlu0 %2539
      %v2542 = vmul.f32 %v2535, %v2540
      %2544 = vrot.lane.b32.xlu0 %v2542, 8
      %v2545 = vpop.permute.xlu0 %2544
      %v2547 = vadd.f32 %v2537, %v2545
      %v2548 = vtanh.pop %v2547
      %2550 = vrot.lane.b32.xlu0 %v2548, 8
      %v2551 = vpop.permute.xlu0 %2550
      %v2553 = vmul.f32 %v2535, %v2551
      %2555 = vrot.lane.b32.xlu0 %v2553, 112
      %v2556 = vpop.permute.xlu0 %2555
      %s2558 = scalar_lea.vmem [#allocation7], 8
      %2559 = vst.msk [vmem:[%s2558] sm:$0xf] %vm2454, %v2556
      %s2560 = scalar_lea.vmem [#allocation6], 12
      %v2561 = vld [vmem:[%s2560] sm:$0xf]
      %v2562 = vpack.c.bf16 %v2553, %v2553
      %2564 = vrot.lane.b32.xlu0 %v2562, 112
      %v2565 = vpop.permute.xlu0 %2564
      %v2567 = vsel %vm2406, %v2565, 0
      %2569 = vmatpush.bf16.msra.mxu0 0
      %2570 = vmatpush.bf16.msra.mxu0 0
      %2571 = vmatpush.bf16.msra.mxu0 0
      %2572 = vmatpush.bf16.msra.mxu0 0
      %2573 = vmatpush.bf16.msra.mxu0 0
      %2574 = vmatpush.bf16.msra.mxu0 0
      %2575 = vmatpush.bf16.msra.mxu0 0
      %2576 = vmatpush.bf16.msra.mxu0 %v2411
      %2577 = vmatmul.bf16.gmra.mxu0 %v2567
      %v2578 = vpop.f32.mrf.mxu0
      %v2579 = vadd.f32 0.0, %v2578
      %v2580 = vpop.f32.mrf.mxu0
      %2581 = vdwg.mxu0
      %v2582 = vadd.f32 %v2561, %v2579
      %v2583 = vsub.f32 0.0, %v2582
      %v2584 = vmul.f32 %v2583, 1.442695
      %v2585 = vpow.pop %v2584
      %v2586 = vadd.f32 %v2585, 1.0
      %v2587 = vrcp.pop %v2586
      %v2588 = vtanh.pop %v2582
      %v2589 = vmul.f32 %v2587, %v2547
      %2591 = vrot.lane.b32.xlu0 %v2588, 104
      %v2592 = vpop.permute.xlu0 %2591
      %v2594 = vmul.f32 %v2587, %v2592
      %2596 = vrot.lane.b32.xlu0 %v2594, 8
      %v2597 = vpop.permute.xlu0 %2596
      %v2599 = vadd.f32 %v2589, %v2597
      %v2600 = vtanh.pop %v2599
      %2602 = vrot.lane.b32.xlu0 %v2600, 8
      %v2603 = vpop.permute.xlu0 %2602
      %v2605 = vmul.f32 %v2587, %v2603
      %2607 = vrot.lane.b32.xlu0 %v2605, 112
      %v2608 = vpop.permute.xlu0 %2607
      %s2610 = scalar_lea.vmem [#allocation7], 12
      %2611 = vst.msk [vmem:[%s2610] sm:$0xf] %vm2454, %v2608
      %s2612 = scalar_lea.vmem [#allocation6], 16
      %v2613 = vld [vmem:[%s2612] sm:$0xf]
      %v2614 = vpack.c.bf16 %v2605, %v2605
      %2616 = vrot.lane.b32.xlu0 %v2614, 112
      %v2617 = vpop.permute.xlu0 %2616
      %v2619 = vsel %vm2406, %v2617, 0
      %2621 = vmatpush.bf16.msra.mxu0 0
      %2622 = vmatpush.bf16.msra.mxu0 0
      %2623 = vmatpush.bf16.msra.mxu0 0
      %2624 = vmatpush.bf16.msra.mxu0 0
      %2625 = vmatpush.bf16.msra.mxu0 0
      %2626 = vmatpush.bf16.msra.mxu0 0
      %2627 = vmatpush.bf16.msra.mxu0 0
      %2628 = vmatpush.bf16.msra.mxu0 %v2411
      %2629 = vmatmul.bf16.gmra.mxu0 %v2619
      %v2630 = vpop.f32.mrf.mxu0
      %v2631 = vadd.f32 0.0, %v2630
      %v2632 = vpop.f32.mrf.mxu0
      %2633 = vdwg.mxu0
      %v2634 = vadd.f32 %v2613, %v2631
      %v2635 = vsub.f32 0.0, %v2634
      %v2636 = vmul.f32 %v2635, 1.442695
      %v2637 = vpow.pop %v2636
      %v2638 = vadd.f32 %v2637, 1.0
      %v2639 = vrcp.pop %v2638
      %v2640 = vtanh.pop %v2634
      %v2641 = vmul.f32 %v2639, %v2599
      %2643 = vrot.lane.b32.xlu0 %v2640, 104
      %v2644 = vpop.permute.xlu0 %2643
      %v2646 = vmul.f32 %v2639, %v2644
      %2648 = vrot.lane.b32.xlu0 %v2646, 8
      %v2649 = vpop.permute.xlu0 %2648
      %v2651 = vadd.f32 %v2641, %v2649
      %v2652 = vtanh.pop %v2651
      %2654 = vrot.lane.b32.xlu0 %v2652, 8
      %v2655 = vpop.permute.xlu0 %2654
      %v2657 = vmul.f32 %v2639, %v2655
      %2659 = vrot.lane.b32.xlu0 %v2657, 112
      %v2660 = vpop.permute.xlu0 %2659
      %s2662 = scalar_lea.vmem [#allocation7], 16
      %2663 = vst.msk [vmem:[%s2662] sm:$0xf] %vm2454, %v2660
      %s2664 = scalar_lea.vmem [#allocation6], 20
      %v2665 = vld [vmem:[%s2664] sm:$0xf]
      %v2666 = vpack.c.bf16 %v2657, %v2657
      %2668 = vrot.lane.b32.xlu0 %v2666, 112
      %v2669 = vpop.permute.xlu0 %2668
      %v2671 = vsel %vm2406, %v2669, 0
      %2673 = vmatpush.bf16.msra.mxu0 0
      %2674 = vmatpush.bf16.msra.mxu0 0
      %2675 = vmatpush.bf16.msra.mxu0 0
      %2676 = vmatpush.bf16.msra.mxu0 0
      %2677 = vmatpush.bf16.msra.mxu0 0
      %2678 = vmatpush.bf16.msra.mxu0 0
      %2679 = vmatpush.bf16.msra.mxu0 0
      %2680 = vmatpush.bf16.msra.mxu0 %v2411
      %2681 = vmatmul.bf16.gmra.mxu0 %v2671
      %v2682 = vpop.f32.mrf.mxu0
      %v2683 = vadd.f32 0.0, %v2682
      %v2684 = vpop.f32.mrf.mxu0
      %2685 = vdwg.mxu0
      %v2686 = vadd.f32 %v2665, %v2683
      %v2687 = vsub.f32 0.0, %v2686
      %v2688 = vmul.f32 %v2687, 1.442695
      %v2689 = vpow.pop %v2688
      %v2690 = vadd.f32 %v2689, 1.0
      %v2691 = vrcp.pop %v2690
      %v2692 = vtanh.pop %v2686
      %v2693 = vmul.f32 %v2691, %v2651
      %2695 = vrot.lane.b32.xlu0 %v2692, 104
      %v2696 = vpop.permute.xlu0 %2695
      %v2698 = vmul.f32 %v2691, %v2696
      %2700 = vrot.lane.b32.xlu0 %v2698, 8
      %v2701 = vpop.permute.xlu0 %2700
      %v2703 = vadd.f32 %v2693, %v2701
      %v2704 = vtanh.pop %v2703
      %2706 = vrot.lane.b32.xlu0 %v2704, 8
      %v2707 = vpop.permute.xlu0 %2706
      %v2709 = vmul.f32 %v2691, %v2707
      %2711 = vrot.lane.b32.xlu0 %v2709, 112
      %v2712 = vpop.permute.xlu0 %2711
      %s2714 = scalar_lea.vmem [#allocation7], 20
      %2715 = vst.msk [vmem:[%s2714] sm:$0xf] %vm2454, %v2712
      %s2716 = scalar_lea.vmem [#allocation6], 24
      %v2717 = vld [vmem:[%s2716] sm:$0xf]
      %v2718 = vpack.c.bf16 %v2709, %v2709
      %2720 = vrot.lane.b32.xlu0 %v2718, 112
      %v2721 = vpop.permute.xlu0 %2720
      %v2723 = vsel %vm2406, %v2721, 0
      %2725 = vmatpush.bf16.msra.mxu0 0
      %2726 = vmatpush.bf16.msra.mxu0 0
      %2727 = vmatpush.bf16.msra.mxu0 0
      %2728 = vmatpush.bf16.msra.mxu0 0
      %2729 = vmatpush.bf16.msra.mxu0 0
      %2730 = vmatpush.bf16.msra.mxu0 0
      %2731 = vmatpush.bf16.msra.mxu0 0
      %2732 = vmatpush.bf16.msra.mxu0 %v2411
      %2733 = vmatmul.bf16.gmra.mxu0 %v2723
      %v2734 = vpop.f32.mrf.mxu0
      %v2735 = vadd.f32 0.0, %v2734
      %v2736 = vpop.f32.mrf.mxu0
      %2737 = vdwg.mxu0
      %v2738 = vadd.f32 %v2717, %v2735
      %v2739 = vsub.f32 0.0, %v2738
      %v2740 = vmul.f32 %v2739, 1.442695
      %v2741 = vpow.pop %v2740
      %v2742 = vadd.f32 %v2741, 1.0
      %v2743 = vrcp.pop %v2742
      %v2744 = vtanh.pop %v2738
      %v2745 = vmul.f32 %v2743, %v2703
      %2747 = vrot.lane.b32.xlu0 %v2744, 104
      %v2748 = vpop.permute.xlu0 %2747
      %v2750 = vmul.f32 %v2743, %v2748
      %2752 = vrot.lane.b32.xlu0 %v2750, 8
      %v2753 = vpop.permute.xlu0 %2752
      %v2755 = vadd.f32 %v2745, %v2753
      %v2756 = vtanh.pop %v2755
      %2758 = vrot.lane.b32.xlu0 %v2756, 8
      %v2759 = vpop.permute.xlu0 %2758
      %v2761 = vmul.f32 %v2743, %v2759
      %2763 = vrot.lane.b32.xlu0 %v2761, 112
      %v2764 = vpop.permute.xlu0 %2763
      %s2766 = scalar_lea.vmem [#allocation7], 24
      %2767 = vst.msk [vmem:[%s2766] sm:$0xf] %vm2454, %v2764
      %s2768 = scalar_lea.vmem [#allocation6], 28
      %v2769 = vld [vmem:[%s2768] sm:$0xf]
      %v2770 = vpack.c.bf16 %v2761, %v2761
      %2772 = vrot.lane.b32.xlu0 %v2770, 112
      %v2773 = vpop.permute.xlu0 %2772
      %v2775 = vsel %vm2406, %v2773, 0
      %2777 = vmatpush.bf16.msra.mxu0 0
      %2778 = vmatpush.bf16.msra.mxu0 0
      %2779 = vmatpush.bf16.msra.mxu0 0
      %2780 = vmatpush.bf16.msra.mxu0 0
      %2781 = vmatpush.bf16.msra.mxu0 0
      %2782 = vmatpush.bf16.msra.mxu0 0
      %2783 = vmatpush.bf16.msra.mxu0 0
      %2784 = vmatpush.bf16.msra.mxu0 %v2411
      %2785 = vmatmul.bf16.gmra.mxu0 %v2775
      %v2786 = vpop.f32.mrf.mxu0
      %v2787 = vadd.f32 0.0, %v2786
      %v2788 = vpop.f32.mrf.mxu0
      %2789 = vdwg.mxu0
      %v2790 = vadd.f32 %v2769, %v2787
      %v2791 = vsub.f32 0.0, %v2790
      %v2792 = vmul.f32 %v2791, 1.442695
      %v2793 = vpow.pop %v2792
      %v2794 = vadd.f32 %v2793, 1.0
      %v2795 = vrcp.pop %v2794
      %v2796 = vtanh.pop %v2790
      %v2797 = vmul.f32 %v2795, %v2755
      %2799 = vrot.lane.b32.xlu0 %v2796, 104
      %v2800 = vpop.permute.xlu0 %2799
      %v2802 = vmul.f32 %v2795, %v2800
      %2804 = vrot.lane.b32.xlu0 %v2802, 8
      %v2805 = vpop.permute.xlu0 %2804
      %v2807 = vadd.f32 %v2797, %v2805
      %v2808 = vtanh.pop %v2807
      %2810 = vrot.lane.b32.xlu0 %v2808, 8
      %v2811 = vpop.permute.xlu0 %2810
      %v2813 = vmul.f32 %v2795, %v2811
      %2815 = vrot.lane.b32.xlu0 %v2813, 112
      %v2816 = vpop.permute.xlu0 %2815
      %s2818 = scalar_lea.vmem [#allocation7], 28
      %2819 = vst.msk [vmem:[%s2818] sm:$0xf] %vm2454, %v2816
      %s2820 = scalar_lea.vmem [#allocation6], 32
      %v2821 = vld [vmem:[%s2820] sm:$0xf]
      %v2822 = vpack.c.bf16 %v2813, %v2813
      %2824 = vrot.lane.b32.xlu0 %v2822, 112
      %v2825 = vpop.permute.xlu0 %2824
      %v2827 = vsel %vm2406, %v2825, 0
      %2829 = vmatpush.bf16.msra.mxu0 0
      %2830 = vmatpush.bf16.msra.mxu0 0
      %2831 = vmatpush.bf16.msra.mxu0 0
      %2832 = vmatpush.bf16.msra.mxu0 0
      %2833 = vmatpush.bf16.msra.mxu0 0
      %2834 = vmatpush.bf16.msra.mxu0 0
      %2835 = vmatpush.bf16.msra.mxu0 0
      %2836 = vmatpush.bf16.msra.mxu0 %v2411
      %2837 = vmatmul.bf16.gmra.mxu0 %v2827
      %v2838 = vpop.f32.mrf.mxu0
      %v2839 = vadd.f32 0.0, %v2838
      %v2840 = vpop.f32.mrf.mxu0
      %2841 = vdwg.mxu0
      %v2842 = vadd.f32 %v2821, %v2839
      %v2843 = vsub.f32 0.0, %v2842
      %v2844 = vmul.f32 %v2843, 1.442695
      %v2845 = vpow.pop %v2844
      %v2846 = vadd.f32 %v2845, 1.0
      %v2847 = vrcp.pop %v2846
      %v2848 = vtanh.pop %v2842
      %v2849 = vmul.f32 %v2847, %v2807
      %2851 = vrot.lane.b32.xlu0 %v2848, 104
      %v2852 = vpop.permute.xlu0 %2851
      %v2854 = vmul.f32 %v2847, %v2852
      %2856 = vrot.lane.b32.xlu0 %v2854, 8
      %v2857 = vpop.permute.xlu0 %2856
      %v2859 = vadd.f32 %v2849, %v2857
      %v2860 = vtanh.pop %v2859
      %2862 = vrot.lane.b32.xlu0 %v2860, 8
      %v2863 = vpop.permute.xlu0 %2862
      %v2865 = vmul.f32 %v2847, %v2863
      %2867 = vrot.lane.b32.xlu0 %v2865, 112
      %v2868 = vpop.permute.xlu0 %2867
      %s2870 = scalar_lea.vmem [#allocation7], 32
      %2871 = vst.msk [vmem:[%s2870] sm:$0xf] %vm2454, %v2868
      %s2872 = scalar_lea.vmem [#allocation6], 36
      %v2873 = vld [vmem:[%s2872] sm:$0xf]
      %v2874 = vpack.c.bf16 %v2865, %v2865
      %2876 = vrot.lane.b32.xlu0 %v2874, 112
      %v2877 = vpop.permute.xlu0 %2876
      %v2879 = vsel %vm2406, %v2877, 0
      %2881 = vmatpush.bf16.msra.mxu0 0
      %2882 = vmatpush.bf16.msra.mxu0 0
      %2883 = vmatpush.bf16.msra.mxu0 0
      %2884 = vmatpush.bf16.msra.mxu0 0
      %2885 = vmatpush.bf16.msra.mxu0 0
      %2886 = vmatpush.bf16.msra.mxu0 0
      %2887 = vmatpush.bf16.msra.mxu0 0
      %2888 = vmatpush.bf16.msra.mxu0 %v2411
      %2889 = vmatmul.bf16.gmra.mxu0 %v2879
      %v2890 = vpop.f32.mrf.mxu0
      %v2891 = vadd.f32 0.0, %v2890
      %v2892 = vpop.f32.mrf.mxu0
      %2893 = vdwg.mxu0
      %v2894 = vadd.f32 %v2873, %v2891
      %v2895 = vsub.f32 0.0, %v2894
      %v2896 = vmul.f32 %v2895, 1.442695
      %v2897 = vpow.pop %v2896
      %v2898 = vadd.f32 %v2897, 1.0
      %v2899 = vrcp.pop %v2898
      %v2900 = vtanh.pop %v2894
      %v2901 = vmul.f32 %v2899, %v2859
      %2903 = vrot.lane.b32.xlu0 %v2900, 104
      %v2904 = vpop.permute.xlu0 %2903
      %v2906 = vmul.f32 %v2899, %v2904
      %2908 = vrot.lane.b32.xlu0 %v2906, 8
      %v2909 = vpop.permute.xlu0 %2908
      %v2911 = vadd.f32 %v2901, %v2909
      %v2912 = vtanh.pop %v2911
      %2914 = vrot.lane.b32.xlu0 %v2912, 8
      %v2915 = vpop.permute.xlu0 %2914
      %v2917 = vmul.f32 %v2899, %v2915
      %2919 = vrot.lane.b32.xlu0 %v2917, 112
      %v2920 = vpop.permute.xlu0 %2919
      %s2922 = scalar_lea.vmem [#allocation7], 36
      %2923 = vst.msk [vmem:[%s2922] sm:$0xf] %vm2454, %v2920
      %s2924 = scalar_lea.vmem [#allocation6], 40
      %v2925 = vld [vmem:[%s2924] sm:$0xf]
      %v2926 = vpack.c.bf16 %v2917, %v2917
      %2928 = vrot.lane.b32.xlu0 %v2926, 112
      %v2929 = vpop.permute.xlu0 %2928
      %v2931 = vsel %vm2406, %v2929, 0
      %2933 = vmatpush.bf16.msra.mxu0 0
      %2934 = vmatpush.bf16.msra.mxu0 0
      %2935 = vmatpush.bf16.msra.mxu0 0
      %2936 = vmatpush.bf16.msra.mxu0 0
      %2937 = vmatpush.bf16.msra.mxu0 0
      %2938 = vmatpush.bf16.msra.mxu0 0
      %2939 = vmatpush.bf16.msra.mxu0 0
      %2940 = vmatpush.bf16.msra.mxu0 %v2411
      %2941 = vmatmul.bf16.gmra.mxu0 %v2931
      %v2942 = vpop.f32.mrf.mxu0
      %v2943 = vadd.f32 0.0, %v2942
      %v2944 = vpop.f32.mrf.mxu0
      %2945 = vdwg.mxu0
      %v2946 = vadd.f32 %v2925, %v2943
      %v2947 = vsub.f32 0.0, %v2946
      %v2948 = vmul.f32 %v2947, 1.442695
      %v2949 = vpow.pop %v2948
      %v2950 = vadd.f32 %v2949, 1.0
      %v2951 = vrcp.pop %v2950
      %v2952 = vtanh.pop %v2946
      %v2953 = vmul.f32 %v2951, %v2911
      %2955 = vrot.lane.b32.xlu0 %v2952, 104
      %v2956 = vpop.permute.xlu0 %2955
      %v2958 = vmul.f32 %v2951, %v2956
      %2960 = vrot.lane.b32.xlu0 %v2958, 8
      %v2961 = vpop.permute.xlu0 %2960
      %v2963 = vadd.f32 %v2953, %v2961
      %v2964 = vtanh.pop %v2963
      %2966 = vrot.lane.b32.xlu0 %v2964, 8
      %v2967 = vpop.permute.xlu0 %2966
      %v2969 = vmul.f32 %v2951, %v2967
      %2971 = vrot.lane.b32.xlu0 %v2969, 112
      %v2972 = vpop.permute.xlu0 %2971
      %s2974 = scalar_lea.vmem [#allocation7], 40
      %2975 = vst.msk [vmem:[%s2974] sm:$0xf] %vm2454, %v2972
      %s2976 = scalar_lea.vmem [#allocation6], 44
      %v2977 = vld [vmem:[%s2976] sm:$0xf]
      %v2978 = vpack.c.bf16 %v2969, %v2969
      %2980 = vrot.lane.b32.xlu0 %v2978, 112
      %v2981 = vpop.permute.xlu0 %2980
      %v2983 = vsel %vm2406, %v2981, 0
      %2985 = vmatpush.bf16.msra.mxu0 0
      %2986 = vmatpush.bf16.msra.mxu0 0
      %2987 = vmatpush.bf16.msra.mxu0 0
      %2988 = vmatpush.bf16.msra.mxu0 0
      %2989 = vmatpush.bf16.msra.mxu0 0
      %2990 = vmatpush.bf16.msra.mxu0 0
      %2991 = vmatpush.bf16.msra.mxu0 0
      %2992 = vmatpush.bf16.msra.mxu0 %v2411
      %2993 = vmatmul.bf16.gmra.mxu0 %v2983
      %v2994 = vpop.f32.mrf.mxu0
      %v2995 = vadd.f32 0.0, %v2994
      %v2996 = vpop.f32.mrf.mxu0
      %2997 = vdwg.mxu0
      %v2998 = vadd.f32 %v2977, %v2995
      %v2999 = vsub.f32 0.0, %v2998
      %v3000 = vmul.f32 %v2999, 1.442695
      %v3001 = vpow.pop %v3000
      %v3002 = vadd.f32 %v3001, 1.0
      %v3003 = vrcp.pop %v3002
      %v3004 = vtanh.pop %v2998
      %v3005 = vmul.f32 %v3003, %v2963
      %3007 = vrot.lane.b32.xlu0 %v3004, 104
      %v3008 = vpop.permute.xlu0 %3007
      %v3010 = vmul.f32 %v3003, %v3008
      %3012 = vrot.lane.b32.xlu0 %v3010, 8
      %v3013 = vpop.permute.xlu0 %3012
      %v3015 = vadd.f32 %v3005, %v3013
      %v3016 = vtanh.pop %v3015
      %3018 = vrot.lane.b32.xlu0 %v3016, 8
      %v3019 = vpop.permute.xlu0 %3018
      %v3021 = vmul.f32 %v3003, %v3019
      %3023 = vrot.lane.b32.xlu0 %v3021, 112
      %v3024 = vpop.permute.xlu0 %3023
      %s3026 = scalar_lea.vmem [#allocation7], 44
      %3027 = vst.msk [vmem:[%s3026] sm:$0xf] %vm2454, %v3024
      %s3028 = scalar_lea.vmem [#allocation6], 48
      %v3029 = vld [vmem:[%s3028] sm:$0xf]
      %v3030 = vpack.c.bf16 %v3021, %v3021
      %3032 = vrot.lane.b32.xlu0 %v3030, 112
      %v3033 = vpop.permute.xlu0 %3032
      %v3035 = vsel %vm2406, %v3033, 0
      %3037 = vmatpush.bf16.msra.mxu0 0
      %3038 = vmatpush.bf16.msra.mxu0 0
      %3039 = vmatpush.bf16.msra.mxu0 0
      %3040 = vmatpush.bf16.msra.mxu0 0
      %3041 = vmatpush.bf16.msra.mxu0 0
      %3042 = vmatpush.bf16.msra.mxu0 0
      %3043 = vmatpush.bf16.msra.mxu0 0
      %3044 = vmatpush.bf16.msra.mxu0 %v2411
      %3045 = vmatmul.bf16.gmra.mxu0 %v3035
      %v3046 = vpop.f32.mrf.mxu0
      %v3047 = vadd.f32 0.0, %v3046
      %v3048 = vpop.f32.mrf.mxu0
      %3049 = vdwg.mxu0
      %v3050 = vadd.f32 %v3029, %v3047
      %v3051 = vsub.f32 0.0, %v3050
      %v3052 = vmul.f32 %v3051, 1.442695
      %v3053 = vpow.pop %v3052
      %v3054 = vadd.f32 %v3053, 1.0
      %v3055 = vrcp.pop %v3054
      %v3056 = vtanh.pop %v3050
      %v3057 = vmul.f32 %v3055, %v3015
      %3059 = vrot.lane.b32.xlu0 %v3056, 104
      %v3060 = vpop.permute.xlu0 %3059
      %v3062 = vmul.f32 %v3055, %v3060
      %3064 = vrot.lane.b32.xlu0 %v3062, 8
      %v3065 = vpop.permute.xlu0 %3064
      %v3067 = vadd.f32 %v3057, %v3065
      %v3068 = vtanh.pop %v3067
      %3070 = vrot.lane.b32.xlu0 %v3068, 8
      %v3071 = vpop.permute.xlu0 %3070
      %v3073 = vmul.f32 %v3055, %v3071
      %3075 = vrot.lane.b32.xlu0 %v3073, 112
      %v3076 = vpop.permute.xlu0 %3075
      %s3078 = scalar_lea.vmem [#allocation7], 48
      %3079 = vst.msk [vmem:[%s3078] sm:$0xf] %vm2454, %v3076
      %s3080 = scalar_lea.vmem [#allocation6], 52
      %v3081 = vld [vmem:[%s3080] sm:$0xf]
      %v3082 = vpack.c.bf16 %v3073, %v3073
      %3084 = vrot.lane.b32.xlu0 %v3082, 112
      %v3085 = vpop.permute.xlu0 %3084
      %v3087 = vsel %vm2406, %v3085, 0
      %3089 = vmatpush.bf16.msra.mxu0 0
      %3090 = vmatpush.bf16.msra.mxu0 0
      %3091 = vmatpush.bf16.msra.mxu0 0
      %3092 = vmatpush.bf16.msra.mxu0 0
      %3093 = vmatpush.bf16.msra.mxu0 0
      %3094 = vmatpush.bf16.msra.mxu0 0
      %3095 = vmatpush.bf16.msra.mxu0 0
      %3096 = vmatpush.bf16.msra.mxu0 %v2411
      %3097 = vmatmul.bf16.gmra.mxu0 %v3087
      %v3098 = vpop.f32.mrf.mxu0
      %v3099 = vadd.f32 0.0, %v3098
      %v3100 = vpop.f32.mrf.mxu0
      %3101 = vdwg.mxu0
      %v3102 = vadd.f32 %v3081, %v3099
      %v3103 = vsub.f32 0.0, %v3102
      %v3104 = vmul.f32 %v3103, 1.442695
      %v3105 = vpow.pop %v3104
      %v3106 = vadd.f32 %v3105, 1.0
      %v3107 = vrcp.pop %v3106
      %v3108 = vtanh.pop %v3102
      %v3109 = vmul.f32 %v3107, %v3067
      %3111 = vrot.lane.b32.xlu0 %v3108, 104
      %v3112 = vpop.permute.xlu0 %3111
      %v3114 = vmul.f32 %v3107, %v3112
      %3116 = vrot.lane.b32.xlu0 %v3114, 8
      %v3117 = vpop.permute.xlu0 %3116
      %v3119 = vadd.f32 %v3109, %v3117
      %v3120 = vtanh.pop %v3119
      %3122 = vrot.lane.b32.xlu0 %v3120, 8
      %v3123 = vpop.permute.xlu0 %3122
      %v3125 = vmul.f32 %v3107, %v3123
      %3127 = vrot.lane.b32.xlu0 %v3125, 112
      %v3128 = vpop.permute.xlu0 %3127
      %s3130 = scalar_lea.vmem [#allocation7], 52
      %3131 = vst.msk [vmem:[%s3130] sm:$0xf] %vm2454, %v3128
      %s3132 = scalar_lea.vmem [#allocation6], 56
      %v3133 = vld [vmem:[%s3132] sm:$0xf]
      %v3134 = vpack.c.bf16 %v3125, %v3125
      %3136 = vrot.lane.b32.xlu0 %v3134, 112
      %v3137 = vpop.permute.xlu0 %3136
      %v3139 = vsel %vm2406, %v3137, 0
      %3141 = vmatpush.bf16.msra.mxu0 0
      %3142 = vmatpush.bf16.msra.mxu0 0
      %3143 = vmatpush.bf16.msra.mxu0 0
      %3144 = vmatpush.bf16.msra.mxu0 0
      %3145 = vmatpush.bf16.msra.mxu0 0
      %3146 = vmatpush.bf16.msra.mxu0 0
      %3147 = vmatpush.bf16.msra.mxu0 0
      %3148 = vmatpush.bf16.msra.mxu0 %v2411
      %3149 = vmatmul.bf16.gmra.mxu0 %v3139
      %v3150 = vpop.f32.mrf.mxu0
      %v3151 = vadd.f32 0.0, %v3150
      %v3152 = vpop.f32.mrf.mxu0
      %3153 = vdwg.mxu0
      %v3154 = vadd.f32 %v3133, %v3151
      %v3155 = vsub.f32 0.0, %v3154
      %v3156 = vmul.f32 %v3155, 1.442695
      %v3157 = vpow.pop %v3156
      %v3158 = vadd.f32 %v3157, 1.0
      %v3159 = vrcp.pop %v3158
      %v3160 = vtanh.pop %v3154
      %v3161 = vmul.f32 %v3159, %v3119
      %3163 = vrot.lane.b32.xlu0 %v3160, 104
      %v3164 = vpop.permute.xlu0 %3163
      %v3166 = vmul.f32 %v3159, %v3164
      %3168 = vrot.lane.b32.xlu0 %v3166, 8
      %v3169 = vpop.permute.xlu0 %3168
      %v3171 = vadd.f32 %v3161, %v3169
      %v3172 = vtanh.pop %v3171
      %3174 = vrot.lane.b32.xlu0 %v3172, 8
      %v3175 = vpop.permute.xlu0 %3174
      %v3177 = vmul.f32 %v3159, %v3175
      %3179 = vrot.lane.b32.xlu0 %v3177, 112
      %v3180 = vpop.permute.xlu0 %3179
      %s3182 = scalar_lea.vmem [#allocation7], 56
      %3183 = vst.msk [vmem:[%s3182] sm:$0xf] %vm2454, %v3180
      %s3184 = scalar_lea.vmem [#allocation6], 60
      %v3185 = vld [vmem:[%s3184] sm:$0xf]
      %v3186 = vpack.c.bf16 %v3177, %v3177
      %3188 = vrot.lane.b32.xlu0 %v3186, 112
      %v3189 = vpop.permute.xlu0 %3188
      %v3191 = vsel %vm2406, %v3189, 0
      %3193 = vmatpush.bf16.msra.mxu0 0
      %3194 = vmatpush.bf16.msra.mxu0 0
      %3195 = vmatpush.bf16.msra.mxu0 0
      %3196 = vmatpush.bf16.msra.mxu0 0
      %3197 = vmatpush.bf16.msra.mxu0 0
      %3198 = vmatpush.bf16.msra.mxu0 0
      %3199 = vmatpush.bf16.msra.mxu0 0
      %3200 = vmatpush.bf16.msra.mxu0 %v2411
      %3201 = vmatmul.bf16.gmra.mxu0 %v3191
      %v3202 = vpop.f32.mrf.mxu0
      %v3203 = vadd.f32 0.0, %v3202
      %v3204 = vpop.f32.mrf.mxu0
      %3205 = vdwg.mxu0
      %v3206 = vadd.f32 %v3185, %v3203
      %v3207 = vsub.f32 0.0, %v3206
      %v3208 = vmul.f32 %v3207, 1.442695
      %v3209 = vpow.pop %v3208
      %v3210 = vadd.f32 %v3209, 1.0
      %v3211 = vrcp.pop %v3210
      %v3212 = vtanh.pop %v3206
      %v3213 = vmul.f32 %v3211, %v3171
      %3215 = vrot.lane.b32.xlu0 %v3212, 104
      %v3216 = vpop.permute.xlu0 %3215
      %v3218 = vmul.f32 %v3211, %v3216
      %3220 = vrot.lane.b32.xlu0 %v3218, 8
      %v3221 = vpop.permute.xlu0 %3220
      %v3223 = vadd.f32 %v3213, %v3221
      %v3224 = vtanh.pop %v3223
      %3226 = vrot.lane.b32.xlu0 %v3224, 8
      %v3227 = vpop.permute.xlu0 %3226
      %v3229 = vmul.f32 %v3211, %v3227
      %3231 = vrot.lane.b32.xlu0 %v3229, 112
      %v3232 = vpop.permute.xlu0 %3231
      %s3234 = scalar_lea.vmem [#allocation7], 60
      %3235 = vst.msk [vmem:[%s3234] sm:$0xf] %vm2454, %v3232
      %v3236 = vld [vmem:[#allocation7] sm:$0xff]
      %v3237 = vld [vmem:[#allocation7 + $0x8] sm:$0xff]
      %v3238 = vld [vmem:[#allocation7 + $0x10] sm:$0xff]
      %v3239 = vld [vmem:[#allocation7 + $0x18] sm:$0xff]
      %v3240 = vld [vmem:[#allocation7 + $0x20] sm:$0xff]
      %v3241 = vld [vmem:[#allocation7 + $0x28] sm:$0xff]
      %v3242 = vld [vmem:[#allocation7 + $0x30] sm:$0xff]
      %v3243 = vld [vmem:[#allocation7 + $0x38] sm:$0xff]
      %v3244 = vld [vmem:[%s12] sm:$0xff]
      %v3245 = vld [vmem:[%s12 + $0x8] sm:$0xff]
      %v3246 = vld [vmem:[%s12 + $0x10] sm:$0xff]
      %v3247 = vld [vmem:[%s12 + $0x18] sm:$0xff]
      %v3248 = vpack.c.bf16 %v3245, %v3244
      %v3249 = vpack.c.bf16 %v3247, %v3246
      %v3250 = vpack.c.bf16 %v3237, %v3236
      %v3251 = vpack.c.bf16 %v3239, %v3238
      %v3252 = vpack.c.bf16 %v3241, %v3240
      %v3253 = vpack.c.bf16 %v3243, %v3242
      %v3255 = vsel %vm2406, %v3250, 0
      %v3258 = vsel %vm2406, %v3251, 0
      %v3261 = vsel %vm2406, %v3252, 0
      %v3264 = vsel %vm2406, %v3253, 0
      %v3267 = vsel %vm2406, %v3248, 0
      %v3270 = vsel %vm2406, %v3249, 0
      %3272 = vmatpush.bf16.xpose.msra.mxu0 0
      %3273 = vmatpush.bf16.xpose.msra.mxu0 0
      %3274 = vmatpush.bf16.xpose.msra.mxu0 0
      %3275 = vmatpush.bf16.xpose.msra.mxu0 0
      %3276 = vmatpush.bf16.xpose.msra.mxu0 0
      %3277 = vmatpush.bf16.xpose.msra.mxu0 0
      %3278 = vmatpush.bf16.xpose.msra.mxu0 %v3270
      %3279 = vmatpush.bf16.xpose.msra.mxu0 %v3267
      %3280 = vmatmul.bf16.gmra.mxu0 %v3255
      %v3281 = vpop.f32.mrf.mxu0
      %v3282 = vadd.f32 0.0, %v3281
      %v3283 = vpop.f32.mrf.mxu0
      %v3284 = vadd.f32 0.0, %v3283
      %3285 = vmatmul.bf16.gmra.mxu0 %v3258
      %v3286 = vpop.f32.mrf.mxu0
      %v3287 = vadd.f32 0.0, %v3286
      %v3288 = vpop.f32.mrf.mxu0
      %v3289 = vadd.f32 0.0, %v3288
      %3290 = vmatmul.bf16.gmra.mxu0 %v3261
      %v3291 = vpop.f32.mrf.mxu0
      %v3292 = vadd.f32 0.0, %v3291
      %v3293 = vpop.f32.mrf.mxu0
      %v3294 = vadd.f32 0.0, %v3293
      %3295 = vmatmul.bf16.gmra.mxu0 %v3264
      %v3296 = vpop.f32.mrf.mxu0
      %v3297 = vadd.f32 0.0, %v3296
      %v3298 = vpop.f32.mrf.mxu0
      %v3299 = vadd.f32 0.0, %v3298
      %3300 = vdwg.mxu0
      %v3301 = vsel %vm592, %v3282, -inf
      %3302 = vmax.xlane.f32.xlu0 %v3301
      %v3303 = vpop.xlane.xlu0 %3302
      %v3304 = vsel %vm592, %v3284, -inf
      %3305 = vmax.xlane.f32.xlu0 %v3304
      %v3306 = vpop.xlane.xlu0 %3305
      %v3307 = vsel %vm592, %v3287, -inf
      %3308 = vmax.xlane.f32.xlu0 %v3307
      %v3309 = vpop.xlane.xlu0 %3308
      %v3310 = vsel %vm592, %v3289, -inf
      %3311 = vmax.xlane.f32.xlu0 %v3310
      %v3312 = vpop.xlane.xlu0 %3311
      %v3313 = vsel %vm592, %v3292, -inf
      %3314 = vmax.xlane.f32.xlu0 %v3313
      %v3315 = vpop.xlane.xlu0 %3314
      %v3316 = vsel %vm592, %v3294, -inf
      %3317 = vmax.xlane.f32.xlu0 %v3316
      %v3318 = vpop.xlane.xlu0 %3317
      %v3319 = vsel %vm592, %v3297, -inf
      %3320 = vmax.xlane.f32.xlu0 %v3319
      %v3321 = vpop.xlane.xlu0 %3320
      %v3322 = vsel %vm592, %v3299, -inf
      %3323 = vmax.xlane.f32.xlu0 %v3322
      %v3324 = vpop.xlane.xlu0 %3323
      %v3325 = vsub.f32 %v3282, %v3303
      %v3326 = vsub.f32 %v3284, %v3306
      %v3327 = vsub.f32 %v3287, %v3309
      %v3328 = vsub.f32 %v3289, %v3312
      %v3329 = vsub.f32 %v3292, %v3315
      %v3330 = vsub.f32 %v3294, %v3318
      %v3331 = vsub.f32 %v3297, %v3321
      %v3332 = vsub.f32 %v3299, %v3324
      %v3333 = vmul.f32 %v3325, 1.442695
      %v3334 = vpow.pop %v3333
      %v3335 = vmul.f32 %v3326, 1.442695
      %v3336 = vpow.pop %v3335
      %v3337 = vmul.f32 %v3327, 1.442695
      %v3338 = vpow.pop %v3337
      %v3339 = vmul.f32 %v3328, 1.442695
      %v3340 = vpow.pop %v3339
      %v3341 = vmul.f32 %v3329, 1.442695
      %v3342 = vpow.pop %v3341
      %v3343 = vmul.f32 %v3330, 1.442695
      %v3344 = vpow.pop %v3343
      %v3345 = vmul.f32 %v3331, 1.442695
      %v3346 = vpow.pop %v3345
      %v3347 = vmul.f32 %v3332, 1.442695
      %v3348 = vpow.pop %v3347
      %v3349 = vsel %vm592, %v3334, 0.0
      %3350 = vadd.xlane.f32.xlu0 %v3349
      %v3351 = vpop.xlane.xlu0 %3350
      %v3352 = vsel %vm592, %v3336, 0.0
      %3353 = vadd.xlane.f32.xlu0 %v3352
      %v3354 = vpop.xlane.xlu0 %3353
      %v3355 = vsel %vm592, %v3338, 0.0
      %3356 = vadd.xlane.f32.xlu0 %v3355
      %v3357 = vpop.xlane.xlu0 %3356
      %v3358 = vsel %vm592, %v3340, 0.0
      %3359 = vadd.xlane.f32.xlu0 %v3358
      %v3360 = vpop.xlane.xlu0 %3359
      %v3361 = vsel %vm592, %v3342, 0.0
      %3362 = vadd.xlane.f32.xlu0 %v3361
      %v3363 = vpop.xlane.xlu0 %3362
      %v3364 = vsel %vm592, %v3344, 0.0
      %3365 = vadd.xlane.f32.xlu0 %v3364
      %v3366 = vpop.xlane.xlu0 %3365
      %v3367 = vsel %vm592, %v3346, 0.0
      %3368 = vadd.xlane.f32.xlu0 %v3367
      %v3369 = vpop.xlane.xlu0 %3368
      %v3370 = vsel %vm592, %v3348, 0.0
      %3371 = vadd.xlane.f32.xlu0 %v3370
      %v3372 = vpop.xlane.xlu0 %3371
      %v3373 = vrcp.pop %v3351
      %v3374 = vrcp.pop %v3354
      %v3375 = vrcp.pop %v3357
      %v3376 = vrcp.pop %v3360
      %v3377 = vrcp.pop %v3363
      %v3378 = vrcp.pop %v3366
      %v3379 = vrcp.pop %v3369
      %v3380 = vrcp.pop %v3372
      %v3381 = vmul.f32 %v3334, %v3373
      %v3382 = vmul.f32 %v3336, %v3374
      %v3383 = vmul.f32 %v3338, %v3375
      %v3384 = vmul.f32 %v3340, %v3376
      %v3385 = vmul.f32 %v3342, %v3377
      %v3386 = vmul.f32 %v3344, %v3378
      %v3387 = vmul.f32 %v3346, %v3379
      %v3388 = vmul.f32 %v3348, %v3380
      %v3389 = vsub.f32 %v3381, 0.0025
      %v3390 = vsub.f32 %v3382, 0.0025
      %v3391 = vsub.f32 %v3383, 0.0025
      %v3392 = vsub.f32 %v3384, 0.0025
      %v3393 = vsub.f32 %v3385, 0.0025
      %v3394 = vsub.f32 %v3386, 0.0025
      %v3395 = vsub.f32 %v3387, 0.0025
      %v3396 = vsub.f32 %v3388, 0.0025
      %v3397 = vmax.f32 %v3389, 0.0
      %v3398 = vmax.f32 %v3390, 0.0
      %v3399 = vmax.f32 %v3391, 0.0
      %v3400 = vmax.f32 %v3392, 0.0
      %v3401 = vmax.f32 %v3393, 0.0
      %v3402 = vmax.f32 %v3394, 0.0
      %v3403 = vmax.f32 %v3395, 0.0
      %v3404 = vmax.f32 %v3396, 0.0
      %v3405 = vmul.f32 %v3397, %v3381
      %v3406 = vmul.f32 %v3398, %v3382
      %v3407 = vmul.f32 %v3399, %v3383
      %v3408 = vmul.f32 %v3400, %v3384
      %v3409 = vmul.f32 %v3401, %v3385
      %v3410 = vmul.f32 %v3402, %v3386
      %v3411 = vmul.f32 %v3403, %v3387
      %v3412 = vmul.f32 %v3404, %v3388
      %v3413 = vand.u32 2147483647, %v3389
      %v3414 = vand.u32 2147483647, %v3390
      %v3415 = vand.u32 2147483647, %v3391
      %v3416 = vand.u32 2147483647, %v3392
      %v3417 = vand.u32 2147483647, %v3393
      %v3418 = vand.u32 2147483647, %v3394
      %v3419 = vand.u32 2147483647, %v3395
      %v3420 = vand.u32 2147483647, %v3396
      %v3421 = vadd.f32 %v3413, 1e-12
      %v3422 = vadd.f32 %v3414, 1e-12
      %v3423 = vadd.f32 %v3415, 1e-12
      %v3424 = vadd.f32 %v3416, 1e-12
      %v3425 = vadd.f32 %v3417, 1e-12
      %v3426 = vadd.f32 %v3418, 1e-12
      %v3427 = vadd.f32 %v3419, 1e-12
      %v3428 = vadd.f32 %v3420, 1e-12
      %v3429 = vrcp.pop %v3421
      %v3430 = vmul.f32 %v3421, %v3429
      %v3431 = vsub.f32 1.0, %v3430
      %v3432 = vmul.f32 %v3429, %v3431
      %v3433 = vadd.f32 %v3429, %v3432
      %vm3434 = vweird.f32 %v3421
      %vm3435 = vweird.f32 %v3429
      %vm3436 = vmor %vm3434, %vm3435
      %v3437 = vsel %vm3436, %v3429, %v3433
      %v3438 = vand.u32 2147483647, %v3421
      %vm3439 = vcmp.eq.f32.partialorder %v3438, 8.507059e+37
      %v3440 = vand.u32 %v3421, 2147483648
      %v3441 = vor.u32 1.1754944e-38, %v3440
      %v3442 = vsel %vm3439, %v3441, %v3437
      %v3443 = vmul.f32 %v3405, %v3442
      %v3444 = vrcp.pop %v3422
      %v3445 = vmul.f32 %v3422, %v3444
      %v3446 = vsub.f32 1.0, %v3445
      %v3447 = vmul.f32 %v3444, %v3446
      %v3448 = vadd.f32 %v3444, %v3447
      %vm3449 = vweird.f32 %v3422
      %vm3450 = vweird.f32 %v3444
      %vm3451 = vmor %vm3449, %vm3450
      %v3452 = vsel %vm3451, %v3444, %v3448
      %v3453 = vand.u32 2147483647, %v3422
      %vm3454 = vcmp.eq.f32.partialorder %v3453, 8.507059e+37
      %v3455 = vand.u32 %v3422, 2147483648
      %v3456 = vor.u32 1.1754944e-38, %v3455
      %v3457 = vsel %vm3454, %v3456, %v3452
      %v3458 = vmul.f32 %v3406, %v3457
      %v3459 = vrcp.pop %v3423
      %v3460 = vmul.f32 %v3423, %v3459
      %v3461 = vsub.f32 1.0, %v3460
      %v3462 = vmul.f32 %v3459, %v3461
      %v3463 = vadd.f32 %v3459, %v3462
      %vm3464 = vweird.f32 %v3423
      %vm3465 = vweird.f32 %v3459
      %vm3466 = vmor %vm3464, %vm3465
      %v3467 = vsel %vm3466, %v3459, %v3463
      %v3468 = vand.u32 2147483647, %v3423
      %vm3469 = vcmp.eq.f32.partialorder %v3468, 8.507059e+37
      %v3470 = vand.u32 %v3423, 2147483648
      %v3471 = vor.u32 1.1754944e-38, %v3470
      %v3472 = vsel %vm3469, %v3471, %v3467
      %v3473 = vmul.f32 %v3407, %v3472
      %v3474 = vrcp.pop %v3424
      %v3475 = vmul.f32 %v3424, %v3474
      %v3476 = vsub.f32 1.0, %v3475
      %v3477 = vmul.f32 %v3474, %v3476
      %v3478 = vadd.f32 %v3474, %v3477
      %vm3479 = vweird.f32 %v3424
      %vm3480 = vweird.f32 %v3474
      %vm3481 = vmor %vm3479, %vm3480
      %v3482 = vsel %vm3481, %v3474, %v3478
      %v3483 = vand.u32 2147483647, %v3424
      %vm3484 = vcmp.eq.f32.partialorder %v3483, 8.507059e+37
      %v3485 = vand.u32 %v3424, 2147483648
      %v3486 = vor.u32 1.1754944e-38, %v3485
      %v3487 = vsel %vm3484, %v3486, %v3482
      %v3488 = vmul.f32 %v3408, %v3487
      %v3489 = vrcp.pop %v3425
      %v3490 = vmul.f32 %v3425, %v3489
      %v3491 = vsub.f32 1.0, %v3490
      %v3492 = vmul.f32 %v3489, %v3491
      %v3493 = vadd.f32 %v3489, %v3492
      %vm3494 = vweird.f32 %v3425
      %vm3495 = vweird.f32 %v3489
      %vm3496 = vmor %vm3494, %vm3495
      %v3497 = vsel %vm3496, %v3489, %v3493
      %v3498 = vand.u32 2147483647, %v3425
      %vm3499 = vcmp.eq.f32.partialorder %v3498, 8.507059e+37
      %v3500 = vand.u32 %v3425, 2147483648
      %v3501 = vor.u32 1.1754944e-38, %v3500
      %v3502 = vsel %vm3499, %v3501, %v3497
      %v3503 = vmul.f32 %v3409, %v3502
      %v3504 = vrcp.pop %v3426
      %v3505 = vmul.f32 %v3426, %v3504
      %v3506 = vsub.f32 1.0, %v3505
      %v3507 = vmul.f32 %v3504, %v3506
      %v3508 = vadd.f32 %v3504, %v3507
      %vm3509 = vweird.f32 %v3426
      %vm3510 = vweird.f32 %v3504
      %vm3511 = vmor %vm3509, %vm3510
      %v3512 = vsel %vm3511, %v3504, %v3508
      %v3513 = vand.u32 2147483647, %v3426
      %vm3514 = vcmp.eq.f32.partialorder %v3513, 8.507059e+37
      %v3515 = vand.u32 %v3426, 2147483648
      %v3516 = vor.u32 1.1754944e-38, %v3515
      %v3517 = vsel %vm3514, %v3516, %v3512
      %v3518 = vmul.f32 %v3410, %v3517
      %v3519 = vrcp.pop %v3427
      %v3520 = vmul.f32 %v3427, %v3519
      %v3521 = vsub.f32 1.0, %v3520
      %v3522 = vmul.f32 %v3519, %v3521
      %v3523 = vadd.f32 %v3519, %v3522
      %vm3524 = vweird.f32 %v3427
      %vm3525 = vweird.f32 %v3519
      %vm3526 = vmor %vm3524, %vm3525
      %v3527 = vsel %vm3526, %v3519, %v3523
      %v3528 = vand.u32 2147483647, %v3427
      %vm3529 = vcmp.eq.f32.partialorder %v3528, 8.507059e+37
      %v3530 = vand.u32 %v3427, 2147483648
      %v3531 = vor.u32 1.1754944e-38, %v3530
      %v3532 = vsel %vm3529, %v3531, %v3527
      %v3533 = vmul.f32 %v3411, %v3532
      %v3534 = vrcp.pop %v3428
      %v3535 = vmul.f32 %v3428, %v3534
      %v3536 = vsub.f32 1.0, %v3535
      %v3537 = vmul.f32 %v3534, %v3536
      %v3538 = vadd.f32 %v3534, %v3537
      %vm3539 = vweird.f32 %v3428
      %vm3540 = vweird.f32 %v3534
      %vm3541 = vmor %vm3539, %vm3540
      %v3542 = vsel %vm3541, %v3534, %v3538
      %v3543 = vand.u32 2147483647, %v3428
      %vm3544 = vcmp.eq.f32.partialorder %v3543, 8.507059e+37
      %v3545 = vand.u32 %v3428, 2147483648
      %v3546 = vor.u32 1.1754944e-38, %v3545
      %v3547 = vsel %vm3544, %v3546, %v3542
      %v3548 = vmul.f32 %v3412, %v3547
      %v3549 = vand.u32 2147483647, %v3443
      %v3550 = vand.u32 2147483647, %v3458
      %v3551 = vand.u32 2147483647, %v3473
      %v3552 = vand.u32 2147483647, %v3488
      %v3553 = vand.u32 2147483647, %v3503
      %v3554 = vand.u32 2147483647, %v3518
      %v3555 = vand.u32 2147483647, %v3533
      %v3556 = vand.u32 2147483647, %v3548
      %v3557 = vsel %vm592, %v3549, 0.0
      %3558 = vadd.xlane.f32.xlu0 %v3557
      %v3559 = vpop.xlane.xlu0 %3558
      %v3560 = vsel %vm592, %v3550, 0.0
      %3561 = vadd.xlane.f32.xlu0 %v3560
      %v3562 = vpop.xlane.xlu0 %3561
      %v3563 = vsel %vm592, %v3551, 0.0
      %3564 = vadd.xlane.f32.xlu0 %v3563
      %v3565 = vpop.xlane.xlu0 %3564
      %v3566 = vsel %vm592, %v3552, 0.0
      %3567 = vadd.xlane.f32.xlu0 %v3566
      %v3568 = vpop.xlane.xlu0 %3567
      %v3569 = vsel %vm592, %v3553, 0.0
      %3570 = vadd.xlane.f32.xlu0 %v3569
      %v3571 = vpop.xlane.xlu0 %3570
      %v3572 = vsel %vm592, %v3554, 0.0
      %3573 = vadd.xlane.f32.xlu0 %v3572
      %v3574 = vpop.xlane.xlu0 %3573
      %v3575 = vsel %vm592, %v3555, 0.0
      %3576 = vadd.xlane.f32.xlu0 %v3575
      %v3577 = vpop.xlane.xlu0 %3576
      %v3578 = vsel %vm592, %v3556, 0.0
      %3579 = vadd.xlane.f32.xlu0 %v3578
      %v3580 = vpop.xlane.xlu0 %3579
      %v3581 = vmax.f32 %v3559, 1e-12
      %v3582 = vmax.f32 %v3562, 1e-12
      %v3583 = vmax.f32 %v3565, 1e-12
      %v3584 = vmax.f32 %v3568, 1e-12
      %v3585 = vmax.f32 %v3571, 1e-12
      %v3586 = vmax.f32 %v3574, 1e-12
      %v3587 = vmax.f32 %v3577, 1e-12
      %v3588 = vmax.f32 %v3580, 1e-12
      %v3589 = vrcp.pop %v3581
      %v3590 = vmul.f32 %v3581, %v3589
      %v3591 = vsub.f32 1.0, %v3590
      %v3592 = vmul.f32 %v3589, %v3591
      %v3593 = vadd.f32 %v3589, %v3592
      %vm3594 = vweird.f32 %v3581
      %vm3595 = vweird.f32 %v3589
      %vm3596 = vmor %vm3594, %vm3595
      %v3597 = vsel %vm3596, %v3589, %v3593
      %v3598 = vand.u32 2147483647, %v3581
      %vm3599 = vcmp.eq.f32.partialorder %v3598, 8.507059e+37
      %v3600 = vand.u32 %v3581, 2147483648
      %v3601 = vor.u32 1.1754944e-38, %v3600
      %v3602 = vsel %vm3599, %v3601, %v3597
      %v3603 = vmul.f32 %v3443, %v3602
      %v3604 = vrcp.pop %v3582
      %v3605 = vmul.f32 %v3582, %v3604
      %v3606 = vsub.f32 1.0, %v3605
      %v3607 = vmul.f32 %v3604, %v3606
      %v3608 = vadd.f32 %v3604, %v3607
      %vm3609 = vweird.f32 %v3582
      %vm3610 = vweird.f32 %v3604
      %vm3611 = vmor %vm3609, %vm3610
      %v3612 = vsel %vm3611, %v3604, %v3608
      %v3613 = vand.u32 2147483647, %v3582
      %vm3614 = vcmp.eq.f32.partialorder %v3613, 8.507059e+37
      %v3615 = vand.u32 %v3582, 2147483648
      %v3616 = vor.u32 1.1754944e-38, %v3615
      %v3617 = vsel %vm3614, %v3616, %v3612
      %v3618 = vmul.f32 %v3458, %v3617
      %v3619 = vrcp.pop %v3583
      %v3620 = vmul.f32 %v3583, %v3619
      %v3621 = vsub.f32 1.0, %v3620
      %v3622 = vmul.f32 %v3619, %v3621
      %v3623 = vadd.f32 %v3619, %v3622
      %vm3624 = vweird.f32 %v3583
      %vm3625 = vweird.f32 %v3619
      %vm3626 = vmor %vm3624, %vm3625
      %v3627 = vsel %vm3626, %v3619, %v3623
      %v3628 = vand.u32 2147483647, %v3583
      %vm3629 = vcmp.eq.f32.partialorder %v3628, 8.507059e+37
      %v3630 = vand.u32 %v3583, 2147483648
      %v3631 = vor.u32 1.1754944e-38, %v3630
      %v3632 = vsel %vm3629, %v3631, %v3627
      %v3633 = vmul.f32 %v3473, %v3632
      %v3634 = vrcp.pop %v3584
      %v3635 = vmul.f32 %v3584, %v3634
      %v3636 = vsub.f32 1.0, %v3635
      %v3637 = vmul.f32 %v3634, %v3636
      %v3638 = vadd.f32 %v3634, %v3637
      %vm3639 = vweird.f32 %v3584
      %vm3640 = vweird.f32 %v3634
      %vm3641 = vmor %vm3639, %vm3640
      %v3642 = vsel %vm3641, %v3634, %v3638
      %v3643 = vand.u32 2147483647, %v3584
      %vm3644 = vcmp.eq.f32.partialorder %v3643, 8.507059e+37
      %v3645 = vand.u32 %v3584, 2147483648
      %v3646 = vor.u32 1.1754944e-38, %v3645
      %v3647 = vsel %vm3644, %v3646, %v3642
      %v3648 = vmul.f32 %v3488, %v3647
      %v3649 = vrcp.pop %v3585
      %v3650 = vmul.f32 %v3585, %v3649
      %v3651 = vsub.f32 1.0, %v3650
      %v3652 = vmul.f32 %v3649, %v3651
      %v3653 = vadd.f32 %v3649, %v3652
      %vm3654 = vweird.f32 %v3585
      %vm3655 = vweird.f32 %v3649
      %vm3656 = vmor %vm3654, %vm3655
      %v3657 = vsel %vm3656, %v3649, %v3653
      %v3658 = vand.u32 2147483647, %v3585
      %vm3659 = vcmp.eq.f32.partialorder %v3658, 8.507059e+37
      %v3660 = vand.u32 %v3585, 2147483648
      %v3661 = vor.u32 1.1754944e-38, %v3660
      %v3662 = vsel %vm3659, %v3661, %v3657
      %v3663 = vmul.f32 %v3503, %v3662
      %v3664 = vrcp.pop %v3586
      %v3665 = vmul.f32 %v3586, %v3664
      %v3666 = vsub.f32 1.0, %v3665
      %v3667 = vmul.f32 %v3664, %v3666
      %v3668 = vadd.f32 %v3664, %v3667
      %vm3669 = vweird.f32 %v3586
      %vm3670 = vweird.f32 %v3664
      %vm3671 = vmor %vm3669, %vm3670
      %v3672 = vsel %vm3671, %v3664, %v3668
      %v3673 = vand.u32 2147483647, %v3586
      %vm3674 = vcmp.eq.f32.partialorder %v3673, 8.507059e+37
      %v3675 = vand.u32 %v3586, 2147483648
      %v3676 = vor.u32 1.1754944e-38, %v3675
      %v3677 = vsel %vm3674, %v3676, %v3672
      %v3678 = vmul.f32 %v3518, %v3677
      %v3679 = vrcp.pop %v3587
      %v3680 = vmul.f32 %v3587, %v3679
      %v3681 = vsub.f32 1.0, %v3680
      %v3682 = vmul.f32 %v3679, %v3681
      %v3683 = vadd.f32 %v3679, %v3682
      %vm3684 = vweird.f32 %v3587
      %vm3685 = vweird.f32 %v3679
      %vm3686 = vmor %vm3684, %vm3685
      %v3687 = vsel %vm3686, %v3679, %v3683
      %v3688 = vand.u32 2147483647, %v3587
      %vm3689 = vcmp.eq.f32.partialorder %v3688, 8.507059e+37
      %v3690 = vand.u32 %v3587, 2147483648
      %v3691 = vor.u32 1.1754944e-38, %v3690
      %v3692 = vsel %vm3689, %v3691, %v3687
      %v3693 = vmul.f32 %v3533, %v3692
      %v3694 = vrcp.pop %v3588
      %v3695 = vmul.f32 %v3588, %v3694
      %v3696 = vsub.f32 1.0, %v3695
      %v3697 = vmul.f32 %v3694, %v3696
      %v3698 = vadd.f32 %v3694, %v3697
      %vm3699 = vweird.f32 %v3588
      %vm3700 = vweird.f32 %v3694
      %vm3701 = vmor %vm3699, %vm3700
      %v3702 = vsel %vm3701, %v3694, %v3698
      %v3703 = vand.u32 2147483647, %v3588
      %vm3704 = vcmp.eq.f32.partialorder %v3703, 8.507059e+37
      %v3705 = vand.u32 %v3588, 2147483648
      %v3706 = vor.u32 1.1754944e-38, %v3705
      %v3707 = vsel %vm3704, %v3706, %v3702
      %v3708 = vmul.f32 %v3548, %v3707
      %v3709 = vpack.c.bf16 %v3618, %v3603
      %v3710 = vpack.c.bf16 %v3648, %v3633
      %v3711 = vpack.c.bf16 %v3678, %v3663
      %v3712 = vpack.c.bf16 %v3708, %v3693
      %v3714 = vsel %vm592, %v3709, 0
      %v3717 = vsel %vm592, %v3710, 0
      %v3720 = vsel %vm592, %v3711, 0
      %v3723 = vsel %vm592, %v3712, 0
      %3725 = vmatpush.bf16.msra.mxu0 0
      %3726 = vmatpush.bf16.msra.mxu0 0
      %3727 = vmatpush.bf16.msra.mxu0 0
      %3728 = vmatpush.bf16.msra.mxu0 0
      %3729 = vmatpush.bf16.msra.mxu0 0
      %3730 = vmatpush.bf16.msra.mxu0 0
      %3731 = vmatpush.bf16.msra.mxu0 %v3249
      %3732 = vmatpush.bf16.msra.mxu0 %v3248
      %3733 = vmatmul.bf16.gmra.mxu0 %v3714
      %v3734 = vpop.f32.mrf.mxu0
      %v3735 = vadd.f32 0.0, %v3734
      %v3736 = vpop.f32.mrf.mxu0
      %v3737 = vadd.f32 0.0, %v3736
      %3738 = vmatmul.bf16.gmra.mxu0 %v3717
      %v3739 = vpop.f32.mrf.mxu0
      %v3740 = vadd.f32 0.0, %v3739
      %v3741 = vpop.f32.mrf.mxu0
      %v3742 = vadd.f32 0.0, %v3741
      %3743 = vmatmul.bf16.gmra.mxu0 %v3720
      %v3744 = vpop.f32.mrf.mxu0
      %v3745 = vadd.f32 0.0, %v3744
      %v3746 = vpop.f32.mrf.mxu0
      %v3747 = vadd.f32 0.0, %v3746
      %3748 = vmatmul.bf16.gmra.mxu0 %v3723
      %v3749 = vpop.f32.mrf.mxu0
      %v3750 = vadd.f32 0.0, %v3749
      %v3751 = vpop.f32.mrf.mxu0
      %v3752 = vadd.f32 0.0, %v3751
      %3753 = vdwg.mxu0
      %v3754 = vld [vmem:[%s7] sm:$0xff]
      %v3755 = vpack.c.bf16 %v3737, %v3735
      %v3756 = vpack.c.bf16 %v3742, %v3740
      %v3757 = vpack.c.bf16 %v3747, %v3745
      %v3758 = vpack.c.bf16 %v3752, %v3750
      %v3759 = vpack.c.bf16 %v3754, %v3754
      %v3761 = vperm.slane %v519, 0
      %v3762 = vperm.slane %v519, 1
      %3763 = vrot.lane.b32.xlu0 %v3761, 32
      %v3764 = vpop.permute.xlu0 %3763
      %3765 = vrot.lane.b32.xlu0 %v3762, 32
      %v3766 = vpop.permute.xlu0 %3765
      %v3767 = vsel %vm592, %v3764, %v3766
      %v3770 = vsel %vm2406, %v3755, 0
      %v3773 = vsel %vm2406, %v3756, 0
      %v3776 = vsel %vm2406, %v3757, 0
      %v3779 = vsel %vm2406, %v3758, 0
      %v3782 = vsel %vm2409, %v3759, 0
      %3784 = vmatpush.bf16.msra.mxu0 0
      %3785 = vmatpush.bf16.msra.mxu0 0
      %3786 = vmatpush.bf16.msra.mxu0 0
      %3787 = vmatpush.bf16.msra.mxu0 0
      %3788 = vmatpush.bf16.msra.mxu0 0
      %3789 = vmatpush.bf16.msra.mxu0 0
      %3790 = vmatpush.bf16.msra.mxu0 0
      %3791 = vmatpush.bf16.msra.mxu0 %v3782
      %3792 = vmatmul.bf16.gmra.mxu0 %v3770
      %v3793 = vpop.f32.mrf.mxu0
      %v3794 = vadd.f32 %v3767, %v3793
      %v3795 = vpop.f32.mrf.mxu0
      %v3796 = vadd.f32 %v3767, %v3795
      %3797 = vmatmul.bf16.gmra.mxu0 %v3773
      %v3798 = vpop.f32.mrf.mxu0
      %v3799 = vadd.f32 %v3767, %v3798
      %v3800 = vpop.f32.mrf.mxu0
      %v3801 = vadd.f32 %v3767, %v3800
      %3802 = vmatmul.bf16.gmra.mxu0 %v3776
      %v3803 = vpop.f32.mrf.mxu0
      %v3804 = vadd.f32 %v3767, %v3803
      %v3805 = vpop.f32.mrf.mxu0
      %v3806 = vadd.f32 %v3767, %v3805
      %3807 = vmatmul.bf16.gmra.mxu0 %v3779
      %v3808 = vpop.f32.mrf.mxu0
      %v3809 = vadd.f32 %v3767, %v3808
      %v3810 = vpop.f32.mrf.mxu0
      %v3811 = vadd.f32 %v3767, %v3810
      %3812 = vdwg.mxu0
      %3813 = vst.msk [vmem:[#allocation8] sm:$0xff] %vm1489, %v3794
      %3814 = vst.msk [vmem:[#allocation8 + $0x8] sm:$0xff] %vm1489, %v3796
      %3815 = vst.msk [vmem:[#allocation8 + $0x10] sm:$0xff] %vm1489, %v3799
      %3816 = vst.msk [vmem:[#allocation8 + $0x18] sm:$0xff] %vm1489, %v3801
      %3817 = vst.msk [vmem:[#allocation8 + $0x20] sm:$0xff] %vm1489, %v3804
      %3818 = vst.msk [vmem:[#allocation8 + $0x28] sm:$0xff] %vm1489, %v3806
      %3819 = vst.msk [vmem:[#allocation8 + $0x30] sm:$0xff] %vm1489, %v3809
      %3820 = vst.msk [vmem:[#allocation8 + $0x38] sm:$0xff] %vm1489, %v3811
      %v3821 = vld [vmem:[%s8] sm:$0xff]
      %v3822 = vld [vmem:[%s8 + $0x8] sm:$0xff]
      %v3823 = vpack.c.bf16 %v3822, %v3821
      %v3824 = vld [vmem:[#allocation8] sm:$0xf]
      %3825 = vmatpush.bf16.msra.mxu0 0
      %3826 = vmatpush.bf16.msra.mxu0 0
      %3827 = vmatpush.bf16.msra.mxu0 0
      %3828 = vmatpush.bf16.msra.mxu0 0
      %3829 = vmatpush.bf16.msra.mxu0 0
      %3830 = vmatpush.bf16.msra.mxu0 0
      %3831 = vmatpush.bf16.msra.mxu0 0
      %3832 = vmatpush.bf16.msra.mxu0 %v3823
      %3833 = vmatmul.bf16.gmra.mxu0 %v1503
      %v3834 = vpop.f32.mrf.mxu0
      %v3835 = vadd.f32 0.0, %v3834
      %v3836 = vpop.f32.mrf.mxu0
      %3837 = vdwg.mxu0
      %v3838 = vadd.f32 %v3824, %v3835
      %v3839 = vsub.f32 0.0, %v3838
      %v3840 = vmul.f32 %v3839, 1.442695
      %v3841 = vpow.pop %v3840
      %v3842 = vadd.f32 %v3841, 1.0
      %v3843 = vrcp.pop %v3842
      %v3844 = vtanh.pop %v3838
      %v3845 = vmul.f32 %v3843, 0.0
      %3847 = vrot.lane.b32.xlu0 %v3844, 80
      %v3848 = vpop.permute.xlu0 %3847
      %v3850 = vmul.f32 %v3843, %v3848
      %3852 = vrot.lane.b32.xlu0 %v3850, 16
      %v3853 = vpop.permute.xlu0 %3852
      %v3855 = vadd.f32 %v3845, %v3853
      %v3856 = vtanh.pop %v3855
      %3858 = vrot.lane.b32.xlu0 %v3856, 16
      %v3859 = vpop.permute.xlu0 %3858
      %v3861 = vmul.f32 %v3843, %v3859
      %3863 = vrot.lane.b32.xlu0 %v3861, 96
      %v3864 = vpop.permute.xlu0 %3863
      %3866 = vst.msk [vmem:[#allocation9] sm:$0xf] %vm1546, %v3864
      %s3867 = scalar_lea.vmem [#allocation8], 4
      %v3868 = vld [vmem:[%s3867] sm:$0xf]
      %v3869 = vpack.c.bf16 %v3861, %v3861
      %3871 = vrot.lane.b32.xlu0 %v3869, 96
      %v3872 = vpop.permute.xlu0 %3871
      %v3874 = vsel %vm1502, %v3872, 0
      %3876 = vmatpush.bf16.msra.mxu0 0
      %3877 = vmatpush.bf16.msra.mxu0 0
      %3878 = vmatpush.bf16.msra.mxu0 0
      %3879 = vmatpush.bf16.msra.mxu0 0
      %3880 = vmatpush.bf16.msra.mxu0 0
      %3881 = vmatpush.bf16.msra.mxu0 0
      %3882 = vmatpush.bf16.msra.mxu0 0
      %3883 = vmatpush.bf16.msra.mxu0 %v3823
      %3884 = vmatmul.bf16.gmra.mxu0 %v3874
      %v3885 = vpop.f32.mrf.mxu0
      %v3886 = vadd.f32 0.0, %v3885
      %v3887 = vpop.f32.mrf.mxu0
      %3888 = vdwg.mxu0
      %v3889 = vadd.f32 %v3868, %v3886
      %v3890 = vsub.f32 0.0, %v3889
      %v3891 = vmul.f32 %v3890, 1.442695
      %v3892 = vpow.pop %v3891
      %v3893 = vadd.f32 %v3892, 1.0
      %v3894 = vrcp.pop %v3893
      %v3895 = vtanh.pop %v3889
      %v3896 = vmul.f32 %v3894, %v3855
      %3898 = vrot.lane.b32.xlu0 %v3895, 80
      %v3899 = vpop.permute.xlu0 %3898
      %v3901 = vmul.f32 %v3894, %v3899
      %3903 = vrot.lane.b32.xlu0 %v3901, 16
      %v3904 = vpop.permute.xlu0 %3903
      %v3906 = vadd.f32 %v3896, %v3904
      %v3907 = vtanh.pop %v3906
      %3909 = vrot.lane.b32.xlu0 %v3907, 16
      %v3910 = vpop.permute.xlu0 %3909
      %v3912 = vmul.f32 %v3894, %v3910
      %3914 = vrot.lane.b32.xlu0 %v3912, 96
      %v3915 = vpop.permute.xlu0 %3914
      %s3917 = scalar_lea.vmem [#allocation9], 4
      %3918 = vst.msk [vmem:[%s3917] sm:$0xf] %vm1546, %v3915
      %s3919 = scalar_lea.vmem [#allocation8], 8
      %v3920 = vld [vmem:[%s3919] sm:$0xf]
      %v3921 = vpack.c.bf16 %v3912, %v3912
      %3923 = vrot.lane.b32.xlu0 %v3921, 96
      %v3924 = vpop.permute.xlu0 %3923
      %v3926 = vsel %vm1502, %v3924, 0
      %3928 = vmatpush.bf16.msra.mxu0 0
      %3929 = vmatpush.bf16.msra.mxu0 0
      %3930 = vmatpush.bf16.msra.mxu0 0
      %3931 = vmatpush.bf16.msra.mxu0 0
      %3932 = vmatpush.bf16.msra.mxu0 0
      %3933 = vmatpush.bf16.msra.mxu0 0
      %3934 = vmatpush.bf16.msra.mxu0 0
      %3935 = vmatpush.bf16.msra.mxu0 %v3823
      %3936 = vmatmul.bf16.gmra.mxu0 %v3926
      %v3937 = vpop.f32.mrf.mxu0
      %v3938 = vadd.f32 0.0, %v3937
      %v3939 = vpop.f32.mrf.mxu0
      %3940 = vdwg.mxu0
      %v3941 = vadd.f32 %v3920, %v3938
      %v3942 = vsub.f32 0.0, %v3941
      %v3943 = vmul.f32 %v3942, 1.442695
      %v3944 = vpow.pop %v3943
      %v3945 = vadd.f32 %v3944, 1.0
      %v3946 = vrcp.pop %v3945
      %v3947 = vtanh.pop %v3941
      %v3948 = vmul.f32 %v3946, %v3906
      %3950 = vrot.lane.b32.xlu0 %v3947, 80
      %v3951 = vpop.permute.xlu0 %3950
      %v3953 = vmul.f32 %v3946, %v3951
      %3955 = vrot.lane.b32.xlu0 %v3953, 16
      %v3956 = vpop.permute.xlu0 %3955
      %v3958 = vadd.f32 %v3948, %v3956
      %v3959 = vtanh.pop %v3958
      %3961 = vrot.lane.b32.xlu0 %v3959, 16
      %v3962 = vpop.permute.xlu0 %3961
      %v3964 = vmul.f32 %v3946, %v3962
      %3966 = vrot.lane.b32.xlu0 %v3964, 96
      %v3967 = vpop.permute.xlu0 %3966
      %s3969 = scalar_lea.vmem [#allocation9], 8
      %3970 = vst.msk [vmem:[%s3969] sm:$0xf] %vm1546, %v3967
      %s3971 = scalar_lea.vmem [#allocation8], 12
      %v3972 = vld [vmem:[%s3971] sm:$0xf]
      %v3973 = vpack.c.bf16 %v3964, %v3964
      %3975 = vrot.lane.b32.xlu0 %v3973, 96
      %v3976 = vpop.permute.xlu0 %3975
      %v3978 = vsel %vm1502, %v3976, 0
      %3980 = vmatpush.bf16.msra.mxu0 0
      %3981 = vmatpush.bf16.msra.mxu0 0
      %3982 = vmatpush.bf16.msra.mxu0 0
      %3983 = vmatpush.bf16.msra.mxu0 0
      %3984 = vmatpush.bf16.msra.mxu0 0
      %3985 = vmatpush.bf16.msra.mxu0 0
      %3986 = vmatpush.bf16.msra.mxu0 0
      %3987 = vmatpush.bf16.msra.mxu0 %v3823
      %3988 = vmatmul.bf16.gmra.mxu0 %v3978
      %v3989 = vpop.f32.mrf.mxu0
      %v3990 = vadd.f32 0.0, %v3989
      %v3991 = vpop.f32.mrf.mxu0
      %3992 = vdwg.mxu0
      %v3993 = vadd.f32 %v3972, %v3990
      %v3994 = vsub.f32 0.0, %v3993
      %v3995 = vmul.f32 %v3994, 1.442695
      %v3996 = vpow.pop %v3995
      %v3997 = vadd.f32 %v3996, 1.0
      %v3998 = vrcp.pop %v3997
      %v3999 = vtanh.pop %v3993
      %v4000 = vmul.f32 %v3998, %v3958
      %4002 = vrot.lane.b32.xlu0 %v3999, 80
      %v4003 = vpop.permute.xlu0 %4002
      %v4005 = vmul.f32 %v3998, %v4003
      %4007 = vrot.lane.b32.xlu0 %v4005, 16
      %v4008 = vpop.permute.xlu0 %4007
      %v4010 = vadd.f32 %v4000, %v4008
      %v4011 = vtanh.pop %v4010
      %4013 = vrot.lane.b32.xlu0 %v4011, 16
      %v4014 = vpop.permute.xlu0 %4013
      %v4016 = vmul.f32 %v3998, %v4014
      %4018 = vrot.lane.b32.xlu0 %v4016, 96
      %v4019 = vpop.permute.xlu0 %4018
      %s4021 = scalar_lea.vmem [#allocation9], 12
      %4022 = vst.msk [vmem:[%s4021] sm:$0xf] %vm1546, %v4019
      %s4023 = scalar_lea.vmem [#allocation8], 16
      %v4024 = vld [vmem:[%s4023] sm:$0xf]
      %v4025 = vpack.c.bf16 %v4016, %v4016
      %4027 = vrot.lane.b32.xlu0 %v4025, 96
      %v4028 = vpop.permute.xlu0 %4027
      %v4030 = vsel %vm1502, %v4028, 0
      %4032 = vmatpush.bf16.msra.mxu0 0
      %4033 = vmatpush.bf16.msra.mxu0 0
      %4034 = vmatpush.bf16.msra.mxu0 0
      %4035 = vmatpush.bf16.msra.mxu0 0
      %4036 = vmatpush.bf16.msra.mxu0 0
      %4037 = vmatpush.bf16.msra.mxu0 0
      %4038 = vmatpush.bf16.msra.mxu0 0
      %4039 = vmatpush.bf16.msra.mxu0 %v3823
      %4040 = vmatmul.bf16.gmra.mxu0 %v4030
      %v4041 = vpop.f32.mrf.mxu0
      %v4042 = vadd.f32 0.0, %v4041
      %v4043 = vpop.f32.mrf.mxu0
      %4044 = vdwg.mxu0
      %v4045 = vadd.f32 %v4024, %v4042
      %v4046 = vsub.f32 0.0, %v4045
      %v4047 = vmul.f32 %v4046, 1.442695
      %v4048 = vpow.pop %v4047
      %v4049 = vadd.f32 %v4048, 1.0
      %v4050 = vrcp.pop %v4049
      %v4051 = vtanh.pop %v4045
      %v4052 = vmul.f32 %v4050, %v4010
      %4054 = vrot.lane.b32.xlu0 %v4051, 80
      %v4055 = vpop.permute.xlu0 %4054
      %v4057 = vmul.f32 %v4050, %v4055
      %4059 = vrot.lane.b32.xlu0 %v4057, 16
      %v4060 = vpop.permute.xlu0 %4059
      %v4062 = vadd.f32 %v4052, %v4060
      %v4063 = vtanh.pop %v4062
      %4065 = vrot.lane.b32.xlu0 %v4063, 16
      %v4066 = vpop.permute.xlu0 %4065
      %v4068 = vmul.f32 %v4050, %v4066
      %4070 = vrot.lane.b32.xlu0 %v4068, 96
      %v4071 = vpop.permute.xlu0 %4070
      %s4073 = scalar_lea.vmem [#allocation9], 16
      %4074 = vst.msk [vmem:[%s4073] sm:$0xf] %vm1546, %v4071
      %s4075 = scalar_lea.vmem [#allocation8], 20
      %v4076 = vld [vmem:[%s4075] sm:$0xf]
      %v4077 = vpack.c.bf16 %v4068, %v4068
      %4079 = vrot.lane.b32.xlu0 %v4077, 96
      %v4080 = vpop.permute.xlu0 %4079
      %v4082 = vsel %vm1502, %v4080, 0
      %4084 = vmatpush.bf16.msra.mxu0 0
      %4085 = vmatpush.bf16.msra.mxu0 0
      %4086 = vmatpush.bf16.msra.mxu0 0
      %4087 = vmatpush.bf16.msra.mxu0 0
      %4088 = vmatpush.bf16.msra.mxu0 0
      %4089 = vmatpush.bf16.msra.mxu0 0
      %4090 = vmatpush.bf16.msra.mxu0 0
      %4091 = vmatpush.bf16.msra.mxu0 %v3823
      %4092 = vmatmul.bf16.gmra.mxu0 %v4082
      %v4093 = vpop.f32.mrf.mxu0
      %v4094 = vadd.f32 0.0, %v4093
      %v4095 = vpop.f32.mrf.mxu0
      %4096 = vdwg.mxu0
      %v4097 = vadd.f32 %v4076, %v4094
      %v4098 = vsub.f32 0.0, %v4097
      %v4099 = vmul.f32 %v4098, 1.442695
      %v4100 = vpow.pop %v4099
      %v4101 = vadd.f32 %v4100, 1.0
      %v4102 = vrcp.pop %v4101
      %v4103 = vtanh.pop %v4097
      %v4104 = vmul.f32 %v4102, %v4062
      %4106 = vrot.lane.b32.xlu0 %v4103, 80
      %v4107 = vpop.permute.xlu0 %4106
      %v4109 = vmul.f32 %v4102, %v4107
      %4111 = vrot.lane.b32.xlu0 %v4109, 16
      %v4112 = vpop.permute.xlu0 %4111
      %v4114 = vadd.f32 %v4104, %v4112
      %v4115 = vtanh.pop %v4114
      %4117 = vrot.lane.b32.xlu0 %v4115, 16
      %v4118 = vpop.permute.xlu0 %4117
      %v4120 = vmul.f32 %v4102, %v4118
      %4122 = vrot.lane.b32.xlu0 %v4120, 96
      %v4123 = vpop.permute.xlu0 %4122
      %s4125 = scalar_lea.vmem [#allocation9], 20
      %4126 = vst.msk [vmem:[%s4125] sm:$0xf] %vm1546, %v4123
      %s4127 = scalar_lea.vmem [#allocation8], 24
      %v4128 = vld [vmem:[%s4127] sm:$0xf]
      %v4129 = vpack.c.bf16 %v4120, %v4120
      %4131 = vrot.lane.b32.xlu0 %v4129, 96
      %v4132 = vpop.permute.xlu0 %4131
      %v4134 = vsel %vm1502, %v4132, 0
      %4136 = vmatpush.bf16.msra.mxu0 0
      %4137 = vmatpush.bf16.msra.mxu0 0
      %4138 = vmatpush.bf16.msra.mxu0 0
      %4139 = vmatpush.bf16.msra.mxu0 0
      %4140 = vmatpush.bf16.msra.mxu0 0
      %4141 = vmatpush.bf16.msra.mxu0 0
      %4142 = vmatpush.bf16.msra.mxu0 0
      %4143 = vmatpush.bf16.msra.mxu0 %v3823
      %4144 = vmatmul.bf16.gmra.mxu0 %v4134
      %v4145 = vpop.f32.mrf.mxu0
      %v4146 = vadd.f32 0.0, %v4145
      %v4147 = vpop.f32.mrf.mxu0
      %4148 = vdwg.mxu0
      %v4149 = vadd.f32 %v4128, %v4146
      %v4150 = vsub.f32 0.0, %v4149
      %v4151 = vmul.f32 %v4150, 1.442695
      %v4152 = vpow.pop %v4151
      %v4153 = vadd.f32 %v4152, 1.0
      %v4154 = vrcp.pop %v4153
      %v4155 = vtanh.pop %v4149
      %v4156 = vmul.f32 %v4154, %v4114
      %4158 = vrot.lane.b32.xlu0 %v4155, 80
      %v4159 = vpop.permute.xlu0 %4158
      %v4161 = vmul.f32 %v4154, %v4159
      %4163 = vrot.lane.b32.xlu0 %v4161, 16
      %v4164 = vpop.permute.xlu0 %4163
      %v4166 = vadd.f32 %v4156, %v4164
      %v4167 = vtanh.pop %v4166
      %4169 = vrot.lane.b32.xlu0 %v4167, 16
      %v4170 = vpop.permute.xlu0 %4169
      %v4172 = vmul.f32 %v4154, %v4170
      %4174 = vrot.lane.b32.xlu0 %v4172, 96
      %v4175 = vpop.permute.xlu0 %4174
      %s4177 = scalar_lea.vmem [#allocation9], 24
      %4178 = vst.msk [vmem:[%s4177] sm:$0xf] %vm1546, %v4175
      %s4179 = scalar_lea.vmem [#allocation8], 28
      %v4180 = vld [vmem:[%s4179] sm:$0xf]
      %v4181 = vpack.c.bf16 %v4172, %v4172
      %4183 = vrot.lane.b32.xlu0 %v4181, 96
      %v4184 = vpop.permute.xlu0 %4183
      %v4186 = vsel %vm1502, %v4184, 0
      %4188 = vmatpush.bf16.msra.mxu0 0
      %4189 = vmatpush.bf16.msra.mxu0 0
      %4190 = vmatpush.bf16.msra.mxu0 0
      %4191 = vmatpush.bf16.msra.mxu0 0
      %4192 = vmatpush.bf16.msra.mxu0 0
      %4193 = vmatpush.bf16.msra.mxu0 0
      %4194 = vmatpush.bf16.msra.mxu0 0
      %4195 = vmatpush.bf16.msra.mxu0 %v3823
      %4196 = vmatmul.bf16.gmra.mxu0 %v4186
      %v4197 = vpop.f32.mrf.mxu0
      %v4198 = vadd.f32 0.0, %v4197
      %v4199 = vpop.f32.mrf.mxu0
      %4200 = vdwg.mxu0
      %v4201 = vadd.f32 %v4180, %v4198
      %v4202 = vsub.f32 0.0, %v4201
      %v4203 = vmul.f32 %v4202, 1.442695
      %v4204 = vpow.pop %v4203
      %v4205 = vadd.f32 %v4204, 1.0
      %v4206 = vrcp.pop %v4205
      %v4207 = vtanh.pop %v4201
      %v4208 = vmul.f32 %v4206, %v4166
      %4210 = vrot.lane.b32.xlu0 %v4207, 80
      %v4211 = vpop.permute.xlu0 %4210
      %v4213 = vmul.f32 %v4206, %v4211
      %4215 = vrot.lane.b32.xlu0 %v4213, 16
      %v4216 = vpop.permute.xlu0 %4215
      %v4218 = vadd.f32 %v4208, %v4216
      %v4219 = vtanh.pop %v4218
      %4221 = vrot.lane.b32.xlu0 %v4219, 16
      %v4222 = vpop.permute.xlu0 %4221
      %v4224 = vmul.f32 %v4206, %v4222
      %4226 = vrot.lane.b32.xlu0 %v4224, 96
      %v4227 = vpop.permute.xlu0 %4226
      %s4229 = scalar_lea.vmem [#allocation9], 28
      %4230 = vst.msk [vmem:[%s4229] sm:$0xf] %vm1546, %v4227
      %s4231 = scalar_lea.vmem [#allocation8], 32
      %v4232 = vld [vmem:[%s4231] sm:$0xf]
      %v4233 = vpack.c.bf16 %v4224, %v4224
      %4235 = vrot.lane.b32.xlu0 %v4233, 96
      %v4236 = vpop.permute.xlu0 %4235
      %v4238 = vsel %vm1502, %v4236, 0
      %4240 = vmatpush.bf16.msra.mxu0 0
      %4241 = vmatpush.bf16.msra.mxu0 0
      %4242 = vmatpush.bf16.msra.mxu0 0
      %4243 = vmatpush.bf16.msra.mxu0 0
      %4244 = vmatpush.bf16.msra.mxu0 0
      %4245 = vmatpush.bf16.msra.mxu0 0
      %4246 = vmatpush.bf16.msra.mxu0 0
      %4247 = vmatpush.bf16.msra.mxu0 %v3823
      %4248 = vmatmul.bf16.gmra.mxu0 %v4238
      %v4249 = vpop.f32.mrf.mxu0
      %v4250 = vadd.f32 0.0, %v4249
      %v4251 = vpop.f32.mrf.mxu0
      %4252 = vdwg.mxu0
      %v4253 = vadd.f32 %v4232, %v4250
      %v4254 = vsub.f32 0.0, %v4253
      %v4255 = vmul.f32 %v4254, 1.442695
      %v4256 = vpow.pop %v4255
      %v4257 = vadd.f32 %v4256, 1.0
      %v4258 = vrcp.pop %v4257
      %v4259 = vtanh.pop %v4253
      %v4260 = vmul.f32 %v4258, %v4218
      %4262 = vrot.lane.b32.xlu0 %v4259, 80
      %v4263 = vpop.permute.xlu0 %4262
      %v4265 = vmul.f32 %v4258, %v4263
      %4267 = vrot.lane.b32.xlu0 %v4265, 16
      %v4268 = vpop.permute.xlu0 %4267
      %v4270 = vadd.f32 %v4260, %v4268
      %v4271 = vtanh.pop %v4270
      %4273 = vrot.lane.b32.xlu0 %v4271, 16
      %v4274 = vpop.permute.xlu0 %4273
      %v4276 = vmul.f32 %v4258, %v4274
      %4278 = vrot.lane.b32.xlu0 %v4276, 96
      %v4279 = vpop.permute.xlu0 %4278
      %s4281 = scalar_lea.vmem [#allocation9], 32
      %4282 = vst.msk [vmem:[%s4281] sm:$0xf] %vm1546, %v4279
      %s4283 = scalar_lea.vmem [#allocation8], 36
      %v4284 = vld [vmem:[%s4283] sm:$0xf]
      %v4285 = vpack.c.bf16 %v4276, %v4276
      %4287 = vrot.lane.b32.xlu0 %v4285, 96
      %v4288 = vpop.permute.xlu0 %4287
      %v4290 = vsel %vm1502, %v4288, 0
      %4292 = vmatpush.bf16.msra.mxu0 0
      %4293 = vmatpush.bf16.msra.mxu0 0
      %4294 = vmatpush.bf16.msra.mxu0 0
      %4295 = vmatpush.bf16.msra.mxu0 0
      %4296 = vmatpush.bf16.msra.mxu0 0
      %4297 = vmatpush.bf16.msra.mxu0 0
      %4298 = vmatpush.bf16.msra.mxu0 0
      %4299 = vmatpush.bf16.msra.mxu0 %v3823
      %4300 = vmatmul.bf16.gmra.mxu0 %v4290
      %v4301 = vpop.f32.mrf.mxu0
      %v4302 = vadd.f32 0.0, %v4301
      %v4303 = vpop.f32.mrf.mxu0
      %4304 = vdwg.mxu0
      %v4305 = vadd.f32 %v4284, %v4302
      %v4306 = vsub.f32 0.0, %v4305
      %v4307 = vmul.f32 %v4306, 1.442695
      %v4308 = vpow.pop %v4307
      %v4309 = vadd.f32 %v4308, 1.0
      %v4310 = vrcp.pop %v4309
      %v4311 = vtanh.pop %v4305
      %v4312 = vmul.f32 %v4310, %v4270
      %4314 = vrot.lane.b32.xlu0 %v4311, 80
      %v4315 = vpop.permute.xlu0 %4314
      %v4317 = vmul.f32 %v4310, %v4315
      %4319 = vrot.lane.b32.xlu0 %v4317, 16
      %v4320 = vpop.permute.xlu0 %4319
      %v4322 = vadd.f32 %v4312, %v4320
      %v4323 = vtanh.pop %v4322
      %4325 = vrot.lane.b32.xlu0 %v4323, 16
      %v4326 = vpop.permute.xlu0 %4325
      %v4328 = vmul.f32 %v4310, %v4326
      %4330 = vrot.lane.b32.xlu0 %v4328, 96
      %v4331 = vpop.permute.xlu0 %4330
      %s4333 = scalar_lea.vmem [#allocation9], 36
      %4334 = vst.msk [vmem:[%s4333] sm:$0xf] %vm1546, %v4331
      %s4335 = scalar_lea.vmem [#allocation8], 40
      %v4336 = vld [vmem:[%s4335] sm:$0xf]
      %v4337 = vpack.c.bf16 %v4328, %v4328
      %4339 = vrot.lane.b32.xlu0 %v4337, 96
      %v4340 = vpop.permute.xlu0 %4339
      %v4342 = vsel %vm1502, %v4340, 0
      %4344 = vmatpush.bf16.msra.mxu0 0
      %4345 = vmatpush.bf16.msra.mxu0 0
      %4346 = vmatpush.bf16.msra.mxu0 0
      %4347 = vmatpush.bf16.msra.mxu0 0
      %4348 = vmatpush.bf16.msra.mxu0 0
      %4349 = vmatpush.bf16.msra.mxu0 0
      %4350 = vmatpush.bf16.msra.mxu0 0
      %4351 = vmatpush.bf16.msra.mxu0 %v3823
      %4352 = vmatmul.bf16.gmra.mxu0 %v4342
      %v4353 = vpop.f32.mrf.mxu0
      %v4354 = vadd.f32 0.0, %v4353
      %v4355 = vpop.f32.mrf.mxu0
      %4356 = vdwg.mxu0
      %v4357 = vadd.f32 %v4336, %v4354
      %v4358 = vsub.f32 0.0, %v4357
      %v4359 = vmul.f32 %v4358, 1.442695
      %v4360 = vpow.pop %v4359
      %v4361 = vadd.f32 %v4360, 1.0
      %v4362 = vrcp.pop %v4361
      %v4363 = vtanh.pop %v4357
      %v4364 = vmul.f32 %v4362, %v4322
      %4366 = vrot.lane.b32.xlu0 %v4363, 80
      %v4367 = vpop.permute.xlu0 %4366
      %v4369 = vmul.f32 %v4362, %v4367
      %4371 = vrot.lane.b32.xlu0 %v4369, 16
      %v4372 = vpop.permute.xlu0 %4371
      %v4374 = vadd.f32 %v4364, %v4372
      %v4375 = vtanh.pop %v4374
      %4377 = vrot.lane.b32.xlu0 %v4375, 16
      %v4378 = vpop.permute.xlu0 %4377
      %v4380 = vmul.f32 %v4362, %v4378
      %4382 = vrot.lane.b32.xlu0 %v4380, 96
      %v4383 = vpop.permute.xlu0 %4382
      %s4385 = scalar_lea.vmem [#allocation9], 40
      %4386 = vst.msk [vmem:[%s4385] sm:$0xf] %vm1546, %v4383
      %s4387 = scalar_lea.vmem [#allocation8], 44
      %v4388 = vld [vmem:[%s4387] sm:$0xf]
      %v4389 = vpack.c.bf16 %v4380, %v4380
      %4391 = vrot.lane.b32.xlu0 %v4389, 96
      %v4392 = vpop.permute.xlu0 %4391
      %v4394 = vsel %vm1502, %v4392, 0
      %4396 = vmatpush.bf16.msra.mxu0 0
      %4397 = vmatpush.bf16.msra.mxu0 0
      %4398 = vmatpush.bf16.msra.mxu0 0
      %4399 = vmatpush.bf16.msra.mxu0 0
      %4400 = vmatpush.bf16.msra.mxu0 0
      %4401 = vmatpush.bf16.msra.mxu0 0
      %4402 = vmatpush.bf16.msra.mxu0 0
      %4403 = vmatpush.bf16.msra.mxu0 %v3823
      %4404 = vmatmul.bf16.gmra.mxu0 %v4394
      %v4405 = vpop.f32.mrf.mxu0
      %v4406 = vadd.f32 0.0, %v4405
      %v4407 = vpop.f32.mrf.mxu0
      %4408 = vdwg.mxu0
      %v4409 = vadd.f32 %v4388, %v4406
      %v4410 = vsub.f32 0.0, %v4409
      %v4411 = vmul.f32 %v4410, 1.442695
      %v4412 = vpow.pop %v4411
      %v4413 = vadd.f32 %v4412, 1.0
      %v4414 = vrcp.pop %v4413
      %v4415 = vtanh.pop %v4409
      %v4416 = vmul.f32 %v4414, %v4374
      %4418 = vrot.lane.b32.xlu0 %v4415, 80
      %v4419 = vpop.permute.xlu0 %4418
      %v4421 = vmul.f32 %v4414, %v4419
      %4423 = vrot.lane.b32.xlu0 %v4421, 16
      %v4424 = vpop.permute.xlu0 %4423
      %v4426 = vadd.f32 %v4416, %v4424
      %v4427 = vtanh.pop %v4426
      %4429 = vrot.lane.b32.xlu0 %v4427, 16
      %v4430 = vpop.permute.xlu0 %4429
      %v4432 = vmul.f32 %v4414, %v4430
      %4434 = vrot.lane.b32.xlu0 %v4432, 96
      %v4435 = vpop.permute.xlu0 %4434
      %s4437 = scalar_lea.vmem [#allocation9], 44
      %4438 = vst.msk [vmem:[%s4437] sm:$0xf] %vm1546, %v4435
      %s4439 = scalar_lea.vmem [#allocation8], 48
      %v4440 = vld [vmem:[%s4439] sm:$0xf]
      %v4441 = vpack.c.bf16 %v4432, %v4432
      %4443 = vrot.lane.b32.xlu0 %v4441, 96
      %v4444 = vpop.permute.xlu0 %4443
      %v4446 = vsel %vm1502, %v4444, 0
      %4448 = vmatpush.bf16.msra.mxu0 0
      %4449 = vmatpush.bf16.msra.mxu0 0
      %4450 = vmatpush.bf16.msra.mxu0 0
      %4451 = vmatpush.bf16.msra.mxu0 0
      %4452 = vmatpush.bf16.msra.mxu0 0
      %4453 = vmatpush.bf16.msra.mxu0 0
      %4454 = vmatpush.bf16.msra.mxu0 0
      %4455 = vmatpush.bf16.msra.mxu0 %v3823
      %4456 = vmatmul.bf16.gmra.mxu0 %v4446
      %v4457 = vpop.f32.mrf.mxu0
      %v4458 = vadd.f32 0.0, %v4457
      %v4459 = vpop.f32.mrf.mxu0
      %4460 = vdwg.mxu0
      %v4461 = vadd.f32 %v4440, %v4458
      %v4462 = vsub.f32 0.0, %v4461
      %v4463 = vmul.f32 %v4462, 1.442695
      %v4464 = vpow.pop %v4463
      %v4465 = vadd.f32 %v4464, 1.0
      %v4466 = vrcp.pop %v4465
      %v4467 = vtanh.pop %v4461
      %v4468 = vmul.f32 %v4466, %v4426
      %4470 = vrot.lane.b32.xlu0 %v4467, 80
      %v4471 = vpop.permute.xlu0 %4470
      %v4473 = vmul.f32 %v4466, %v4471
      %4475 = vrot.lane.b32.xlu0 %v4473, 16
      %v4476 = vpop.permute.xlu0 %4475
      %v4478 = vadd.f32 %v4468, %v4476
      %v4479 = vtanh.pop %v4478
      %4481 = vrot.lane.b32.xlu0 %v4479, 16
      %v4482 = vpop.permute.xlu0 %4481
      %v4484 = vmul.f32 %v4466, %v4482
      %4486 = vrot.lane.b32.xlu0 %v4484, 96
      %v4487 = vpop.permute.xlu0 %4486
      %s4489 = scalar_lea.vmem [#allocation9], 48
      %4490 = vst.msk [vmem:[%s4489] sm:$0xf] %vm1546, %v4487
      %s4491 = scalar_lea.vmem [#allocation8], 52
      %v4492 = vld [vmem:[%s4491] sm:$0xf]
      %v4493 = vpack.c.bf16 %v4484, %v4484
      %4495 = vrot.lane.b32.xlu0 %v4493, 96
      %v4496 = vpop.permute.xlu0 %4495
      %v4498 = vsel %vm1502, %v4496, 0
      %4500 = vmatpush.bf16.msra.mxu0 0
      %4501 = vmatpush.bf16.msra.mxu0 0
      %4502 = vmatpush.bf16.msra.mxu0 0
      %4503 = vmatpush.bf16.msra.mxu0 0
      %4504 = vmatpush.bf16.msra.mxu0 0
      %4505 = vmatpush.bf16.msra.mxu0 0
      %4506 = vmatpush.bf16.msra.mxu0 0
      %4507 = vmatpush.bf16.msra.mxu0 %v3823
      %4508 = vmatmul.bf16.gmra.mxu0 %v4498
      %v4509 = vpop.f32.mrf.mxu0
      %v4510 = vadd.f32 0.0, %v4509
      %v4511 = vpop.f32.mrf.mxu0
      %4512 = vdwg.mxu0
      %v4513 = vadd.f32 %v4492, %v4510
      %v4514 = vsub.f32 0.0, %v4513
      %v4515 = vmul.f32 %v4514, 1.442695
      %v4516 = vpow.pop %v4515
      %v4517 = vadd.f32 %v4516, 1.0
      %v4518 = vrcp.pop %v4517
      %v4519 = vtanh.pop %v4513
      %v4520 = vmul.f32 %v4518, %v4478
      %4522 = vrot.lane.b32.xlu0 %v4519, 80
      %v4523 = vpop.permute.xlu0 %4522
      %v4525 = vmul.f32 %v4518, %v4523
      %4527 = vrot.lane.b32.xlu0 %v4525, 16
      %v4528 = vpop.permute.xlu0 %4527
      %v4530 = vadd.f32 %v4520, %v4528
      %v4531 = vtanh.pop %v4530
      %4533 = vrot.lane.b32.xlu0 %v4531, 16
      %v4534 = vpop.permute.xlu0 %4533
      %v4536 = vmul.f32 %v4518, %v4534
      %4538 = vrot.lane.b32.xlu0 %v4536, 96
      %v4539 = vpop.permute.xlu0 %4538
      %s4541 = scalar_lea.vmem [#allocation9], 52
      %4542 = vst.msk [vmem:[%s4541] sm:$0xf] %vm1546, %v4539
      %s4543 = scalar_lea.vmem [#allocation8], 56
      %v4544 = vld [vmem:[%s4543] sm:$0xf]
      %v4545 = vpack.c.bf16 %v4536, %v4536
      %4547 = vrot.lane.b32.xlu0 %v4545, 96
      %v4548 = vpop.permute.xlu0 %4547
      %v4550 = vsel %vm1502, %v4548, 0
      %4552 = vmatpush.bf16.msra.mxu0 0
      %4553 = vmatpush.bf16.msra.mxu0 0
      %4554 = vmatpush.bf16.msra.mxu0 0
      %4555 = vmatpush.bf16.msra.mxu0 0
      %4556 = vmatpush.bf16.msra.mxu0 0
      %4557 = vmatpush.bf16.msra.mxu0 0
      %4558 = vmatpush.bf16.msra.mxu0 0
      %4559 = vmatpush.bf16.msra.mxu0 %v3823
      %4560 = vmatmul.bf16.gmra.mxu0 %v4550
      %v4561 = vpop.f32.mrf.mxu0
      %v4562 = vadd.f32 0.0, %v4561
      %v4563 = vpop.f32.mrf.mxu0
      %4564 = vdwg.mxu0
      %v4565 = vadd.f32 %v4544, %v4562
      %v4566 = vsub.f32 0.0, %v4565
      %v4567 = vmul.f32 %v4566, 1.442695
      %v4568 = vpow.pop %v4567
      %v4569 = vadd.f32 %v4568, 1.0
      %v4570 = vrcp.pop %v4569
      %v4571 = vtanh.pop %v4565
      %v4572 = vmul.f32 %v4570, %v4530
      %4574 = vrot.lane.b32.xlu0 %v4571, 80
      %v4575 = vpop.permute.xlu0 %4574
      %v4577 = vmul.f32 %v4570, %v4575
      %4579 = vrot.lane.b32.xlu0 %v4577, 16
      %v4580 = vpop.permute.xlu0 %4579
      %v4582 = vadd.f32 %v4572, %v4580
      %v4583 = vtanh.pop %v4582
      %4585 = vrot.lane.b32.xlu0 %v4583, 16
      %v4586 = vpop.permute.xlu0 %4585
      %v4588 = vmul.f32 %v4570, %v4586
      %4590 = vrot.lane.b32.xlu0 %v4588, 96
      %v4591 = vpop.permute.xlu0 %4590
      %s4593 = scalar_lea.vmem [#allocation9], 56
      %4594 = vst.msk [vmem:[%s4593] sm:$0xf] %vm1546, %v4591
      %s4595 = scalar_lea.vmem [#allocation8], 60
      %v4596 = vld [vmem:[%s4595] sm:$0xf]
      %v4597 = vpack.c.bf16 %v4588, %v4588
      %4599 = vrot.lane.b32.xlu0 %v4597, 96
      %v4600 = vpop.permute.xlu0 %4599
      %v4602 = vsel %vm1502, %v4600, 0
      %4604 = vmatpush.bf16.msra.mxu0 0
      %4605 = vmatpush.bf16.msra.mxu0 0
      %4606 = vmatpush.bf16.msra.mxu0 0
      %4607 = vmatpush.bf16.msra.mxu0 0
      %4608 = vmatpush.bf16.msra.mxu0 0
      %4609 = vmatpush.bf16.msra.mxu0 0
      %4610 = vmatpush.bf16.msra.mxu0 0
      %4611 = vmatpush.bf16.msra.mxu0 %v3823
      %4612 = vmatmul.bf16.gmra.mxu0 %v4602
      %v4613 = vpop.f32.mrf.mxu0
      %v4614 = vadd.f32 0.0, %v4613
      %v4615 = vpop.f32.mrf.mxu0
      %4616 = vdwg.mxu0
      %v4617 = vadd.f32 %v4596, %v4614
      %v4618 = vsub.f32 0.0, %v4617
      %v4619 = vmul.f32 %v4618, 1.442695
      %v4620 = vpow.pop %v4619
      %v4621 = vadd.f32 %v4620, 1.0
      %v4622 = vrcp.pop %v4621
      %v4623 = vtanh.pop %v4617
      %v4624 = vmul.f32 %v4622, %v4582
      %4626 = vrot.lane.b32.xlu0 %v4623, 80
      %v4627 = vpop.permute.xlu0 %4626
      %v4629 = vmul.f32 %v4622, %v4627
      %4631 = vrot.lane.b32.xlu0 %v4629, 16
      %v4632 = vpop.permute.xlu0 %4631
      %v4634 = vadd.f32 %v4624, %v4632
      %v4635 = vtanh.pop %v4634
      %4637 = vrot.lane.b32.xlu0 %v4635, 16
      %v4638 = vpop.permute.xlu0 %4637
      %v4640 = vmul.f32 %v4622, %v4638
      %4642 = vrot.lane.b32.xlu0 %v4640, 96
      %v4643 = vpop.permute.xlu0 %4642
      %s4645 = scalar_lea.vmem [#allocation9], 60
      %4646 = vst.msk [vmem:[%s4645] sm:$0xf] %vm1546, %v4643
      %v4647 = vld [vmem:[#allocation9] sm:$0xff]
      %v4648 = vld [vmem:[#allocation9 + $0x8] sm:$0xff]
      %v4649 = vld [vmem:[#allocation9 + $0x10] sm:$0xff]
      %v4650 = vld [vmem:[#allocation9 + $0x18] sm:$0xff]
      %v4651 = vld [vmem:[#allocation9 + $0x20] sm:$0xff]
      %v4652 = vld [vmem:[#allocation9 + $0x28] sm:$0xff]
      %v4653 = vld [vmem:[#allocation9 + $0x30] sm:$0xff]
      %v4654 = vld [vmem:[#allocation9 + $0x38] sm:$0xff]
      %v4655 = vmax.f32 %v4647, 0.0
      %v4656 = vmax.f32 %v4648, 0.0
      %v4657 = vmax.f32 %v4649, 0.0
      %v4658 = vmax.f32 %v4650, 0.0
      %v4659 = vmax.f32 %v4651, 0.0
      %v4660 = vmax.f32 %v4652, 0.0
      %v4661 = vmax.f32 %v4653, 0.0
      %v4662 = vmax.f32 %v4654, 0.0
      %v4663 = vld [vmem:[%s9] sm:$0xff]
      %v4664 = vld [vmem:[%s9 + $0x8] sm:$0xff]
      %v4665 = vpack.c.bf16 %v4656, %v4655
      %v4666 = vpack.c.bf16 %v4658, %v4657
      %v4667 = vpack.c.bf16 %v4660, %v4659
      %v4668 = vpack.c.bf16 %v4662, %v4661
      %v4669 = vpack.c.bf16 %v4664, %v4663
      %v4671 = vperm.slane %v520, 0
      %v4672 = vperm.slane %v520, 1
      %4673 = vrot.lane.b32.xlu0 %v4671, 96
      %v4674 = vpop.permute.xlu0 %4673
      %4675 = vrot.lane.b32.xlu0 %v4672, 96
      %v4676 = vpop.permute.xlu0 %4675
      %vm4677 = vcmask 785408
      %v4678 = vsel %vm4677, %v4674, %v4676
      %v4681 = vsel %vm1502, %v4665, 0
      %v4684 = vsel %vm1502, %v4666, 0
      %v4687 = vsel %vm1502, %v4667, 0
      %v4690 = vsel %vm1502, %v4668, 0
      %4692 = vmatpush.bf16.msra.mxu0 0
      %4693 = vmatpush.bf16.msra.mxu0 0
      %4694 = vmatpush.bf16.msra.mxu0 0
      %4695 = vmatpush.bf16.msra.mxu0 0
      %4696 = vmatpush.bf16.msra.mxu0 0
      %4697 = vmatpush.bf16.msra.mxu0 0
      %4698 = vmatpush.bf16.msra.mxu0 0
      %4699 = vmatpush.bf16.msra.mxu0 %v4669
      %4700 = vmatmul.bf16.gmra.mxu0 %v4681
      %v4701 = vpop.f32.mrf.mxu0
      %v4702 = vadd.f32 %v4678, %v4701
      %v4703 = vpop.f32.mrf.mxu0
      %v4704 = vadd.f32 %v4678, %v4703
      %4705 = vmatmul.bf16.gmra.mxu0 %v4684
      %v4706 = vpop.f32.mrf.mxu0
      %v4707 = vadd.f32 %v4678, %v4706
      %v4708 = vpop.f32.mrf.mxu0
      %v4709 = vadd.f32 %v4678, %v4708
      %4710 = vmatmul.bf16.gmra.mxu0 %v4687
      %v4711 = vpop.f32.mrf.mxu0
      %v4712 = vadd.f32 %v4678, %v4711
      %v4713 = vpop.f32.mrf.mxu0
      %v4714 = vadd.f32 %v4678, %v4713
      %4715 = vmatmul.bf16.gmra.mxu0 %v4690
      %v4716 = vpop.f32.mrf.mxu0
      %v4717 = vadd.f32 %v4678, %v4716
      %v4718 = vpop.f32.mrf.mxu0
      %v4719 = vadd.f32 %v4678, %v4718
      %4720 = vdwg.mxu0
      %4721 = vst [vmem:[#allocation10] sm:$0xff] %v4702
      %4722 = vst [vmem:[#allocation10 + $0x8] sm:$0xff] %v4704
      %4723 = vst [vmem:[#allocation10 + $0x10] sm:$0xff] %v4707
      %4724 = vst [vmem:[#allocation10 + $0x18] sm:$0xff] %v4709
      %4725 = vst [vmem:[#allocation10 + $0x20] sm:$0xff] %v4712
      %4726 = vst [vmem:[#allocation10 + $0x28] sm:$0xff] %v4714
      %4727 = vst [vmem:[#allocation10 + $0x30] sm:$0xff] %v4717
      %4728 = vst [vmem:[#allocation10 + $0x38] sm:$0xff] %v4719
      %v4729 = vld [vmem:[%s10] sm:$0xff]
      %v4730 = vld [vmem:[%s10 + $0x8] sm:$0xff]
      %v4731 = vld [vmem:[%s10 + $0x10] sm:$0xff]
      %v4732 = vld [vmem:[%s10 + $0x18] sm:$0xff]
      %v4733 = vpack.c.bf16 %v4730, %v4729
      %v4734 = vpack.c.bf16 %v4732, %v4731
      %v4735 = vld [vmem:[#allocation10] sm:$0xf]
      %4736 = vmatpush.bf16.msra.mxu0 0
      %4737 = vmatpush.bf16.msra.mxu0 0
      %4738 = vmatpush.bf16.msra.mxu0 0
      %4739 = vmatpush.bf16.msra.mxu0 0
      %4740 = vmatpush.bf16.msra.mxu0 0
      %4741 = vmatpush.bf16.msra.mxu0 0
      %4742 = vmatpush.bf16.msra.mxu0 %v4734
      %4743 = vmatpush.bf16.msra.mxu0 %v4733
      %4744 = vmatmul.bf16.gmra.mxu0 %v594
      %v4745 = vpop.f32.mrf.mxu0
      %v4746 = vadd.f32 0.0, %v4745
      %v4747 = vpop.f32.mrf.mxu0
      %4748 = vdwg.mxu0
      %v4749 = vadd.f32 %v4735, %v4746
      %v4750 = vsub.f32 0.0, %v4749
      %v4751 = vmul.f32 %v4750, 1.442695
      %v4752 = vpow.pop %v4751
      %v4753 = vadd.f32 %v4752, 1.0
      %v4754 = vrcp.pop %v4753
      %v4755 = vtanh.pop %v4749
      %v4756 = vmul.f32 %v4754, 0.0
      %4758 = vrot.lane.b32.xlu0 %v4755, 32
      %v4759 = vpop.permute.xlu0 %4758
      %v4761 = vmul.f32 %v4754, %v4759
      %4763 = vrot.lane.b32.xlu0 %v4761, 32
      %v4764 = vpop.permute.xlu0 %4763
      %v4766 = vadd.f32 %v4756, %v4764
      %v4767 = vtanh.pop %v4766
      %4769 = vrot.lane.b32.xlu0 %v4767, 32
      %v4770 = vpop.permute.xlu0 %4769
      %v4772 = vmul.f32 %v4754, %v4770
      %4774 = vrot.lane.b32.xlu0 %v4772, 64
      %v4775 = vpop.permute.xlu0 %4774
      %4777 = vst.msk [vmem:[#allocation11] sm:$0xf] %vm637, %v4775
      %s4778 = scalar_lea.vmem [#allocation10], 4
      %v4779 = vld [vmem:[%s4778] sm:$0xf]
      %v4780 = vpack.c.bf16 %v4772, %v4772
      %4782 = vrot.lane.b32.xlu0 %v4780, 64
      %v4783 = vpop.permute.xlu0 %4782
      %v4785 = vsel %vm592, %v4783, 0
      %4787 = vmatpush.bf16.msra.mxu0 0
      %4788 = vmatpush.bf16.msra.mxu0 0
      %4789 = vmatpush.bf16.msra.mxu0 0
      %4790 = vmatpush.bf16.msra.mxu0 0
      %4791 = vmatpush.bf16.msra.mxu0 0
      %4792 = vmatpush.bf16.msra.mxu0 0
      %4793 = vmatpush.bf16.msra.mxu0 %v4734
      %4794 = vmatpush.bf16.msra.mxu0 %v4733
      %4795 = vmatmul.bf16.gmra.mxu0 %v4785
      %v4796 = vpop.f32.mrf.mxu0
      %v4797 = vadd.f32 0.0, %v4796
      %v4798 = vpop.f32.mrf.mxu0
      %4799 = vdwg.mxu0
      %v4800 = vadd.f32 %v4779, %v4797
      %v4801 = vsub.f32 0.0, %v4800
      %v4802 = vmul.f32 %v4801, 1.442695
      %v4803 = vpow.pop %v4802
      %v4804 = vadd.f32 %v4803, 1.0
      %v4805 = vrcp.pop %v4804
      %v4806 = vtanh.pop %v4800
      %v4807 = vmul.f32 %v4805, %v4766
      %4809 = vrot.lane.b32.xlu0 %v4806, 32
      %v4810 = vpop.permute.xlu0 %4809
      %v4812 = vmul.f32 %v4805, %v4810
      %4814 = vrot.lane.b32.xlu0 %v4812, 32
      %v4815 = vpop.permute.xlu0 %4814
      %v4817 = vadd.f32 %v4807, %v4815
      %v4818 = vtanh.pop %v4817
      %4820 = vrot.lane.b32.xlu0 %v4818, 32
      %v4821 = vpop.permute.xlu0 %4820
      %v4823 = vmul.f32 %v4805, %v4821
      %4825 = vrot.lane.b32.xlu0 %v4823, 64
      %v4826 = vpop.permute.xlu0 %4825
      %s4828 = scalar_lea.vmem [#allocation11], 4
      %4829 = vst.msk [vmem:[%s4828] sm:$0xf] %vm637, %v4826
      %s4830 = scalar_lea.vmem [#allocation10], 8
      %v4831 = vld [vmem:[%s4830] sm:$0xf]
      %v4832 = vpack.c.bf16 %v4823, %v4823
      %4834 = vrot.lane.b32.xlu0 %v4832, 64
      %v4835 = vpop.permute.xlu0 %4834
      %v4837 = vsel %vm592, %v4835, 0
      %4839 = vmatpush.bf16.msra.mxu0 0
      %4840 = vmatpush.bf16.msra.mxu0 0
      %4841 = vmatpush.bf16.msra.mxu0 0
      %4842 = vmatpush.bf16.msra.mxu0 0
      %4843 = vmatpush.bf16.msra.mxu0 0
      %4844 = vmatpush.bf16.msra.mxu0 0
      %4845 = vmatpush.bf16.msra.mxu0 %v4734
      %4846 = vmatpush.bf16.msra.mxu0 %v4733
      %4847 = vmatmul.bf16.gmra.mxu0 %v4837
      %v4848 = vpop.f32.mrf.mxu0
      %v4849 = vadd.f32 0.0, %v4848
      %v4850 = vpop.f32.mrf.mxu0
      %4851 = vdwg.mxu0
      %v4852 = vadd.f32 %v4831, %v4849
      %v4853 = vsub.f32 0.0, %v4852
      %v4854 = vmul.f32 %v4853, 1.442695
      %v4855 = vpow.pop %v4854
      %v4856 = vadd.f32 %v4855, 1.0
      %v4857 = vrcp.pop %v4856
      %v4858 = vtanh.pop %v4852
      %v4859 = vmul.f32 %v4857, %v4817
      %4861 = vrot.lane.b32.xlu0 %v4858, 32
      %v4862 = vpop.permute.xlu0 %4861
      %v4864 = vmul.f32 %v4857, %v4862
      %4866 = vrot.lane.b32.xlu0 %v4864, 32
      %v4867 = vpop.permute.xlu0 %4866
      %v4869 = vadd.f32 %v4859, %v4867
      %v4870 = vtanh.pop %v4869
      %4872 = vrot.lane.b32.xlu0 %v4870, 32
      %v4873 = vpop.permute.xlu0 %4872
      %v4875 = vmul.f32 %v4857, %v4873
      %4877 = vrot.lane.b32.xlu0 %v4875, 64
      %v4878 = vpop.permute.xlu0 %4877
      %s4880 = scalar_lea.vmem [#allocation11], 8
      %4881 = vst.msk [vmem:[%s4880] sm:$0xf] %vm637, %v4878
      %s4882 = scalar_lea.vmem [#allocation10], 12
      %v4883 = vld [vmem:[%s4882] sm:$0xf]
      %v4884 = vpack.c.bf16 %v4875, %v4875
      %4886 = vrot.lane.b32.xlu0 %v4884, 64
      %v4887 = vpop.permute.xlu0 %4886
      %v4889 = vsel %vm592, %v4887, 0
      %4891 = vmatpush.bf16.msra.mxu0 0
      %4892 = vmatpush.bf16.msra.mxu0 0
      %4893 = vmatpush.bf16.msra.mxu0 0
      %4894 = vmatpush.bf16.msra.mxu0 0
      %4895 = vmatpush.bf16.msra.mxu0 0
      %4896 = vmatpush.bf16.msra.mxu0 0
      %4897 = vmatpush.bf16.msra.mxu0 %v4734
      %4898 = vmatpush.bf16.msra.mxu0 %v4733
      %4899 = vmatmul.bf16.gmra.mxu0 %v4889
      %v4900 = vpop.f32.mrf.mxu0
      %v4901 = vadd.f32 0.0, %v4900
      %v4902 = vpop.f32.mrf.mxu0
      %4903 = vdwg.mxu0
      %v4904 = vadd.f32 %v4883, %v4901
      %v4905 = vsub.f32 0.0, %v4904
      %v4906 = vmul.f32 %v4905, 1.442695
      %v4907 = vpow.pop %v4906
      %v4908 = vadd.f32 %v4907, 1.0
      %v4909 = vrcp.pop %v4908
      %v4910 = vtanh.pop %v4904
      %v4911 = vmul.f32 %v4909, %v4869
      %4913 = vrot.lane.b32.xlu0 %v4910, 32
      %v4914 = vpop.permute.xlu0 %4913
      %v4916 = vmul.f32 %v4909, %v4914
      %4918 = vrot.lane.b32.xlu0 %v4916, 32
      %v4919 = vpop.permute.xlu0 %4918
      %v4921 = vadd.f32 %v4911, %v4919
      %v4922 = vtanh.pop %v4921
      %4924 = vrot.lane.b32.xlu0 %v4922, 32
      %v4925 = vpop.permute.xlu0 %4924
      %v4927 = vmul.f32 %v4909, %v4925
      %4929 = vrot.lane.b32.xlu0 %v4927, 64
      %v4930 = vpop.permute.xlu0 %4929
      %s4932 = scalar_lea.vmem [#allocation11], 12
      %4933 = vst.msk [vmem:[%s4932] sm:$0xf] %vm637, %v4930
      %s4934 = scalar_lea.vmem [#allocation10], 16
      %v4935 = vld [vmem:[%s4934] sm:$0xf]
      %v4936 = vpack.c.bf16 %v4927, %v4927
      %4938 = vrot.lane.b32.xlu0 %v4936, 64
      %v4939 = vpop.permute.xlu0 %4938
      %v4941 = vsel %vm592, %v4939, 0
      %4943 = vmatpush.bf16.msra.mxu0 0
      %4944 = vmatpush.bf16.msra.mxu0 0
      %4945 = vmatpush.bf16.msra.mxu0 0
      %4946 = vmatpush.bf16.msra.mxu0 0
      %4947 = vmatpush.bf16.msra.mxu0 0
      %4948 = vmatpush.bf16.msra.mxu0 0
      %4949 = vmatpush.bf16.msra.mxu0 %v4734
      %4950 = vmatpush.bf16.msra.mxu0 %v4733
      %4951 = vmatmul.bf16.gmra.mxu0 %v4941
      %v4952 = vpop.f32.mrf.mxu0
      %v4953 = vadd.f32 0.0, %v4952
      %v4954 = vpop.f32.mrf.mxu0
      %4955 = vdwg.mxu0
      %v4956 = vadd.f32 %v4935, %v4953
      %v4957 = vsub.f32 0.0, %v4956
      %v4958 = vmul.f32 %v4957, 1.442695
      %v4959 = vpow.pop %v4958
      %v4960 = vadd.f32 %v4959, 1.0
      %v4961 = vrcp.pop %v4960
      %v4962 = vtanh.pop %v4956
      %v4963 = vmul.f32 %v4961, %v4921
      %4965 = vrot.lane.b32.xlu0 %v4962, 32
      %v4966 = vpop.permute.xlu0 %4965
      %v4968 = vmul.f32 %v4961, %v4966
      %4970 = vrot.lane.b32.xlu0 %v4968, 32
      %v4971 = vpop.permute.xlu0 %4970
      %v4973 = vadd.f32 %v4963, %v4971
      %v4974 = vtanh.pop %v4973
      %4976 = vrot.lane.b32.xlu0 %v4974, 32
      %v4977 = vpop.permute.xlu0 %4976
      %v4979 = vmul.f32 %v4961, %v4977
      %4981 = vrot.lane.b32.xlu0 %v4979, 64
      %v4982 = vpop.permute.xlu0 %4981
      %s4984 = scalar_lea.vmem [#allocation11], 16
      %4985 = vst.msk [vmem:[%s4984] sm:$0xf] %vm637, %v4982
      %s4986 = scalar_lea.vmem [#allocation10], 20
      %v4987 = vld [vmem:[%s4986] sm:$0xf]
      %v4988 = vpack.c.bf16 %v4979, %v4979
      %4990 = vrot.lane.b32.xlu0 %v4988, 64
      %v4991 = vpop.permute.xlu0 %4990
      %v4993 = vsel %vm592, %v4991, 0
      %4995 = vmatpush.bf16.msra.mxu0 0
      %4996 = vmatpush.bf16.msra.mxu0 0
      %4997 = vmatpush.bf16.msra.mxu0 0
      %4998 = vmatpush.bf16.msra.mxu0 0
      %4999 = vmatpush.bf16.msra.mxu0 0
      %5000 = vmatpush.bf16.msra.mxu0 0
      %5001 = vmatpush.bf16.msra.mxu0 %v4734
      %5002 = vmatpush.bf16.msra.mxu0 %v4733
      %5003 = vmatmul.bf16.gmra.mxu0 %v4993
      %v5004 = vpop.f32.mrf.mxu0
      %v5005 = vadd.f32 0.0, %v5004
      %v5006 = vpop.f32.mrf.mxu0
      %5007 = vdwg.mxu0
      %v5008 = vadd.f32 %v4987, %v5005
      %v5009 = vsub.f32 0.0, %v5008
      %v5010 = vmul.f32 %v5009, 1.442695
      %v5011 = vpow.pop %v5010
      %v5012 = vadd.f32 %v5011, 1.0
      %v5013 = vrcp.pop %v5012
      %v5014 = vtanh.pop %v5008
      %v5015 = vmul.f32 %v5013, %v4973
      %5017 = vrot.lane.b32.xlu0 %v5014, 32
      %v5018 = vpop.permute.xlu0 %5017
      %v5020 = vmul.f32 %v5013, %v5018
      %5022 = vrot.lane.b32.xlu0 %v5020, 32
      %v5023 = vpop.permute.xlu0 %5022
      %v5025 = vadd.f32 %v5015, %v5023
      %v5026 = vtanh.pop %v5025
      %5028 = vrot.lane.b32.xlu0 %v5026, 32
      %v5029 = vpop.permute.xlu0 %5028
      %v5031 = vmul.f32 %v5013, %v5029
      %5033 = vrot.lane.b32.xlu0 %v5031, 64
      %v5034 = vpop.permute.xlu0 %5033
      %s5036 = scalar_lea.vmem [#allocation11], 20
      %5037 = vst.msk [vmem:[%s5036] sm:$0xf] %vm637, %v5034
      %s5038 = scalar_lea.vmem [#allocation10], 24
      %v5039 = vld [vmem:[%s5038] sm:$0xf]
      %v5040 = vpack.c.bf16 %v5031, %v5031
      %5042 = vrot.lane.b32.xlu0 %v5040, 64
      %v5043 = vpop.permute.xlu0 %5042
      %v5045 = vsel %vm592, %v5043, 0
      %5047 = vmatpush.bf16.msra.mxu0 0
      %5048 = vmatpush.bf16.msra.mxu0 0
      %5049 = vmatpush.bf16.msra.mxu0 0
      %5050 = vmatpush.bf16.msra.mxu0 0
      %5051 = vmatpush.bf16.msra.mxu0 0
      %5052 = vmatpush.bf16.msra.mxu0 0
      %5053 = vmatpush.bf16.msra.mxu0 %v4734
      %5054 = vmatpush.bf16.msra.mxu0 %v4733
      %5055 = vmatmul.bf16.gmra.mxu0 %v5045
      %v5056 = vpop.f32.mrf.mxu0
      %v5057 = vadd.f32 0.0, %v5056
      %v5058 = vpop.f32.mrf.mxu0
      %5059 = vdwg.mxu0
      %v5060 = vadd.f32 %v5039, %v5057
      %v5061 = vsub.f32 0.0, %v5060
      %v5062 = vmul.f32 %v5061, 1.442695
      %v5063 = vpow.pop %v5062
      %v5064 = vadd.f32 %v5063, 1.0
      %v5065 = vrcp.pop %v5064
      %v5066 = vtanh.pop %v5060
      %v5067 = vmul.f32 %v5065, %v5025
      %5069 = vrot.lane.b32.xlu0 %v5066, 32
      %v5070 = vpop.permute.xlu0 %5069
      %v5072 = vmul.f32 %v5065, %v5070
      %5074 = vrot.lane.b32.xlu0 %v5072, 32
      %v5075 = vpop.permute.xlu0 %5074
      %v5077 = vadd.f32 %v5067, %v5075
      %v5078 = vtanh.pop %v5077
      %5080 = vrot.lane.b32.xlu0 %v5078, 32
      %v5081 = vpop.permute.xlu0 %5080
      %v5083 = vmul.f32 %v5065, %v5081
      %5085 = vrot.lane.b32.xlu0 %v5083, 64
      %v5086 = vpop.permute.xlu0 %5085
      %s5088 = scalar_lea.vmem [#allocation11], 24
      %5089 = vst.msk [vmem:[%s5088] sm:$0xf] %vm637, %v5086
      %s5090 = scalar_lea.vmem [#allocation10], 28
      %v5091 = vld [vmem:[%s5090] sm:$0xf]
      %v5092 = vpack.c.bf16 %v5083, %v5083
      %5094 = vrot.lane.b32.xlu0 %v5092, 64
      %v5095 = vpop.permute.xlu0 %5094
      %v5097 = vsel %vm592, %v5095, 0
      %5099 = vmatpush.bf16.msra.mxu0 0
      %5100 = vmatpush.bf16.msra.mxu0 0
      %5101 = vmatpush.bf16.msra.mxu0 0
      %5102 = vmatpush.bf16.msra.mxu0 0
      %5103 = vmatpush.bf16.msra.mxu0 0
      %5104 = vmatpush.bf16.msra.mxu0 0
      %5105 = vmatpush.bf16.msra.mxu0 %v4734
      %5106 = vmatpush.bf16.msra.mxu0 %v4733
      %5107 = vmatmul.bf16.gmra.mxu0 %v5097
      %v5108 = vpop.f32.mrf.mxu0
      %v5109 = vadd.f32 0.0, %v5108
      %v5110 = vpop.f32.mrf.mxu0
      %5111 = vdwg.mxu0
      %v5112 = vadd.f32 %v5091, %v5109
      %v5113 = vsub.f32 0.0, %v5112
      %v5114 = vmul.f32 %v5113, 1.442695
      %v5115 = vpow.pop %v5114
      %v5116 = vadd.f32 %v5115, 1.0
      %v5117 = vrcp.pop %v5116
      %v5118 = vtanh.pop %v5112
      %v5119 = vmul.f32 %v5117, %v5077
      %5121 = vrot.lane.b32.xlu0 %v5118, 32
      %v5122 = vpop.permute.xlu0 %5121
      %v5124 = vmul.f32 %v5117, %v5122
      %5126 = vrot.lane.b32.xlu0 %v5124, 32
      %v5127 = vpop.permute.xlu0 %5126
      %v5129 = vadd.f32 %v5119, %v5127
      %v5130 = vtanh.pop %v5129
      %5132 = vrot.lane.b32.xlu0 %v5130, 32
      %v5133 = vpop.permute.xlu0 %5132
      %v5135 = vmul.f32 %v5117, %v5133
      %5137 = vrot.lane.b32.xlu0 %v5135, 64
      %v5138 = vpop.permute.xlu0 %5137
      %s5140 = scalar_lea.vmem [#allocation11], 28
      %5141 = vst.msk [vmem:[%s5140] sm:$0xf] %vm637, %v5138
      %s5142 = scalar_lea.vmem [#allocation10], 32
      %v5143 = vld [vmem:[%s5142] sm:$0xf]
      %v5144 = vpack.c.bf16 %v5135, %v5135
      %5146 = vrot.lane.b32.xlu0 %v5144, 64
      %v5147 = vpop.permute.xlu0 %5146
      %v5149 = vsel %vm592, %v5147, 0
      %5151 = vmatpush.bf16.msra.mxu0 0
      %5152 = vmatpush.bf16.msra.mxu0 0
      %5153 = vmatpush.bf16.msra.mxu0 0
      %5154 = vmatpush.bf16.msra.mxu0 0
      %5155 = vmatpush.bf16.msra.mxu0 0
      %5156 = vmatpush.bf16.msra.mxu0 0
      %5157 = vmatpush.bf16.msra.mxu0 %v4734
      %5158 = vmatpush.bf16.msra.mxu0 %v4733
      %5159 = vmatmul.bf16.gmra.mxu0 %v5149
      %v5160 = vpop.f32.mrf.mxu0
      %v5161 = vadd.f32 0.0, %v5160
      %v5162 = vpop.f32.mrf.mxu0
      %5163 = vdwg.mxu0
      %v5164 = vadd.f32 %v5143, %v5161
      %v5165 = vsub.f32 0.0, %v5164
      %v5166 = vmul.f32 %v5165, 1.442695
      %v5167 = vpow.pop %v5166
      %v5168 = vadd.f32 %v5167, 1.0
      %v5169 = vrcp.pop %v5168
      %v5170 = vtanh.pop %v5164
      %v5171 = vmul.f32 %v5169, %v5129
      %5173 = vrot.lane.b32.xlu0 %v5170, 32
      %v5174 = vpop.permute.xlu0 %5173
      %v5176 = vmul.f32 %v5169, %v5174
      %5178 = vrot.lane.b32.xlu0 %v5176, 32
      %v5179 = vpop.permute.xlu0 %5178
      %v5181 = vadd.f32 %v5171, %v5179
      %v5182 = vtanh.pop %v5181
      %5184 = vrot.lane.b32.xlu0 %v5182, 32
      %v5185 = vpop.permute.xlu0 %5184
      %v5187 = vmul.f32 %v5169, %v5185
      %5189 = vrot.lane.b32.xlu0 %v5187, 64
      %v5190 = vpop.permute.xlu0 %5189
      %s5192 = scalar_lea.vmem [#allocation11], 32
      %5193 = vst.msk [vmem:[%s5192] sm:$0xf] %vm637, %v5190
      %s5194 = scalar_lea.vmem [#allocation10], 36
      %v5195 = vld [vmem:[%s5194] sm:$0xf]
      %v5196 = vpack.c.bf16 %v5187, %v5187
      %5198 = vrot.lane.b32.xlu0 %v5196, 64
      %v5199 = vpop.permute.xlu0 %5198
      %v5201 = vsel %vm592, %v5199, 0
      %5203 = vmatpush.bf16.msra.mxu0 0
      %5204 = vmatpush.bf16.msra.mxu0 0
      %5205 = vmatpush.bf16.msra.mxu0 0
      %5206 = vmatpush.bf16.msra.mxu0 0
      %5207 = vmatpush.bf16.msra.mxu0 0
      %5208 = vmatpush.bf16.msra.mxu0 0
      %5209 = vmatpush.bf16.msra.mxu0 %v4734
      %5210 = vmatpush.bf16.msra.mxu0 %v4733
      %5211 = vmatmul.bf16.gmra.mxu0 %v5201
      %v5212 = vpop.f32.mrf.mxu0
      %v5213 = vadd.f32 0.0, %v5212
      %v5214 = vpop.f32.mrf.mxu0
      %5215 = vdwg.mxu0
      %v5216 = vadd.f32 %v5195, %v5213
      %v5217 = vsub.f32 0.0, %v5216
      %v5218 = vmul.f32 %v5217, 1.442695
      %v5219 = vpow.pop %v5218
      %v5220 = vadd.f32 %v5219, 1.0
      %v5221 = vrcp.pop %v5220
      %v5222 = vtanh.pop %v5216
      %v5223 = vmul.f32 %v5221, %v5181
      %5225 = vrot.lane.b32.xlu0 %v5222, 32
      %v5226 = vpop.permute.xlu0 %5225
      %v5228 = vmul.f32 %v5221, %v5226
      %5230 = vrot.lane.b32.xlu0 %v5228, 32
      %v5231 = vpop.permute.xlu0 %5230
      %v5233 = vadd.f32 %v5223, %v5231
      %v5234 = vtanh.pop %v5233
      %5236 = vrot.lane.b32.xlu0 %v5234, 32
      %v5237 = vpop.permute.xlu0 %5236
      %v5239 = vmul.f32 %v5221, %v5237
      %5241 = vrot.lane.b32.xlu0 %v5239, 64
      %v5242 = vpop.permute.xlu0 %5241
      %s5244 = scalar_lea.vmem [#allocation11], 36
      %5245 = vst.msk [vmem:[%s5244] sm:$0xf] %vm637, %v5242
      %s5246 = scalar_lea.vmem [#allocation10], 40
      %v5247 = vld [vmem:[%s5246] sm:$0xf]
      %v5248 = vpack.c.bf16 %v5239, %v5239
      %5250 = vrot.lane.b32.xlu0 %v5248, 64
      %v5251 = vpop.permute.xlu0 %5250
      %v5253 = vsel %vm592, %v5251, 0
      %5255 = vmatpush.bf16.msra.mxu0 0
      %5256 = vmatpush.bf16.msra.mxu0 0
      %5257 = vmatpush.bf16.msra.mxu0 0
      %5258 = vmatpush.bf16.msra.mxu0 0
      %5259 = vmatpush.bf16.msra.mxu0 0
      %5260 = vmatpush.bf16.msra.mxu0 0
      %5261 = vmatpush.bf16.msra.mxu0 %v4734
      %5262 = vmatpush.bf16.msra.mxu0 %v4733
      %5263 = vmatmul.bf16.gmra.mxu0 %v5253
      %v5264 = vpop.f32.mrf.mxu0
      %v5265 = vadd.f32 0.0, %v5264
      %v5266 = vpop.f32.mrf.mxu0
      %5267 = vdwg.mxu0
      %v5268 = vadd.f32 %v5247, %v5265
      %v5269 = vsub.f32 0.0, %v5268
      %v5270 = vmul.f32 %v5269, 1.442695
      %v5271 = vpow.pop %v5270
      %v5272 = vadd.f32 %v5271, 1.0
      %v5273 = vrcp.pop %v5272
      %v5274 = vtanh.pop %v5268
      %v5275 = vmul.f32 %v5273, %v5233
      %5277 = vrot.lane.b32.xlu0 %v5274, 32
      %v5278 = vpop.permute.xlu0 %5277
      %v5280 = vmul.f32 %v5273, %v5278
      %5282 = vrot.lane.b32.xlu0 %v5280, 32
      %v5283 = vpop.permute.xlu0 %5282
      %v5285 = vadd.f32 %v5275, %v5283
      %v5286 = vtanh.pop %v5285
      %5288 = vrot.lane.b32.xlu0 %v5286, 32
      %v5289 = vpop.permute.xlu0 %5288
      %v5291 = vmul.f32 %v5273, %v5289
      %5293 = vrot.lane.b32.xlu0 %v5291, 64
      %v5294 = vpop.permute.xlu0 %5293
      %s5296 = scalar_lea.vmem [#allocation11], 40
      %5297 = vst.msk [vmem:[%s5296] sm:$0xf] %vm637, %v5294
      %s5298 = scalar_lea.vmem [#allocation10], 44
      %v5299 = vld [vmem:[%s5298] sm:$0xf]
      %v5300 = vpack.c.bf16 %v5291, %v5291
      %5302 = vrot.lane.b32.xlu0 %v5300, 64
      %v5303 = vpop.permute.xlu0 %5302
      %v5305 = vsel %vm592, %v5303, 0
      %5307 = vmatpush.bf16.msra.mxu0 0
      %5308 = vmatpush.bf16.msra.mxu0 0
      %5309 = vmatpush.bf16.msra.mxu0 0
      %5310 = vmatpush.bf16.msra.mxu0 0
      %5311 = vmatpush.bf16.msra.mxu0 0
      %5312 = vmatpush.bf16.msra.mxu0 0
      %5313 = vmatpush.bf16.msra.mxu0 %v4734
      %5314 = vmatpush.bf16.msra.mxu0 %v4733
      %5315 = vmatmul.bf16.gmra.mxu0 %v5305
      %v5316 = vpop.f32.mrf.mxu0
      %v5317 = vadd.f32 0.0, %v5316
      %v5318 = vpop.f32.mrf.mxu0
      %5319 = vdwg.mxu0
      %v5320 = vadd.f32 %v5299, %v5317
      %v5321 = vsub.f32 0.0, %v5320
      %v5322 = vmul.f32 %v5321, 1.442695
      %v5323 = vpow.pop %v5322
      %v5324 = vadd.f32 %v5323, 1.0
      %v5325 = vrcp.pop %v5324
      %v5326 = vtanh.pop %v5320
      %v5327 = vmul.f32 %v5325, %v5285
      %5329 = vrot.lane.b32.xlu0 %v5326, 32
      %v5330 = vpop.permute.xlu0 %5329
      %v5332 = vmul.f32 %v5325, %v5330
      %5334 = vrot.lane.b32.xlu0 %v5332, 32
      %v5335 = vpop.permute.xlu0 %5334
      %v5337 = vadd.f32 %v5327, %v5335
      %v5338 = vtanh.pop %v5337
      %5340 = vrot.lane.b32.xlu0 %v5338, 32
      %v5341 = vpop.permute.xlu0 %5340
      %v5343 = vmul.f32 %v5325, %v5341
      %5345 = vrot.lane.b32.xlu0 %v5343, 64
      %v5346 = vpop.permute.xlu0 %5345
      %s5348 = scalar_lea.vmem [#allocation11], 44
      %5349 = vst.msk [vmem:[%s5348] sm:$0xf] %vm637, %v5346
      %s5350 = scalar_lea.vmem [#allocation10], 48
      %v5351 = vld [vmem:[%s5350] sm:$0xf]
      %v5352 = vpack.c.bf16 %v5343, %v5343
      %5354 = vrot.lane.b32.xlu0 %v5352, 64
      %v5355 = vpop.permute.xlu0 %5354
      %v5357 = vsel %vm592, %v5355, 0
      %5359 = vmatpush.bf16.msra.mxu0 0
      %5360 = vmatpush.bf16.msra.mxu0 0
      %5361 = vmatpush.bf16.msra.mxu0 0
      %5362 = vmatpush.bf16.msra.mxu0 0
      %5363 = vmatpush.bf16.msra.mxu0 0
      %5364 = vmatpush.bf16.msra.mxu0 0
      %5365 = vmatpush.bf16.msra.mxu0 %v4734
      %5366 = vmatpush.bf16.msra.mxu0 %v4733
      %5367 = vmatmul.bf16.gmra.mxu0 %v5357
      %v5368 = vpop.f32.mrf.mxu0
      %v5369 = vadd.f32 0.0, %v5368
      %v5370 = vpop.f32.mrf.mxu0
      %5371 = vdwg.mxu0
      %v5372 = vadd.f32 %v5351, %v5369
      %v5373 = vsub.f32 0.0, %v5372
      %v5374 = vmul.f32 %v5373, 1.442695
      %v5375 = vpow.pop %v5374
      %v5376 = vadd.f32 %v5375, 1.0
      %v5377 = vrcp.pop %v5376
      %v5378 = vtanh.pop %v5372
      %v5379 = vmul.f32 %v5377, %v5337
      %5381 = vrot.lane.b32.xlu0 %v5378, 32
      %v5382 = vpop.permute.xlu0 %5381
      %v5384 = vmul.f32 %v5377, %v5382
      %5386 = vrot.lane.b32.xlu0 %v5384, 32
      %v5387 = vpop.permute.xlu0 %5386
      %v5389 = vadd.f32 %v5379, %v5387
      %v5390 = vtanh.pop %v5389
      %5392 = vrot.lane.b32.xlu0 %v5390, 32
      %v5393 = vpop.permute.xlu0 %5392
      %v5395 = vmul.f32 %v5377, %v5393
      %5397 = vrot.lane.b32.xlu0 %v5395, 64
      %v5398 = vpop.permute.xlu0 %5397
      %s5400 = scalar_lea.vmem [#allocation11], 48
      %5401 = vst.msk [vmem:[%s5400] sm:$0xf] %vm637, %v5398
      %s5402 = scalar_lea.vmem [#allocation10], 52
      %v5403 = vld [vmem:[%s5402] sm:$0xf]
      %v5404 = vpack.c.bf16 %v5395, %v5395
      %5406 = vrot.lane.b32.xlu0 %v5404, 64
      %v5407 = vpop.permute.xlu0 %5406
      %v5409 = vsel %vm592, %v5407, 0
      %5411 = vmatpush.bf16.msra.mxu0 0
      %5412 = vmatpush.bf16.msra.mxu0 0
      %5413 = vmatpush.bf16.msra.mxu0 0
      %5414 = vmatpush.bf16.msra.mxu0 0
      %5415 = vmatpush.bf16.msra.mxu0 0
      %5416 = vmatpush.bf16.msra.mxu0 0
      %5417 = vmatpush.bf16.msra.mxu0 %v4734
      %5418 = vmatpush.bf16.msra.mxu0 %v4733
      %5419 = vmatmul.bf16.gmra.mxu0 %v5409
      %v5420 = vpop.f32.mrf.mxu0
      %v5421 = vadd.f32 0.0, %v5420
      %v5422 = vpop.f32.mrf.mxu0
      %5423 = vdwg.mxu0
      %v5424 = vadd.f32 %v5403, %v5421
      %v5425 = vsub.f32 0.0, %v5424
      %v5426 = vmul.f32 %v5425, 1.442695
      %v5427 = vpow.pop %v5426
      %v5428 = vadd.f32 %v5427, 1.0
      %v5429 = vrcp.pop %v5428
      %v5430 = vtanh.pop %v5424
      %v5431 = vmul.f32 %v5429, %v5389
      %5433 = vrot.lane.b32.xlu0 %v5430, 32
      %v5434 = vpop.permute.xlu0 %5433
      %v5436 = vmul.f32 %v5429, %v5434
      %5438 = vrot.lane.b32.xlu0 %v5436, 32
      %v5439 = vpop.permute.xlu0 %5438
      %v5441 = vadd.f32 %v5431, %v5439
      %v5442 = vtanh.pop %v5441
      %5444 = vrot.lane.b32.xlu0 %v5442, 32
      %v5445 = vpop.permute.xlu0 %5444
      %v5447 = vmul.f32 %v5429, %v5445
      %5449 = vrot.lane.b32.xlu0 %v5447, 64
      %v5450 = vpop.permute.xlu0 %5449
      %s5452 = scalar_lea.vmem [#allocation11], 52
      %5453 = vst.msk [vmem:[%s5452] sm:$0xf] %vm637, %v5450
      %s5454 = scalar_lea.vmem [#allocation10], 56
      %v5455 = vld [vmem:[%s5454] sm:$0xf]
      %v5456 = vpack.c.bf16 %v5447, %v5447
      %5458 = vrot.lane.b32.xlu0 %v5456, 64
      %v5459 = vpop.permute.xlu0 %5458
      %v5461 = vsel %vm592, %v5459, 0
      %5463 = vmatpush.bf16.msra.mxu0 0
      %5464 = vmatpush.bf16.msra.mxu0 0
      %5465 = vmatpush.bf16.msra.mxu0 0
      %5466 = vmatpush.bf16.msra.mxu0 0
      %5467 = vmatpush.bf16.msra.mxu0 0
      %5468 = vmatpush.bf16.msra.mxu0 0
      %5469 = vmatpush.bf16.msra.mxu0 %v4734
      %5470 = vmatpush.bf16.msra.mxu0 %v4733
      %5471 = vmatmul.bf16.gmra.mxu0 %v5461
      %v5472 = vpop.f32.mrf.mxu0
      %v5473 = vadd.f32 0.0, %v5472
      %v5474 = vpop.f32.mrf.mxu0
      %5475 = vdwg.mxu0
      %v5476 = vadd.f32 %v5455, %v5473
      %v5477 = vsub.f32 0.0, %v5476
      %v5478 = vmul.f32 %v5477, 1.442695
      %v5479 = vpow.pop %v5478
      %v5480 = vadd.f32 %v5479, 1.0
      %v5481 = vrcp.pop %v5480
      %v5482 = vtanh.pop %v5476
      %v5483 = vmul.f32 %v5481, %v5441
      %5485 = vrot.lane.b32.xlu0 %v5482, 32
      %v5486 = vpop.permute.xlu0 %5485
      %v5488 = vmul.f32 %v5481, %v5486
      %5490 = vrot.lane.b32.xlu0 %v5488, 32
      %v5491 = vpop.permute.xlu0 %5490
      %v5493 = vadd.f32 %v5483, %v5491
      %v5494 = vtanh.pop %v5493
      %5496 = vrot.lane.b32.xlu0 %v5494, 32
      %v5497 = vpop.permute.xlu0 %5496
      %v5499 = vmul.f32 %v5481, %v5497
      %5501 = vrot.lane.b32.xlu0 %v5499, 64
      %v5502 = vpop.permute.xlu0 %5501
      %s5504 = scalar_lea.vmem [#allocation11], 56
      %5505 = vst.msk [vmem:[%s5504] sm:$0xf] %vm637, %v5502
      %s5506 = scalar_lea.vmem [#allocation10], 60
      %v5507 = vld [vmem:[%s5506] sm:$0xf]
      %v5508 = vpack.c.bf16 %v5499, %v5499
      %5510 = vrot.lane.b32.xlu0 %v5508, 64
      %v5511 = vpop.permute.xlu0 %5510
      %v5513 = vsel %vm592, %v5511, 0
      %5515 = vmatpush.bf16.msra.mxu0 0
      %5516 = vmatpush.bf16.msra.mxu0 0
      %5517 = vmatpush.bf16.msra.mxu0 0
      %5518 = vmatpush.bf16.msra.mxu0 0
      %5519 = vmatpush.bf16.msra.mxu0 0
      %5520 = vmatpush.bf16.msra.mxu0 0
      %5521 = vmatpush.bf16.msra.mxu0 %v4734
      %5522 = vmatpush.bf16.msra.mxu0 %v4733
      %5523 = vmatmul.bf16.gmra.mxu0 %v5513
      %v5524 = vpop.f32.mrf.mxu0
      %v5525 = vadd.f32 0.0, %v5524
      %v5526 = vpop.f32.mrf.mxu0
      %5527 = vdwg.mxu0
      %v5528 = vadd.f32 %v5507, %v5525
      %v5529 = vsub.f32 0.0, %v5528
      %v5530 = vmul.f32 %v5529, 1.442695
      %v5531 = vpow.pop %v5530
      %v5532 = vadd.f32 %v5531, 1.0
      %v5533 = vrcp.pop %v5532
      %v5534 = vtanh.pop %v5528
      %v5535 = vmul.f32 %v5533, %v5493
      %5537 = vrot.lane.b32.xlu0 %v5534, 32
      %v5538 = vpop.permute.xlu0 %5537
      %v5540 = vmul.f32 %v5533, %v5538
      %5542 = vrot.lane.b32.xlu0 %v5540, 32
      %v5543 = vpop.permute.xlu0 %5542
      %v5545 = vadd.f32 %v5535, %v5543
      %v5546 = vtanh.pop %v5545
      %5548 = vrot.lane.b32.xlu0 %v5546, 32
      %v5549 = vpop.permute.xlu0 %5548
      %v5551 = vmul.f32 %v5533, %v5549
      %5553 = vrot.lane.b32.xlu0 %v5551, 64
      %v5554 = vpop.permute.xlu0 %5553
      %s5556 = scalar_lea.vmem [#allocation11], 60
      %5557 = vst.msk [vmem:[%s5556] sm:$0xf] %vm637, %v5554
      %v5558 = vld [vmem:[#allocation11] sm:$0xff]
      %v5559 = vld [vmem:[#allocation11 + $0x8] sm:$0xff]
      %v5560 = vld [vmem:[#allocation11 + $0x10] sm:$0xff]
      %v5561 = vld [vmem:[#allocation11 + $0x18] sm:$0xff]
      %v5562 = vld [vmem:[#allocation11 + $0x20] sm:$0xff]
      %v5563 = vld [vmem:[#allocation11 + $0x28] sm:$0xff]
      %v5564 = vld [vmem:[#allocation11 + $0x30] sm:$0xff]
      %v5565 = vld [vmem:[#allocation11 + $0x38] sm:$0xff]
      %v5566 = vmax.f32 %v5558, 0.0
      %v5567 = vmax.f32 %v5559, 0.0
      %v5568 = vmax.f32 %v5560, 0.0
      %v5569 = vmax.f32 %v5561, 0.0
      %v5570 = vmax.f32 %v5562, 0.0
      %v5571 = vmax.f32 %v5563, 0.0
      %v5572 = vmax.f32 %v5564, 0.0
      %v5573 = vmax.f32 %v5565, 0.0
      %v5574 = vld [vmem:[%s13] sm:$0xff]
      %v5575 = vld [vmem:[%s13 + $0x8] sm:$0xff]
      %v5576 = vld [vmem:[%s13 + $0x10] sm:$0xff]
      %v5577 = vld [vmem:[%s13 + $0x18] sm:$0xff]
      %v5578 = vpack.c.bf16 %v5567, %v5566
      %v5579 = vpack.c.bf16 %v5569, %v5568
      %v5580 = vpack.c.bf16 %v5571, %v5570
      %v5581 = vpack.c.bf16 %v5573, %v5572
      %v5582 = vpack.c.bf16 %v5575, %v5574
      %v5583 = vpack.c.bf16 %v5577, %v5576
      %v5585 = vperm.slane %v521, 0
      %5586 = vrot.lane.b32.xlu0 %v5585, 96
      %v5587 = vpop.permute.xlu0 %5586
      %v5590 = vsel %vm592, %v5578, 0
      %v5593 = vsel %vm592, %v5579, 0
      %v5596 = vsel %vm592, %v5580, 0
      %v5599 = vsel %vm592, %v5581, 0
      %5601 = vmatpush.bf16.msra.mxu0 0
      %5602 = vmatpush.bf16.msra.mxu0 0
      %5603 = vmatpush.bf16.msra.mxu0 0
      %5604 = vmatpush.bf16.msra.mxu0 0
      %5605 = vmatpush.bf16.msra.mxu0 0
      %5606 = vmatpush.bf16.msra.mxu0 0
      %5607 = vmatpush.bf16.msra.mxu0 %v5583
      %5608 = vmatpush.bf16.msra.mxu0 %v5582
      %5609 = vmatmul.bf16.gmra.mxu0 %v5590
      %v5610 = vpop.f32.mrf.mxu0
      %v5611 = vadd.f32 %v5587, %v5610
      %v5612 = vpop.f32.mrf.mxu0
      %v5613 = vadd.f32 %v5587, %v5612
      %5614 = vmatmul.bf16.gmra.mxu0 %v5593
      %v5615 = vpop.f32.mrf.mxu0
      %v5616 = vadd.f32 %v5587, %v5615
      %v5617 = vpop.f32.mrf.mxu0
      %v5618 = vadd.f32 %v5587, %v5617
      %5619 = vmatmul.bf16.gmra.mxu0 %v5596
      %v5620 = vpop.f32.mrf.mxu0
      %v5621 = vadd.f32 %v5587, %v5620
      %v5622 = vpop.f32.mrf.mxu0
      %v5623 = vadd.f32 %v5587, %v5622
      %5624 = vmatmul.bf16.gmra.mxu0 %v5599
      %v5625 = vpop.f32.mrf.mxu0
      %v5626 = vadd.f32 %v5587, %v5625
      %v5627 = vpop.f32.mrf.mxu0
      %v5628 = vadd.f32 %v5587, %v5627
      %5629 = vdwg.mxu0
      %5630 = vst.msk [vmem:[%s502] sm:$0xff] %vm531, %v5611
      %5631 = vst.msk [vmem:[%s502 + $0x8] sm:$0xff] %vm531, %v5613
      %5632 = vst.msk [vmem:[%s502 + $0x10] sm:$0xff] %vm531, %v5616
      %5633 = vst.msk [vmem:[%s502 + $0x18] sm:$0xff] %vm531, %v5618
      %5634 = vst.msk [vmem:[%s502 + $0x20] sm:$0xff] %vm531, %v5621
      %5635 = vst.msk [vmem:[%s502 + $0x28] sm:$0xff] %vm531, %v5623
      %5636 = vst.msk [vmem:[%s502 + $0x30] sm:$0xff] %vm531, %v5626
      %5637 = vst.msk [vmem:[%s502 + $0x38] sm:$0xff] %vm531, %v5628
      %5638 = vst.msk [vmem:[%s507] sm:$0xff] %vm592, %v3603
      %5639 = vst.msk [vmem:[%s507 + $0x8] sm:$0xff] %vm592, %v3618
      %5640 = vst.msk [vmem:[%s507 + $0x10] sm:$0xff] %vm592, %v3633
      %5641 = vst.msk [vmem:[%s507 + $0x18] sm:$0xff] %vm592, %v3648
      %5642 = vst.msk [vmem:[%s507 + $0x20] sm:$0xff] %vm592, %v3663
      %5643 = vst.msk [vmem:[%s507 + $0x28] sm:$0xff] %vm592, %v3678
      %5644 = vst.msk [vmem:[%s507 + $0x30] sm:$0xff] %vm592, %v3693
      %5645 = vst.msk [vmem:[%s507 + $0x38] sm:$0xff] %vm592, %v3708
      %p5646 = scmp.lt.s32.totalorder %s27, 1
      %s5647 = scalar_select %p5646, %s27, 1
      %s5648 = smul.addr %s5647, 8
      %s5649 = smul.addr %s5648, 8
      %s5650 = scalar_lea.vmem %s14, %s5649
      %p5651 = scmp.lt.s32.totalorder %s27, 1
      %s5652 = scalar_select %p5651, %s27, 1
      %s5653 = smul.addr %s5652, 8
      %s5654 = smul.addr %s5653, 8
      %s5655 = scalar_lea.vmem %s15, %s5654
      // Predicated region
      $region77: #{tpu_custom_call.1} parent=75 // pred_check
        %p5656 = pneg %p344
      $region78: #{tpu_custom_call.1} parent=75 // pred_check_branch
        %5658 = sbr.rel (%p5656) target = $region80
      $region79: #{tpu_custom_call.1} parent=75 // pred_region
        _
      $region80: #{tpu_custom_call.1} parent=75 // pred_fallthru
        _
      // Predicated region
      $region81: #{tpu_custom_call.1} parent=75 // pred_check
        %p5659 = pneg %p370
      $region82: #{tpu_custom_call.1} parent=75 // pred_check_branch
        %5661 = sbr.rel (%p5659) target = $region84
      $region83: #{tpu_custom_call.1} parent=75 // pred_region
        _
      $region84: #{tpu_custom_call.1} parent=75 // pred_fallthru
        _
    $region76: #{tpu_custom_call.1} parent=5 // pred_fallthru
      _
    %p5662 = scmp.le.s32.totalorder 2, %s22
    // Predicated region
    $region85: #{tpu_custom_call.1} parent=5 // pred_check
      %p5663 = pneg %p5662
    $region86: #{tpu_custom_call.1} parent=5 // pred_check_branch
      %5665 = sbr.rel (%p5663) target = $region88
    $region87: #{tpu_custom_call.1} parent=5 // pred_region
      %s5666 = ssub.s32 %s22, 2
      // Predicated region
      $region89: #{tpu_custom_call.1} parent=87 // pred_check
        %p5667 = pneg %p350
      $region90: #{tpu_custom_call.1} parent=87 // pred_check_branch
        %5669 = sbr.rel (%p5667) target = $region92
      $region91: #{tpu_custom_call.1} parent=87 // pred_region
        %p5670 = scmp.lt.s32.totalorder %s28, 1
        %s5671 = scalar_select %p5670, %s28, 1
        %s5672 = smul.addr %s5671, 8
        %s5673 = smul.addr %s5672, 8
        %s5674 = scalar_lea.vmem %s14, %s5673
      $region92: #{tpu_custom_call.1} parent=87 // pred_fallthru
        _
      // Predicated region
      $region93: #{tpu_custom_call.1} parent=87 // pred_check
        %p5675 = pneg %p376
      $region94: #{tpu_custom_call.1} parent=87 // pred_check_branch
        %5677 = sbr.rel (%p5675) target = $region96
      $region95: #{tpu_custom_call.1} parent=87 // pred_region
        %p5678 = scmp.lt.s32.totalorder %s28, 1
        %s5679 = scalar_select %p5678, %s28, 1
        %s5680 = smul.addr %s5679, 8
        %s5681 = smul.addr %s5680, 8
        %s5682 = scalar_lea.vmem %s15, %s5681
      $region96: #{tpu_custom_call.1} parent=87 // pred_fallthru
        _
    $region88: #{tpu_custom_call.1} parent=5 // pred_fallthru
      _
  $region6: #{tpu_custom_call.1} parent=0 // loop_footer
    %s26 = sadd.s32 1, %s22
  $region7: #{tpu_custom_call.1} parent=0 // loop_footer_branch
    %21 = sbr.rel target = $region3
  $region8: #{tpu_custom_call.1} parent=0 // loop_exit
    _

</llo_original>
